<compile_context>
chip_gen: v7x
topology: tpu7x:2x2x1
jax: 0.10.0
libtpu: 0.0.40
codegen_flags: <defaults>
</compile_context>

<pallas_src>
import functools

import numpy as np

import jax
import jax.numpy as jnp
from jax import lax
from jax.experimental import pallas as pl
from jax.experimental.pallas import tpu as pltpu


# ---------------------------------------------------------------------------
# Fused kernel: whole SimpleCNN forward for a block of `batch` images.
# ---------------------------------------------------------------------------
def _fused_cnn_kernel(xc_ref, b1s_ref, b1row_ref, b2s_ref, b2row_ref,
                      fc1w_ref, fc1b_ref, fc2w_ref, fc2b_ref, out_ref,
                      *, batch):
    B = batch
    dot = functools.partial(jnp.dot, preferred_element_type=jnp.float32)
    bf16 = jnp.bfloat16

    # ---- conv1 (1->16, 3x3, pad=1) + ReLU + 2x2 max-pool --------------------
    # xc_ref[0, g] is an [8B, 84] slab (rows ordered i*B + b; i = pooled-row
    # index within parity, b = image).  Groups 0/1 feed even pooled rows (qo),
    # groups 2/3 feed odd pooled rows (qe).  One [8B,84]@[84,256] matmul per
    # (group, dw); the 2x2 pool is a running max over the 4 candidates; the
    # shared bias is added once after the max.
    def conv1_pool(g0):
        acc = None
        for g in (g0, g0 + 1):                       # dh = 0, 1
            xg = xc_ref[0, g]                        # [8B, 84] bf16
            for dw in (0, 1):
                cand = dot(xg, b1s_ref[dw])          # [8B, 256] f32
                acc = cand if acc is None else jnp.maximum(acc, cand)
        return acc

    row = lax.broadcasted_iota(jnp.int32, (8 * B, 256), 0)
    qo = jnp.where(row >= 7 * B, 0.0,
                   jnp.maximum(conv1_pool(0) + b1row_ref[...], 0.0))  # bottom H-pad
    qe = jnp.where(row < B, 0.0,
                   jnp.maximum(conv1_pool(2) + b1row_ref[...], 0.0))  # top H-pad
    qo_b = qo.astype(bf16)
    qe_b = qe.astype(bf16)

    # ---- conv2 (16->32, 3x3, pad=1) + ReLU + 2x2 max-pool -------------------
    # Padded-pooled1 row (2s + t) for pooled2 row s is, per t = dh + kh, one of
    # these four B-aligned (no-relayout) slices of the parity-split planes:
    q_rows = (qe_b[:7 * B], qo_b[:7 * B], qe_b[B:], qo_b[B:])
    p2 = None
    for dh in (0, 1):
        for dw in (0, 1):
            acc = dot(q_rows[dh], b2s_ref[dw * 3 + 0])
            acc = acc + dot(q_rows[dh + 1], b2s_ref[dw * 3 + 1])
            acc = acc + dot(q_rows[dh + 2], b2s_ref[dw * 3 + 2])
            p2 = acc if p2 is None else jnp.maximum(p2, acc)
    p2 = jnp.maximum(p2 + b2row_ref[...], 0.0)       # [7B, 256] f32
    p2_b = p2.astype(bf16)

    # ---- fc1 (1568->128) + ReLU ---------------------------------------------
    # Rows h*B:(h+1)*B of p2 hold pooled2 row h for every image in the block,
    # so each partial product is a dense [B, 256] @ [256, 128] matmul.
    f1 = dot(p2_b[0:B], fc1w_ref[0])
    for h in range(1, 7):
        f1 = f1 + dot(p2_b[h * B:(h + 1) * B], fc1w_ref[h])
    f1 = jnp.maximum(f1 + fc1b_ref[...], 0.0)        # [B, 128] f32

    # ---- fc2 (128->10, zero-padded to 128 lanes for a lane-dense store) -----
    out = dot(f1.astype(bf16), fc2w_ref[...]) + fc2b_ref[...]
    out_ref[...] = out.astype(out_ref.dtype)


# ---------------------------------------------------------------------------
# One-time host-side weight re-layout (no per-forward transposes).
# ---------------------------------------------------------------------------
def _conv_band_matrices(w_oihw, w_in, w_out):
    """B[dw, kh][wi*CI + ci, wo*OC + oc] = W[oc, ci, kh, kw], wi = 2*wo+dw+kw-1.

    Folds the 3x3 W-direction taps and the W-direction 2x2-pool offset dw into
    dense band matrices; W-direction zero-padding = dropped (zero) columns.
    """
    w = np.asarray(w_oihw, np.float32)
    oc_n, ci_n, kh_n, kw_n = w.shape
    bands = np.zeros((2, kh_n, w_in * ci_n, w_out * oc_n), np.float32)
    for dw in range(2):
        for kh in range(kh_n):
            for wo in range(w_out):
                for kw in range(kw_n):
                    wi = 2 * wo + dw + kw - 1
                    if 0 <= wi < w_in:
                        bands[dw, kh,
                              wi * ci_n:(wi + 1) * ci_n,
                              wo * oc_n:(wo + 1) * oc_n] = w[:, :, kh, kw].T
    return bands


def prepare_params(params):
    # conv1 bands: [2, 3*28, 14*16] -> lane-pad 224 -> 256.
    b1s = _conv_band_matrices(params["conv1_w"], 28, 14).reshape(2, 84, 224)
    b1s = np.pad(b1s, ((0, 0), (0, 0), (0, 32)))
    # conv2 bands (idx = dw*3 + kh): [6, 14*16, 7*32] -> pad K and N 224 -> 256.
    b2s = _conv_band_matrices(params["conv2_w"], 14, 7).reshape(6, 224, 224)
    b2s = np.pad(b2s, ((0, 0), (0, 32), (0, 32)))
    b1row = np.pad(np.tile(np.asarray(params["conv1_b"], np.float32), 14), (0, 32))
    b2row = np.pad(np.tile(np.asarray(params["conv2_b"], np.float32), 7), (0, 32))
    # fc1: PyTorch flatten order (c, h, w) -> kernel layout (h, w*32 + c); K-pad 256.
    fc1w = np.asarray(params["fc1_w"], np.float32)
    fc1w = fc1w.reshape(128, 32, 7, 7).transpose(2, 3, 1, 0).reshape(7, 224, 128)
    fc1w = np.pad(fc1w, ((0, 0), (0, 32), (0, 0)))
    # fc2: [10, 128] -> [128, 128] with zero columns 10..127 (lane-dense output).
    fc2w = np.pad(np.asarray(params["fc2_w"], np.float32).T, ((0, 0), (0, 118)))
    fc2b = np.pad(np.asarray(params["fc2_b"], np.float32), (0, 118))
    return {
        "b1s":   jnp.asarray(b1s, jnp.bfloat16),     # [2, 84, 256]
        "b1row": jnp.asarray(b1row[None, :]),        # [1, 256] f32
        "b2s":   jnp.asarray(b2s, jnp.bfloat16),     # [6, 256, 256]
        "b2row": jnp.asarray(b2row[None, :]),        # [1, 256] f32
        "fc1w":  jnp.asarray(fc1w, jnp.bfloat16),    # [7, 256, 128]
        "fc1b":  jnp.asarray(np.asarray(params["fc1_b"], np.float32)[None, :]),
        "fc2w":  jnp.asarray(fc2w, jnp.bfloat16),    # [128, 128]
        "fc2b":  jnp.asarray(fc2b[None, :]),         # [1, 128] f32
    }


# ---------------------------------------------------------------------------
# Forward wrapper: tiny input-row preprocessing + the single pallas_call.
# ---------------------------------------------------------------------------
def _full_spec(a):
    zeros = (0,) * a.ndim
    return pl.BlockSpec(a.shape, lambda j: zeros)


def _pick_block_batch(n, max_block):
    # Multiple of 8 (sublane tile); try to keep >= 2 grid steps so v7x's two
    # TensorCores both get work under dimension_semantics=("parallel",).
    return int(min(max_block, max(8, (((n + 1) // 2) + 7) // 8 * 8)))


def simple_cnn_forward(prep, x_nchw, *, max_block_batch=32):
    """Fused SimpleCNN forward. x_nchw: [N, 1, 28, 28] float32 -> [N, 10]."""
    n = x_nchw.shape[0]
    B = _pick_block_batch(n, max_block_batch)
    npad = -(-n // B) * B
    g = npad // B

    x = x_nchw[:, 0, :, :].astype(jnp.float32)                  # [N, 28, 28]
    if npad != n:
        x = jnp.pad(x, ((0, npad - n), (0, 0), (0, 0)))

    # Row-parity preprocessing (cheap XLA prologue, ~11 KB/image).
    #   X_m[i] = x[4*i + m]   (zero outside [0, 28))
    xp = jnp.pad(x, ((0, 0), (4, 4), (0, 0)))                   # [npad, 36, 28]
    xm = {m: xp[:, m + 4::4, :][:, :8, :] for m in range(-3, 3)}
    # groups: 0 = (even pooled rows, dh=0), 1 = (even, dh=1), 2/3 = odd rows.
    xc = jnp.stack([
        jnp.concatenate([xm[-1], xm[0], xm[1]], axis=-1),
        jnp.concatenate([xm[0], xm[1], xm[2]], axis=-1),
        jnp.concatenate([xm[-3], xm[-2], xm[-1]], axis=-1),
        jnp.concatenate([xm[-2], xm[-1], xm[0]], axis=-1),
    ], axis=0).astype(jnp.bfloat16)                              # [4, npad, 8, 84]
    # -> [g, 4, 8*B, 84]: one contiguous block per grid step; rows i-major /
    # image-minor so all in-kernel slices stay sublane-aligned.
    xc = xc.reshape(4, g, B, 8, 84).transpose(1, 0, 3, 2, 4).reshape(g, 4, 8 * B, 84)

    out = pl.pallas_call(
        functools.partial(_fused_cnn_kernel, batch=B),
        out_shape=jax.ShapeDtypeStruct((npad, 128), jnp.float32),
        grid=(g,),
        in_specs=[
            pl.BlockSpec((1, 4, 8 * B, 84), lambda j: (j, 0, 0, 0)),
            _full_spec(prep["b1s"]), _full_spec(prep["b1row"]),
            _full_spec(prep["b2s"]), _full_spec(prep["b2row"]),
            _full_spec(prep["fc1w"]), _full_spec(prep["fc1b"]),
            _full_spec(prep["fc2w"]), _full_spec(prep["fc2b"]),
        ],
        out_specs=pl.BlockSpec((B, 128), lambda j: (j, 0)),
        compiler_params=pltpu.CompilerParams(
            dimension_semantics=("parallel",),
            vmem_limit_bytes=32 * 1024 * 1024),
    )(xc, prep["b1s"], prep["b1row"], prep["b2s"], prep["b2row"],
      prep["fc1w"], prep["fc1b"], prep["fc2w"], prep["fc2b"])

    return out[:n, :10]


# ---------------------------------------------------------------------------
# Deterministic params + plain-XLA reference (validation only)
# ---------------------------------------------------------------------------
def init_params(key):
    ks = jax.random.split(key, 8)
    s = 0.05
    f32 = jnp.float32
    return {
        "conv1_w": jax.random.normal(ks[0], (16, 1, 3, 3), f32) * s,
        "conv1_b": jax.random.normal(ks[1], (16,), f32) * s,
        "conv2_w": jax.random.normal(ks[2], (32, 16, 3, 3), f32) * s,
        "conv2_b": jax.random.normal(ks[3], (32,), f32) * s,
        "fc1_w": jax.random.normal(ks[4], (128, 32 * 7 * 7), f32) * s,
        "fc1_b": jax.random.normal(ks[5], (128,), f32) * s,
        "fc2_w": jax.random.normal(ks[6], (10, 128), f32) * s,
        "fc2_b": jax.random.normal(ks[7], (10,), f32) * s,
    }


def reference_forward(params, x_nchw):
    dn = ("NCHW", "OIHW", "NCHW")
    h = lax.conv_general_dilated(x_nchw, params["conv1_w"], (1, 1),
                                 ((1, 1), (1, 1)), dimension_numbers=dn)
    h = jnp.maximum(h + params["conv1_b"][None, :, None, None], 0.0)
    h = lax.reduce_window(h, -jnp.inf, lax.max, (1, 1, 2, 2), (1, 1, 2, 2), "VALID")
    h = lax.conv_general_dilated(h, params["conv2_w"], (1, 1),
                                 ((1, 1), (1, 1)), dimension_numbers=dn)
    h = jnp.maximum(h + params["conv2_b"][None, :, None, None], 0.0)
    h = lax.reduce_window(h, -jnp.inf, lax.max, (1, 1, 2, 2), (1, 1, 2, 2), "VALID")
    flat = h.reshape(h.shape[0], -1)                            # (c, h, w) order
    f1 = jnp.maximum(flat @ params["fc1_w"].T + params["fc1_b"], 0.0)
    return f1 @ params["fc2_w"].T + params["fc2_b"]


if __name__ == "__main__":
    key = jax.random.PRNGKey(0)
    pkey, xkey = jax.random.split(key)
    params = init_params(pkey)
    prep = prepare_params(params)        # one-time host-side weight re-layout
    # Forward implies MNIST-like input: 1 channel, 28x28 (32*7*7 flatten).
    # 64 images -> block batch 32 -> grid of 2 (both v7x TensorCores busy).
    x = jax.random.normal(xkey, (64, 1, 28, 28), jnp.float32)

    fwd = jax.jit(simple_cnn_forward)
    logits = jax.block_until_ready(fwd(prep, x))

    assert logits.shape == (64, 10), logits.shape
    assert logits.dtype == jnp.float32
    assert bool(jnp.all(jnp.isfinite(logits)))

    # Sanity-check against a plain-XLA reference (both paths use bf16-pass
    # matmul/convolution precision; accumulation is f32 in both).
    ref = jax.block_until_ready(jax.jit(reference_forward)(params, x))
    err = float(jnp.max(jnp.abs(logits - ref)))
    assert err < 5e-2, f"kernel vs reference mismatch: max abs err = {err}"

    print("KERNEL_OK")
</pallas_src>

<mosaic_0001>
module attributes {stable_mosaic.version = 11 : i64} {
  func.func @_fused_cnn_kernel(%arg0: i32, %arg1: memref<1x4x256x84xbf16, #tpu.memory_space<vmem>>, %arg2: memref<2x84x256xbf16, #tpu.memory_space<vmem>>, %arg3: memref<1x256xf32, #tpu.memory_space<vmem>>, %arg4: memref<6x256x256xbf16, #tpu.memory_space<vmem>>, %arg5: memref<1x256xf32, #tpu.memory_space<vmem>>, %arg6: memref<7x256x128xbf16, #tpu.memory_space<vmem>>, %arg7: memref<1x128xf32, #tpu.memory_space<vmem>>, %arg8: memref<128x128xbf16, #tpu.memory_space<vmem>>, %arg9: memref<1x128xf32, #tpu.memory_space<vmem>>, %arg10: memref<32x128xf32, #tpu.memory_space<vmem>>) attributes {dimension_semantics = [#tpu.dimension_semantics<parallel>], iteration_bounds = array<i64: 2>, scalar_prefetch = 0 : i64, scratch_operands = 0 : i64, tpu.core_type = #tpu.core_type<tc>, window_params = [{transform_indices = @transform_0, window_bounds = array<i64: 1, 4, 256, 84>}, {pipeline_mode = #tpu.pipeline_mode<synchronous>, transform_indices = @transform_1, window_bounds = array<i64: 2, 84, 256>}, {pipeline_mode = #tpu.pipeline_mode<synchronous>, transform_indices = @transform_2, window_bounds = array<i64: 1, 256>}, {pipeline_mode = #tpu.pipeline_mode<synchronous>, transform_indices = @transform_3, window_bounds = array<i64: 6, 256, 256>}, {pipeline_mode = #tpu.pipeline_mode<synchronous>, transform_indices = @transform_4, window_bounds = array<i64: 1, 256>}, {pipeline_mode = #tpu.pipeline_mode<synchronous>, transform_indices = @transform_5, window_bounds = array<i64: 7, 256, 128>}, {pipeline_mode = #tpu.pipeline_mode<synchronous>, transform_indices = @transform_6, window_bounds = array<i64: 1, 128>}, {pipeline_mode = #tpu.pipeline_mode<synchronous>, transform_indices = @transform_7, window_bounds = array<i64: 128, 128>}, {pipeline_mode = #tpu.pipeline_mode<synchronous>, transform_indices = @transform_8, window_bounds = array<i64: 1, 128>}, {transform_indices = @transform_9, window_bounds = array<i64: 32, 128>}]} {
    %0 = tpu.iota {dimensions = array<i32: 0>} : vector<256x256xi32>
    %c224_i32 = arith.constant 224 : i32
    %1 = vector.broadcast %c224_i32 : i32 to vector<256x256xi32>
    %2 = arith.cmpi sge, %0, %1 : vector<256x256xi32>
    %c0 = arith.constant 0 : index
    %c0_0 = arith.constant 0 : index
    %c0_1 = arith.constant 0 : index
    %c0_2 = arith.constant 0 : index
    %3 = vector.load %arg1[%c0, %c0_0, %c0_1, %c0_2] : memref<1x4x256x84xbf16, #tpu.memory_space<vmem>>, vector<1x1x256x84xbf16>
    %4 = vector.shape_cast %3 : vector<1x1x256x84xbf16> to vector<256x84xbf16>
    %c0_3 = arith.constant 0 : index
    %c0_4 = arith.constant 0 : index
    %c0_5 = arith.constant 0 : index
    %5 = vector.load %arg2[%c0_3, %c0_4, %c0_5] : memref<2x84x256xbf16, #tpu.memory_space<vmem>>, vector<1x84x256xbf16>
    %6 = vector.shape_cast %5 : vector<1x84x256xbf16> to vector<84x256xbf16>
    %cst = arith.constant dense<0.000000e+00> : vector<256x256xf32>
    %7 = tpu.matmul %4, %6, %cst {dimension_numbers = #tpu.dot_dimension_numbers<[1], [0], [0], [1], [0, 0, 1, 1], [], []>} : vector<256x84xbf16>, vector<84x256xbf16>, vector<256x256xf32> -> vector<256x256xf32>
    %c1 = arith.constant 1 : index
    %c0_6 = arith.constant 0 : index
    %c0_7 = arith.constant 0 : index
    %8 = vector.load %arg2[%c1, %c0_6, %c0_7] : memref<2x84x256xbf16, #tpu.memory_space<vmem>>, vector<1x84x256xbf16>
    %9 = vector.shape_cast %8 : vector<1x84x256xbf16> to vector<84x256xbf16>
    %cst_8 = arith.constant dense<0.000000e+00> : vector<256x256xf32>
    %10 = tpu.matmul %4, %9, %cst_8 {dimension_numbers = #tpu.dot_dimension_numbers<[1], [0], [0], [1], [0, 0, 1, 1], [], []>} : vector<256x84xbf16>, vector<84x256xbf16>, vector<256x256xf32> -> vector<256x256xf32>
    %11 = arith.maximumf %7, %10 : vector<256x256xf32>
    %c0_9 = arith.constant 0 : index
    %c1_10 = arith.constant 1 : index
    %c0_11 = arith.constant 0 : index
    %c0_12 = arith.constant 0 : index
    %12 = vector.load %arg1[%c0_9, %c1_10, %c0_11, %c0_12] : memref<1x4x256x84xbf16, #tpu.memory_space<vmem>>, vector<1x1x256x84xbf16>
    %13 = vector.shape_cast %12 : vector<1x1x256x84xbf16> to vector<256x84xbf16>
    %c0_13 = arith.constant 0 : index
    %c0_14 = arith.constant 0 : index
    %c0_15 = arith.constant 0 : index
    %14 = vector.load %arg2[%c0_13, %c0_14, %c0_15] : memref<2x84x256xbf16, #tpu.memory_space<vmem>>, vector<1x84x256xbf16>
    %15 = vector.shape_cast %14 : vector<1x84x256xbf16> to vector<84x256xbf16>
    %cst_16 = arith.constant dense<0.000000e+00> : vector<256x256xf32>
    %16 = tpu.matmul %13, %15, %cst_16 {dimension_numbers = #tpu.dot_dimension_numbers<[1], [0], [0], [1], [0, 0, 1, 1], [], []>} : vector<256x84xbf16>, vector<84x256xbf16>, vector<256x256xf32> -> vector<256x256xf32>
    %17 = arith.maximumf %11, %16 : vector<256x256xf32>
    %c1_17 = arith.constant 1 : index
    %c0_18 = arith.constant 0 : index
    %c0_19 = arith.constant 0 : index
    %18 = vector.load %arg2[%c1_17, %c0_18, %c0_19] : memref<2x84x256xbf16, #tpu.memory_space<vmem>>, vector<1x84x256xbf16>
    %19 = vector.shape_cast %18 : vector<1x84x256xbf16> to vector<84x256xbf16>
    %cst_20 = arith.constant dense<0.000000e+00> : vector<256x256xf32>
    %20 = tpu.matmul %13, %19, %cst_20 {dimension_numbers = #tpu.dot_dimension_numbers<[1], [0], [0], [1], [0, 0, 1, 1], [], []>} : vector<256x84xbf16>, vector<84x256xbf16>, vector<256x256xf32> -> vector<256x256xf32>
    %21 = arith.maximumf %17, %20 : vector<256x256xf32>
    %c0_21 = arith.constant 0 : index
    %c0_22 = arith.constant 0 : index
    %22 = vector.load %arg3[%c0_21, %c0_22] : memref<1x256xf32, #tpu.memory_space<vmem>>, vector<1x256xf32>
    %23 = vector.broadcast %22 : vector<1x256xf32> to vector<256x256xf32>
    %24 = arith.addf %21, %23 : vector<256x256xf32>
    %cst_23 = arith.constant 0.000000e+00 : f32
    %25 = vector.broadcast %cst_23 : f32 to vector<256x256xf32>
    %26 = arith.maximumf %24, %25 : vector<256x256xf32>
    %cst_24 = arith.constant 0.000000e+00 : f32
    %27 = vector.broadcast %cst_24 : f32 to vector<256x256xf32>
    %28 = arith.select %2, %27, %26 : vector<256x256xi1>, vector<256x256xf32>
    %c32_i32 = arith.constant 32 : i32
    %29 = vector.broadcast %c32_i32 : i32 to vector<256x256xi32>
    %30 = arith.cmpi slt, %0, %29 : vector<256x256xi32>
    %c0_25 = arith.constant 0 : index
    %c2 = arith.constant 2 : index
    %c0_26 = arith.constant 0 : index
    %c0_27 = arith.constant 0 : index
    %31 = vector.load %arg1[%c0_25, %c2, %c0_26, %c0_27] : memref<1x4x256x84xbf16, #tpu.memory_space<vmem>>, vector<1x1x256x84xbf16>
    %32 = vector.shape_cast %31 : vector<1x1x256x84xbf16> to vector<256x84xbf16>
    %c0_28 = arith.constant 0 : index
    %c0_29 = arith.constant 0 : index
    %c0_30 = arith.constant 0 : index
    %33 = vector.load %arg2[%c0_28, %c0_29, %c0_30] : memref<2x84x256xbf16, #tpu.memory_space<vmem>>, vector<1x84x256xbf16>
    %34 = vector.shape_cast %33 : vector<1x84x256xbf16> to vector<84x256xbf16>
    %cst_31 = arith.constant dense<0.000000e+00> : vector<256x256xf32>
    %35 = tpu.matmul %32, %34, %cst_31 {dimension_numbers = #tpu.dot_dimension_numbers<[1], [0], [0], [1], [0, 0, 1, 1], [], []>} : vector<256x84xbf16>, vector<84x256xbf16>, vector<256x256xf32> -> vector<256x256xf32>
    %c1_32 = arith.constant 1 : index
    %c0_33 = arith.constant 0 : index
    %c0_34 = arith.constant 0 : index
    %36 = vector.load %arg2[%c1_32, %c0_33, %c0_34] : memref<2x84x256xbf16, #tpu.memory_space<vmem>>, vector<1x84x256xbf16>
    %37 = vector.shape_cast %36 : vector<1x84x256xbf16> to vector<84x256xbf16>
    %cst_35 = arith.constant dense<0.000000e+00> : vector<256x256xf32>
    %38 = tpu.matmul %32, %37, %cst_35 {dimension_numbers = #tpu.dot_dimension_numbers<[1], [0], [0], [1], [0, 0, 1, 1], [], []>} : vector<256x84xbf16>, vector<84x256xbf16>, vector<256x256xf32> -> vector<256x256xf32>
    %39 = arith.maximumf %35, %38 : vector<256x256xf32>
    %c0_36 = arith.constant 0 : index
    %c3 = arith.constant 3 : index
    %c0_37 = arith.constant 0 : index
    %c0_38 = arith.constant 0 : index
    %40 = vector.load %arg1[%c0_36, %c3, %c0_37, %c0_38] : memref<1x4x256x84xbf16, #tpu.memory_space<vmem>>, vector<1x1x256x84xbf16>
    %41 = vector.shape_cast %40 : vector<1x1x256x84xbf16> to vector<256x84xbf16>
    %c0_39 = arith.constant 0 : index
    %c0_40 = arith.constant 0 : index
    %c0_41 = arith.constant 0 : index
    %42 = vector.load %arg2[%c0_39, %c0_40, %c0_41] : memref<2x84x256xbf16, #tpu.memory_space<vmem>>, vector<1x84x256xbf16>
    %43 = vector.shape_cast %42 : vector<1x84x256xbf16> to vector<84x256xbf16>
    %cst_42 = arith.constant dense<0.000000e+00> : vector<256x256xf32>
    %44 = tpu.matmul %41, %43, %cst_42 {dimension_numbers = #tpu.dot_dimension_numbers<[1], [0], [0], [1], [0, 0, 1, 1], [], []>} : vector<256x84xbf16>, vector<84x256xbf16>, vector<256x256xf32> -> vector<256x256xf32>
    %45 = arith.maximumf %39, %44 : vector<256x256xf32>
    %c1_43 = arith.constant 1 : index
    %c0_44 = arith.constant 0 : index
    %c0_45 = arith.constant 0 : index
    %46 = vector.load %arg2[%c1_43, %c0_44, %c0_45] : memref<2x84x256xbf16, #tpu.memory_space<vmem>>, vector<1x84x256xbf16>
    %47 = vector.shape_cast %46 : vector<1x84x256xbf16> to vector<84x256xbf16>
    %cst_46 = arith.constant dense<0.000000e+00> : vector<256x256xf32>
    %48 = tpu.matmul %41, %47, %cst_46 {dimension_numbers = #tpu.dot_dimension_numbers<[1], [0], [0], [1], [0, 0, 1, 1], [], []>} : vector<256x84xbf16>, vector<84x256xbf16>, vector<256x256xf32> -> vector<256x256xf32>
    %49 = arith.maximumf %45, %48 : vector<256x256xf32>
    %c0_47 = arith.constant 0 : index
    %c0_48 = arith.constant 0 : index
    %50 = vector.load %arg3[%c0_47, %c0_48] : memref<1x256xf32, #tpu.memory_space<vmem>>, vector<1x256xf32>
    %51 = vector.broadcast %50 : vector<1x256xf32> to vector<256x256xf32>
    %52 = arith.addf %49, %51 : vector<256x256xf32>
    %cst_49 = arith.constant 0.000000e+00 : f32
    %53 = vector.broadcast %cst_49 : f32 to vector<256x256xf32>
    %54 = arith.maximumf %52, %53 : vector<256x256xf32>
    %cst_50 = arith.constant 0.000000e+00 : f32
    %55 = vector.broadcast %cst_50 : f32 to vector<256x256xf32>
    %56 = arith.select %30, %55, %54 : vector<256x256xi1>, vector<256x256xf32>
    %57 = arith.truncf %28 : vector<256x256xf32> to vector<256x256xbf16>
    %58 = arith.truncf %56 : vector<256x256xf32> to vector<256x256xbf16>
    %59 = vector.extract_strided_slice %58 {offsets = [0, 0], sizes = [224, 256], strides = [1, 1]} : vector<256x256xbf16> to vector<224x256xbf16>
    %60 = vector.extract_strided_slice %57 {offsets = [0, 0], sizes = [224, 256], strides = [1, 1]} : vector<256x256xbf16> to vector<224x256xbf16>
    %61 = vector.extract_strided_slice %58 {offsets = [32, 0], sizes = [224, 256], strides = [1, 1]} : vector<256x256xbf16> to vector<224x256xbf16>
    %62 = vector.extract_strided_slice %57 {offsets = [32, 0], sizes = [224, 256], strides = [1, 1]} : vector<256x256xbf16> to vector<224x256xbf16>
    %c0_51 = arith.constant 0 : index
    %c0_52 = arith.constant 0 : index
    %c0_53 = arith.constant 0 : index
    %63 = vector.load %arg4[%c0_51, %c0_52, %c0_53] : memref<6x256x256xbf16, #tpu.memory_space<vmem>>, vector<1x256x256xbf16>
    %64 = vector.shape_cast %63 : vector<1x256x256xbf16> to vector<256x256xbf16>
    %cst_54 = arith.constant dense<0.000000e+00> : vector<224x256xf32>
    %65 = tpu.matmul %59, %64, %cst_54 {dimension_numbers = #tpu.dot_dimension_numbers<[1], [0], [0], [1], [0, 0, 1, 1], [], []>} : vector<224x256xbf16>, vector<256x256xbf16>, vector<224x256xf32> -> vector<224x256xf32>
    %c1_55 = arith.constant 1 : index
    %c0_56 = arith.constant 0 : index
    %c0_57 = arith.constant 0 : index
    %66 = vector.load %arg4[%c1_55, %c0_56, %c0_57] : memref<6x256x256xbf16, #tpu.memory_space<vmem>>, vector<1x256x256xbf16>
    %67 = vector.shape_cast %66 : vector<1x256x256xbf16> to vector<256x256xbf16>
    %cst_58 = arith.constant dense<0.000000e+00> : vector<224x256xf32>
    %68 = tpu.matmul %60, %67, %cst_58 {dimension_numbers = #tpu.dot_dimension_numbers<[1], [0], [0], [1], [0, 0, 1, 1], [], []>} : vector<224x256xbf16>, vector<256x256xbf16>, vector<224x256xf32> -> vector<224x256xf32>
    %69 = arith.addf %65, %68 : vector<224x256xf32>
    %c2_59 = arith.constant 2 : index
    %c0_60 = arith.constant 0 : index
    %c0_61 = arith.constant 0 : index
    %70 = vector.load %arg4[%c2_59, %c0_60, %c0_61] : memref<6x256x256xbf16, #tpu.memory_space<vmem>>, vector<1x256x256xbf16>
    %71 = vector.shape_cast %70 : vector<1x256x256xbf16> to vector<256x256xbf16>
    %cst_62 = arith.constant dense<0.000000e+00> : vector<224x256xf32>
    %72 = tpu.matmul %61, %71, %cst_62 {dimension_numbers = #tpu.dot_dimension_numbers<[1], [0], [0], [1], [0, 0, 1, 1], [], []>} : vector<224x256xbf16>, vector<256x256xbf16>, vector<224x256xf32> -> vector<224x256xf32>
    %73 = arith.addf %69, %72 : vector<224x256xf32>
    %c3_63 = arith.constant 3 : index
    %c0_64 = arith.constant 0 : index
    %c0_65 = arith.constant 0 : index
    %74 = vector.load %arg4[%c3_63, %c0_64, %c0_65] : memref<6x256x256xbf16, #tpu.memory_space<vmem>>, vector<1x256x256xbf16>
    %75 = vector.shape_cast %74 : vector<1x256x256xbf16> to vector<256x256xbf16>
    %cst_66 = arith.constant dense<0.000000e+00> : vector<224x256xf32>
    %76 = tpu.matmul %59, %75, %cst_66 {dimension_numbers = #tpu.dot_dimension_numbers<[1], [0], [0], [1], [0, 0, 1, 1], [], []>} : vector<224x256xbf16>, vector<256x256xbf16>, vector<224x256xf32> -> vector<224x256xf32>
    %c4 = arith.constant 4 : index
    %c0_67 = arith.constant 0 : index
    %c0_68 = arith.constant 0 : index
    %77 = vector.load %arg4[%c4, %c0_67, %c0_68] : memref<6x256x256xbf16, #tpu.memory_space<vmem>>, vector<1x256x256xbf16>
    %78 = vector.shape_cast %77 : vector<1x256x256xbf16> to vector<256x256xbf16>
    %cst_69 = arith.constant dense<0.000000e+00> : vector<224x256xf32>
    %79 = tpu.matmul %60, %78, %cst_69 {dimension_numbers = #tpu.dot_dimension_numbers<[1], [0], [0], [1], [0, 0, 1, 1], [], []>} : vector<224x256xbf16>, vector<256x256xbf16>, vector<224x256xf32> -> vector<224x256xf32>
    %80 = arith.addf %76, %79 : vector<224x256xf32>
    %c5 = arith.constant 5 : index
    %c0_70 = arith.constant 0 : index
    %c0_71 = arith.constant 0 : index
    %81 = vector.load %arg4[%c5, %c0_70, %c0_71] : memref<6x256x256xbf16, #tpu.memory_space<vmem>>, vector<1x256x256xbf16>
    %82 = vector.shape_cast %81 : vector<1x256x256xbf16> to vector<256x256xbf16>
    %cst_72 = arith.constant dense<0.000000e+00> : vector<224x256xf32>
    %83 = tpu.matmul %61, %82, %cst_72 {dimension_numbers = #tpu.dot_dimension_numbers<[1], [0], [0], [1], [0, 0, 1, 1], [], []>} : vector<224x256xbf16>, vector<256x256xbf16>, vector<224x256xf32> -> vector<224x256xf32>
    %84 = arith.addf %80, %83 : vector<224x256xf32>
    %85 = arith.maximumf %73, %84 : vector<224x256xf32>
    %c0_73 = arith.constant 0 : index
    %c0_74 = arith.constant 0 : index
    %c0_75 = arith.constant 0 : index
    %86 = vector.load %arg4[%c0_73, %c0_74, %c0_75] : memref<6x256x256xbf16, #tpu.memory_space<vmem>>, vector<1x256x256xbf16>
    %87 = vector.shape_cast %86 : vector<1x256x256xbf16> to vector<256x256xbf16>
    %cst_76 = arith.constant dense<0.000000e+00> : vector<224x256xf32>
    %88 = tpu.matmul %60, %87, %cst_76 {dimension_numbers = #tpu.dot_dimension_numbers<[1], [0], [0], [1], [0, 0, 1, 1], [], []>} : vector<224x256xbf16>, vector<256x256xbf16>, vector<224x256xf32> -> vector<224x256xf32>
    %c1_77 = arith.constant 1 : index
    %c0_78 = arith.constant 0 : index
    %c0_79 = arith.constant 0 : index
    %89 = vector.load %arg4[%c1_77, %c0_78, %c0_79] : memref<6x256x256xbf16, #tpu.memory_space<vmem>>, vector<1x256x256xbf16>
    %90 = vector.shape_cast %89 : vector<1x256x256xbf16> to vector<256x256xbf16>
    %cst_80 = arith.constant dense<0.000000e+00> : vector<224x256xf32>
    %91 = tpu.matmul %61, %90, %cst_80 {dimension_numbers = #tpu.dot_dimension_numbers<[1], [0], [0], [1], [0, 0, 1, 1], [], []>} : vector<224x256xbf16>, vector<256x256xbf16>, vector<224x256xf32> -> vector<224x256xf32>
    %92 = arith.addf %88, %91 : vector<224x256xf32>
    %c2_81 = arith.constant 2 : index
    %c0_82 = arith.constant 0 : index
    %c0_83 = arith.constant 0 : index
    %93 = vector.load %arg4[%c2_81, %c0_82, %c0_83] : memref<6x256x256xbf16, #tpu.memory_space<vmem>>, vector<1x256x256xbf16>
    %94 = vector.shape_cast %93 : vector<1x256x256xbf16> to vector<256x256xbf16>
    %cst_84 = arith.constant dense<0.000000e+00> : vector<224x256xf32>
    %95 = tpu.matmul %62, %94, %cst_84 {dimension_numbers = #tpu.dot_dimension_numbers<[1], [0], [0], [1], [0, 0, 1, 1], [], []>} : vector<224x256xbf16>, vector<256x256xbf16>, vector<224x256xf32> -> vector<224x256xf32>
    %96 = arith.addf %92, %95 : vector<224x256xf32>
    %97 = arith.maximumf %85, %96 : vector<224x256xf32>
    %c3_85 = arith.constant 3 : index
    %c0_86 = arith.constant 0 : index
    %c0_87 = arith.constant 0 : index
    %98 = vector.load %arg4[%c3_85, %c0_86, %c0_87] : memref<6x256x256xbf16, #tpu.memory_space<vmem>>, vector<1x256x256xbf16>
    %99 = vector.shape_cast %98 : vector<1x256x256xbf16> to vector<256x256xbf16>
    %cst_88 = arith.constant dense<0.000000e+00> : vector<224x256xf32>
    %100 = tpu.matmul %60, %99, %cst_88 {dimension_numbers = #tpu.dot_dimension_numbers<[1], [0], [0], [1], [0, 0, 1, 1], [], []>} : vector<224x256xbf16>, vector<256x256xbf16>, vector<224x256xf32> -> vector<224x256xf32>
    %c4_89 = arith.constant 4 : index
    %c0_90 = arith.constant 0 : index
    %c0_91 = arith.constant 0 : index
    %101 = vector.load %arg4[%c4_89, %c0_90, %c0_91] : memref<6x256x256xbf16, #tpu.memory_space<vmem>>, vector<1x256x256xbf16>
    %102 = vector.shape_cast %101 : vector<1x256x256xbf16> to vector<256x256xbf16>
    %cst_92 = arith.constant dense<0.000000e+00> : vector<224x256xf32>
    %103 = tpu.matmul %61, %102, %cst_92 {dimension_numbers = #tpu.dot_dimension_numbers<[1], [0], [0], [1], [0, 0, 1, 1], [], []>} : vector<224x256xbf16>, vector<256x256xbf16>, vector<224x256xf32> -> vector<224x256xf32>
    %104 = arith.addf %100, %103 : vector<224x256xf32>
    %c5_93 = arith.constant 5 : index
    %c0_94 = arith.constant 0 : index
    %c0_95 = arith.constant 0 : index
    %105 = vector.load %arg4[%c5_93, %c0_94, %c0_95] : memref<6x256x256xbf16, #tpu.memory_space<vmem>>, vector<1x256x256xbf16>
    %106 = vector.shape_cast %105 : vector<1x256x256xbf16> to vector<256x256xbf16>
    %cst_96 = arith.constant dense<0.000000e+00> : vector<224x256xf32>
    %107 = tpu.matmul %62, %106, %cst_96 {dimension_numbers = #tpu.dot_dimension_numbers<[1], [0], [0], [1], [0, 0, 1, 1], [], []>} : vector<224x256xbf16>, vector<256x256xbf16>, vector<224x256xf32> -> vector<224x256xf32>
    %108 = arith.addf %104, %107 : vector<224x256xf32>
    %109 = arith.maximumf %97, %108 : vector<224x256xf32>
    %c0_97 = arith.constant 0 : index
    %c0_98 = arith.constant 0 : index
    %110 = vector.load %arg5[%c0_97, %c0_98] : memref<1x256xf32, #tpu.memory_space<vmem>>, vector<1x256xf32>
    %111 = vector.broadcast %110 : vector<1x256xf32> to vector<224x256xf32>
    %112 = arith.addf %109, %111 : vector<224x256xf32>
    %cst_99 = arith.constant 0.000000e+00 : f32
    %113 = vector.broadcast %cst_99 : f32 to vector<224x256xf32>
    %114 = arith.maximumf %112, %113 : vector<224x256xf32>
    %115 = arith.truncf %114 : vector<224x256xf32> to vector<224x256xbf16>
    %116 = vector.extract_strided_slice %115 {offsets = [0, 0], sizes = [32, 256], strides = [1, 1]} : vector<224x256xbf16> to vector<32x256xbf16>
    %c0_100 = arith.constant 0 : index
    %c0_101 = arith.constant 0 : index
    %c0_102 = arith.constant 0 : index
    %117 = vector.load %arg6[%c0_100, %c0_101, %c0_102] : memref<7x256x128xbf16, #tpu.memory_space<vmem>>, vector<1x256x128xbf16>
    %118 = vector.shape_cast %117 : vector<1x256x128xbf16> to vector<256x128xbf16>
    %cst_103 = arith.constant dense<0.000000e+00> : vector<32x128xf32>
    %119 = tpu.matmul %116, %118, %cst_103 {dimension_numbers = #tpu.dot_dimension_numbers<[1], [0], [0], [1], [0, 0, 1, 1], [], []>} : vector<32x256xbf16>, vector<256x128xbf16>, vector<32x128xf32> -> vector<32x128xf32>
    %120 = vector.extract_strided_slice %115 {offsets = [32, 0], sizes = [32, 256], strides = [1, 1]} : vector<224x256xbf16> to vector<32x256xbf16>
    %c1_104 = arith.constant 1 : index
    %c0_105 = arith.constant 0 : index
    %c0_106 = arith.constant 0 : index
    %121 = vector.load %arg6[%c1_104, %c0_105, %c0_106] : memref<7x256x128xbf16, #tpu.memory_space<vmem>>, vector<1x256x128xbf16>
    %122 = vector.shape_cast %121 : vector<1x256x128xbf16> to vector<256x128xbf16>
    %cst_107 = arith.constant dense<0.000000e+00> : vector<32x128xf32>
    %123 = tpu.matmul %120, %122, %cst_107 {dimension_numbers = #tpu.dot_dimension_numbers<[1], [0], [0], [1], [0, 0, 1, 1], [], []>} : vector<32x256xbf16>, vector<256x128xbf16>, vector<32x128xf32> -> vector<32x128xf32>
    %124 = arith.addf %119, %123 : vector<32x128xf32>
    %125 = vector.extract_strided_slice %115 {offsets = [64, 0], sizes = [32, 256], strides = [1, 1]} : vector<224x256xbf16> to vector<32x256xbf16>
    %c2_108 = arith.constant 2 : index
    %c0_109 = arith.constant 0 : index
    %c0_110 = arith.constant 0 : index
    %126 = vector.load %arg6[%c2_108, %c0_109, %c0_110] : memref<7x256x128xbf16, #tpu.memory_space<vmem>>, vector<1x256x128xbf16>
    %127 = vector.shape_cast %126 : vector<1x256x128xbf16> to vector<256x128xbf16>
    %cst_111 = arith.constant dense<0.000000e+00> : vector<32x128xf32>
    %128 = tpu.matmul %125, %127, %cst_111 {dimension_numbers = #tpu.dot_dimension_numbers<[1], [0], [0], [1], [0, 0, 1, 1], [], []>} : vector<32x256xbf16>, vector<256x128xbf16>, vector<32x128xf32> -> vector<32x128xf32>
    %129 = arith.addf %124, %128 : vector<32x128xf32>
    %130 = vector.extract_strided_slice %115 {offsets = [96, 0], sizes = [32, 256], strides = [1, 1]} : vector<224x256xbf16> to vector<32x256xbf16>
    %c3_112 = arith.constant 3 : index
    %c0_113 = arith.constant 0 : index
    %c0_114 = arith.constant 0 : index
    %131 = vector.load %arg6[%c3_112, %c0_113, %c0_114] : memref<7x256x128xbf16, #tpu.memory_space<vmem>>, vector<1x256x128xbf16>
    %132 = vector.shape_cast %131 : vector<1x256x128xbf16> to vector<256x128xbf16>
    %cst_115 = arith.constant dense<0.000000e+00> : vector<32x128xf32>
    %133 = tpu.matmul %130, %132, %cst_115 {dimension_numbers = #tpu.dot_dimension_numbers<[1], [0], [0], [1], [0, 0, 1, 1], [], []>} : vector<32x256xbf16>, vector<256x128xbf16>, vector<32x128xf32> -> vector<32x128xf32>
    %134 = arith.addf %129, %133 : vector<32x128xf32>
    %135 = vector.extract_strided_slice %115 {offsets = [128, 0], sizes = [32, 256], strides = [1, 1]} : vector<224x256xbf16> to vector<32x256xbf16>
    %c4_116 = arith.constant 4 : index
    %c0_117 = arith.constant 0 : index
    %c0_118 = arith.constant 0 : index
    %136 = vector.load %arg6[%c4_116, %c0_117, %c0_118] : memref<7x256x128xbf16, #tpu.memory_space<vmem>>, vector<1x256x128xbf16>
    %137 = vector.shape_cast %136 : vector<1x256x128xbf16> to vector<256x128xbf16>
    %cst_119 = arith.constant dense<0.000000e+00> : vector<32x128xf32>
    %138 = tpu.matmul %135, %137, %cst_119 {dimension_numbers = #tpu.dot_dimension_numbers<[1], [0], [0], [1], [0, 0, 1, 1], [], []>} : vector<32x256xbf16>, vector<256x128xbf16>, vector<32x128xf32> -> vector<32x128xf32>
    %139 = arith.addf %134, %138 : vector<32x128xf32>
    %140 = vector.extract_strided_slice %115 {offsets = [160, 0], sizes = [32, 256], strides = [1, 1]} : vector<224x256xbf16> to vector<32x256xbf16>
    %c5_120 = arith.constant 5 : index
    %c0_121 = arith.constant 0 : index
    %c0_122 = arith.constant 0 : index
    %141 = vector.load %arg6[%c5_120, %c0_121, %c0_122] : memref<7x256x128xbf16, #tpu.memory_space<vmem>>, vector<1x256x128xbf16>
    %142 = vector.shape_cast %141 : vector<1x256x128xbf16> to vector<256x128xbf16>
    %cst_123 = arith.constant dense<0.000000e+00> : vector<32x128xf32>
    %143 = tpu.matmul %140, %142, %cst_123 {dimension_numbers = #tpu.dot_dimension_numbers<[1], [0], [0], [1], [0, 0, 1, 1], [], []>} : vector<32x256xbf16>, vector<256x128xbf16>, vector<32x128xf32> -> vector<32x128xf32>
    %144 = arith.addf %139, %143 : vector<32x128xf32>
    %145 = vector.extract_strided_slice %115 {offsets = [192, 0], sizes = [32, 256], strides = [1, 1]} : vector<224x256xbf16> to vector<32x256xbf16>
    %c6 = arith.constant 6 : index
    %c0_124 = arith.constant 0 : index
    %c0_125 = arith.constant 0 : index
    %146 = vector.load %arg6[%c6, %c0_124, %c0_125] : memref<7x256x128xbf16, #tpu.memory_space<vmem>>, vector<1x256x128xbf16>
    %147 = vector.shape_cast %146 : vector<1x256x128xbf16> to vector<256x128xbf16>
    %cst_126 = arith.constant dense<0.000000e+00> : vector<32x128xf32>
    %148 = tpu.matmul %145, %147, %cst_126 {dimension_numbers = #tpu.dot_dimension_numbers<[1], [0], [0], [1], [0, 0, 1, 1], [], []>} : vector<32x256xbf16>, vector<256x128xbf16>, vector<32x128xf32> -> vector<32x128xf32>
    %149 = arith.addf %144, %148 : vector<32x128xf32>
    %c0_127 = arith.constant 0 : index
    %c0_128 = arith.constant 0 : index
    %150 = vector.load %arg7[%c0_127, %c0_128] : memref<1x128xf32, #tpu.memory_space<vmem>>, vector<1x128xf32>
    %151 = vector.broadcast %150 : vector<1x128xf32> to vector<32x128xf32>
    %152 = arith.addf %149, %151 : vector<32x128xf32>
    %cst_129 = arith.constant 0.000000e+00 : f32
    %153 = vector.broadcast %cst_129 : f32 to vector<32x128xf32>
    %154 = arith.maximumf %152, %153 : vector<32x128xf32>
    %155 = arith.truncf %154 : vector<32x128xf32> to vector<32x128xbf16>
    %c0_130 = arith.constant 0 : index
    %c0_131 = arith.constant 0 : index
    %156 = vector.load %arg8[%c0_130, %c0_131] : memref<128x128xbf16, #tpu.memory_space<vmem>>, vector<128x128xbf16>
    %cst_132 = arith.constant dense<0.000000e+00> : vector<32x128xf32>
    %157 = tpu.matmul %155, %156, %cst_132 {dimension_numbers = #tpu.dot_dimension_numbers<[1], [0], [0], [1], [0, 0, 1, 1], [], []>} : vector<32x128xbf16>, vector<128x128xbf16>, vector<32x128xf32> -> vector<32x128xf32>
    %c0_133 = arith.constant 0 : index
    %c0_134 = arith.constant 0 : index
    %158 = vector.load %arg9[%c0_133, %c0_134] : memref<1x128xf32, #tpu.memory_space<vmem>>, vector<1x128xf32>
    %159 = vector.broadcast %158 : vector<1x128xf32> to vector<32x128xf32>
    %160 = arith.addf %157, %159 : vector<32x128xf32>
    %c0_135 = arith.constant 0 : index
    %c0_136 = arith.constant 0 : index
    %161 = vector.load %arg10[%c0_135, %c0_136] : memref<32x128xf32, #tpu.memory_space<vmem>>, vector<32x128xf32>
    tpu.vector_store %arg10[%c0_135, %c0_136], %160 {strides = array<i32>} : memref<32x128xf32, #tpu.memory_space<vmem>>, vector<32x128xf32>,
    return
  }
  func.func @transform_0(%arg0: i32) -> (i32, i32, i32, i32) {
    %c0_i32 = arith.constant 0 : i32
    %c0_i32_0 = arith.constant 0 : i32
    %c0_i32_1 = arith.constant 0 : i32
    %c0_i32_2 = arith.constant 0 : i32
    return %arg0, %c0_i32, %c0_i32_0, %c0_i32_1 : i32, i32, i32, i32
  }
  func.func @transform_1(%arg0: i32) -> (i32, i32, i32) {
    %c0_i32 = arith.constant 0 : i32
    %c0_i32_0 = arith.constant 0 : i32
    %c0_i32_1 = arith.constant 0 : i32
    %c0_i32_2 = arith.constant 0 : i32
    return %c0_i32, %c0_i32_0, %c0_i32_1 : i32, i32, i32
  }
  func.func @transform_2(%arg0: i32) -> (i32, i32) {
    %c0_i32 = arith.constant 0 : i32
    %c0_i32_0 = arith.constant 0 : i32
    %c0_i32_1 = arith.constant 0 : i32
    return %c0_i32, %c0_i32_0 : i32, i32
  }
  func.func @transform_3(%arg0: i32) -> (i32, i32, i32) {
    %c0_i32 = arith.constant 0 : i32
    %c0_i32_0 = arith.constant 0 : i32
    %c0_i32_1 = arith.constant 0 : i32
    %c0_i32_2 = arith.constant 0 : i32
    return %c0_i32, %c0_i32_0, %c0_i32_1 : i32, i32, i32
  }
  func.func @transform_4(%arg0: i32) -> (i32, i32) {
    %c0_i32 = arith.constant 0 : i32
    %c0_i32_0 = arith.constant 0 : i32
    %c0_i32_1 = arith.constant 0 : i32
    return %c0_i32, %c0_i32_0 : i32, i32
  }
  func.func @transform_5(%arg0: i32) -> (i32, i32, i32) {
    %c0_i32 = arith.constant 0 : i32
    %c0_i32_0 = arith.constant 0 : i32
    %c0_i32_1 = arith.constant 0 : i32
    %c0_i32_2 = arith.constant 0 : i32
    return %c0_i32, %c0_i32_0, %c0_i32_1 : i32, i32, i32
  }
  func.func @transform_6(%arg0: i32) -> (i32, i32) {
    %c0_i32 = arith.constant 0 : i32
    %c0_i32_0 = arith.constant 0 : i32
    %c0_i32_1 = arith.constant 0 : i32
    return %c0_i32, %c0_i32_0 : i32, i32
  }
  func.func @transform_7(%arg0: i32) -> (i32, i32) {
    %c0_i32 = arith.constant 0 : i32
    %c0_i32_0 = arith.constant 0 : i32
    %c0_i32_1 = arith.constant 0 : i32
    return %c0_i32, %c0_i32_0 : i32, i32
  }
  func.func @transform_8(%arg0: i32) -> (i32, i32) {
    %c0_i32 = arith.constant 0 : i32
    %c0_i32_0 = arith.constant 0 : i32
    %c0_i32_1 = arith.constant 0 : i32
    return %c0_i32, %c0_i32_0 : i32, i32
  }
  func.func @transform_9(%arg0: i32) -> (i32, i32) {
    %c0_i32 = arith.constant 0 : i32
    %c0_i32_0 = arith.constant 0 : i32
    return %arg0, %c0_i32 : i32, i32
  }
}

</mosaic_0001>

<llo_original>
// kernel: simple_cnn_forward.1
$region0: #{simple_cnn_forward.1}
  #allocation0 [shape = 'u32[]', space=smem, size = 0x4, offset = 0x4, fixed_abs, tag = 'smem constant byte address 0x4 - core index']
  #allocation1 [shape = 'u32[144,128]{1,0:T(1,128)}', space=vmem, size = 0x12000, scoped, tag = 'internal scratch']
  %s0 = inlined_call_operand.vmem [shape: bf16[2,4,256,84], index: 0, kind: input, shape index: {}]
  %s1 = inlined_call_operand.vmem [shape: bf16[2,84,256], index: 1, kind: input, shape index: {}]
  %s2 = inlined_call_operand.vmem [shape: f32[1,256], index: 2, kind: input, shape index: {}]
  %s3 = inlined_call_operand.vmem [shape: bf16[6,256,256], index: 3, kind: input, shape index: {}]
  %s4 = inlined_call_operand.vmem [shape: f32[1,256], index: 4, kind: input, shape index: {}]
  %s5 = inlined_call_operand.vmem [shape: bf16[7,256,128], index: 5, kind: input, shape index: {}]
  %s6 = inlined_call_operand.vmem [shape: f32[1,128], index: 6, kind: input, shape index: {}]
  %s7 = inlined_call_operand.vmem [shape: bf16[128,128], index: 7, kind: input, shape index: {}]
  %s8 = inlined_call_operand.vmem [shape: f32[1,128], index: 8, kind: input, shape index: {}]
  %s9 = inlined_call_operand.vmem [shape: f32[64,128], index: 9, kind: output, shape index: {}]
  %s10 = sld [smem:[#allocation0]]
  $region69: #{simple_cnn_forward.1} parent=0
    _
  %s12 = ssub.s32 1, %s10
  %s13 = scalar_select 0, %s12, %s10
  loop: start=0, step=1, limit=4
  $region2: #{simple_cnn_forward.1} parent=0 // loop_pre_header
    _
  $region3: #{simple_cnn_forward.1} parent=0 // loop_header
    %s15 = sphi 0, %s19
    %p16 = scmp.ge.s32.totalorder %s15, 4
    %s25 = sphi 0, %s27
    %s28 = sphi 0, %s25
    %s29 = sphi 0, %s28
    %s45 = sphi 0, %s29
    %s49 = sphi 0, %s49
    %s51 = sphi 0, %s49
    %s52 = sphi 0, %s51
    %s66 = sphi 0, %s52
    %s70 = sphi 0, %s70
    %s72 = sphi 0, %s70
    %s73 = sphi 0, %s72
    %s87 = sphi 0, %s73
    %s91 = sphi 0, %s91
    %s93 = sphi 0, %s91
    %s94 = sphi 0, %s93
    %s108 = sphi 0, %s94
    %s112 = sphi 0, %s112
    %s114 = sphi 0, %s112
    %s115 = sphi 0, %s114
    %s129 = sphi 0, %s115
    %s133 = sphi 0, %s133
    %s135 = sphi 0, %s133
    %s136 = sphi 0, %s135
    %s150 = sphi 0, %s136
    %s154 = sphi 0, %s154
    %s156 = sphi 0, %s154
    %s157 = sphi 0, %s156
    %s171 = sphi 0, %s157
    %s175 = sphi 0, %s175
    %s177 = sphi 0, %s175
    %s178 = sphi 0, %s177
    %s192 = sphi 0, %s178
    %s196 = sphi 0, %s196
    %s198 = sphi 0, %s196
    %s199 = sphi 0, %s198
    %s213 = sphi 0, %s199
    %s219 = sphi 0, %s221
    %s222 = sphi 0, %s219
    %s223 = sphi 0, %s222
    %s239 = sphi 0, %s223
  $region4: #{simple_cnn_forward.1} parent=0 // loop_header_branch
    %18 = sbr.rel (%p16) target = $region8
  $region5: #{simple_cnn_forward.1} parent=0 // loop_body
    %s20 = ssub.s32 %s15, 1
    %s21 = ssub.s32 %s15, 2
    %s22 = sadd.s32 %s15, 1
    %s23 = ssub.s32 %s15, %s22
    %p24 = scmp.eq.s32.totalorder %s23, 0
    %s26 = sadd.s32 %s25, 1
    %s27 = scalar_select %p24, %s25, %s26
    %p30 = pneg %p24
    %p31 = scmp.eq.s32.totalorder %s15, 1
    %p32 = por %p30, %p31
    %p33 = scmp.ne.s32.totalorder %s25, %s28
    %p34 = scmp.eq.s32.totalorder %s15, 0
    %p35 = por %p33, %p34
    %p36 = scmp.ne.s32.totalorder %s25, %s28
    %p37 = scmp.eq.s32.totalorder %s20, 1
    %p38 = por %p36, %p37
    %p39 = scmp.ne.s32.totalorder %s28, %s29
    %p40 = scmp.eq.s32.totalorder %s20, 0
    %p41 = por %p39, %p40
    %p42 = scmp.ne.s32.totalorder %s28, %s29
    %p43 = scmp.eq.s32.totalorder %s21, 1
    %p44 = por %p42, %p43
    %p46 = scmp.ne.s32.totalorder %s29, %s45
    %p47 = scmp.eq.s32.totalorder %s21, 0
    %p48 = por %p46, %p47
    %s50 = sadd.s32 %s49, 1
    %p53 = scmp.eq.s32.totalorder %s15, 1
    %p54 = scmp.ne.s32.totalorder %s49, %s51
    %p55 = scmp.eq.s32.totalorder %s15, 0
    %p56 = por %p54, %p55
    %p57 = scmp.ne.s32.totalorder %s49, %s51
    %p58 = scmp.eq.s32.totalorder %s20, 1
    %p59 = por %p57, %p58
    %p60 = scmp.ne.s32.totalorder %s51, %s52
    %p61 = scmp.eq.s32.totalorder %s20, 0
    %p62 = por %p60, %p61
    %p63 = scmp.ne.s32.totalorder %s51, %s52
    %p64 = scmp.eq.s32.totalorder %s21, 1
    %p65 = por %p63, %p64
    %p67 = scmp.ne.s32.totalorder %s52, %s66
    %p68 = scmp.eq.s32.totalorder %s21, 0
    %p69 = por %p67, %p68
    %s71 = sadd.s32 %s70, 1
    %p74 = scmp.eq.s32.totalorder %s15, 1
    %p75 = scmp.ne.s32.totalorder %s70, %s72
    %p76 = scmp.eq.s32.totalorder %s15, 0
    %p77 = por %p75, %p76
    %p78 = scmp.ne.s32.totalorder %s70, %s72
    %p79 = scmp.eq.s32.totalorder %s20, 1
    %p80 = por %p78, %p79
    %p81 = scmp.ne.s32.totalorder %s72, %s73
    %p82 = scmp.eq.s32.totalorder %s20, 0
    %p83 = por %p81, %p82
    %p84 = scmp.ne.s32.totalorder %s72, %s73
    %p85 = scmp.eq.s32.totalorder %s21, 1
    %p86 = por %p84, %p85
    %p88 = scmp.ne.s32.totalorder %s73, %s87
    %p89 = scmp.eq.s32.totalorder %s21, 0
    %p90 = por %p88, %p89
    %s92 = sadd.s32 %s91, 1
    %p95 = scmp.eq.s32.totalorder %s15, 1
    %p96 = scmp.ne.s32.totalorder %s91, %s93
    %p97 = scmp.eq.s32.totalorder %s15, 0
    %p98 = por %p96, %p97
    %p99 = scmp.ne.s32.totalorder %s91, %s93
    %p100 = scmp.eq.s32.totalorder %s20, 1
    %p101 = por %p99, %p100
    %p102 = scmp.ne.s32.totalorder %s93, %s94
    %p103 = scmp.eq.s32.totalorder %s20, 0
    %p104 = por %p102, %p103
    %p105 = scmp.ne.s32.totalorder %s93, %s94
    %p106 = scmp.eq.s32.totalorder %s21, 1
    %p107 = por %p105, %p106
    %p109 = scmp.ne.s32.totalorder %s94, %s108
    %p110 = scmp.eq.s32.totalorder %s21, 0
    %p111 = por %p109, %p110
    %s113 = sadd.s32 %s112, 1
    %p116 = scmp.eq.s32.totalorder %s15, 1
    %p117 = scmp.ne.s32.totalorder %s112, %s114
    %p118 = scmp.eq.s32.totalorder %s15, 0
    %p119 = por %p117, %p118
    %p120 = scmp.ne.s32.totalorder %s112, %s114
    %p121 = scmp.eq.s32.totalorder %s20, 1
    %p122 = por %p120, %p121
    %p123 = scmp.ne.s32.totalorder %s114, %s115
    %p124 = scmp.eq.s32.totalorder %s20, 0
    %p125 = por %p123, %p124
    %p126 = scmp.ne.s32.totalorder %s114, %s115
    %p127 = scmp.eq.s32.totalorder %s21, 1
    %p128 = por %p126, %p127
    %p130 = scmp.ne.s32.totalorder %s115, %s129
    %p131 = scmp.eq.s32.totalorder %s21, 0
    %p132 = por %p130, %p131
    %s134 = sadd.s32 %s133, 1
    %p137 = scmp.eq.s32.totalorder %s15, 1
    %p138 = scmp.ne.s32.totalorder %s133, %s135
    %p139 = scmp.eq.s32.totalorder %s15, 0
    %p140 = por %p138, %p139
    %p141 = scmp.ne.s32.totalorder %s133, %s135
    %p142 = scmp.eq.s32.totalorder %s20, 1
    %p143 = por %p141, %p142
    %p144 = scmp.ne.s32.totalorder %s135, %s136
    %p145 = scmp.eq.s32.totalorder %s20, 0
    %p146 = por %p144, %p145
    %p147 = scmp.ne.s32.totalorder %s135, %s136
    %p148 = scmp.eq.s32.totalorder %s21, 1
    %p149 = por %p147, %p148
    %p151 = scmp.ne.s32.totalorder %s136, %s150
    %p152 = scmp.eq.s32.totalorder %s21, 0
    %p153 = por %p151, %p152
    %s155 = sadd.s32 %s154, 1
    %p158 = scmp.eq.s32.totalorder %s15, 1
    %p159 = scmp.ne.s32.totalorder %s154, %s156
    %p160 = scmp.eq.s32.totalorder %s15, 0
    %p161 = por %p159, %p160
    %p162 = scmp.ne.s32.totalorder %s154, %s156
    %p163 = scmp.eq.s32.totalorder %s20, 1
    %p164 = por %p162, %p163
    %p165 = scmp.ne.s32.totalorder %s156, %s157
    %p166 = scmp.eq.s32.totalorder %s20, 0
    %p167 = por %p165, %p166
    %p168 = scmp.ne.s32.totalorder %s156, %s157
    %p169 = scmp.eq.s32.totalorder %s21, 1
    %p170 = por %p168, %p169
    %p172 = scmp.ne.s32.totalorder %s157, %s171
    %p173 = scmp.eq.s32.totalorder %s21, 0
    %p174 = por %p172, %p173
    %s176 = sadd.s32 %s175, 1
    %p179 = scmp.eq.s32.totalorder %s15, 1
    %p180 = scmp.ne.s32.totalorder %s175, %s177
    %p181 = scmp.eq.s32.totalorder %s15, 0
    %p182 = por %p180, %p181
    %p183 = scmp.ne.s32.totalorder %s175, %s177
    %p184 = scmp.eq.s32.totalorder %s20, 1
    %p185 = por %p183, %p184
    %p186 = scmp.ne.s32.totalorder %s177, %s178
    %p187 = scmp.eq.s32.totalorder %s20, 0
    %p188 = por %p186, %p187
    %p189 = scmp.ne.s32.totalorder %s177, %s178
    %p190 = scmp.eq.s32.totalorder %s21, 1
    %p191 = por %p189, %p190
    %p193 = scmp.ne.s32.totalorder %s178, %s192
    %p194 = scmp.eq.s32.totalorder %s21, 0
    %p195 = por %p193, %p194
    %s197 = sadd.s32 %s196, 1
    %p200 = scmp.eq.s32.totalorder %s15, 1
    %p201 = scmp.ne.s32.totalorder %s196, %s198
    %p202 = scmp.eq.s32.totalorder %s15, 0
    %p203 = por %p201, %p202
    %p204 = scmp.ne.s32.totalorder %s196, %s198
    %p205 = scmp.eq.s32.totalorder %s20, 1
    %p206 = por %p204, %p205
    %p207 = scmp.ne.s32.totalorder %s198, %s199
    %p208 = scmp.eq.s32.totalorder %s20, 0
    %p209 = por %p207, %p208
    %p210 = scmp.ne.s32.totalorder %s198, %s199
    %p211 = scmp.eq.s32.totalorder %s21, 1
    %p212 = por %p210, %p211
    %p214 = scmp.ne.s32.totalorder %s199, %s213
    %p215 = scmp.eq.s32.totalorder %s21, 0
    %p216 = por %p214, %p215
    %s217 = ssub.s32 %s15, %s22
    %p218 = scmp.eq.s32.totalorder %s217, 0
    %s220 = sadd.s32 %s219, 1
    %s221 = scalar_select %p218, %s219, %s220
    %p224 = pneg %p218
    %p225 = scmp.eq.s32.totalorder %s15, 1
    %p226 = por %p224, %p225
    %p227 = scmp.ne.s32.totalorder %s219, %s222
    %p228 = scmp.eq.s32.totalorder %s15, 0
    %p229 = por %p227, %p228
    %p230 = scmp.ne.s32.totalorder %s219, %s222
    %p231 = scmp.eq.s32.totalorder %s20, 1
    %p232 = por %p230, %p231
    %p233 = scmp.ne.s32.totalorder %s222, %s223
    %p234 = scmp.eq.s32.totalorder %s20, 0
    %p235 = por %p233, %p234
    %p236 = scmp.ne.s32.totalorder %s222, %s223
    %p237 = scmp.eq.s32.totalorder %s21, 1
    %p238 = por %p236, %p237
    %p240 = scmp.ne.s32.totalorder %s223, %s239
    %p241 = scmp.eq.s32.totalorder %s21, 0
    %p242 = por %p240, %p241
    %p243 = scmp.le.s32.totalorder 1, %s15
    %p244 = scmp.lt.s32.totalorder %s15, 3
    %p245 = pnand %p243, %p244
    %p246 = pneg %p245
    // Predicated region
    $region9: #{simple_cnn_forward.1} parent=5 // pred_check
      _
    $region10: #{simple_cnn_forward.1} parent=5 // pred_check_branch
      %248 = sbr.rel (%p245) target = $region12
    $region11: #{simple_cnn_forward.1} parent=5 // pred_region
      %s249 = ssub.s32 %s15, 1
      // Predicated region
      $region13: #{simple_cnn_forward.1} parent=11 // pred_check
        %p250 = pneg %p62
      $region14: #{simple_cnn_forward.1} parent=11 // pred_check_branch
        %252 = sbr.rel (%p250) target = $region16
      $region15: #{simple_cnn_forward.1} parent=11 // pred_region
        _
      $region16: #{simple_cnn_forward.1} parent=11 // pred_fallthru
        _
      // Predicated region
      $region17: #{simple_cnn_forward.1} parent=11 // pred_check
        %p253 = pneg %p83
      $region18: #{simple_cnn_forward.1} parent=11 // pred_check_branch
        %255 = sbr.rel (%p253) target = $region20
      $region19: #{simple_cnn_forward.1} parent=11 // pred_region
        _
      $region20: #{simple_cnn_forward.1} parent=11 // pred_fallthru
        _
      // Predicated region
      $region21: #{simple_cnn_forward.1} parent=11 // pred_check
        %p256 = pneg %p104
      $region22: #{simple_cnn_forward.1} parent=11 // pred_check_branch
        %258 = sbr.rel (%p256) target = $region24
      $region23: #{simple_cnn_forward.1} parent=11 // pred_region
        _
      $region24: #{simple_cnn_forward.1} parent=11 // pred_fallthru
        _
      // Predicated region
      $region25: #{simple_cnn_forward.1} parent=11 // pred_check
        %p259 = pneg %p125
      $region26: #{simple_cnn_forward.1} parent=11 // pred_check_branch
        %261 = sbr.rel (%p259) target = $region28
      $region27: #{simple_cnn_forward.1} parent=11 // pred_region
        _
      $region28: #{simple_cnn_forward.1} parent=11 // pred_fallthru
        _
      // Predicated region
      $region29: #{simple_cnn_forward.1} parent=11 // pred_check
        %p262 = pneg %p146
      $region30: #{simple_cnn_forward.1} parent=11 // pred_check_branch
        %264 = sbr.rel (%p262) target = $region32
      $region31: #{simple_cnn_forward.1} parent=11 // pred_region
        _
      $region32: #{simple_cnn_forward.1} parent=11 // pred_fallthru
        _
      // Predicated region
      $region33: #{simple_cnn_forward.1} parent=11 // pred_check
        %p265 = pneg %p167
      $region34: #{simple_cnn_forward.1} parent=11 // pred_check_branch
        %267 = sbr.rel (%p265) target = $region36
      $region35: #{simple_cnn_forward.1} parent=11 // pred_region
        _
      $region36: #{simple_cnn_forward.1} parent=11 // pred_fallthru
        _
      // Predicated region
      $region37: #{simple_cnn_forward.1} parent=11 // pred_check
        %p268 = pneg %p188
      $region38: #{simple_cnn_forward.1} parent=11 // pred_check_branch
        %270 = sbr.rel (%p268) target = $region40
      $region39: #{simple_cnn_forward.1} parent=11 // pred_region
        _
      $region40: #{simple_cnn_forward.1} parent=11 // pred_fallthru
        _
      // Predicated region
      $region41: #{simple_cnn_forward.1} parent=11 // pred_check
        %p271 = pneg %p209
      $region42: #{simple_cnn_forward.1} parent=11 // pred_check_branch
        %273 = sbr.rel (%p271) target = $region44
      $region43: #{simple_cnn_forward.1} parent=11 // pred_region
        _
      $region44: #{simple_cnn_forward.1} parent=11 // pred_fallthru
        _
    $region12: #{simple_cnn_forward.1} parent=5 // pred_fallthru
      _
    %p274 = scmp.lt.s32.totalorder %s15, 2
    // Predicated region
    $region45: #{simple_cnn_forward.1} parent=5 // pred_check
      %p275 = pneg %p274
    $region46: #{simple_cnn_forward.1} parent=5 // pred_check_branch
      %277 = sbr.rel (%p275) target = $region48
    $region47: #{simple_cnn_forward.1} parent=5 // pred_region
      // Predicated region
      $region49: #{simple_cnn_forward.1} parent=47 // pred_check
        %p278 = pneg %p35
      $region50: #{simple_cnn_forward.1} parent=47 // pred_check_branch
        %280 = sbr.rel (%p278) target = $region52
      $region51: #{simple_cnn_forward.1} parent=47 // pred_region
        %p281 = scmp.lt.s32.totalorder %s15, 1
        %s282 = scalar_select %p281, %s15, 1
        %s283 = smul.addr %s282, 128
        %s284 = smul.addr %s283, 4
        %s285 = scalar_lea.vmem %s0, %s284
      $region52: #{simple_cnn_forward.1} parent=47 // pred_fallthru
        _
    $region48: #{simple_cnn_forward.1} parent=5 // pred_fallthru
      _
    %p286 = scmp.le.s32.totalorder 1, %s15
    %p287 = scmp.lt.s32.totalorder %s15, 3
    %p288 = pnand %p286, %p287
    %p289 = pneg %p288
    // Predicated region
    $region53: #{simple_cnn_forward.1} parent=5 // pred_check
      _
    $region54: #{simple_cnn_forward.1} parent=5 // pred_check_branch
      %291 = sbr.rel (%p288) target = $region56
    $region55: #{simple_cnn_forward.1} parent=5 // pred_region
      %s292 = ssub.s32 %s15, 1
      %p293 = scmp.lt.s32.totalorder %s20, 1
      %s294 = scalar_select %p293, %s20, 1
      %s295 = smul.addr %s294, 128
      %s296 = smul.addr %s295, 4
      %s297 = scalar_lea.vmem %s0, %s296
      %p298 = pneg %p41
      %p299 = pneg %p38
      %p300 = pneg %p62
      %p301 = pneg %p59
      %p302 = pneg %p83
      %p303 = pneg %p80
      %p304 = pneg %p104
      %p305 = pneg %p101
      %p306 = pneg %p125
      %p307 = pneg %p122
      %p308 = pneg %p146
      %p309 = pneg %p143
      %p310 = pneg %p167
      %p311 = pneg %p164
      %p312 = pneg %p188
      %p313 = pneg %p185
      %p314 = pneg %p209
      %p315 = pneg %p206
      %p316 = pneg %p235
      %p317 = pneg %p232
      %s318 = smul.u32 4, %s20
      %p319 = scmp.lt.s32.totalorder %s318, 7
      %s320 = scalar_select %p319, %s318, 7
      %s321 = smul.addr %s320, 8
      %s322 = scalar_lea.vmem %s9, %s321
      %p323 = scmp.lt.s32.totalorder %s20, 1
      %s324 = scalar_select %p323, %s20, 1
      %s325 = smul.addr %s324, 128
      %s326 = smul.addr %s325, 4
      %s327 = scalar_lea.vmem %s0, %s326
      %s328 = smul.u32 4, %s20
      %p329 = scmp.lt.s32.totalorder %s328, 7
      %s330 = scalar_select %p329, %s328, 7
      %s331 = smul.addr %s330, 8
      %s332 = scalar_lea.vmem %s9, %s331
      %s333 = smul.u32 4, %s20
      %v335 = vlaneseq
      %v336 = vshrl.u32 %v335, 7
      %v337 = vadd.s32 %v336, 8
      %v338 = vadd.s32 %v336, 16
      %v339 = vadd.s32 %v336, 24
      %v340 = vadd.s32 %v336, 32
      %v341 = vadd.s32 %v336, 40
      %v342 = vadd.s32 %v336, 48
      %v343 = vadd.s32 %v336, 56
      %v344 = vadd.s32 %v336, 64
      %v345 = vadd.s32 %v336, 72
      %v346 = vadd.s32 %v336, 80
      %v347 = vadd.s32 %v336, 88
      %v348 = vadd.s32 %v336, 96
      %v349 = vadd.s32 %v336, 104
      %v350 = vadd.s32 %v336, 112
      %v351 = vadd.s32 %v336, 120
      %v352 = vadd.s32 %v336, 128
      %v353 = vadd.s32 %v336, 136
      %v354 = vadd.s32 %v336, 144
      %v355 = vadd.s32 %v336, 152
      %v356 = vadd.s32 %v336, 160
      %v357 = vadd.s32 %v336, 168
      %v358 = vadd.s32 %v336, 176
      %v359 = vadd.s32 %v336, 184
      %v360 = vadd.s32 %v336, 192
      %v361 = vadd.s32 %v336, 200
      %v362 = vadd.s32 %v336, 208
      %v363 = vadd.s32 %v336, 216
      %v364 = vadd.s32 %v336, 224
      %v365 = vadd.s32 %v336, 232
      %v366 = vadd.s32 %v336, 240
      %v367 = vadd.s32 %v336, 248
      %vm368 = vcmp.ge.s32.totalorder %v336, 224
      %vm369 = vcmp.ge.s32.totalorder %v337, 224
      %vm370 = vcmp.ge.s32.totalorder %v338, 224
      %vm371 = vcmp.ge.s32.totalorder %v339, 224
      %vm372 = vcmp.ge.s32.totalorder %v340, 224
      %vm373 = vcmp.ge.s32.totalorder %v341, 224
      %vm374 = vcmp.ge.s32.totalorder %v342, 224
      %vm375 = vcmp.ge.s32.totalorder %v343, 224
      %vm376 = vcmp.ge.s32.totalorder %v344, 224
      %vm377 = vcmp.ge.s32.totalorder %v345, 224
      %vm378 = vcmp.ge.s32.totalorder %v346, 224
      %vm379 = vcmp.ge.s32.totalorder %v347, 224
      %vm380 = vcmp.ge.s32.totalorder %v348, 224
      %vm381 = vcmp.ge.s32.totalorder %v349, 224
      %vm382 = vcmp.ge.s32.totalorder %v350, 224
      %vm383 = vcmp.ge.s32.totalorder %v351, 224
      %vm384 = vcmp.ge.s32.totalorder %v352, 224
      %vm385 = vcmp.ge.s32.totalorder %v353, 224
      %vm386 = vcmp.ge.s32.totalorder %v354, 224
      %vm387 = vcmp.ge.s32.totalorder %v355, 224
      %vm388 = vcmp.ge.s32.totalorder %v356, 224
      %vm389 = vcmp.ge.s32.totalorder %v357, 224
      %vm390 = vcmp.ge.s32.totalorder %v358, 224
      %vm391 = vcmp.ge.s32.totalorder %v359, 224
      %vm392 = vcmp.ge.s32.totalorder %v360, 224
      %vm393 = vcmp.ge.s32.totalorder %v361, 224
      %vm394 = vcmp.ge.s32.totalorder %v362, 224
      %vm395 = vcmp.ge.s32.totalorder %v363, 224
      %vm396 = vcmp.ge.s32.totalorder %v364, 224
      %vm397 = vcmp.ge.s32.totalorder %v365, 224
      %vm398 = vcmp.ge.s32.totalorder %v366, 224
      %vm399 = vcmp.ge.s32.totalorder %v367, 224
      %v400 = vld [vmem:[%s327] sm:$0xf]
      %v401 = vld [vmem:[%s327 + $0x4] sm:$0xf]
      %v402 = vld [vmem:[%s327 + $0x8] sm:$0xf]
      %v403 = vld [vmem:[%s327 + $0xc] sm:$0xf]
      %v404 = vld [vmem:[%s327 + $0x10] sm:$0xf]
      %v405 = vld [vmem:[%s327 + $0x14] sm:$0xf]
      %v406 = vld [vmem:[%s327 + $0x18] sm:$0xf]
      %v407 = vld [vmem:[%s327 + $0x1c] sm:$0xf]
      %v408 = vld [vmem:[%s327 + $0x20] sm:$0xf]
      %v409 = vld [vmem:[%s327 + $0x24] sm:$0xf]
      %v410 = vld [vmem:[%s327 + $0x28] sm:$0xf]
      %v411 = vld [vmem:[%s327 + $0x2c] sm:$0xf]
      %v412 = vld [vmem:[%s327 + $0x30] sm:$0xf]
      %v413 = vld [vmem:[%s327 + $0x34] sm:$0xf]
      %v414 = vld [vmem:[%s327 + $0x38] sm:$0xf]
      %v415 = vld [vmem:[%s327 + $0x3c] sm:$0xf]
      %v416 = vld [vmem:[%s327 + $0x40] sm:$0xf]
      %v417 = vld [vmem:[%s327 + $0x44] sm:$0xf]
      %v418 = vld [vmem:[%s327 + $0x48] sm:$0xf]
      %v419 = vld [vmem:[%s327 + $0x4c] sm:$0xf]
      %v420 = vld [vmem:[%s327 + $0x50] sm:$0xf]
      %v421 = vld [vmem:[%s327 + $0x54] sm:$0xf]
      %v422 = vld [vmem:[%s327 + $0x58] sm:$0xf]
      %v423 = vld [vmem:[%s327 + $0x5c] sm:$0xf]
      %v424 = vld [vmem:[%s327 + $0x60] sm:$0xf]
      %v425 = vld [vmem:[%s327 + $0x64] sm:$0xf]
      %v426 = vld [vmem:[%s327 + $0x68] sm:$0xf]
      %v427 = vld [vmem:[%s327 + $0x6c] sm:$0xf]
      %v428 = vld [vmem:[%s327 + $0x70] sm:$0xf]
      %v429 = vld [vmem:[%s327 + $0x74] sm:$0xf]
      %v430 = vld [vmem:[%s327 + $0x78] sm:$0xf]
      %v431 = vld [vmem:[%s327 + $0x7c] sm:$0xf]
      %v432 = vld [vmem:[%s1] sm:$0xff]
      %v433 = vld [vmem:[%s1 + $0x8] sm:$0xff]
      %v434 = vld [vmem:[%s1 + $0x10] sm:$0xff]
      %v435 = vld [vmem:[%s1 + $0x18] sm:$0xff]
      %v436 = vld [vmem:[%s1 + $0x20] sm:$0xff]
      %v437 = vld [vmem:[%s1 + $0x28] sm:$0xff]
      %v438 = vld [vmem:[%s1 + $0x30] sm:$0xff]
      %v439 = vld [vmem:[%s1 + $0x38] sm:$0xff]
      %v440 = vld [vmem:[%s1 + $0x40] sm:$0xff]
      %v441 = vld [vmem:[%s1 + $0x48] sm:$0xff]
      %v442 = vld [vmem:[%s1 + $0x50] sm:$0x33]
      %v475 = vunpack.c.l.b16 %v400
      %v476 = vunpack.c.l.b16 %v401
      %v477 = vunpack.c.l.b16 %v402
      %v478 = vunpack.c.l.b16 %v403
      %v479 = vunpack.c.l.b16 %v404
      %v480 = vunpack.c.l.b16 %v405
      %v481 = vunpack.c.l.b16 %v406
      %v482 = vunpack.c.l.b16 %v407
      %v483 = vunpack.c.l.b16 %v408
      %v484 = vunpack.c.l.b16 %v409
      %v485 = vunpack.c.l.b16 %v410
      %v486 = vunpack.c.l.b16 %v411
      %v487 = vunpack.c.l.b16 %v412
      %v488 = vunpack.c.l.b16 %v413
      %v489 = vunpack.c.l.b16 %v414
      %v490 = vunpack.c.l.b16 %v415
      %v491 = vunpack.c.l.b16 %v416
      %v492 = vunpack.c.l.b16 %v417
      %v493 = vunpack.c.l.b16 %v418
      %v494 = vunpack.c.l.b16 %v419
      %v495 = vunpack.c.l.b16 %v420
      %v496 = vunpack.c.l.b16 %v421
      %v497 = vunpack.c.l.b16 %v422
      %v498 = vunpack.c.l.b16 %v423
      %v499 = vunpack.c.l.b16 %v424
      %v500 = vunpack.c.l.b16 %v425
      %v501 = vunpack.c.l.b16 %v426
      %v502 = vunpack.c.l.b16 %v427
      %v503 = vunpack.c.l.b16 %v428
      %v504 = vunpack.c.l.b16 %v429
      %v505 = vunpack.c.l.b16 %v430
      %v506 = vunpack.c.l.b16 %v431
      %v507 = vpack.c.b16 %v476, %v475
      %v508 = vpack.c.b16 %v478, %v477
      %v509 = vpack.c.b16 %v480, %v479
      %v510 = vpack.c.b16 %v482, %v481
      %v511 = vpack.c.b16 %v484, %v483
      %v512 = vpack.c.b16 %v486, %v485
      %v513 = vpack.c.b16 %v488, %v487
      %v514 = vpack.c.b16 %v490, %v489
      %v515 = vpack.c.b16 %v492, %v491
      %v516 = vpack.c.b16 %v494, %v493
      %v517 = vpack.c.b16 %v496, %v495
      %v518 = vpack.c.b16 %v498, %v497
      %v519 = vpack.c.b16 %v500, %v499
      %v520 = vpack.c.b16 %v502, %v501
      %v521 = vpack.c.b16 %v504, %v503
      %v522 = vpack.c.b16 %v506, %v505
      %v534 = vunpack.c.l.b16 %v432
      %v535 = vunpack.c.h.b16 %v432
      %v536 = vunpack.c.l.b16 %v433
      %v537 = vunpack.c.h.b16 %v433
      %v538 = vunpack.c.l.b16 %v434
      %v539 = vunpack.c.h.b16 %v434
      %v540 = vunpack.c.l.b16 %v435
      %v541 = vunpack.c.h.b16 %v435
      %v542 = vunpack.c.l.b16 %v436
      %v543 = vunpack.c.h.b16 %v436
      %v544 = vunpack.c.l.b16 %v437
      %v545 = vunpack.c.h.b16 %v437
      %v546 = vunpack.c.l.b16 %v438
      %v547 = vunpack.c.h.b16 %v438
      %v548 = vunpack.c.l.b16 %v439
      %v549 = vunpack.c.h.b16 %v439
      %v550 = vunpack.c.l.b16 %v440
      %v551 = vunpack.c.h.b16 %v440
      %v552 = vunpack.c.l.b16 %v441
      %v553 = vunpack.c.h.b16 %v441
      %v554 = vunpack.c.l.b16 %v442
      %v555 = vunpack.c.h.b16 %v442
      %v556 = vpack.c.b16 %v536, %v534
      %v557 = vpack.c.b16 %v537, %v535
      %v558 = vpack.c.b16 %v540, %v538
      %v559 = vpack.c.b16 %v541, %v539
      %v560 = vpack.c.b16 %v544, %v542
      %v561 = vpack.c.b16 %v545, %v543
      %v562 = vpack.c.b16 %v548, %v546
      %v563 = vpack.c.b16 %v549, %v547
      %v564 = vpack.c.b16 %v552, %v550
      %v565 = vpack.c.b16 %v553, %v551
      %v566 = vpack.c.b16 %v554, %v554
      %v567 = vpack.c.b16 %v555, %v555
      %vm578 = vcmask 687104
      %v580 = vsel %vm578, %v507, 0
      %v583 = vsel %vm578, %v508, 0
      %v586 = vsel %vm578, %v509, 0
      %v589 = vsel %vm578, %v510, 0
      %v592 = vsel %vm578, %v511, 0
      %v595 = vsel %vm578, %v512, 0
      %v598 = vsel %vm578, %v513, 0
      %v601 = vsel %vm578, %v514, 0
      %v604 = vsel %vm578, %v515, 0
      %v607 = vsel %vm578, %v516, 0
      %v610 = vsel %vm578, %v517, 0
      %v613 = vsel %vm578, %v518, 0
      %v616 = vsel %vm578, %v519, 0
      %v619 = vsel %vm578, %v520, 0
      %v622 = vsel %vm578, %v521, 0
      %v625 = vsel %vm578, %v522, 0
      %vm627 = vcmask 1041408
      %v629 = vsel %vm627, %v566, 0
      %v632 = vsel %vm627, %v567, 0
      %634 = vmatprep.subr.bf16.mxu0 %v557
      %635 = vmatpush1.bf16.msra.mxu0 %v556
      %636 = vmatprep.subr.bf16.mxu0 %v559
      %637 = vmatpush1.bf16.msra.mxu0 %v558
      %638 = vmatprep.subr.bf16.mxu0 %v561
      %639 = vmatpush1.bf16.msra.mxu0 %v560
      %640 = vmatprep.subr.bf16.mxu0 %v563
      %641 = vmatpush1.bf16.msra.mxu0 %v562
      %642 = vmatprep.subr.bf16.mxu0 %v565
      %643 = vmatpush1.bf16.msra.mxu0 %v564
      %644 = vmatprep.subr.bf16.mxu0 %v632
      %645 = vmatpush1.bf16.msra.mxu0 %v629
      %646 = vmatprep.subr.bf16.mxu0 0
      %647 = vmatpush1.bf16.msra.mxu0 0
      %648 = vmatprep.subr.bf16.mxu0 0
      %649 = vmatpush1.bf16.msra.mxu0 0
      %650 = vmatprep.subr.bf16.mxu0 0
      %651 = vmatpush1.bf16.msra.mxu0 0
      %652 = vmatprep.subr.bf16.mxu0 0
      %653 = vmatpush1.bf16.msra.mxu0 0
      %654 = vmatprep.subr.bf16.mxu0 0
      %655 = vmatpush1.bf16.msra.mxu0 0
      %656 = vmatprep.subr.bf16.mxu0 0
      %657 = vmatpush1.bf16.msra.mxu0 0
      %658 = vmatprep.subr.bf16.mxu0 0
      %659 = vmatpush1.bf16.msra.mxu0 0
      %660 = vmatprep.subr.bf16.mxu0 0
      %661 = vmatpush1.bf16.msra.mxu0 0
      %662 = vmatprep.subr.bf16.mxu0 0
      %663 = vmatpush1.bf16.msra.mxu0 0
      %664 = vmatprep.subr.bf16.mxu0 0
      %665 = vmatpush1.bf16.msra.mxu0 0
      %666 = vmatprep.mubr.bf16.mxu0 0
      %667 = vmatmul.mubr.bf16.gmra.mrb[0].mxu0 %v580
      %v668 = vpop.f32.mrb[0].mxu0
      %v669 = vadd.f32 0.0, %v668
      %v670 = vpop.f32.mrb[0].mxu0
      %v671 = vadd.f32 0.0, %v670
      %v672 = vpop.f32.mrb[0].mxu0
      %v673 = vadd.f32 0.0, %v672
      %v674 = vpop.f32.mrb[0].mxu0
      %v675 = vadd.f32 0.0, %v674
      %676 = vmatprep.mubr.bf16.mxu0 0
      %677 = vmatmul.mubr.bf16.gmra.mrb[0].mxu0 %v583
      %v678 = vpop.f32.mrb[0].mxu0
      %v679 = vadd.f32 0.0, %v678
      %v680 = vpop.f32.mrb[0].mxu0
      %v681 = vadd.f32 0.0, %v680
      %v682 = vpop.f32.mrb[0].mxu0
      %v683 = vadd.f32 0.0, %v682
      %v684 = vpop.f32.mrb[0].mxu0
      %v685 = vadd.f32 0.0, %v684
      %686 = vmatprep.mubr.bf16.mxu0 0
      %687 = vmatmul.mubr.bf16.gmra.mrb[0].mxu0 %v586
      %v688 = vpop.f32.mrb[0].mxu0
      %v689 = vadd.f32 0.0, %v688
      %v690 = vpop.f32.mrb[0].mxu0
      %v691 = vadd.f32 0.0, %v690
      %v692 = vpop.f32.mrb[0].mxu0
      %v693 = vadd.f32 0.0, %v692
      %v694 = vpop.f32.mrb[0].mxu0
      %v695 = vadd.f32 0.0, %v694
      %696 = vmatprep.mubr.bf16.mxu0 0
      %697 = vmatmul.mubr.bf16.gmra.mrb[0].mxu0 %v589
      %v698 = vpop.f32.mrb[0].mxu0
      %v699 = vadd.f32 0.0, %v698
      %v700 = vpop.f32.mrb[0].mxu0
      %v701 = vadd.f32 0.0, %v700
      %v702 = vpop.f32.mrb[0].mxu0
      %v703 = vadd.f32 0.0, %v702
      %v704 = vpop.f32.mrb[0].mxu0
      %v705 = vadd.f32 0.0, %v704
      %706 = vmatprep.mubr.bf16.mxu0 0
      %707 = vmatmul.mubr.bf16.gmra.mrb[0].mxu0 %v592
      %v708 = vpop.f32.mrb[0].mxu0
      %v709 = vadd.f32 0.0, %v708
      %v710 = vpop.f32.mrb[0].mxu0
      %v711 = vadd.f32 0.0, %v710
      %v712 = vpop.f32.mrb[0].mxu0
      %v713 = vadd.f32 0.0, %v712
      %v714 = vpop.f32.mrb[0].mxu0
      %v715 = vadd.f32 0.0, %v714
      %716 = vmatprep.mubr.bf16.mxu0 0
      %717 = vmatmul.mubr.bf16.gmra.mrb[0].mxu0 %v595
      %v718 = vpop.f32.mrb[0].mxu0
      %v719 = vadd.f32 0.0, %v718
      %v720 = vpop.f32.mrb[0].mxu0
      %v721 = vadd.f32 0.0, %v720
      %v722 = vpop.f32.mrb[0].mxu0
      %v723 = vadd.f32 0.0, %v722
      %v724 = vpop.f32.mrb[0].mxu0
      %v725 = vadd.f32 0.0, %v724
      %726 = vmatprep.mubr.bf16.mxu0 0
      %727 = vmatmul.mubr.bf16.gmra.mrb[0].mxu0 %v598
      %v728 = vpop.f32.mrb[0].mxu0
      %v729 = vadd.f32 0.0, %v728
      %v730 = vpop.f32.mrb[0].mxu0
      %v731 = vadd.f32 0.0, %v730
      %v732 = vpop.f32.mrb[0].mxu0
      %v733 = vadd.f32 0.0, %v732
      %v734 = vpop.f32.mrb[0].mxu0
      %v735 = vadd.f32 0.0, %v734
      %736 = vmatprep.mubr.bf16.mxu0 0
      %737 = vmatmul.mubr.bf16.gmra.mrb[0].mxu0 %v601
      %v738 = vpop.f32.mrb[0].mxu0
      %v739 = vadd.f32 0.0, %v738
      %v740 = vpop.f32.mrb[0].mxu0
      %v741 = vadd.f32 0.0, %v740
      %v742 = vpop.f32.mrb[0].mxu0
      %v743 = vadd.f32 0.0, %v742
      %v744 = vpop.f32.mrb[0].mxu0
      %v745 = vadd.f32 0.0, %v744
      %746 = vmatprep.mubr.bf16.mxu0 0
      %747 = vmatmul.mubr.bf16.gmra.mrb[0].mxu0 %v604
      %v748 = vpop.f32.mrb[0].mxu0
      %v749 = vadd.f32 0.0, %v748
      %v750 = vpop.f32.mrb[0].mxu0
      %v751 = vadd.f32 0.0, %v750
      %v752 = vpop.f32.mrb[0].mxu0
      %v753 = vadd.f32 0.0, %v752
      %v754 = vpop.f32.mrb[0].mxu0
      %v755 = vadd.f32 0.0, %v754
      %756 = vmatprep.mubr.bf16.mxu0 0
      %757 = vmatmul.mubr.bf16.gmra.mrb[0].mxu0 %v607
      %v758 = vpop.f32.mrb[0].mxu0
      %v759 = vadd.f32 0.0, %v758
      %v760 = vpop.f32.mrb[0].mxu0
      %v761 = vadd.f32 0.0, %v760
      %v762 = vpop.f32.mrb[0].mxu0
      %v763 = vadd.f32 0.0, %v762
      %v764 = vpop.f32.mrb[0].mxu0
      %v765 = vadd.f32 0.0, %v764
      %766 = vmatprep.mubr.bf16.mxu0 0
      %767 = vmatmul.mubr.bf16.gmra.mrb[0].mxu0 %v610
      %v768 = vpop.f32.mrb[0].mxu0
      %v769 = vadd.f32 0.0, %v768
      %v770 = vpop.f32.mrb[0].mxu0
      %v771 = vadd.f32 0.0, %v770
      %v772 = vpop.f32.mrb[0].mxu0
      %v773 = vadd.f32 0.0, %v772
      %v774 = vpop.f32.mrb[0].mxu0
      %v775 = vadd.f32 0.0, %v774
      %776 = vmatprep.mubr.bf16.mxu0 0
      %777 = vmatmul.mubr.bf16.gmra.mrb[0].mxu0 %v613
      %v778 = vpop.f32.mrb[0].mxu0
      %v779 = vadd.f32 0.0, %v778
      %v780 = vpop.f32.mrb[0].mxu0
      %v781 = vadd.f32 0.0, %v780
      %v782 = vpop.f32.mrb[0].mxu0
      %v783 = vadd.f32 0.0, %v782
      %v784 = vpop.f32.mrb[0].mxu0
      %v785 = vadd.f32 0.0, %v784
      %786 = vmatprep.mubr.bf16.mxu0 0
      %787 = vmatmul.mubr.bf16.gmra.mrb[0].mxu0 %v616
      %v788 = vpop.f32.mrb[0].mxu0
      %v789 = vadd.f32 0.0, %v788
      %v790 = vpop.f32.mrb[0].mxu0
      %v791 = vadd.f32 0.0, %v790
      %v792 = vpop.f32.mrb[0].mxu0
      %v793 = vadd.f32 0.0, %v792
      %v794 = vpop.f32.mrb[0].mxu0
      %v795 = vadd.f32 0.0, %v794
      %796 = vmatprep.mubr.bf16.mxu0 0
      %797 = vmatmul.mubr.bf16.gmra.mrb[0].mxu0 %v619
      %v798 = vpop.f32.mrb[0].mxu0
      %v799 = vadd.f32 0.0, %v798
      %v800 = vpop.f32.mrb[0].mxu0
      %v801 = vadd.f32 0.0, %v800
      %v802 = vpop.f32.mrb[0].mxu0
      %v803 = vadd.f32 0.0, %v802
      %v804 = vpop.f32.mrb[0].mxu0
      %v805 = vadd.f32 0.0, %v804
      %806 = vmatprep.mubr.bf16.mxu0 0
      %807 = vmatmul.mubr.bf16.gmra.mrb[0].mxu0 %v622
      %v808 = vpop.f32.mrb[0].mxu0
      %v809 = vadd.f32 0.0, %v808
      %v810 = vpop.f32.mrb[0].mxu0
      %v811 = vadd.f32 0.0, %v810
      %v812 = vpop.f32.mrb[0].mxu0
      %v813 = vadd.f32 0.0, %v812
      %v814 = vpop.f32.mrb[0].mxu0
      %v815 = vadd.f32 0.0, %v814
      %816 = vmatprep.mubr.bf16.mxu0 0
      %817 = vmatmul.mubr.bf16.gmra.mrb[0].mxu0 %v625
      %v818 = vpop.f32.mrb[0].mxu0
      %v819 = vadd.f32 0.0, %v818
      %v820 = vpop.f32.mrb[0].mxu0
      %v821 = vadd.f32 0.0, %v820
      %v822 = vpop.f32.mrb[0].mxu0
      %v823 = vadd.f32 0.0, %v822
      %v824 = vpop.f32.mrb[0].mxu0
      %v825 = vadd.f32 0.0, %v824
      %826 = vdwg.mxu0
      %s827 = scalar_lea.vmem %s1, 88
      %v828 = vld [vmem:[%s827] sm:$0xff]
      %v829 = vld [vmem:[%s827 + $0x8] sm:$0xff]
      %v830 = vld [vmem:[%s827 + $0x10] sm:$0xff]
      %v831 = vld [vmem:[%s827 + $0x18] sm:$0xff]
      %v832 = vld [vmem:[%s827 + $0x20] sm:$0xff]
      %v833 = vld [vmem:[%s827 + $0x28] sm:$0xff]
      %v834 = vld [vmem:[%s827 + $0x30] sm:$0xff]
      %v835 = vld [vmem:[%s827 + $0x38] sm:$0xff]
      %v836 = vld [vmem:[%s827 + $0x40] sm:$0xff]
      %v837 = vld [vmem:[%s827 + $0x48] sm:$0xff]
      %v838 = vld [vmem:[%s827 + $0x50] sm:$0x33]
      %v850 = vunpack.c.l.b16 %v828
      %v851 = vunpack.c.h.b16 %v828
      %v852 = vunpack.c.l.b16 %v829
      %v853 = vunpack.c.h.b16 %v829
      %v854 = vunpack.c.l.b16 %v830
      %v855 = vunpack.c.h.b16 %v830
      %v856 = vunpack.c.l.b16 %v831
      %v857 = vunpack.c.h.b16 %v831
      %v858 = vunpack.c.l.b16 %v832
      %v859 = vunpack.c.h.b16 %v832
      %v860 = vunpack.c.l.b16 %v833
      %v861 = vunpack.c.h.b16 %v833
      %v862 = vunpack.c.l.b16 %v834
      %v863 = vunpack.c.h.b16 %v834
      %v864 = vunpack.c.l.b16 %v835
      %v865 = vunpack.c.h.b16 %v835
      %v866 = vunpack.c.l.b16 %v836
      %v867 = vunpack.c.h.b16 %v836
      %v868 = vunpack.c.l.b16 %v837
      %v869 = vunpack.c.h.b16 %v837
      %v870 = vunpack.c.l.b16 %v838
      %v871 = vunpack.c.h.b16 %v838
      %v872 = vpack.c.b16 %v852, %v850
      %v873 = vpack.c.b16 %v853, %v851
      %v874 = vpack.c.b16 %v856, %v854
      %v875 = vpack.c.b16 %v857, %v855
      %v876 = vpack.c.b16 %v860, %v858
      %v877 = vpack.c.b16 %v861, %v859
      %v878 = vpack.c.b16 %v864, %v862
      %v879 = vpack.c.b16 %v865, %v863
      %v880 = vpack.c.b16 %v868, %v866
      %v881 = vpack.c.b16 %v869, %v867
      %v882 = vpack.c.b16 %v870, %v870
      %v883 = vpack.c.b16 %v871, %v871
      %v895 = vsel %vm627, %v882, 0
      %v898 = vsel %vm627, %v883, 0
      %900 = vmatprep.subr.bf16.mxu0 %v873
      %901 = vmatpush1.bf16.msra.mxu0 %v872
      %902 = vmatprep.subr.bf16.mxu0 %v875
      %903 = vmatpush1.bf16.msra.mxu0 %v874
      %904 = vmatprep.subr.bf16.mxu0 %v877
      %905 = vmatpush1.bf16.msra.mxu0 %v876
      %906 = vmatprep.subr.bf16.mxu0 %v879
      %907 = vmatpush1.bf16.msra.mxu0 %v878
      %908 = vmatprep.subr.bf16.mxu0 %v881
      %909 = vmatpush1.bf16.msra.mxu0 %v880
      %910 = vmatprep.subr.bf16.mxu0 %v898
      %911 = vmatpush1.bf16.msra.mxu0 %v895
      %912 = vmatprep.subr.bf16.mxu0 0
      %913 = vmatpush1.bf16.msra.mxu0 0
      %914 = vmatprep.subr.bf16.mxu0 0
      %915 = vmatpush1.bf16.msra.mxu0 0
      %916 = vmatprep.subr.bf16.mxu0 0
      %917 = vmatpush1.bf16.msra.mxu0 0
      %918 = vmatprep.subr.bf16.mxu0 0
      %919 = vmatpush1.bf16.msra.mxu0 0
      %920 = vmatprep.subr.bf16.mxu0 0
      %921 = vmatpush1.bf16.msra.mxu0 0
      %922 = vmatprep.subr.bf16.mxu0 0
      %923 = vmatpush1.bf16.msra.mxu0 0
      %924 = vmatprep.subr.bf16.mxu0 0
      %925 = vmatpush1.bf16.msra.mxu0 0
      %926 = vmatprep.subr.bf16.mxu0 0
      %927 = vmatpush1.bf16.msra.mxu0 0
      %928 = vmatprep.subr.bf16.mxu0 0
      %929 = vmatpush1.bf16.msra.mxu0 0
      %930 = vmatprep.subr.bf16.mxu0 0
      %931 = vmatpush1.bf16.msra.mxu0 0
      %932 = vmatprep.mubr.bf16.mxu0 0
      %933 = vmatmul.mubr.bf16.gmra.mrb[0].mxu0 %v580
      %v934 = vpop.f32.mrb[0].mxu0
      %v935 = vadd.f32 0.0, %v934
      %v936 = vpop.f32.mrb[0].mxu0
      %v937 = vadd.f32 0.0, %v936
      %v938 = vpop.f32.mrb[0].mxu0
      %v939 = vadd.f32 0.0, %v938
      %v940 = vpop.f32.mrb[0].mxu0
      %v941 = vadd.f32 0.0, %v940
      %942 = vmatprep.mubr.bf16.mxu0 0
      %943 = vmatmul.mubr.bf16.gmra.mrb[0].mxu0 %v583
      %v944 = vpop.f32.mrb[0].mxu0
      %v945 = vadd.f32 0.0, %v944
      %v946 = vpop.f32.mrb[0].mxu0
      %v947 = vadd.f32 0.0, %v946
      %v948 = vpop.f32.mrb[0].mxu0
      %v949 = vadd.f32 0.0, %v948
      %v950 = vpop.f32.mrb[0].mxu0
      %v951 = vadd.f32 0.0, %v950
      %952 = vmatprep.mubr.bf16.mxu0 0
      %953 = vmatmul.mubr.bf16.gmra.mrb[0].mxu0 %v586
      %v954 = vpop.f32.mrb[0].mxu0
      %v955 = vadd.f32 0.0, %v954
      %v956 = vpop.f32.mrb[0].mxu0
      %v957 = vadd.f32 0.0, %v956
      %v958 = vpop.f32.mrb[0].mxu0
      %v959 = vadd.f32 0.0, %v958
      %v960 = vpop.f32.mrb[0].mxu0
      %v961 = vadd.f32 0.0, %v960
      %962 = vmatprep.mubr.bf16.mxu0 0
      %963 = vmatmul.mubr.bf16.gmra.mrb[0].mxu0 %v589
      %v964 = vpop.f32.mrb[0].mxu0
      %v965 = vadd.f32 0.0, %v964
      %v966 = vpop.f32.mrb[0].mxu0
      %v967 = vadd.f32 0.0, %v966
      %v968 = vpop.f32.mrb[0].mxu0
      %v969 = vadd.f32 0.0, %v968
      %v970 = vpop.f32.mrb[0].mxu0
      %v971 = vadd.f32 0.0, %v970
      %972 = vmatprep.mubr.bf16.mxu0 0
      %973 = vmatmul.mubr.bf16.gmra.mrb[0].mxu0 %v592
      %v974 = vpop.f32.mrb[0].mxu0
      %v975 = vadd.f32 0.0, %v974
      %v976 = vpop.f32.mrb[0].mxu0
      %v977 = vadd.f32 0.0, %v976
      %v978 = vpop.f32.mrb[0].mxu0
      %v979 = vadd.f32 0.0, %v978
      %v980 = vpop.f32.mrb[0].mxu0
      %v981 = vadd.f32 0.0, %v980
      %982 = vmatprep.mubr.bf16.mxu0 0
      %983 = vmatmul.mubr.bf16.gmra.mrb[0].mxu0 %v595
      %v984 = vpop.f32.mrb[0].mxu0
      %v985 = vadd.f32 0.0, %v984
      %v986 = vpop.f32.mrb[0].mxu0
      %v987 = vadd.f32 0.0, %v986
      %v988 = vpop.f32.mrb[0].mxu0
      %v989 = vadd.f32 0.0, %v988
      %v990 = vpop.f32.mrb[0].mxu0
      %v991 = vadd.f32 0.0, %v990
      %992 = vmatprep.mubr.bf16.mxu0 0
      %993 = vmatmul.mubr.bf16.gmra.mrb[0].mxu0 %v598
      %v994 = vpop.f32.mrb[0].mxu0
      %v995 = vadd.f32 0.0, %v994
      %v996 = vpop.f32.mrb[0].mxu0
      %v997 = vadd.f32 0.0, %v996
      %v998 = vpop.f32.mrb[0].mxu0
      %v999 = vadd.f32 0.0, %v998
      %v1000 = vpop.f32.mrb[0].mxu0
      %v1001 = vadd.f32 0.0, %v1000
      %1002 = vmatprep.mubr.bf16.mxu0 0
      %1003 = vmatmul.mubr.bf16.gmra.mrb[0].mxu0 %v601
      %v1004 = vpop.f32.mrb[0].mxu0
      %v1005 = vadd.f32 0.0, %v1004
      %v1006 = vpop.f32.mrb[0].mxu0
      %v1007 = vadd.f32 0.0, %v1006
      %v1008 = vpop.f32.mrb[0].mxu0
      %v1009 = vadd.f32 0.0, %v1008
      %v1010 = vpop.f32.mrb[0].mxu0
      %v1011 = vadd.f32 0.0, %v1010
      %1012 = vmatprep.mubr.bf16.mxu0 0
      %1013 = vmatmul.mubr.bf16.gmra.mrb[0].mxu0 %v604
      %v1014 = vpop.f32.mrb[0].mxu0
      %v1015 = vadd.f32 0.0, %v1014
      %v1016 = vpop.f32.mrb[0].mxu0
      %v1017 = vadd.f32 0.0, %v1016
      %v1018 = vpop.f32.mrb[0].mxu0
      %v1019 = vadd.f32 0.0, %v1018
      %v1020 = vpop.f32.mrb[0].mxu0
      %v1021 = vadd.f32 0.0, %v1020
      %1022 = vmatprep.mubr.bf16.mxu0 0
      %1023 = vmatmul.mubr.bf16.gmra.mrb[0].mxu0 %v607
      %v1024 = vpop.f32.mrb[0].mxu0
      %v1025 = vadd.f32 0.0, %v1024
      %v1026 = vpop.f32.mrb[0].mxu0
      %v1027 = vadd.f32 0.0, %v1026
      %v1028 = vpop.f32.mrb[0].mxu0
      %v1029 = vadd.f32 0.0, %v1028
      %v1030 = vpop.f32.mrb[0].mxu0
      %v1031 = vadd.f32 0.0, %v1030
      %1032 = vmatprep.mubr.bf16.mxu0 0
      %1033 = vmatmul.mubr.bf16.gmra.mrb[0].mxu0 %v610
      %v1034 = vpop.f32.mrb[0].mxu0
      %v1035 = vadd.f32 0.0, %v1034
      %v1036 = vpop.f32.mrb[0].mxu0
      %v1037 = vadd.f32 0.0, %v1036
      %v1038 = vpop.f32.mrb[0].mxu0
      %v1039 = vadd.f32 0.0, %v1038
      %v1040 = vpop.f32.mrb[0].mxu0
      %v1041 = vadd.f32 0.0, %v1040
      %1042 = vmatprep.mubr.bf16.mxu0 0
      %1043 = vmatmul.mubr.bf16.gmra.mrb[0].mxu0 %v613
      %v1044 = vpop.f32.mrb[0].mxu0
      %v1045 = vadd.f32 0.0, %v1044
      %v1046 = vpop.f32.mrb[0].mxu0
      %v1047 = vadd.f32 0.0, %v1046
      %v1048 = vpop.f32.mrb[0].mxu0
      %v1049 = vadd.f32 0.0, %v1048
      %v1050 = vpop.f32.mrb[0].mxu0
      %v1051 = vadd.f32 0.0, %v1050
      %1052 = vmatprep.mubr.bf16.mxu0 0
      %1053 = vmatmul.mubr.bf16.gmra.mrb[0].mxu0 %v616
      %v1054 = vpop.f32.mrb[0].mxu0
      %v1055 = vadd.f32 0.0, %v1054
      %v1056 = vpop.f32.mrb[0].mxu0
      %v1057 = vadd.f32 0.0, %v1056
      %v1058 = vpop.f32.mrb[0].mxu0
      %v1059 = vadd.f32 0.0, %v1058
      %v1060 = vpop.f32.mrb[0].mxu0
      %v1061 = vadd.f32 0.0, %v1060
      %1062 = vmatprep.mubr.bf16.mxu0 0
      %1063 = vmatmul.mubr.bf16.gmra.mrb[0].mxu0 %v619
      %v1064 = vpop.f32.mrb[0].mxu0
      %v1065 = vadd.f32 0.0, %v1064
      %v1066 = vpop.f32.mrb[0].mxu0
      %v1067 = vadd.f32 0.0, %v1066
      %v1068 = vpop.f32.mrb[0].mxu0
      %v1069 = vadd.f32 0.0, %v1068
      %v1070 = vpop.f32.mrb[0].mxu0
      %v1071 = vadd.f32 0.0, %v1070
      %1072 = vmatprep.mubr.bf16.mxu0 0
      %1073 = vmatmul.mubr.bf16.gmra.mrb[0].mxu0 %v622
      %v1074 = vpop.f32.mrb[0].mxu0
      %v1075 = vadd.f32 0.0, %v1074
      %v1076 = vpop.f32.mrb[0].mxu0
      %v1077 = vadd.f32 0.0, %v1076
      %v1078 = vpop.f32.mrb[0].mxu0
      %v1079 = vadd.f32 0.0, %v1078
      %v1080 = vpop.f32.mrb[0].mxu0
      %v1081 = vadd.f32 0.0, %v1080
      %1082 = vmatprep.mubr.bf16.mxu0 0
      %1083 = vmatmul.mubr.bf16.gmra.mrb[0].mxu0 %v625
      %v1084 = vpop.f32.mrb[0].mxu0
      %v1085 = vadd.f32 0.0, %v1084
      %v1086 = vpop.f32.mrb[0].mxu0
      %v1087 = vadd.f32 0.0, %v1086
      %v1088 = vpop.f32.mrb[0].mxu0
      %v1089 = vadd.f32 0.0, %v1088
      %v1090 = vpop.f32.mrb[0].mxu0
      %v1091 = vadd.f32 0.0, %v1090
      %1092 = vdwg.mxu0
      %v1093 = vmax.f32 %v669, %v935
      %v1094 = vmax.f32 %v671, %v937
      %v1095 = vmax.f32 %v673, %v939
      %v1096 = vmax.f32 %v675, %v941
      %v1097 = vmax.f32 %v679, %v945
      %v1098 = vmax.f32 %v681, %v947
      %v1099 = vmax.f32 %v683, %v949
      %v1100 = vmax.f32 %v685, %v951
      %v1101 = vmax.f32 %v689, %v955
      %v1102 = vmax.f32 %v691, %v957
      %v1103 = vmax.f32 %v693, %v959
      %v1104 = vmax.f32 %v695, %v961
      %v1105 = vmax.f32 %v699, %v965
      %v1106 = vmax.f32 %v701, %v967
      %v1107 = vmax.f32 %v703, %v969
      %v1108 = vmax.f32 %v705, %v971
      %v1109 = vmax.f32 %v709, %v975
      %v1110 = vmax.f32 %v711, %v977
      %v1111 = vmax.f32 %v713, %v979
      %v1112 = vmax.f32 %v715, %v981
      %v1113 = vmax.f32 %v719, %v985
      %v1114 = vmax.f32 %v721, %v987
      %v1115 = vmax.f32 %v723, %v989
      %v1116 = vmax.f32 %v725, %v991
      %v1117 = vmax.f32 %v729, %v995
      %v1118 = vmax.f32 %v731, %v997
      %v1119 = vmax.f32 %v733, %v999
      %v1120 = vmax.f32 %v735, %v1001
      %v1121 = vmax.f32 %v739, %v1005
      %v1122 = vmax.f32 %v741, %v1007
      %v1123 = vmax.f32 %v743, %v1009
      %v1124 = vmax.f32 %v745, %v1011
      %v1125 = vmax.f32 %v749, %v1015
      %v1126 = vmax.f32 %v751, %v1017
      %v1127 = vmax.f32 %v753, %v1019
      %v1128 = vmax.f32 %v755, %v1021
      %v1129 = vmax.f32 %v759, %v1025
      %v1130 = vmax.f32 %v761, %v1027
      %v1131 = vmax.f32 %v763, %v1029
      %v1132 = vmax.f32 %v765, %v1031
      %v1133 = vmax.f32 %v769, %v1035
      %v1134 = vmax.f32 %v771, %v1037
      %v1135 = vmax.f32 %v773, %v1039
      %v1136 = vmax.f32 %v775, %v1041
      %v1137 = vmax.f32 %v779, %v1045
      %v1138 = vmax.f32 %v781, %v1047
      %v1139 = vmax.f32 %v783, %v1049
      %v1140 = vmax.f32 %v785, %v1051
      %v1141 = vmax.f32 %v789, %v1055
      %v1142 = vmax.f32 %v791, %v1057
      %v1143 = vmax.f32 %v793, %v1059
      %v1144 = vmax.f32 %v795, %v1061
      %v1145 = vmax.f32 %v799, %v1065
      %v1146 = vmax.f32 %v801, %v1067
      %v1147 = vmax.f32 %v803, %v1069
      %v1148 = vmax.f32 %v805, %v1071
      %v1149 = vmax.f32 %v809, %v1075
      %v1150 = vmax.f32 %v811, %v1077
      %v1151 = vmax.f32 %v813, %v1079
      %v1152 = vmax.f32 %v815, %v1081
      %v1153 = vmax.f32 %v819, %v1085
      %v1154 = vmax.f32 %v821, %v1087
      %v1155 = vmax.f32 %v823, %v1089
      %v1156 = vmax.f32 %v825, %v1091
      %s1157 = scalar_lea.vmem %s327, 128
      %v1158 = vld [vmem:[%s1157] sm:$0xf]
      %v1159 = vld [vmem:[%s1157 + $0x4] sm:$0xf]
      %v1160 = vld [vmem:[%s1157 + $0x8] sm:$0xf]
      %v1161 = vld [vmem:[%s1157 + $0xc] sm:$0xf]
      %v1162 = vld [vmem:[%s1157 + $0x10] sm:$0xf]
      %v1163 = vld [vmem:[%s1157 + $0x14] sm:$0xf]
      %v1164 = vld [vmem:[%s1157 + $0x18] sm:$0xf]
      %v1165 = vld [vmem:[%s1157 + $0x1c] sm:$0xf]
      %v1166 = vld [vmem:[%s1157 + $0x20] sm:$0xf]
      %v1167 = vld [vmem:[%s1157 + $0x24] sm:$0xf]
      %v1168 = vld [vmem:[%s1157 + $0x28] sm:$0xf]
      %v1169 = vld [vmem:[%s1157 + $0x2c] sm:$0xf]
      %v1170 = vld [vmem:[%s1157 + $0x30] sm:$0xf]
      %v1171 = vld [vmem:[%s1157 + $0x34] sm:$0xf]
      %v1172 = vld [vmem:[%s1157 + $0x38] sm:$0xf]
      %v1173 = vld [vmem:[%s1157 + $0x3c] sm:$0xf]
      %v1174 = vld [vmem:[%s1157 + $0x40] sm:$0xf]
      %v1175 = vld [vmem:[%s1157 + $0x44] sm:$0xf]
      %v1176 = vld [vmem:[%s1157 + $0x48] sm:$0xf]
      %v1177 = vld [vmem:[%s1157 + $0x4c] sm:$0xf]
      %v1178 = vld [vmem:[%s1157 + $0x50] sm:$0xf]
      %v1179 = vld [vmem:[%s1157 + $0x54] sm:$0xf]
      %v1180 = vld [vmem:[%s1157 + $0x58] sm:$0xf]
      %v1181 = vld [vmem:[%s1157 + $0x5c] sm:$0xf]
      %v1182 = vld [vmem:[%s1157 + $0x60] sm:$0xf]
      %v1183 = vld [vmem:[%s1157 + $0x64] sm:$0xf]
      %v1184 = vld [vmem:[%s1157 + $0x68] sm:$0xf]
      %v1185 = vld [vmem:[%s1157 + $0x6c] sm:$0xf]
      %v1186 = vld [vmem:[%s1157 + $0x70] sm:$0xf]
      %v1187 = vld [vmem:[%s1157 + $0x74] sm:$0xf]
      %v1188 = vld [vmem:[%s1157 + $0x78] sm:$0xf]
      %v1189 = vld [vmem:[%s1157 + $0x7c] sm:$0xf]
      %v1222 = vunpack.c.l.b16 %v1158
      %v1223 = vunpack.c.l.b16 %v1159
      %v1224 = vunpack.c.l.b16 %v1160
      %v1225 = vunpack.c.l.b16 %v1161
      %v1226 = vunpack.c.l.b16 %v1162
      %v1227 = vunpack.c.l.b16 %v1163
      %v1228 = vunpack.c.l.b16 %v1164
      %v1229 = vunpack.c.l.b16 %v1165
      %v1230 = vunpack.c.l.b16 %v1166
      %v1231 = vunpack.c.l.b16 %v1167
      %v1232 = vunpack.c.l.b16 %v1168
      %v1233 = vunpack.c.l.b16 %v1169
      %v1234 = vunpack.c.l.b16 %v1170
      %v1235 = vunpack.c.l.b16 %v1171
      %v1236 = vunpack.c.l.b16 %v1172
      %v1237 = vunpack.c.l.b16 %v1173
      %v1238 = vunpack.c.l.b16 %v1174
      %v1239 = vunpack.c.l.b16 %v1175
      %v1240 = vunpack.c.l.b16 %v1176
      %v1241 = vunpack.c.l.b16 %v1177
      %v1242 = vunpack.c.l.b16 %v1178
      %v1243 = vunpack.c.l.b16 %v1179
      %v1244 = vunpack.c.l.b16 %v1180
      %v1245 = vunpack.c.l.b16 %v1181
      %v1246 = vunpack.c.l.b16 %v1182
      %v1247 = vunpack.c.l.b16 %v1183
      %v1248 = vunpack.c.l.b16 %v1184
      %v1249 = vunpack.c.l.b16 %v1185
      %v1250 = vunpack.c.l.b16 %v1186
      %v1251 = vunpack.c.l.b16 %v1187
      %v1252 = vunpack.c.l.b16 %v1188
      %v1253 = vunpack.c.l.b16 %v1189
      %v1254 = vpack.c.b16 %v1223, %v1222
      %v1255 = vpack.c.b16 %v1225, %v1224
      %v1256 = vpack.c.b16 %v1227, %v1226
      %v1257 = vpack.c.b16 %v1229, %v1228
      %v1258 = vpack.c.b16 %v1231, %v1230
      %v1259 = vpack.c.b16 %v1233, %v1232
      %v1260 = vpack.c.b16 %v1235, %v1234
      %v1261 = vpack.c.b16 %v1237, %v1236
      %v1262 = vpack.c.b16 %v1239, %v1238
      %v1263 = vpack.c.b16 %v1241, %v1240
      %v1264 = vpack.c.b16 %v1243, %v1242
      %v1265 = vpack.c.b16 %v1245, %v1244
      %v1266 = vpack.c.b16 %v1247, %v1246
      %v1267 = vpack.c.b16 %v1249, %v1248
      %v1268 = vpack.c.b16 %v1251, %v1250
      %v1269 = vpack.c.b16 %v1253, %v1252
      %v1271 = vsel %vm578, %v1254, 0
      %v1274 = vsel %vm578, %v1255, 0
      %v1277 = vsel %vm578, %v1256, 0
      %v1280 = vsel %vm578, %v1257, 0
      %v1283 = vsel %vm578, %v1258, 0
      %v1286 = vsel %vm578, %v1259, 0
      %v1289 = vsel %vm578, %v1260, 0
      %v1292 = vsel %vm578, %v1261, 0
      %v1295 = vsel %vm578, %v1262, 0
      %v1298 = vsel %vm578, %v1263, 0
      %v1301 = vsel %vm578, %v1264, 0
      %v1304 = vsel %vm578, %v1265, 0
      %v1307 = vsel %vm578, %v1266, 0
      %v1310 = vsel %vm578, %v1267, 0
      %v1313 = vsel %vm578, %v1268, 0
      %v1316 = vsel %vm578, %v1269, 0
      %1318 = vmatprep.subr.bf16.mxu0 %v557
      %1319 = vmatpush1.bf16.msra.mxu0 %v556
      %1320 = vmatprep.subr.bf16.mxu0 %v559
      %1321 = vmatpush1.bf16.msra.mxu0 %v558
      %1322 = vmatprep.subr.bf16.mxu0 %v561
      %1323 = vmatpush1.bf16.msra.mxu0 %v560
      %1324 = vmatprep.subr.bf16.mxu0 %v563
      %1325 = vmatpush1.bf16.msra.mxu0 %v562
      %1326 = vmatprep.subr.bf16.mxu0 %v565
      %1327 = vmatpush1.bf16.msra.mxu0 %v564
      %1328 = vmatprep.subr.bf16.mxu0 %v632
      %1329 = vmatpush1.bf16.msra.mxu0 %v629
      %1330 = vmatprep.subr.bf16.mxu0 0
      %1331 = vmatpush1.bf16.msra.mxu0 0
      %1332 = vmatprep.subr.bf16.mxu0 0
      %1333 = vmatpush1.bf16.msra.mxu0 0
      %1334 = vmatprep.subr.bf16.mxu0 0
      %1335 = vmatpush1.bf16.msra.mxu0 0
      %1336 = vmatprep.subr.bf16.mxu0 0
      %1337 = vmatpush1.bf16.msra.mxu0 0
      %1338 = vmatprep.subr.bf16.mxu0 0
      %1339 = vmatpush1.bf16.msra.mxu0 0
      %1340 = vmatprep.subr.bf16.mxu0 0
      %1341 = vmatpush1.bf16.msra.mxu0 0
      %1342 = vmatprep.subr.bf16.mxu0 0
      %1343 = vmatpush1.bf16.msra.mxu0 0
      %1344 = vmatprep.subr.bf16.mxu0 0
      %1345 = vmatpush1.bf16.msra.mxu0 0
      %1346 = vmatprep.subr.bf16.mxu0 0
      %1347 = vmatpush1.bf16.msra.mxu0 0
      %1348 = vmatprep.subr.bf16.mxu0 0
      %1349 = vmatpush1.bf16.msra.mxu0 0
      %1350 = vmatprep.mubr.bf16.mxu0 0
      %1351 = vmatmul.mubr.bf16.gmra.mrb[0].mxu0 %v1271
      %v1352 = vpop.f32.mrb[0].mxu0
      %v1353 = vadd.f32 0.0, %v1352
      %v1354 = vpop.f32.mrb[0].mxu0
      %v1355 = vadd.f32 0.0, %v1354
      %v1356 = vpop.f32.mrb[0].mxu0
      %v1357 = vadd.f32 0.0, %v1356
      %v1358 = vpop.f32.mrb[0].mxu0
      %v1359 = vadd.f32 0.0, %v1358
      %1360 = vmatprep.mubr.bf16.mxu0 0
      %1361 = vmatmul.mubr.bf16.gmra.mrb[0].mxu0 %v1274
      %v1362 = vpop.f32.mrb[0].mxu0
      %v1363 = vadd.f32 0.0, %v1362
      %v1364 = vpop.f32.mrb[0].mxu0
      %v1365 = vadd.f32 0.0, %v1364
      %v1366 = vpop.f32.mrb[0].mxu0
      %v1367 = vadd.f32 0.0, %v1366
      %v1368 = vpop.f32.mrb[0].mxu0
      %v1369 = vadd.f32 0.0, %v1368
      %1370 = vmatprep.mubr.bf16.mxu0 0
      %1371 = vmatmul.mubr.bf16.gmra.mrb[0].mxu0 %v1277
      %v1372 = vpop.f32.mrb[0].mxu0
      %v1373 = vadd.f32 0.0, %v1372
      %v1374 = vpop.f32.mrb[0].mxu0
      %v1375 = vadd.f32 0.0, %v1374
      %v1376 = vpop.f32.mrb[0].mxu0
      %v1377 = vadd.f32 0.0, %v1376
      %v1378 = vpop.f32.mrb[0].mxu0
      %v1379 = vadd.f32 0.0, %v1378
      %1380 = vmatprep.mubr.bf16.mxu0 0
      %1381 = vmatmul.mubr.bf16.gmra.mrb[0].mxu0 %v1280
      %v1382 = vpop.f32.mrb[0].mxu0
      %v1383 = vadd.f32 0.0, %v1382
      %v1384 = vpop.f32.mrb[0].mxu0
      %v1385 = vadd.f32 0.0, %v1384
      %v1386 = vpop.f32.mrb[0].mxu0
      %v1387 = vadd.f32 0.0, %v1386
      %v1388 = vpop.f32.mrb[0].mxu0
      %v1389 = vadd.f32 0.0, %v1388
      %1390 = vmatprep.mubr.bf16.mxu0 0
      %1391 = vmatmul.mubr.bf16.gmra.mrb[0].mxu0 %v1283
      %v1392 = vpop.f32.mrb[0].mxu0
      %v1393 = vadd.f32 0.0, %v1392
      %v1394 = vpop.f32.mrb[0].mxu0
      %v1395 = vadd.f32 0.0, %v1394
      %v1396 = vpop.f32.mrb[0].mxu0
      %v1397 = vadd.f32 0.0, %v1396
      %v1398 = vpop.f32.mrb[0].mxu0
      %v1399 = vadd.f32 0.0, %v1398
      %1400 = vmatprep.mubr.bf16.mxu0 0
      %1401 = vmatmul.mubr.bf16.gmra.mrb[0].mxu0 %v1286
      %v1402 = vpop.f32.mrb[0].mxu0
      %v1403 = vadd.f32 0.0, %v1402
      %v1404 = vpop.f32.mrb[0].mxu0
      %v1405 = vadd.f32 0.0, %v1404
      %v1406 = vpop.f32.mrb[0].mxu0
      %v1407 = vadd.f32 0.0, %v1406
      %v1408 = vpop.f32.mrb[0].mxu0
      %v1409 = vadd.f32 0.0, %v1408
      %1410 = vmatprep.mubr.bf16.mxu0 0
      %1411 = vmatmul.mubr.bf16.gmra.mrb[0].mxu0 %v1289
      %v1412 = vpop.f32.mrb[0].mxu0
      %v1413 = vadd.f32 0.0, %v1412
      %v1414 = vpop.f32.mrb[0].mxu0
      %v1415 = vadd.f32 0.0, %v1414
      %v1416 = vpop.f32.mrb[0].mxu0
      %v1417 = vadd.f32 0.0, %v1416
      %v1418 = vpop.f32.mrb[0].mxu0
      %v1419 = vadd.f32 0.0, %v1418
      %1420 = vmatprep.mubr.bf16.mxu0 0
      %1421 = vmatmul.mubr.bf16.gmra.mrb[0].mxu0 %v1292
      %v1422 = vpop.f32.mrb[0].mxu0
      %v1423 = vadd.f32 0.0, %v1422
      %v1424 = vpop.f32.mrb[0].mxu0
      %v1425 = vadd.f32 0.0, %v1424
      %v1426 = vpop.f32.mrb[0].mxu0
      %v1427 = vadd.f32 0.0, %v1426
      %v1428 = vpop.f32.mrb[0].mxu0
      %v1429 = vadd.f32 0.0, %v1428
      %1430 = vmatprep.mubr.bf16.mxu0 0
      %1431 = vmatmul.mubr.bf16.gmra.mrb[0].mxu0 %v1295
      %v1432 = vpop.f32.mrb[0].mxu0
      %v1433 = vadd.f32 0.0, %v1432
      %v1434 = vpop.f32.mrb[0].mxu0
      %v1435 = vadd.f32 0.0, %v1434
      %v1436 = vpop.f32.mrb[0].mxu0
      %v1437 = vadd.f32 0.0, %v1436
      %v1438 = vpop.f32.mrb[0].mxu0
      %v1439 = vadd.f32 0.0, %v1438
      %1440 = vmatprep.mubr.bf16.mxu0 0
      %1441 = vmatmul.mubr.bf16.gmra.mrb[0].mxu0 %v1298
      %v1442 = vpop.f32.mrb[0].mxu0
      %v1443 = vadd.f32 0.0, %v1442
      %v1444 = vpop.f32.mrb[0].mxu0
      %v1445 = vadd.f32 0.0, %v1444
      %v1446 = vpop.f32.mrb[0].mxu0
      %v1447 = vadd.f32 0.0, %v1446
      %v1448 = vpop.f32.mrb[0].mxu0
      %v1449 = vadd.f32 0.0, %v1448
      %1450 = vmatprep.mubr.bf16.mxu0 0
      %1451 = vmatmul.mubr.bf16.gmra.mrb[0].mxu0 %v1301
      %v1452 = vpop.f32.mrb[0].mxu0
      %v1453 = vadd.f32 0.0, %v1452
      %v1454 = vpop.f32.mrb[0].mxu0
      %v1455 = vadd.f32 0.0, %v1454
      %v1456 = vpop.f32.mrb[0].mxu0
      %v1457 = vadd.f32 0.0, %v1456
      %v1458 = vpop.f32.mrb[0].mxu0
      %v1459 = vadd.f32 0.0, %v1458
      %1460 = vmatprep.mubr.bf16.mxu0 0
      %1461 = vmatmul.mubr.bf16.gmra.mrb[0].mxu0 %v1304
      %v1462 = vpop.f32.mrb[0].mxu0
      %v1463 = vadd.f32 0.0, %v1462
      %v1464 = vpop.f32.mrb[0].mxu0
      %v1465 = vadd.f32 0.0, %v1464
      %v1466 = vpop.f32.mrb[0].mxu0
      %v1467 = vadd.f32 0.0, %v1466
      %v1468 = vpop.f32.mrb[0].mxu0
      %v1469 = vadd.f32 0.0, %v1468
      %1470 = vmatprep.mubr.bf16.mxu0 0
      %1471 = vmatmul.mubr.bf16.gmra.mrb[0].mxu0 %v1307
      %v1472 = vpop.f32.mrb[0].mxu0
      %v1473 = vadd.f32 0.0, %v1472
      %v1474 = vpop.f32.mrb[0].mxu0
      %v1475 = vadd.f32 0.0, %v1474
      %v1476 = vpop.f32.mrb[0].mxu0
      %v1477 = vadd.f32 0.0, %v1476
      %v1478 = vpop.f32.mrb[0].mxu0
      %v1479 = vadd.f32 0.0, %v1478
      %1480 = vmatprep.mubr.bf16.mxu0 0
      %1481 = vmatmul.mubr.bf16.gmra.mrb[0].mxu0 %v1310
      %v1482 = vpop.f32.mrb[0].mxu0
      %v1483 = vadd.f32 0.0, %v1482
      %v1484 = vpop.f32.mrb[0].mxu0
      %v1485 = vadd.f32 0.0, %v1484
      %v1486 = vpop.f32.mrb[0].mxu0
      %v1487 = vadd.f32 0.0, %v1486
      %v1488 = vpop.f32.mrb[0].mxu0
      %v1489 = vadd.f32 0.0, %v1488
      %1490 = vmatprep.mubr.bf16.mxu0 0
      %1491 = vmatmul.mubr.bf16.gmra.mrb[0].mxu0 %v1313
      %v1492 = vpop.f32.mrb[0].mxu0
      %v1493 = vadd.f32 0.0, %v1492
      %v1494 = vpop.f32.mrb[0].mxu0
      %v1495 = vadd.f32 0.0, %v1494
      %v1496 = vpop.f32.mrb[0].mxu0
      %v1497 = vadd.f32 0.0, %v1496
      %v1498 = vpop.f32.mrb[0].mxu0
      %v1499 = vadd.f32 0.0, %v1498
      %1500 = vmatprep.mubr.bf16.mxu0 0
      %1501 = vmatmul.mubr.bf16.gmra.mrb[0].mxu0 %v1316
      %v1502 = vpop.f32.mrb[0].mxu0
      %v1503 = vadd.f32 0.0, %v1502
      %v1504 = vpop.f32.mrb[0].mxu0
      %v1505 = vadd.f32 0.0, %v1504
      %v1506 = vpop.f32.mrb[0].mxu0
      %v1507 = vadd.f32 0.0, %v1506
      %v1508 = vpop.f32.mrb[0].mxu0
      %v1509 = vadd.f32 0.0, %v1508
      %1510 = vdwg.mxu0
      %v1511 = vmax.f32 %v1093, %v1353
      %v1512 = vmax.f32 %v1094, %v1355
      %v1513 = vmax.f32 %v1095, %v1357
      %v1514 = vmax.f32 %v1096, %v1359
      %v1515 = vmax.f32 %v1097, %v1363
      %v1516 = vmax.f32 %v1098, %v1365
      %v1517 = vmax.f32 %v1099, %v1367
      %v1518 = vmax.f32 %v1100, %v1369
      %v1519 = vmax.f32 %v1101, %v1373
      %v1520 = vmax.f32 %v1102, %v1375
      %v1521 = vmax.f32 %v1103, %v1377
      %v1522 = vmax.f32 %v1104, %v1379
      %v1523 = vmax.f32 %v1105, %v1383
      %v1524 = vmax.f32 %v1106, %v1385
      %v1525 = vmax.f32 %v1107, %v1387
      %v1526 = vmax.f32 %v1108, %v1389
      %v1527 = vmax.f32 %v1109, %v1393
      %v1528 = vmax.f32 %v1110, %v1395
      %v1529 = vmax.f32 %v1111, %v1397
      %v1530 = vmax.f32 %v1112, %v1399
      %v1531 = vmax.f32 %v1113, %v1403
      %v1532 = vmax.f32 %v1114, %v1405
      %v1533 = vmax.f32 %v1115, %v1407
      %v1534 = vmax.f32 %v1116, %v1409
      %v1535 = vmax.f32 %v1117, %v1413
      %v1536 = vmax.f32 %v1118, %v1415
      %v1537 = vmax.f32 %v1119, %v1417
      %v1538 = vmax.f32 %v1120, %v1419
      %v1539 = vmax.f32 %v1121, %v1423
      %v1540 = vmax.f32 %v1122, %v1425
      %v1541 = vmax.f32 %v1123, %v1427
      %v1542 = vmax.f32 %v1124, %v1429
      %v1543 = vmax.f32 %v1125, %v1433
      %v1544 = vmax.f32 %v1126, %v1435
      %v1545 = vmax.f32 %v1127, %v1437
      %v1546 = vmax.f32 %v1128, %v1439
      %v1547 = vmax.f32 %v1129, %v1443
      %v1548 = vmax.f32 %v1130, %v1445
      %v1549 = vmax.f32 %v1131, %v1447
      %v1550 = vmax.f32 %v1132, %v1449
      %v1551 = vmax.f32 %v1133, %v1453
      %v1552 = vmax.f32 %v1134, %v1455
      %v1553 = vmax.f32 %v1135, %v1457
      %v1554 = vmax.f32 %v1136, %v1459
      %v1555 = vmax.f32 %v1137, %v1463
      %v1556 = vmax.f32 %v1138, %v1465
      %v1557 = vmax.f32 %v1139, %v1467
      %v1558 = vmax.f32 %v1140, %v1469
      %v1559 = vmax.f32 %v1141, %v1473
      %v1560 = vmax.f32 %v1142, %v1475
      %v1561 = vmax.f32 %v1143, %v1477
      %v1562 = vmax.f32 %v1144, %v1479
      %v1563 = vmax.f32 %v1145, %v1483
      %v1564 = vmax.f32 %v1146, %v1485
      %v1565 = vmax.f32 %v1147, %v1487
      %v1566 = vmax.f32 %v1148, %v1489
      %v1567 = vmax.f32 %v1149, %v1493
      %v1568 = vmax.f32 %v1150, %v1495
      %v1569 = vmax.f32 %v1151, %v1497
      %v1570 = vmax.f32 %v1152, %v1499
      %v1571 = vmax.f32 %v1153, %v1503
      %v1572 = vmax.f32 %v1154, %v1505
      %v1573 = vmax.f32 %v1155, %v1507
      %v1574 = vmax.f32 %v1156, %v1509
      %1575 = vmatprep.subr.bf16.mxu0 %v873
      %1576 = vmatpush1.bf16.msra.mxu0 %v872
      %1577 = vmatprep.subr.bf16.mxu0 %v875
      %1578 = vmatpush1.bf16.msra.mxu0 %v874
      %1579 = vmatprep.subr.bf16.mxu0 %v877
      %1580 = vmatpush1.bf16.msra.mxu0 %v876
      %1581 = vmatprep.subr.bf16.mxu0 %v879
      %1582 = vmatpush1.bf16.msra.mxu0 %v878
      %1583 = vmatprep.subr.bf16.mxu0 %v881
      %1584 = vmatpush1.bf16.msra.mxu0 %v880
      %1585 = vmatprep.subr.bf16.mxu0 %v898
      %1586 = vmatpush1.bf16.msra.mxu0 %v895
      %1587 = vmatprep.subr.bf16.mxu0 0
      %1588 = vmatpush1.bf16.msra.mxu0 0
      %1589 = vmatprep.subr.bf16.mxu0 0
      %1590 = vmatpush1.bf16.msra.mxu0 0
      %1591 = vmatprep.subr.bf16.mxu0 0
      %1592 = vmatpush1.bf16.msra.mxu0 0
      %1593 = vmatprep.subr.bf16.mxu0 0
      %1594 = vmatpush1.bf16.msra.mxu0 0
      %1595 = vmatprep.subr.bf16.mxu0 0
      %1596 = vmatpush1.bf16.msra.mxu0 0
      %1597 = vmatprep.subr.bf16.mxu0 0
      %1598 = vmatpush1.bf16.msra.mxu0 0
      %1599 = vmatprep.subr.bf16.mxu0 0
      %1600 = vmatpush1.bf16.msra.mxu0 0
      %1601 = vmatprep.subr.bf16.mxu0 0
      %1602 = vmatpush1.bf16.msra.mxu0 0
      %1603 = vmatprep.subr.bf16.mxu0 0
      %1604 = vmatpush1.bf16.msra.mxu0 0
      %1605 = vmatprep.subr.bf16.mxu0 0
      %1606 = vmatpush1.bf16.msra.mxu0 0
      %1607 = vmatprep.mubr.bf16.mxu0 0
      %1608 = vmatmul.mubr.bf16.gmra.mrb[0].mxu0 %v1271
      %v1609 = vpop.f32.mrb[0].mxu0
      %v1610 = vadd.f32 0.0, %v1609
      %v1611 = vpop.f32.mrb[0].mxu0
      %v1612 = vadd.f32 0.0, %v1611
      %v1613 = vpop.f32.mrb[0].mxu0
      %v1614 = vadd.f32 0.0, %v1613
      %v1615 = vpop.f32.mrb[0].mxu0
      %v1616 = vadd.f32 0.0, %v1615
      %1617 = vmatprep.mubr.bf16.mxu0 0
      %1618 = vmatmul.mubr.bf16.gmra.mrb[0].mxu0 %v1274
      %v1619 = vpop.f32.mrb[0].mxu0
      %v1620 = vadd.f32 0.0, %v1619
      %v1621 = vpop.f32.mrb[0].mxu0
      %v1622 = vadd.f32 0.0, %v1621
      %v1623 = vpop.f32.mrb[0].mxu0
      %v1624 = vadd.f32 0.0, %v1623
      %v1625 = vpop.f32.mrb[0].mxu0
      %v1626 = vadd.f32 0.0, %v1625
      %1627 = vmatprep.mubr.bf16.mxu0 0
      %1628 = vmatmul.mubr.bf16.gmra.mrb[0].mxu0 %v1277
      %v1629 = vpop.f32.mrb[0].mxu0
      %v1630 = vadd.f32 0.0, %v1629
      %v1631 = vpop.f32.mrb[0].mxu0
      %v1632 = vadd.f32 0.0, %v1631
      %v1633 = vpop.f32.mrb[0].mxu0
      %v1634 = vadd.f32 0.0, %v1633
      %v1635 = vpop.f32.mrb[0].mxu0
      %v1636 = vadd.f32 0.0, %v1635
      %1637 = vmatprep.mubr.bf16.mxu0 0
      %1638 = vmatmul.mubr.bf16.gmra.mrb[0].mxu0 %v1280
      %v1639 = vpop.f32.mrb[0].mxu0
      %v1640 = vadd.f32 0.0, %v1639
      %v1641 = vpop.f32.mrb[0].mxu0
      %v1642 = vadd.f32 0.0, %v1641
      %v1643 = vpop.f32.mrb[0].mxu0
      %v1644 = vadd.f32 0.0, %v1643
      %v1645 = vpop.f32.mrb[0].mxu0
      %v1646 = vadd.f32 0.0, %v1645
      %1647 = vmatprep.mubr.bf16.mxu0 0
      %1648 = vmatmul.mubr.bf16.gmra.mrb[0].mxu0 %v1283
      %v1649 = vpop.f32.mrb[0].mxu0
      %v1650 = vadd.f32 0.0, %v1649
      %v1651 = vpop.f32.mrb[0].mxu0
      %v1652 = vadd.f32 0.0, %v1651
      %v1653 = vpop.f32.mrb[0].mxu0
      %v1654 = vadd.f32 0.0, %v1653
      %v1655 = vpop.f32.mrb[0].mxu0
      %v1656 = vadd.f32 0.0, %v1655
      %1657 = vmatprep.mubr.bf16.mxu0 0
      %1658 = vmatmul.mubr.bf16.gmra.mrb[0].mxu0 %v1286
      %v1659 = vpop.f32.mrb[0].mxu0
      %v1660 = vadd.f32 0.0, %v1659
      %v1661 = vpop.f32.mrb[0].mxu0
      %v1662 = vadd.f32 0.0, %v1661
      %v1663 = vpop.f32.mrb[0].mxu0
      %v1664 = vadd.f32 0.0, %v1663
      %v1665 = vpop.f32.mrb[0].mxu0
      %v1666 = vadd.f32 0.0, %v1665
      %1667 = vmatprep.mubr.bf16.mxu0 0
      %1668 = vmatmul.mubr.bf16.gmra.mrb[0].mxu0 %v1289
      %v1669 = vpop.f32.mrb[0].mxu0
      %v1670 = vadd.f32 0.0, %v1669
      %v1671 = vpop.f32.mrb[0].mxu0
      %v1672 = vadd.f32 0.0, %v1671
      %v1673 = vpop.f32.mrb[0].mxu0
      %v1674 = vadd.f32 0.0, %v1673
      %v1675 = vpop.f32.mrb[0].mxu0
      %v1676 = vadd.f32 0.0, %v1675
      %1677 = vmatprep.mubr.bf16.mxu0 0
      %1678 = vmatmul.mubr.bf16.gmra.mrb[0].mxu0 %v1292
      %v1679 = vpop.f32.mrb[0].mxu0
      %v1680 = vadd.f32 0.0, %v1679
      %v1681 = vpop.f32.mrb[0].mxu0
      %v1682 = vadd.f32 0.0, %v1681
      %v1683 = vpop.f32.mrb[0].mxu0
      %v1684 = vadd.f32 0.0, %v1683
      %v1685 = vpop.f32.mrb[0].mxu0
      %v1686 = vadd.f32 0.0, %v1685
      %1687 = vmatprep.mubr.bf16.mxu0 0
      %1688 = vmatmul.mubr.bf16.gmra.mrb[0].mxu0 %v1295
      %v1689 = vpop.f32.mrb[0].mxu0
      %v1690 = vadd.f32 0.0, %v1689
      %v1691 = vpop.f32.mrb[0].mxu0
      %v1692 = vadd.f32 0.0, %v1691
      %v1693 = vpop.f32.mrb[0].mxu0
      %v1694 = vadd.f32 0.0, %v1693
      %v1695 = vpop.f32.mrb[0].mxu0
      %v1696 = vadd.f32 0.0, %v1695
      %1697 = vmatprep.mubr.bf16.mxu0 0
      %1698 = vmatmul.mubr.bf16.gmra.mrb[0].mxu0 %v1298
      %v1699 = vpop.f32.mrb[0].mxu0
      %v1700 = vadd.f32 0.0, %v1699
      %v1701 = vpop.f32.mrb[0].mxu0
      %v1702 = vadd.f32 0.0, %v1701
      %v1703 = vpop.f32.mrb[0].mxu0
      %v1704 = vadd.f32 0.0, %v1703
      %v1705 = vpop.f32.mrb[0].mxu0
      %v1706 = vadd.f32 0.0, %v1705
      %1707 = vmatprep.mubr.bf16.mxu0 0
      %1708 = vmatmul.mubr.bf16.gmra.mrb[0].mxu0 %v1301
      %v1709 = vpop.f32.mrb[0].mxu0
      %v1710 = vadd.f32 0.0, %v1709
      %v1711 = vpop.f32.mrb[0].mxu0
      %v1712 = vadd.f32 0.0, %v1711
      %v1713 = vpop.f32.mrb[0].mxu0
      %v1714 = vadd.f32 0.0, %v1713
      %v1715 = vpop.f32.mrb[0].mxu0
      %v1716 = vadd.f32 0.0, %v1715
      %1717 = vmatprep.mubr.bf16.mxu0 0
      %1718 = vmatmul.mubr.bf16.gmra.mrb[0].mxu0 %v1304
      %v1719 = vpop.f32.mrb[0].mxu0
      %v1720 = vadd.f32 0.0, %v1719
      %v1721 = vpop.f32.mrb[0].mxu0
      %v1722 = vadd.f32 0.0, %v1721
      %v1723 = vpop.f32.mrb[0].mxu0
      %v1724 = vadd.f32 0.0, %v1723
      %v1725 = vpop.f32.mrb[0].mxu0
      %v1726 = vadd.f32 0.0, %v1725
      %1727 = vmatprep.mubr.bf16.mxu0 0
      %1728 = vmatmul.mubr.bf16.gmra.mrb[0].mxu0 %v1307
      %v1729 = vpop.f32.mrb[0].mxu0
      %v1730 = vadd.f32 0.0, %v1729
      %v1731 = vpop.f32.mrb[0].mxu0
      %v1732 = vadd.f32 0.0, %v1731
      %v1733 = vpop.f32.mrb[0].mxu0
      %v1734 = vadd.f32 0.0, %v1733
      %v1735 = vpop.f32.mrb[0].mxu0
      %v1736 = vadd.f32 0.0, %v1735
      %1737 = vmatprep.mubr.bf16.mxu0 0
      %1738 = vmatmul.mubr.bf16.gmra.mrb[0].mxu0 %v1310
      %v1739 = vpop.f32.mrb[0].mxu0
      %v1740 = vadd.f32 0.0, %v1739
      %v1741 = vpop.f32.mrb[0].mxu0
      %v1742 = vadd.f32 0.0, %v1741
      %v1743 = vpop.f32.mrb[0].mxu0
      %v1744 = vadd.f32 0.0, %v1743
      %v1745 = vpop.f32.mrb[0].mxu0
      %v1746 = vadd.f32 0.0, %v1745
      %1747 = vmatprep.mubr.bf16.mxu0 0
      %1748 = vmatmul.mubr.bf16.gmra.mrb[0].mxu0 %v1313
      %v1749 = vpop.f32.mrb[0].mxu0
      %v1750 = vadd.f32 0.0, %v1749
      %v1751 = vpop.f32.mrb[0].mxu0
      %v1752 = vadd.f32 0.0, %v1751
      %v1753 = vpop.f32.mrb[0].mxu0
      %v1754 = vadd.f32 0.0, %v1753
      %v1755 = vpop.f32.mrb[0].mxu0
      %v1756 = vadd.f32 0.0, %v1755
      %1757 = vmatprep.mubr.bf16.mxu0 0
      %1758 = vmatmul.mubr.bf16.gmra.mrb[0].mxu0 %v1316
      %v1759 = vpop.f32.mrb[0].mxu0
      %v1760 = vadd.f32 0.0, %v1759
      %v1761 = vpop.f32.mrb[0].mxu0
      %v1762 = vadd.f32 0.0, %v1761
      %v1763 = vpop.f32.mrb[0].mxu0
      %v1764 = vadd.f32 0.0, %v1763
      %v1765 = vpop.f32.mrb[0].mxu0
      %v1766 = vadd.f32 0.0, %v1765
      %1767 = vdwg.mxu0
      %v1768 = vmax.f32 %v1511, %v1610
      %v1769 = vmax.f32 %v1512, %v1612
      %v1770 = vmax.f32 %v1513, %v1614
      %v1771 = vmax.f32 %v1514, %v1616
      %v1772 = vmax.f32 %v1515, %v1620
      %v1773 = vmax.f32 %v1516, %v1622
      %v1774 = vmax.f32 %v1517, %v1624
      %v1775 = vmax.f32 %v1518, %v1626
      %v1776 = vmax.f32 %v1519, %v1630
      %v1777 = vmax.f32 %v1520, %v1632
      %v1778 = vmax.f32 %v1521, %v1634
      %v1779 = vmax.f32 %v1522, %v1636
      %v1780 = vmax.f32 %v1523, %v1640
      %v1781 = vmax.f32 %v1524, %v1642
      %v1782 = vmax.f32 %v1525, %v1644
      %v1783 = vmax.f32 %v1526, %v1646
      %v1784 = vmax.f32 %v1527, %v1650
      %v1785 = vmax.f32 %v1528, %v1652
      %v1786 = vmax.f32 %v1529, %v1654
      %v1787 = vmax.f32 %v1530, %v1656
      %v1788 = vmax.f32 %v1531, %v1660
      %v1789 = vmax.f32 %v1532, %v1662
      %v1790 = vmax.f32 %v1533, %v1664
      %v1791 = vmax.f32 %v1534, %v1666
      %v1792 = vmax.f32 %v1535, %v1670
      %v1793 = vmax.f32 %v1536, %v1672
      %v1794 = vmax.f32 %v1537, %v1674
      %v1795 = vmax.f32 %v1538, %v1676
      %v1796 = vmax.f32 %v1539, %v1680
      %v1797 = vmax.f32 %v1540, %v1682
      %v1798 = vmax.f32 %v1541, %v1684
      %v1799 = vmax.f32 %v1542, %v1686
      %v1800 = vmax.f32 %v1543, %v1690
      %v1801 = vmax.f32 %v1544, %v1692
      %v1802 = vmax.f32 %v1545, %v1694
      %v1803 = vmax.f32 %v1546, %v1696
      %v1804 = vmax.f32 %v1547, %v1700
      %v1805 = vmax.f32 %v1548, %v1702
      %v1806 = vmax.f32 %v1549, %v1704
      %v1807 = vmax.f32 %v1550, %v1706
      %v1808 = vmax.f32 %v1551, %v1710
      %v1809 = vmax.f32 %v1552, %v1712
      %v1810 = vmax.f32 %v1553, %v1714
      %v1811 = vmax.f32 %v1554, %v1716
      %v1812 = vmax.f32 %v1555, %v1720
      %v1813 = vmax.f32 %v1556, %v1722
      %v1814 = vmax.f32 %v1557, %v1724
      %v1815 = vmax.f32 %v1558, %v1726
      %v1816 = vmax.f32 %v1559, %v1730
      %v1817 = vmax.f32 %v1560, %v1732
      %v1818 = vmax.f32 %v1561, %v1734
      %v1819 = vmax.f32 %v1562, %v1736
      %v1820 = vmax.f32 %v1563, %v1740
      %v1821 = vmax.f32 %v1564, %v1742
      %v1822 = vmax.f32 %v1565, %v1744
      %v1823 = vmax.f32 %v1566, %v1746
      %v1824 = vmax.f32 %v1567, %v1750
      %v1825 = vmax.f32 %v1568, %v1752
      %v1826 = vmax.f32 %v1569, %v1754
      %v1827 = vmax.f32 %v1570, %v1756
      %v1828 = vmax.f32 %v1571, %v1760
      %v1829 = vmax.f32 %v1572, %v1762
      %v1830 = vmax.f32 %v1573, %v1764
      %v1831 = vmax.f32 %v1574, %v1766
      %v1832 = vld [vmem:[%s2] sm:$0x3]
      %v1834 = vlaneseq
      %v1835 = vshrl.u32 %v1834, 7
      %v1836 = vsub.s32 0, %v1835
      %v1837 = vrot.slane %v1832, %v1836
      %v1838 = vlaneseq
      %v1839 = vshrl.u32 %v1838, 7
      %v1840 = vsub.s32 1, %v1839
      %v1841 = vrot.slane %v1832, %v1840
      %v1844 = vadd.f32 %v1768, %v1837
      %v1845 = vadd.f32 %v1769, %v1841
      %v1846 = vadd.f32 %v1770, %v1837
      %v1847 = vadd.f32 %v1771, %v1841
      %v1848 = vadd.f32 %v1772, %v1837
      %v1849 = vadd.f32 %v1773, %v1841
      %v1850 = vadd.f32 %v1774, %v1837
      %v1851 = vadd.f32 %v1775, %v1841
      %v1852 = vadd.f32 %v1776, %v1837
      %v1853 = vadd.f32 %v1777, %v1841
      %v1854 = vadd.f32 %v1778, %v1837
      %v1855 = vadd.f32 %v1779, %v1841
      %v1856 = vadd.f32 %v1780, %v1837
      %v1857 = vadd.f32 %v1781, %v1841
      %v1858 = vadd.f32 %v1782, %v1837
      %v1859 = vadd.f32 %v1783, %v1841
      %v1860 = vadd.f32 %v1784, %v1837
      %v1861 = vadd.f32 %v1785, %v1841
      %v1862 = vadd.f32 %v1786, %v1837
      %v1863 = vadd.f32 %v1787, %v1841
      %v1864 = vadd.f32 %v1788, %v1837
      %v1865 = vadd.f32 %v1789, %v1841
      %v1866 = vadd.f32 %v1790, %v1837
      %v1867 = vadd.f32 %v1791, %v1841
      %v1868 = vadd.f32 %v1792, %v1837
      %v1869 = vadd.f32 %v1793, %v1841
      %v1870 = vadd.f32 %v1794, %v1837
      %v1871 = vadd.f32 %v1795, %v1841
      %v1872 = vadd.f32 %v1796, %v1837
      %v1873 = vadd.f32 %v1797, %v1841
      %v1874 = vadd.f32 %v1798, %v1837
      %v1875 = vadd.f32 %v1799, %v1841
      %v1876 = vadd.f32 %v1800, %v1837
      %v1877 = vadd.f32 %v1801, %v1841
      %v1878 = vadd.f32 %v1802, %v1837
      %v1879 = vadd.f32 %v1803, %v1841
      %v1880 = vadd.f32 %v1804, %v1837
      %v1881 = vadd.f32 %v1805, %v1841
      %v1882 = vadd.f32 %v1806, %v1837
      %v1883 = vadd.f32 %v1807, %v1841
      %v1884 = vadd.f32 %v1808, %v1837
      %v1885 = vadd.f32 %v1809, %v1841
      %v1886 = vadd.f32 %v1810, %v1837
      %v1887 = vadd.f32 %v1811, %v1841
      %v1888 = vadd.f32 %v1812, %v1837
      %v1889 = vadd.f32 %v1813, %v1841
      %v1890 = vadd.f32 %v1814, %v1837
      %v1891 = vadd.f32 %v1815, %v1841
      %v1892 = vadd.f32 %v1816, %v1837
      %v1893 = vadd.f32 %v1817, %v1841
      %v1894 = vadd.f32 %v1818, %v1837
      %v1895 = vadd.f32 %v1819, %v1841
      %v1896 = vadd.f32 %v1820, %v1837
      %v1897 = vadd.f32 %v1821, %v1841
      %v1898 = vadd.f32 %v1822, %v1837
      %v1899 = vadd.f32 %v1823, %v1841
      %v1900 = vadd.f32 %v1824, %v1837
      %v1901 = vadd.f32 %v1825, %v1841
      %v1902 = vadd.f32 %v1826, %v1837
      %v1903 = vadd.f32 %v1827, %v1841
      %v1904 = vadd.f32 %v1828, %v1837
      %v1905 = vadd.f32 %v1829, %v1841
      %v1906 = vadd.f32 %v1830, %v1837
      %v1907 = vadd.f32 %v1831, %v1841
      %v1908 = vmax.f32 %v1844, 0.0
      %v1909 = vmax.f32 %v1845, 0.0
      %v1910 = vmax.f32 %v1846, 0.0
      %v1911 = vmax.f32 %v1847, 0.0
      %v1912 = vmax.f32 %v1848, 0.0
      %v1913 = vmax.f32 %v1849, 0.0
      %v1914 = vmax.f32 %v1850, 0.0
      %v1915 = vmax.f32 %v1851, 0.0
      %v1916 = vmax.f32 %v1852, 0.0
      %v1917 = vmax.f32 %v1853, 0.0
      %v1918 = vmax.f32 %v1854, 0.0
      %v1919 = vmax.f32 %v1855, 0.0
      %v1920 = vmax.f32 %v1856, 0.0
      %v1921 = vmax.f32 %v1857, 0.0
      %v1922 = vmax.f32 %v1858, 0.0
      %v1923 = vmax.f32 %v1859, 0.0
      %v1924 = vmax.f32 %v1860, 0.0
      %v1925 = vmax.f32 %v1861, 0.0
      %v1926 = vmax.f32 %v1862, 0.0
      %v1927 = vmax.f32 %v1863, 0.0
      %v1928 = vmax.f32 %v1864, 0.0
      %v1929 = vmax.f32 %v1865, 0.0
      %v1930 = vmax.f32 %v1866, 0.0
      %v1931 = vmax.f32 %v1867, 0.0
      %v1932 = vmax.f32 %v1868, 0.0
      %v1933 = vmax.f32 %v1869, 0.0
      %v1934 = vmax.f32 %v1870, 0.0
      %v1935 = vmax.f32 %v1871, 0.0
      %v1936 = vmax.f32 %v1872, 0.0
      %v1937 = vmax.f32 %v1873, 0.0
      %v1938 = vmax.f32 %v1874, 0.0
      %v1939 = vmax.f32 %v1875, 0.0
      %v1940 = vmax.f32 %v1876, 0.0
      %v1941 = vmax.f32 %v1877, 0.0
      %v1942 = vmax.f32 %v1878, 0.0
      %v1943 = vmax.f32 %v1879, 0.0
      %v1944 = vmax.f32 %v1880, 0.0
      %v1945 = vmax.f32 %v1881, 0.0
      %v1946 = vmax.f32 %v1882, 0.0
      %v1947 = vmax.f32 %v1883, 0.0
      %v1948 = vmax.f32 %v1884, 0.0
      %v1949 = vmax.f32 %v1885, 0.0
      %v1950 = vmax.f32 %v1886, 0.0
      %v1951 = vmax.f32 %v1887, 0.0
      %v1952 = vmax.f32 %v1888, 0.0
      %v1953 = vmax.f32 %v1889, 0.0
      %v1954 = vmax.f32 %v1890, 0.0
      %v1955 = vmax.f32 %v1891, 0.0
      %v1956 = vmax.f32 %v1892, 0.0
      %v1957 = vmax.f32 %v1893, 0.0
      %v1958 = vmax.f32 %v1894, 0.0
      %v1959 = vmax.f32 %v1895, 0.0
      %v1960 = vmax.f32 %v1896, 0.0
      %v1961 = vmax.f32 %v1897, 0.0
      %v1962 = vmax.f32 %v1898, 0.0
      %v1963 = vmax.f32 %v1899, 0.0
      %v1964 = vmax.f32 %v1900, 0.0
      %v1965 = vmax.f32 %v1901, 0.0
      %v1966 = vmax.f32 %v1902, 0.0
      %v1967 = vmax.f32 %v1903, 0.0
      %v1968 = vmax.f32 %v1904, 0.0
      %v1969 = vmax.f32 %v1905, 0.0
      %v1970 = vmax.f32 %v1906, 0.0
      %v1971 = vmax.f32 %v1907, 0.0
      %v1972 = vsel %vm368, 0.0, %v1908
      %v1973 = vsel %vm368, 0.0, %v1909
      %v1974 = vsel %vm369, 0.0, %v1910
      %v1975 = vsel %vm369, 0.0, %v1911
      %v1976 = vsel %vm370, 0.0, %v1912
      %v1977 = vsel %vm370, 0.0, %v1913
      %v1978 = vsel %vm371, 0.0, %v1914
      %v1979 = vsel %vm371, 0.0, %v1915
      %v1980 = vsel %vm372, 0.0, %v1916
      %v1981 = vsel %vm372, 0.0, %v1917
      %v1982 = vsel %vm373, 0.0, %v1918
      %v1983 = vsel %vm373, 0.0, %v1919
      %v1984 = vsel %vm374, 0.0, %v1920
      %v1985 = vsel %vm374, 0.0, %v1921
      %v1986 = vsel %vm375, 0.0, %v1922
      %v1987 = vsel %vm375, 0.0, %v1923
      %v1988 = vsel %vm376, 0.0, %v1924
      %v1989 = vsel %vm376, 0.0, %v1925
      %v1990 = vsel %vm377, 0.0, %v1926
      %v1991 = vsel %vm377, 0.0, %v1927
      %v1992 = vsel %vm378, 0.0, %v1928
      %v1993 = vsel %vm378, 0.0, %v1929
      %v1994 = vsel %vm379, 0.0, %v1930
      %v1995 = vsel %vm379, 0.0, %v1931
      %v1996 = vsel %vm380, 0.0, %v1932
      %v1997 = vsel %vm380, 0.0, %v1933
      %v1998 = vsel %vm381, 0.0, %v1934
      %v1999 = vsel %vm381, 0.0, %v1935
      %v2000 = vsel %vm382, 0.0, %v1936
      %v2001 = vsel %vm382, 0.0, %v1937
      %v2002 = vsel %vm383, 0.0, %v1938
      %v2003 = vsel %vm383, 0.0, %v1939
      %v2004 = vsel %vm384, 0.0, %v1940
      %v2005 = vsel %vm384, 0.0, %v1941
      %v2006 = vsel %vm385, 0.0, %v1942
      %v2007 = vsel %vm385, 0.0, %v1943
      %v2008 = vsel %vm386, 0.0, %v1944
      %v2009 = vsel %vm386, 0.0, %v1945
      %v2010 = vsel %vm387, 0.0, %v1946
      %v2011 = vsel %vm387, 0.0, %v1947
      %v2012 = vsel %vm388, 0.0, %v1948
      %v2013 = vsel %vm388, 0.0, %v1949
      %v2014 = vsel %vm389, 0.0, %v1950
      %v2015 = vsel %vm389, 0.0, %v1951
      %v2016 = vsel %vm390, 0.0, %v1952
      %v2017 = vsel %vm390, 0.0, %v1953
      %v2018 = vsel %vm391, 0.0, %v1954
      %v2019 = vsel %vm391, 0.0, %v1955
      %v2020 = vsel %vm392, 0.0, %v1956
      %v2021 = vsel %vm392, 0.0, %v1957
      %v2022 = vsel %vm393, 0.0, %v1958
      %v2023 = vsel %vm393, 0.0, %v1959
      %v2024 = vsel %vm394, 0.0, %v1960
      %v2025 = vsel %vm394, 0.0, %v1961
      %v2026 = vsel %vm395, 0.0, %v1962
      %v2027 = vsel %vm395, 0.0, %v1963
      %v2028 = vsel %vm396, 0.0, %v1964
      %v2029 = vsel %vm396, 0.0, %v1965
      %v2030 = vsel %vm397, 0.0, %v1966
      %v2031 = vsel %vm397, 0.0, %v1967
      %v2032 = vsel %vm398, 0.0, %v1968
      %v2033 = vsel %vm398, 0.0, %v1969
      %v2034 = vsel %vm399, 0.0, %v1970
      %v2035 = vsel %vm399, 0.0, %v1971
      %vm2036 = vcmp.lt.s32.totalorder %v336, 32
      %vm2037 = vcmp.lt.s32.totalorder %v337, 32
      %vm2038 = vcmp.lt.s32.totalorder %v338, 32
      %vm2039 = vcmp.lt.s32.totalorder %v339, 32
      %vm2040 = vcmp.lt.s32.totalorder %v340, 32
      %vm2041 = vcmp.lt.s32.totalorder %v341, 32
      %vm2042 = vcmp.lt.s32.totalorder %v342, 32
      %vm2043 = vcmp.lt.s32.totalorder %v343, 32
      %vm2044 = vcmp.lt.s32.totalorder %v344, 32
      %vm2045 = vcmp.lt.s32.totalorder %v345, 32
      %vm2046 = vcmp.lt.s32.totalorder %v346, 32
      %vm2047 = vcmp.lt.s32.totalorder %v347, 32
      %vm2048 = vcmp.lt.s32.totalorder %v348, 32
      %vm2049 = vcmp.lt.s32.totalorder %v349, 32
      %vm2050 = vcmp.lt.s32.totalorder %v350, 32
      %vm2051 = vcmp.lt.s32.totalorder %v351, 32
      %vm2052 = vcmp.lt.s32.totalorder %v352, 32
      %vm2053 = vcmp.lt.s32.totalorder %v353, 32
      %vm2054 = vcmp.lt.s32.totalorder %v354, 32
      %vm2055 = vcmp.lt.s32.totalorder %v355, 32
      %vm2056 = vcmp.lt.s32.totalorder %v356, 32
      %vm2057 = vcmp.lt.s32.totalorder %v357, 32
      %vm2058 = vcmp.lt.s32.totalorder %v358, 32
      %vm2059 = vcmp.lt.s32.totalorder %v359, 32
      %vm2060 = vcmp.lt.s32.totalorder %v360, 32
      %vm2061 = vcmp.lt.s32.totalorder %v361, 32
      %vm2062 = vcmp.lt.s32.totalorder %v362, 32
      %vm2063 = vcmp.lt.s32.totalorder %v363, 32
      %vm2064 = vcmp.lt.s32.totalorder %v364, 32
      %vm2065 = vcmp.lt.s32.totalorder %v365, 32
      %vm2066 = vcmp.lt.s32.totalorder %v366, 32
      %vm2067 = vcmp.lt.s32.totalorder %v367, 32
      %s2068 = scalar_lea.vmem %s327, 256
      %v2069 = vld [vmem:[%s2068] sm:$0xf]
      %v2070 = vld [vmem:[%s2068 + $0x4] sm:$0xf]
      %v2071 = vld [vmem:[%s2068 + $0x8] sm:$0xf]
      %v2072 = vld [vmem:[%s2068 + $0xc] sm:$0xf]
      %v2073 = vld [vmem:[%s2068 + $0x10] sm:$0xf]
      %v2074 = vld [vmem:[%s2068 + $0x14] sm:$0xf]
      %v2075 = vld [vmem:[%s2068 + $0x18] sm:$0xf]
      %v2076 = vld [vmem:[%s2068 + $0x1c] sm:$0xf]
      %v2077 = vld [vmem:[%s2068 + $0x20] sm:$0xf]
      %v2078 = vld [vmem:[%s2068 + $0x24] sm:$0xf]
      %v2079 = vld [vmem:[%s2068 + $0x28] sm:$0xf]
      %v2080 = vld [vmem:[%s2068 + $0x2c] sm:$0xf]
      %v2081 = vld [vmem:[%s2068 + $0x30] sm:$0xf]
      %v2082 = vld [vmem:[%s2068 + $0x34] sm:$0xf]
      %v2083 = vld [vmem:[%s2068 + $0x38] sm:$0xf]
      %v2084 = vld [vmem:[%s2068 + $0x3c] sm:$0xf]
      %v2085 = vld [vmem:[%s2068 + $0x40] sm:$0xf]
      %v2086 = vld [vmem:[%s2068 + $0x44] sm:$0xf]
      %v2087 = vld [vmem:[%s2068 + $0x48] sm:$0xf]
      %v2088 = vld [vmem:[%s2068 + $0x4c] sm:$0xf]
      %v2089 = vld [vmem:[%s2068 + $0x50] sm:$0xf]
      %v2090 = vld [vmem:[%s2068 + $0x54] sm:$0xf]
      %v2091 = vld [vmem:[%s2068 + $0x58] sm:$0xf]
      %v2092 = vld [vmem:[%s2068 + $0x5c] sm:$0xf]
      %v2093 = vld [vmem:[%s2068 + $0x60] sm:$0xf]
      %v2094 = vld [vmem:[%s2068 + $0x64] sm:$0xf]
      %v2095 = vld [vmem:[%s2068 + $0x68] sm:$0xf]
      %v2096 = vld [vmem:[%s2068 + $0x6c] sm:$0xf]
      %v2097 = vld [vmem:[%s2068 + $0x70] sm:$0xf]
      %v2098 = vld [vmem:[%s2068 + $0x74] sm:$0xf]
      %v2099 = vld [vmem:[%s2068 + $0x78] sm:$0xf]
      %v2100 = vld [vmem:[%s2068 + $0x7c] sm:$0xf]
      %v2133 = vunpack.c.l.b16 %v2069
      %v2134 = vunpack.c.l.b16 %v2070
      %v2135 = vunpack.c.l.b16 %v2071
      %v2136 = vunpack.c.l.b16 %v2072
      %v2137 = vunpack.c.l.b16 %v2073
      %v2138 = vunpack.c.l.b16 %v2074
      %v2139 = vunpack.c.l.b16 %v2075
      %v2140 = vunpack.c.l.b16 %v2076
      %v2141 = vunpack.c.l.b16 %v2077
      %v2142 = vunpack.c.l.b16 %v2078
      %v2143 = vunpack.c.l.b16 %v2079
      %v2144 = vunpack.c.l.b16 %v2080
      %v2145 = vunpack.c.l.b16 %v2081
      %v2146 = vunpack.c.l.b16 %v2082
      %v2147 = vunpack.c.l.b16 %v2083
      %v2148 = vunpack.c.l.b16 %v2084
      %v2149 = vunpack.c.l.b16 %v2085
      %v2150 = vunpack.c.l.b16 %v2086
      %v2151 = vunpack.c.l.b16 %v2087
      %v2152 = vunpack.c.l.b16 %v2088
      %v2153 = vunpack.c.l.b16 %v2089
      %v2154 = vunpack.c.l.b16 %v2090
      %v2155 = vunpack.c.l.b16 %v2091
      %v2156 = vunpack.c.l.b16 %v2092
      %v2157 = vunpack.c.l.b16 %v2093
      %v2158 = vunpack.c.l.b16 %v2094
      %v2159 = vunpack.c.l.b16 %v2095
      %v2160 = vunpack.c.l.b16 %v2096
      %v2161 = vunpack.c.l.b16 %v2097
      %v2162 = vunpack.c.l.b16 %v2098
      %v2163 = vunpack.c.l.b16 %v2099
      %v2164 = vunpack.c.l.b16 %v2100
      %v2165 = vpack.c.b16 %v2134, %v2133
      %v2166 = vpack.c.b16 %v2136, %v2135
      %v2167 = vpack.c.b16 %v2138, %v2137
      %v2168 = vpack.c.b16 %v2140, %v2139
      %v2169 = vpack.c.b16 %v2142, %v2141
      %v2170 = vpack.c.b16 %v2144, %v2143
      %v2171 = vpack.c.b16 %v2146, %v2145
      %v2172 = vpack.c.b16 %v2148, %v2147
      %v2173 = vpack.c.b16 %v2150, %v2149
      %v2174 = vpack.c.b16 %v2152, %v2151
      %v2175 = vpack.c.b16 %v2154, %v2153
      %v2176 = vpack.c.b16 %v2156, %v2155
      %v2177 = vpack.c.b16 %v2158, %v2157
      %v2178 = vpack.c.b16 %v2160, %v2159
      %v2179 = vpack.c.b16 %v2162, %v2161
      %v2180 = vpack.c.b16 %v2164, %v2163
      %v2182 = vsel %vm578, %v2165, 0
      %v2185 = vsel %vm578, %v2166, 0
      %v2188 = vsel %vm578, %v2167, 0
      %v2191 = vsel %vm578, %v2168, 0
      %v2194 = vsel %vm578, %v2169, 0
      %v2197 = vsel %vm578, %v2170, 0
      %v2200 = vsel %vm578, %v2171, 0
      %v2203 = vsel %vm578, %v2172, 0
      %v2206 = vsel %vm578, %v2173, 0
      %v2209 = vsel %vm578, %v2174, 0
      %v2212 = vsel %vm578, %v2175, 0
      %v2215 = vsel %vm578, %v2176, 0
      %v2218 = vsel %vm578, %v2177, 0
      %v2221 = vsel %vm578, %v2178, 0
      %v2224 = vsel %vm578, %v2179, 0
      %v2227 = vsel %vm578, %v2180, 0
      %2229 = vmatprep.subr.bf16.mxu0 %v557
      %2230 = vmatpush1.bf16.msra.mxu0 %v556
      %2231 = vmatprep.subr.bf16.mxu0 %v559
      %2232 = vmatpush1.bf16.msra.mxu0 %v558
      %2233 = vmatprep.subr.bf16.mxu0 %v561
      %2234 = vmatpush1.bf16.msra.mxu0 %v560
      %2235 = vmatprep.subr.bf16.mxu0 %v563
      %2236 = vmatpush1.bf16.msra.mxu0 %v562
      %2237 = vmatprep.subr.bf16.mxu0 %v565
      %2238 = vmatpush1.bf16.msra.mxu0 %v564
      %2239 = vmatprep.subr.bf16.mxu0 %v632
      %2240 = vmatpush1.bf16.msra.mxu0 %v629
      %2241 = vmatprep.subr.bf16.mxu0 0
      %2242 = vmatpush1.bf16.msra.mxu0 0
      %2243 = vmatprep.subr.bf16.mxu0 0
      %2244 = vmatpush1.bf16.msra.mxu0 0
      %2245 = vmatprep.subr.bf16.mxu0 0
      %2246 = vmatpush1.bf16.msra.mxu0 0
      %2247 = vmatprep.subr.bf16.mxu0 0
      %2248 = vmatpush1.bf16.msra.mxu0 0
      %2249 = vmatprep.subr.bf16.mxu0 0
      %2250 = vmatpush1.bf16.msra.mxu0 0
      %2251 = vmatprep.subr.bf16.mxu0 0
      %2252 = vmatpush1.bf16.msra.mxu0 0
      %2253 = vmatprep.subr.bf16.mxu0 0
      %2254 = vmatpush1.bf16.msra.mxu0 0
      %2255 = vmatprep.subr.bf16.mxu0 0
      %2256 = vmatpush1.bf16.msra.mxu0 0
      %2257 = vmatprep.subr.bf16.mxu0 0
      %2258 = vmatpush1.bf16.msra.mxu0 0
      %2259 = vmatprep.subr.bf16.mxu0 0
      %2260 = vmatpush1.bf16.msra.mxu0 0
      %2261 = vmatprep.mubr.bf16.mxu0 0
      %2262 = vmatmul.mubr.bf16.gmra.mrb[0].mxu0 %v2182
      %v2263 = vpop.f32.mrb[0].mxu0
      %v2264 = vadd.f32 0.0, %v2263
      %v2265 = vpop.f32.mrb[0].mxu0
      %v2266 = vadd.f32 0.0, %v2265
      %v2267 = vpop.f32.mrb[0].mxu0
      %v2268 = vadd.f32 0.0, %v2267
      %v2269 = vpop.f32.mrb[0].mxu0
      %v2270 = vadd.f32 0.0, %v2269
      %2271 = vmatprep.mubr.bf16.mxu0 0
      %2272 = vmatmul.mubr.bf16.gmra.mrb[0].mxu0 %v2185
      %v2273 = vpop.f32.mrb[0].mxu0
      %v2274 = vadd.f32 0.0, %v2273
      %v2275 = vpop.f32.mrb[0].mxu0
      %v2276 = vadd.f32 0.0, %v2275
      %v2277 = vpop.f32.mrb[0].mxu0
      %v2278 = vadd.f32 0.0, %v2277
      %v2279 = vpop.f32.mrb[0].mxu0
      %v2280 = vadd.f32 0.0, %v2279
      %2281 = vmatprep.mubr.bf16.mxu0 0
      %2282 = vmatmul.mubr.bf16.gmra.mrb[0].mxu0 %v2188
      %v2283 = vpop.f32.mrb[0].mxu0
      %v2284 = vadd.f32 0.0, %v2283
      %v2285 = vpop.f32.mrb[0].mxu0
      %v2286 = vadd.f32 0.0, %v2285
      %v2287 = vpop.f32.mrb[0].mxu0
      %v2288 = vadd.f32 0.0, %v2287
      %v2289 = vpop.f32.mrb[0].mxu0
      %v2290 = vadd.f32 0.0, %v2289
      %2291 = vmatprep.mubr.bf16.mxu0 0
      %2292 = vmatmul.mubr.bf16.gmra.mrb[0].mxu0 %v2191
      %v2293 = vpop.f32.mrb[0].mxu0
      %v2294 = vadd.f32 0.0, %v2293
      %v2295 = vpop.f32.mrb[0].mxu0
      %v2296 = vadd.f32 0.0, %v2295
      %v2297 = vpop.f32.mrb[0].mxu0
      %v2298 = vadd.f32 0.0, %v2297
      %v2299 = vpop.f32.mrb[0].mxu0
      %v2300 = vadd.f32 0.0, %v2299
      %2301 = vmatprep.mubr.bf16.mxu0 0
      %2302 = vmatmul.mubr.bf16.gmra.mrb[0].mxu0 %v2194
      %v2303 = vpop.f32.mrb[0].mxu0
      %v2304 = vadd.f32 0.0, %v2303
      %v2305 = vpop.f32.mrb[0].mxu0
      %v2306 = vadd.f32 0.0, %v2305
      %v2307 = vpop.f32.mrb[0].mxu0
      %v2308 = vadd.f32 0.0, %v2307
      %v2309 = vpop.f32.mrb[0].mxu0
      %v2310 = vadd.f32 0.0, %v2309
      %2311 = vmatprep.mubr.bf16.mxu0 0
      %2312 = vmatmul.mubr.bf16.gmra.mrb[0].mxu0 %v2197
      %v2313 = vpop.f32.mrb[0].mxu0
      %v2314 = vadd.f32 0.0, %v2313
      %v2315 = vpop.f32.mrb[0].mxu0
      %v2316 = vadd.f32 0.0, %v2315
      %v2317 = vpop.f32.mrb[0].mxu0
      %v2318 = vadd.f32 0.0, %v2317
      %v2319 = vpop.f32.mrb[0].mxu0
      %v2320 = vadd.f32 0.0, %v2319
      %2321 = vmatprep.mubr.bf16.mxu0 0
      %2322 = vmatmul.mubr.bf16.gmra.mrb[0].mxu0 %v2200
      %v2323 = vpop.f32.mrb[0].mxu0
      %v2324 = vadd.f32 0.0, %v2323
      %v2325 = vpop.f32.mrb[0].mxu0
      %v2326 = vadd.f32 0.0, %v2325
      %v2327 = vpop.f32.mrb[0].mxu0
      %v2328 = vadd.f32 0.0, %v2327
      %v2329 = vpop.f32.mrb[0].mxu0
      %v2330 = vadd.f32 0.0, %v2329
      %2331 = vmatprep.mubr.bf16.mxu0 0
      %2332 = vmatmul.mubr.bf16.gmra.mrb[0].mxu0 %v2203
      %v2333 = vpop.f32.mrb[0].mxu0
      %v2334 = vadd.f32 0.0, %v2333
      %v2335 = vpop.f32.mrb[0].mxu0
      %v2336 = vadd.f32 0.0, %v2335
      %v2337 = vpop.f32.mrb[0].mxu0
      %v2338 = vadd.f32 0.0, %v2337
      %v2339 = vpop.f32.mrb[0].mxu0
      %v2340 = vadd.f32 0.0, %v2339
      %2341 = vmatprep.mubr.bf16.mxu0 0
      %2342 = vmatmul.mubr.bf16.gmra.mrb[0].mxu0 %v2206
      %v2343 = vpop.f32.mrb[0].mxu0
      %v2344 = vadd.f32 0.0, %v2343
      %v2345 = vpop.f32.mrb[0].mxu0
      %v2346 = vadd.f32 0.0, %v2345
      %v2347 = vpop.f32.mrb[0].mxu0
      %v2348 = vadd.f32 0.0, %v2347
      %v2349 = vpop.f32.mrb[0].mxu0
      %v2350 = vadd.f32 0.0, %v2349
      %2351 = vmatprep.mubr.bf16.mxu0 0
      %2352 = vmatmul.mubr.bf16.gmra.mrb[0].mxu0 %v2209
      %v2353 = vpop.f32.mrb[0].mxu0
      %v2354 = vadd.f32 0.0, %v2353
      %v2355 = vpop.f32.mrb[0].mxu0
      %v2356 = vadd.f32 0.0, %v2355
      %v2357 = vpop.f32.mrb[0].mxu0
      %v2358 = vadd.f32 0.0, %v2357
      %v2359 = vpop.f32.mrb[0].mxu0
      %v2360 = vadd.f32 0.0, %v2359
      %2361 = vmatprep.mubr.bf16.mxu0 0
      %2362 = vmatmul.mubr.bf16.gmra.mrb[0].mxu0 %v2212
      %v2363 = vpop.f32.mrb[0].mxu0
      %v2364 = vadd.f32 0.0, %v2363
      %v2365 = vpop.f32.mrb[0].mxu0
      %v2366 = vadd.f32 0.0, %v2365
      %v2367 = vpop.f32.mrb[0].mxu0
      %v2368 = vadd.f32 0.0, %v2367
      %v2369 = vpop.f32.mrb[0].mxu0
      %v2370 = vadd.f32 0.0, %v2369
      %2371 = vmatprep.mubr.bf16.mxu0 0
      %2372 = vmatmul.mubr.bf16.gmra.mrb[0].mxu0 %v2215
      %v2373 = vpop.f32.mrb[0].mxu0
      %v2374 = vadd.f32 0.0, %v2373
      %v2375 = vpop.f32.mrb[0].mxu0
      %v2376 = vadd.f32 0.0, %v2375
      %v2377 = vpop.f32.mrb[0].mxu0
      %v2378 = vadd.f32 0.0, %v2377
      %v2379 = vpop.f32.mrb[0].mxu0
      %v2380 = vadd.f32 0.0, %v2379
      %2381 = vmatprep.mubr.bf16.mxu0 0
      %2382 = vmatmul.mubr.bf16.gmra.mrb[0].mxu0 %v2218
      %v2383 = vpop.f32.mrb[0].mxu0
      %v2384 = vadd.f32 0.0, %v2383
      %v2385 = vpop.f32.mrb[0].mxu0
      %v2386 = vadd.f32 0.0, %v2385
      %v2387 = vpop.f32.mrb[0].mxu0
      %v2388 = vadd.f32 0.0, %v2387
      %v2389 = vpop.f32.mrb[0].mxu0
      %v2390 = vadd.f32 0.0, %v2389
      %2391 = vmatprep.mubr.bf16.mxu0 0
      %2392 = vmatmul.mubr.bf16.gmra.mrb[0].mxu0 %v2221
      %v2393 = vpop.f32.mrb[0].mxu0
      %v2394 = vadd.f32 0.0, %v2393
      %v2395 = vpop.f32.mrb[0].mxu0
      %v2396 = vadd.f32 0.0, %v2395
      %v2397 = vpop.f32.mrb[0].mxu0
      %v2398 = vadd.f32 0.0, %v2397
      %v2399 = vpop.f32.mrb[0].mxu0
      %v2400 = vadd.f32 0.0, %v2399
      %2401 = vmatprep.mubr.bf16.mxu0 0
      %2402 = vmatmul.mubr.bf16.gmra.mrb[0].mxu0 %v2224
      %v2403 = vpop.f32.mrb[0].mxu0
      %v2404 = vadd.f32 0.0, %v2403
      %v2405 = vpop.f32.mrb[0].mxu0
      %v2406 = vadd.f32 0.0, %v2405
      %v2407 = vpop.f32.mrb[0].mxu0
      %v2408 = vadd.f32 0.0, %v2407
      %v2409 = vpop.f32.mrb[0].mxu0
      %v2410 = vadd.f32 0.0, %v2409
      %2411 = vmatprep.mubr.bf16.mxu0 0
      %2412 = vmatmul.mubr.bf16.gmra.mrb[0].mxu0 %v2227
      %v2413 = vpop.f32.mrb[0].mxu0
      %v2414 = vadd.f32 0.0, %v2413
      %v2415 = vpop.f32.mrb[0].mxu0
      %v2416 = vadd.f32 0.0, %v2415
      %v2417 = vpop.f32.mrb[0].mxu0
      %v2418 = vadd.f32 0.0, %v2417
      %v2419 = vpop.f32.mrb[0].mxu0
      %v2420 = vadd.f32 0.0, %v2419
      %2421 = vdwg.mxu0
      %2422 = vmatprep.subr.bf16.mxu0 %v873
      %2423 = vmatpush1.bf16.msra.mxu0 %v872
      %2424 = vmatprep.subr.bf16.mxu0 %v875
      %2425 = vmatpush1.bf16.msra.mxu0 %v874
      %2426 = vmatprep.subr.bf16.mxu0 %v877
      %2427 = vmatpush1.bf16.msra.mxu0 %v876
      %2428 = vmatprep.subr.bf16.mxu0 %v879
      %2429 = vmatpush1.bf16.msra.mxu0 %v878
      %2430 = vmatprep.subr.bf16.mxu0 %v881
      %2431 = vmatpush1.bf16.msra.mxu0 %v880
      %2432 = vmatprep.subr.bf16.mxu0 %v898
      %2433 = vmatpush1.bf16.msra.mxu0 %v895
      %2434 = vmatprep.subr.bf16.mxu0 0
      %2435 = vmatpush1.bf16.msra.mxu0 0
      %2436 = vmatprep.subr.bf16.mxu0 0
      %2437 = vmatpush1.bf16.msra.mxu0 0
      %2438 = vmatprep.subr.bf16.mxu0 0
      %2439 = vmatpush1.bf16.msra.mxu0 0
      %2440 = vmatprep.subr.bf16.mxu0 0
      %2441 = vmatpush1.bf16.msra.mxu0 0
      %2442 = vmatprep.subr.bf16.mxu0 0
      %2443 = vmatpush1.bf16.msra.mxu0 0
      %2444 = vmatprep.subr.bf16.mxu0 0
      %2445 = vmatpush1.bf16.msra.mxu0 0
      %2446 = vmatprep.subr.bf16.mxu0 0
      %2447 = vmatpush1.bf16.msra.mxu0 0
      %2448 = vmatprep.subr.bf16.mxu0 0
      %2449 = vmatpush1.bf16.msra.mxu0 0
      %2450 = vmatprep.subr.bf16.mxu0 0
      %2451 = vmatpush1.bf16.msra.mxu0 0
      %2452 = vmatprep.subr.bf16.mxu0 0
      %2453 = vmatpush1.bf16.msra.mxu0 0
      %2454 = vmatprep.mubr.bf16.mxu0 0
      %2455 = vmatmul.mubr.bf16.gmra.mrb[0].mxu0 %v2182
      %v2456 = vpop.f32.mrb[0].mxu0
      %v2457 = vadd.f32 0.0, %v2456
      %v2458 = vpop.f32.mrb[0].mxu0
      %v2459 = vadd.f32 0.0, %v2458
      %v2460 = vpop.f32.mrb[0].mxu0
      %v2461 = vadd.f32 0.0, %v2460
      %v2462 = vpop.f32.mrb[0].mxu0
      %v2463 = vadd.f32 0.0, %v2462
      %2464 = vmatprep.mubr.bf16.mxu0 0
      %2465 = vmatmul.mubr.bf16.gmra.mrb[0].mxu0 %v2185
      %v2466 = vpop.f32.mrb[0].mxu0
      %v2467 = vadd.f32 0.0, %v2466
      %v2468 = vpop.f32.mrb[0].mxu0
      %v2469 = vadd.f32 0.0, %v2468
      %v2470 = vpop.f32.mrb[0].mxu0
      %v2471 = vadd.f32 0.0, %v2470
      %v2472 = vpop.f32.mrb[0].mxu0
      %v2473 = vadd.f32 0.0, %v2472
      %2474 = vmatprep.mubr.bf16.mxu0 0
      %2475 = vmatmul.mubr.bf16.gmra.mrb[0].mxu0 %v2188
      %v2476 = vpop.f32.mrb[0].mxu0
      %v2477 = vadd.f32 0.0, %v2476
      %v2478 = vpop.f32.mrb[0].mxu0
      %v2479 = vadd.f32 0.0, %v2478
      %v2480 = vpop.f32.mrb[0].mxu0
      %v2481 = vadd.f32 0.0, %v2480
      %v2482 = vpop.f32.mrb[0].mxu0
      %v2483 = vadd.f32 0.0, %v2482
      %2484 = vmatprep.mubr.bf16.mxu0 0
      %2485 = vmatmul.mubr.bf16.gmra.mrb[0].mxu0 %v2191
      %v2486 = vpop.f32.mrb[0].mxu0
      %v2487 = vadd.f32 0.0, %v2486
      %v2488 = vpop.f32.mrb[0].mxu0
      %v2489 = vadd.f32 0.0, %v2488
      %v2490 = vpop.f32.mrb[0].mxu0
      %v2491 = vadd.f32 0.0, %v2490
      %v2492 = vpop.f32.mrb[0].mxu0
      %v2493 = vadd.f32 0.0, %v2492
      %2494 = vmatprep.mubr.bf16.mxu0 0
      %2495 = vmatmul.mubr.bf16.gmra.mrb[0].mxu0 %v2194
      %v2496 = vpop.f32.mrb[0].mxu0
      %v2497 = vadd.f32 0.0, %v2496
      %v2498 = vpop.f32.mrb[0].mxu0
      %v2499 = vadd.f32 0.0, %v2498
      %v2500 = vpop.f32.mrb[0].mxu0
      %v2501 = vadd.f32 0.0, %v2500
      %v2502 = vpop.f32.mrb[0].mxu0
      %v2503 = vadd.f32 0.0, %v2502
      %2504 = vmatprep.mubr.bf16.mxu0 0
      %2505 = vmatmul.mubr.bf16.gmra.mrb[0].mxu0 %v2197
      %v2506 = vpop.f32.mrb[0].mxu0
      %v2507 = vadd.f32 0.0, %v2506
      %v2508 = vpop.f32.mrb[0].mxu0
      %v2509 = vadd.f32 0.0, %v2508
      %v2510 = vpop.f32.mrb[0].mxu0
      %v2511 = vadd.f32 0.0, %v2510
      %v2512 = vpop.f32.mrb[0].mxu0
      %v2513 = vadd.f32 0.0, %v2512
      %2514 = vmatprep.mubr.bf16.mxu0 0
      %2515 = vmatmul.mubr.bf16.gmra.mrb[0].mxu0 %v2200
      %v2516 = vpop.f32.mrb[0].mxu0
      %v2517 = vadd.f32 0.0, %v2516
      %v2518 = vpop.f32.mrb[0].mxu0
      %v2519 = vadd.f32 0.0, %v2518
      %v2520 = vpop.f32.mrb[0].mxu0
      %v2521 = vadd.f32 0.0, %v2520
      %v2522 = vpop.f32.mrb[0].mxu0
      %v2523 = vadd.f32 0.0, %v2522
      %2524 = vmatprep.mubr.bf16.mxu0 0
      %2525 = vmatmul.mubr.bf16.gmra.mrb[0].mxu0 %v2203
      %v2526 = vpop.f32.mrb[0].mxu0
      %v2527 = vadd.f32 0.0, %v2526
      %v2528 = vpop.f32.mrb[0].mxu0
      %v2529 = vadd.f32 0.0, %v2528
      %v2530 = vpop.f32.mrb[0].mxu0
      %v2531 = vadd.f32 0.0, %v2530
      %v2532 = vpop.f32.mrb[0].mxu0
      %v2533 = vadd.f32 0.0, %v2532
      %2534 = vmatprep.mubr.bf16.mxu0 0
      %2535 = vmatmul.mubr.bf16.gmra.mrb[0].mxu0 %v2206
      %v2536 = vpop.f32.mrb[0].mxu0
      %v2537 = vadd.f32 0.0, %v2536
      %v2538 = vpop.f32.mrb[0].mxu0
      %v2539 = vadd.f32 0.0, %v2538
      %v2540 = vpop.f32.mrb[0].mxu0
      %v2541 = vadd.f32 0.0, %v2540
      %v2542 = vpop.f32.mrb[0].mxu0
      %v2543 = vadd.f32 0.0, %v2542
      %2544 = vmatprep.mubr.bf16.mxu0 0
      %2545 = vmatmul.mubr.bf16.gmra.mrb[0].mxu0 %v2209
      %v2546 = vpop.f32.mrb[0].mxu0
      %v2547 = vadd.f32 0.0, %v2546
      %v2548 = vpop.f32.mrb[0].mxu0
      %v2549 = vadd.f32 0.0, %v2548
      %v2550 = vpop.f32.mrb[0].mxu0
      %v2551 = vadd.f32 0.0, %v2550
      %v2552 = vpop.f32.mrb[0].mxu0
      %v2553 = vadd.f32 0.0, %v2552
      %2554 = vmatprep.mubr.bf16.mxu0 0
      %2555 = vmatmul.mubr.bf16.gmra.mrb[0].mxu0 %v2212
      %v2556 = vpop.f32.mrb[0].mxu0
      %v2557 = vadd.f32 0.0, %v2556
      %v2558 = vpop.f32.mrb[0].mxu0
      %v2559 = vadd.f32 0.0, %v2558
      %v2560 = vpop.f32.mrb[0].mxu0
      %v2561 = vadd.f32 0.0, %v2560
      %v2562 = vpop.f32.mrb[0].mxu0
      %v2563 = vadd.f32 0.0, %v2562
      %2564 = vmatprep.mubr.bf16.mxu0 0
      %2565 = vmatmul.mubr.bf16.gmra.mrb[0].mxu0 %v2215
      %v2566 = vpop.f32.mrb[0].mxu0
      %v2567 = vadd.f32 0.0, %v2566
      %v2568 = vpop.f32.mrb[0].mxu0
      %v2569 = vadd.f32 0.0, %v2568
      %v2570 = vpop.f32.mrb[0].mxu0
      %v2571 = vadd.f32 0.0, %v2570
      %v2572 = vpop.f32.mrb[0].mxu0
      %v2573 = vadd.f32 0.0, %v2572
      %2574 = vmatprep.mubr.bf16.mxu0 0
      %2575 = vmatmul.mubr.bf16.gmra.mrb[0].mxu0 %v2218
      %v2576 = vpop.f32.mrb[0].mxu0
      %v2577 = vadd.f32 0.0, %v2576
      %v2578 = vpop.f32.mrb[0].mxu0
      %v2579 = vadd.f32 0.0, %v2578
      %v2580 = vpop.f32.mrb[0].mxu0
      %v2581 = vadd.f32 0.0, %v2580
      %v2582 = vpop.f32.mrb[0].mxu0
      %v2583 = vadd.f32 0.0, %v2582
      %2584 = vmatprep.mubr.bf16.mxu0 0
      %2585 = vmatmul.mubr.bf16.gmra.mrb[0].mxu0 %v2221
      %v2586 = vpop.f32.mrb[0].mxu0
      %v2587 = vadd.f32 0.0, %v2586
      %v2588 = vpop.f32.mrb[0].mxu0
      %v2589 = vadd.f32 0.0, %v2588
      %v2590 = vpop.f32.mrb[0].mxu0
      %v2591 = vadd.f32 0.0, %v2590
      %v2592 = vpop.f32.mrb[0].mxu0
      %v2593 = vadd.f32 0.0, %v2592
      %2594 = vmatprep.mubr.bf16.mxu0 0
      %2595 = vmatmul.mubr.bf16.gmra.mrb[0].mxu0 %v2224
      %v2596 = vpop.f32.mrb[0].mxu0
      %v2597 = vadd.f32 0.0, %v2596
      %v2598 = vpop.f32.mrb[0].mxu0
      %v2599 = vadd.f32 0.0, %v2598
      %v2600 = vpop.f32.mrb[0].mxu0
      %v2601 = vadd.f32 0.0, %v2600
      %v2602 = vpop.f32.mrb[0].mxu0
      %v2603 = vadd.f32 0.0, %v2602
      %2604 = vmatprep.mubr.bf16.mxu0 0
      %2605 = vmatmul.mubr.bf16.gmra.mrb[0].mxu0 %v2227
      %v2606 = vpop.f32.mrb[0].mxu0
      %v2607 = vadd.f32 0.0, %v2606
      %v2608 = vpop.f32.mrb[0].mxu0
      %v2609 = vadd.f32 0.0, %v2608
      %v2610 = vpop.f32.mrb[0].mxu0
      %v2611 = vadd.f32 0.0, %v2610
      %v2612 = vpop.f32.mrb[0].mxu0
      %v2613 = vadd.f32 0.0, %v2612
      %2614 = vdwg.mxu0
      %v2615 = vmax.f32 %v2264, %v2457
      %v2616 = vmax.f32 %v2266, %v2459
      %v2617 = vmax.f32 %v2268, %v2461
      %v2618 = vmax.f32 %v2270, %v2463
      %v2619 = vmax.f32 %v2274, %v2467
      %v2620 = vmax.f32 %v2276, %v2469
      %v2621 = vmax.f32 %v2278, %v2471
      %v2622 = vmax.f32 %v2280, %v2473
      %v2623 = vmax.f32 %v2284, %v2477
      %v2624 = vmax.f32 %v2286, %v2479
      %v2625 = vmax.f32 %v2288, %v2481
      %v2626 = vmax.f32 %v2290, %v2483
      %v2627 = vmax.f32 %v2294, %v2487
      %v2628 = vmax.f32 %v2296, %v2489
      %v2629 = vmax.f32 %v2298, %v2491
      %v2630 = vmax.f32 %v2300, %v2493
      %v2631 = vmax.f32 %v2304, %v2497
      %v2632 = vmax.f32 %v2306, %v2499
      %v2633 = vmax.f32 %v2308, %v2501
      %v2634 = vmax.f32 %v2310, %v2503
      %v2635 = vmax.f32 %v2314, %v2507
      %v2636 = vmax.f32 %v2316, %v2509
      %v2637 = vmax.f32 %v2318, %v2511
      %v2638 = vmax.f32 %v2320, %v2513
      %v2639 = vmax.f32 %v2324, %v2517
      %v2640 = vmax.f32 %v2326, %v2519
      %v2641 = vmax.f32 %v2328, %v2521
      %v2642 = vmax.f32 %v2330, %v2523
      %v2643 = vmax.f32 %v2334, %v2527
      %v2644 = vmax.f32 %v2336, %v2529
      %v2645 = vmax.f32 %v2338, %v2531
      %v2646 = vmax.f32 %v2340, %v2533
      %v2647 = vmax.f32 %v2344, %v2537
      %v2648 = vmax.f32 %v2346, %v2539
      %v2649 = vmax.f32 %v2348, %v2541
      %v2650 = vmax.f32 %v2350, %v2543
      %v2651 = vmax.f32 %v2354, %v2547
      %v2652 = vmax.f32 %v2356, %v2549
      %v2653 = vmax.f32 %v2358, %v2551
      %v2654 = vmax.f32 %v2360, %v2553
      %v2655 = vmax.f32 %v2364, %v2557
      %v2656 = vmax.f32 %v2366, %v2559
      %v2657 = vmax.f32 %v2368, %v2561
      %v2658 = vmax.f32 %v2370, %v2563
      %v2659 = vmax.f32 %v2374, %v2567
      %v2660 = vmax.f32 %v2376, %v2569
      %v2661 = vmax.f32 %v2378, %v2571
      %v2662 = vmax.f32 %v2380, %v2573
      %v2663 = vmax.f32 %v2384, %v2577
      %v2664 = vmax.f32 %v2386, %v2579
      %v2665 = vmax.f32 %v2388, %v2581
      %v2666 = vmax.f32 %v2390, %v2583
      %v2667 = vmax.f32 %v2394, %v2587
      %v2668 = vmax.f32 %v2396, %v2589
      %v2669 = vmax.f32 %v2398, %v2591
      %v2670 = vmax.f32 %v2400, %v2593
      %v2671 = vmax.f32 %v2404, %v2597
      %v2672 = vmax.f32 %v2406, %v2599
      %v2673 = vmax.f32 %v2408, %v2601
      %v2674 = vmax.f32 %v2410, %v2603
      %v2675 = vmax.f32 %v2414, %v2607
      %v2676 = vmax.f32 %v2416, %v2609
      %v2677 = vmax.f32 %v2418, %v2611
      %v2678 = vmax.f32 %v2420, %v2613
      %s2679 = scalar_lea.vmem %s327, 384
      %v2680 = vld [vmem:[%s2679] sm:$0xf]
      %v2681 = vld [vmem:[%s2679 + $0x4] sm:$0xf]
      %v2682 = vld [vmem:[%s2679 + $0x8] sm:$0xf]
      %v2683 = vld [vmem:[%s2679 + $0xc] sm:$0xf]
      %v2684 = vld [vmem:[%s2679 + $0x10] sm:$0xf]
      %v2685 = vld [vmem:[%s2679 + $0x14] sm:$0xf]
      %v2686 = vld [vmem:[%s2679 + $0x18] sm:$0xf]
      %v2687 = vld [vmem:[%s2679 + $0x1c] sm:$0xf]
      %v2688 = vld [vmem:[%s2679 + $0x20] sm:$0xf]
      %v2689 = vld [vmem:[%s2679 + $0x24] sm:$0xf]
      %v2690 = vld [vmem:[%s2679 + $0x28] sm:$0xf]
      %v2691 = vld [vmem:[%s2679 + $0x2c] sm:$0xf]
      %v2692 = vld [vmem:[%s2679 + $0x30] sm:$0xf]
      %v2693 = vld [vmem:[%s2679 + $0x34] sm:$0xf]
      %v2694 = vld [vmem:[%s2679 + $0x38] sm:$0xf]
      %v2695 = vld [vmem:[%s2679 + $0x3c] sm:$0xf]
      %v2696 = vld [vmem:[%s2679 + $0x40] sm:$0xf]
      %v2697 = vld [vmem:[%s2679 + $0x44] sm:$0xf]
      %v2698 = vld [vmem:[%s2679 + $0x48] sm:$0xf]
      %v2699 = vld [vmem:[%s2679 + $0x4c] sm:$0xf]
      %v2700 = vld [vmem:[%s2679 + $0x50] sm:$0xf]
      %v2701 = vld [vmem:[%s2679 + $0x54] sm:$0xf]
      %v2702 = vld [vmem:[%s2679 + $0x58] sm:$0xf]
      %v2703 = vld [vmem:[%s2679 + $0x5c] sm:$0xf]
      %v2704 = vld [vmem:[%s2679 + $0x60] sm:$0xf]
      %v2705 = vld [vmem:[%s2679 + $0x64] sm:$0xf]
      %v2706 = vld [vmem:[%s2679 + $0x68] sm:$0xf]
      %v2707 = vld [vmem:[%s2679 + $0x6c] sm:$0xf]
      %v2708 = vld [vmem:[%s2679 + $0x70] sm:$0xf]
      %v2709 = vld [vmem:[%s2679 + $0x74] sm:$0xf]
      %v2710 = vld [vmem:[%s2679 + $0x78] sm:$0xf]
      %v2711 = vld [vmem:[%s2679 + $0x7c] sm:$0xf]
      %v2744 = vunpack.c.l.b16 %v2680
      %v2745 = vunpack.c.l.b16 %v2681
      %v2746 = vunpack.c.l.b16 %v2682
      %v2747 = vunpack.c.l.b16 %v2683
      %v2748 = vunpack.c.l.b16 %v2684
      %v2749 = vunpack.c.l.b16 %v2685
      %v2750 = vunpack.c.l.b16 %v2686
      %v2751 = vunpack.c.l.b16 %v2687
      %v2752 = vunpack.c.l.b16 %v2688
      %v2753 = vunpack.c.l.b16 %v2689
      %v2754 = vunpack.c.l.b16 %v2690
      %v2755 = vunpack.c.l.b16 %v2691
      %v2756 = vunpack.c.l.b16 %v2692
      %v2757 = vunpack.c.l.b16 %v2693
      %v2758 = vunpack.c.l.b16 %v2694
      %v2759 = vunpack.c.l.b16 %v2695
      %v2760 = vunpack.c.l.b16 %v2696
      %v2761 = vunpack.c.l.b16 %v2697
      %v2762 = vunpack.c.l.b16 %v2698
      %v2763 = vunpack.c.l.b16 %v2699
      %v2764 = vunpack.c.l.b16 %v2700
      %v2765 = vunpack.c.l.b16 %v2701
      %v2766 = vunpack.c.l.b16 %v2702
      %v2767 = vunpack.c.l.b16 %v2703
      %v2768 = vunpack.c.l.b16 %v2704
      %v2769 = vunpack.c.l.b16 %v2705
      %v2770 = vunpack.c.l.b16 %v2706
      %v2771 = vunpack.c.l.b16 %v2707
      %v2772 = vunpack.c.l.b16 %v2708
      %v2773 = vunpack.c.l.b16 %v2709
      %v2774 = vunpack.c.l.b16 %v2710
      %v2775 = vunpack.c.l.b16 %v2711
      %v2776 = vpack.c.b16 %v2745, %v2744
      %v2777 = vpack.c.b16 %v2747, %v2746
      %v2778 = vpack.c.b16 %v2749, %v2748
      %v2779 = vpack.c.b16 %v2751, %v2750
      %v2780 = vpack.c.b16 %v2753, %v2752
      %v2781 = vpack.c.b16 %v2755, %v2754
      %v2782 = vpack.c.b16 %v2757, %v2756
      %v2783 = vpack.c.b16 %v2759, %v2758
      %v2784 = vpack.c.b16 %v2761, %v2760
      %v2785 = vpack.c.b16 %v2763, %v2762
      %v2786 = vpack.c.b16 %v2765, %v2764
      %v2787 = vpack.c.b16 %v2767, %v2766
      %v2788 = vpack.c.b16 %v2769, %v2768
      %v2789 = vpack.c.b16 %v2771, %v2770
      %v2790 = vpack.c.b16 %v2773, %v2772
      %v2791 = vpack.c.b16 %v2775, %v2774
      %v2793 = vsel %vm578, %v2776, 0
      %v2796 = vsel %vm578, %v2777, 0
      %v2799 = vsel %vm578, %v2778, 0
      %v2802 = vsel %vm578, %v2779, 0
      %v2805 = vsel %vm578, %v2780, 0
      %v2808 = vsel %vm578, %v2781, 0
      %v2811 = vsel %vm578, %v2782, 0
      %v2814 = vsel %vm578, %v2783, 0
      %v2817 = vsel %vm578, %v2784, 0
      %v2820 = vsel %vm578, %v2785, 0
      %v2823 = vsel %vm578, %v2786, 0
      %v2826 = vsel %vm578, %v2787, 0
      %v2829 = vsel %vm578, %v2788, 0
      %v2832 = vsel %vm578, %v2789, 0
      %v2835 = vsel %vm578, %v2790, 0
      %v2838 = vsel %vm578, %v2791, 0
      %2840 = vmatprep.subr.bf16.mxu0 %v557
      %2841 = vmatpush1.bf16.msra.mxu0 %v556
      %2842 = vmatprep.subr.bf16.mxu0 %v559
      %2843 = vmatpush1.bf16.msra.mxu0 %v558
      %2844 = vmatprep.subr.bf16.mxu0 %v561
      %2845 = vmatpush1.bf16.msra.mxu0 %v560
      %2846 = vmatprep.subr.bf16.mxu0 %v563
      %2847 = vmatpush1.bf16.msra.mxu0 %v562
      %2848 = vmatprep.subr.bf16.mxu0 %v565
      %2849 = vmatpush1.bf16.msra.mxu0 %v564
      %2850 = vmatprep.subr.bf16.mxu0 %v632
      %2851 = vmatpush1.bf16.msra.mxu0 %v629
      %2852 = vmatprep.subr.bf16.mxu0 0
      %2853 = vmatpush1.bf16.msra.mxu0 0
      %2854 = vmatprep.subr.bf16.mxu0 0
      %2855 = vmatpush1.bf16.msra.mxu0 0
      %2856 = vmatprep.subr.bf16.mxu0 0
      %2857 = vmatpush1.bf16.msra.mxu0 0
      %2858 = vmatprep.subr.bf16.mxu0 0
      %2859 = vmatpush1.bf16.msra.mxu0 0
      %2860 = vmatprep.subr.bf16.mxu0 0
      %2861 = vmatpush1.bf16.msra.mxu0 0
      %2862 = vmatprep.subr.bf16.mxu0 0
      %2863 = vmatpush1.bf16.msra.mxu0 0
      %2864 = vmatprep.subr.bf16.mxu0 0
      %2865 = vmatpush1.bf16.msra.mxu0 0
      %2866 = vmatprep.subr.bf16.mxu0 0
      %2867 = vmatpush1.bf16.msra.mxu0 0
      %2868 = vmatprep.subr.bf16.mxu0 0
      %2869 = vmatpush1.bf16.msra.mxu0 0
      %2870 = vmatprep.subr.bf16.mxu0 0
      %2871 = vmatpush1.bf16.msra.mxu0 0
      %2872 = vmatprep.mubr.bf16.mxu0 0
      %2873 = vmatmul.mubr.bf16.gmra.mrb[0].mxu0 %v2793
      %v2874 = vpop.f32.mrb[0].mxu0
      %v2875 = vadd.f32 0.0, %v2874
      %v2876 = vpop.f32.mrb[0].mxu0
      %v2877 = vadd.f32 0.0, %v2876
      %v2878 = vpop.f32.mrb[0].mxu0
      %v2879 = vadd.f32 0.0, %v2878
      %v2880 = vpop.f32.mrb[0].mxu0
      %v2881 = vadd.f32 0.0, %v2880
      %2882 = vmatprep.mubr.bf16.mxu0 0
      %2883 = vmatmul.mubr.bf16.gmra.mrb[0].mxu0 %v2796
      %v2884 = vpop.f32.mrb[0].mxu0
      %v2885 = vadd.f32 0.0, %v2884
      %v2886 = vpop.f32.mrb[0].mxu0
      %v2887 = vadd.f32 0.0, %v2886
      %v2888 = vpop.f32.mrb[0].mxu0
      %v2889 = vadd.f32 0.0, %v2888
      %v2890 = vpop.f32.mrb[0].mxu0
      %v2891 = vadd.f32 0.0, %v2890
      %2892 = vmatprep.mubr.bf16.mxu0 0
      %2893 = vmatmul.mubr.bf16.gmra.mrb[0].mxu0 %v2799
      %v2894 = vpop.f32.mrb[0].mxu0
      %v2895 = vadd.f32 0.0, %v2894
      %v2896 = vpop.f32.mrb[0].mxu0
      %v2897 = vadd.f32 0.0, %v2896
      %v2898 = vpop.f32.mrb[0].mxu0
      %v2899 = vadd.f32 0.0, %v2898
      %v2900 = vpop.f32.mrb[0].mxu0
      %v2901 = vadd.f32 0.0, %v2900
      %2902 = vmatprep.mubr.bf16.mxu0 0
      %2903 = vmatmul.mubr.bf16.gmra.mrb[0].mxu0 %v2802
      %v2904 = vpop.f32.mrb[0].mxu0
      %v2905 = vadd.f32 0.0, %v2904
      %v2906 = vpop.f32.mrb[0].mxu0
      %v2907 = vadd.f32 0.0, %v2906
      %v2908 = vpop.f32.mrb[0].mxu0
      %v2909 = vadd.f32 0.0, %v2908
      %v2910 = vpop.f32.mrb[0].mxu0
      %v2911 = vadd.f32 0.0, %v2910
      %2912 = vmatprep.mubr.bf16.mxu0 0
      %2913 = vmatmul.mubr.bf16.gmra.mrb[0].mxu0 %v2805
      %v2914 = vpop.f32.mrb[0].mxu0
      %v2915 = vadd.f32 0.0, %v2914
      %v2916 = vpop.f32.mrb[0].mxu0
      %v2917 = vadd.f32 0.0, %v2916
      %v2918 = vpop.f32.mrb[0].mxu0
      %v2919 = vadd.f32 0.0, %v2918
      %v2920 = vpop.f32.mrb[0].mxu0
      %v2921 = vadd.f32 0.0, %v2920
      %2922 = vmatprep.mubr.bf16.mxu0 0
      %2923 = vmatmul.mubr.bf16.gmra.mrb[0].mxu0 %v2808
      %v2924 = vpop.f32.mrb[0].mxu0
      %v2925 = vadd.f32 0.0, %v2924
      %v2926 = vpop.f32.mrb[0].mxu0
      %v2927 = vadd.f32 0.0, %v2926
      %v2928 = vpop.f32.mrb[0].mxu0
      %v2929 = vadd.f32 0.0, %v2928
      %v2930 = vpop.f32.mrb[0].mxu0
      %v2931 = vadd.f32 0.0, %v2930
      %2932 = vmatprep.mubr.bf16.mxu0 0
      %2933 = vmatmul.mubr.bf16.gmra.mrb[0].mxu0 %v2811
      %v2934 = vpop.f32.mrb[0].mxu0
      %v2935 = vadd.f32 0.0, %v2934
      %v2936 = vpop.f32.mrb[0].mxu0
      %v2937 = vadd.f32 0.0, %v2936
      %v2938 = vpop.f32.mrb[0].mxu0
      %v2939 = vadd.f32 0.0, %v2938
      %v2940 = vpop.f32.mrb[0].mxu0
      %v2941 = vadd.f32 0.0, %v2940
      %2942 = vmatprep.mubr.bf16.mxu0 0
      %2943 = vmatmul.mubr.bf16.gmra.mrb[0].mxu0 %v2814
      %v2944 = vpop.f32.mrb[0].mxu0
      %v2945 = vadd.f32 0.0, %v2944
      %v2946 = vpop.f32.mrb[0].mxu0
      %v2947 = vadd.f32 0.0, %v2946
      %v2948 = vpop.f32.mrb[0].mxu0
      %v2949 = vadd.f32 0.0, %v2948
      %v2950 = vpop.f32.mrb[0].mxu0
      %v2951 = vadd.f32 0.0, %v2950
      %2952 = vmatprep.mubr.bf16.mxu0 0
      %2953 = vmatmul.mubr.bf16.gmra.mrb[0].mxu0 %v2817
      %v2954 = vpop.f32.mrb[0].mxu0
      %v2955 = vadd.f32 0.0, %v2954
      %v2956 = vpop.f32.mrb[0].mxu0
      %v2957 = vadd.f32 0.0, %v2956
      %v2958 = vpop.f32.mrb[0].mxu0
      %v2959 = vadd.f32 0.0, %v2958
      %v2960 = vpop.f32.mrb[0].mxu0
      %v2961 = vadd.f32 0.0, %v2960
      %2962 = vmatprep.mubr.bf16.mxu0 0
      %2963 = vmatmul.mubr.bf16.gmra.mrb[0].mxu0 %v2820
      %v2964 = vpop.f32.mrb[0].mxu0
      %v2965 = vadd.f32 0.0, %v2964
      %v2966 = vpop.f32.mrb[0].mxu0
      %v2967 = vadd.f32 0.0, %v2966
      %v2968 = vpop.f32.mrb[0].mxu0
      %v2969 = vadd.f32 0.0, %v2968
      %v2970 = vpop.f32.mrb[0].mxu0
      %v2971 = vadd.f32 0.0, %v2970
      %2972 = vmatprep.mubr.bf16.mxu0 0
      %2973 = vmatmul.mubr.bf16.gmra.mrb[0].mxu0 %v2823
      %v2974 = vpop.f32.mrb[0].mxu0
      %v2975 = vadd.f32 0.0, %v2974
      %v2976 = vpop.f32.mrb[0].mxu0
      %v2977 = vadd.f32 0.0, %v2976
      %v2978 = vpop.f32.mrb[0].mxu0
      %v2979 = vadd.f32 0.0, %v2978
      %v2980 = vpop.f32.mrb[0].mxu0
      %v2981 = vadd.f32 0.0, %v2980
      %2982 = vmatprep.mubr.bf16.mxu0 0
      %2983 = vmatmul.mubr.bf16.gmra.mrb[0].mxu0 %v2826
      %v2984 = vpop.f32.mrb[0].mxu0
      %v2985 = vadd.f32 0.0, %v2984
      %v2986 = vpop.f32.mrb[0].mxu0
      %v2987 = vadd.f32 0.0, %v2986
      %v2988 = vpop.f32.mrb[0].mxu0
      %v2989 = vadd.f32 0.0, %v2988
      %v2990 = vpop.f32.mrb[0].mxu0
      %v2991 = vadd.f32 0.0, %v2990
      %2992 = vmatprep.mubr.bf16.mxu0 0
      %2993 = vmatmul.mubr.bf16.gmra.mrb[0].mxu0 %v2829
      %v2994 = vpop.f32.mrb[0].mxu0
      %v2995 = vadd.f32 0.0, %v2994
      %v2996 = vpop.f32.mrb[0].mxu0
      %v2997 = vadd.f32 0.0, %v2996
      %v2998 = vpop.f32.mrb[0].mxu0
      %v2999 = vadd.f32 0.0, %v2998
      %v3000 = vpop.f32.mrb[0].mxu0
      %v3001 = vadd.f32 0.0, %v3000
      %3002 = vmatprep.mubr.bf16.mxu0 0
      %3003 = vmatmul.mubr.bf16.gmra.mrb[0].mxu0 %v2832
      %v3004 = vpop.f32.mrb[0].mxu0
      %v3005 = vadd.f32 0.0, %v3004
      %v3006 = vpop.f32.mrb[0].mxu0
      %v3007 = vadd.f32 0.0, %v3006
      %v3008 = vpop.f32.mrb[0].mxu0
      %v3009 = vadd.f32 0.0, %v3008
      %v3010 = vpop.f32.mrb[0].mxu0
      %v3011 = vadd.f32 0.0, %v3010
      %3012 = vmatprep.mubr.bf16.mxu0 0
      %3013 = vmatmul.mubr.bf16.gmra.mrb[0].mxu0 %v2835
      %v3014 = vpop.f32.mrb[0].mxu0
      %v3015 = vadd.f32 0.0, %v3014
      %v3016 = vpop.f32.mrb[0].mxu0
      %v3017 = vadd.f32 0.0, %v3016
      %v3018 = vpop.f32.mrb[0].mxu0
      %v3019 = vadd.f32 0.0, %v3018
      %v3020 = vpop.f32.mrb[0].mxu0
      %v3021 = vadd.f32 0.0, %v3020
      %3022 = vmatprep.mubr.bf16.mxu0 0
      %3023 = vmatmul.mubr.bf16.gmra.mrb[0].mxu0 %v2838
      %v3024 = vpop.f32.mrb[0].mxu0
      %v3025 = vadd.f32 0.0, %v3024
      %v3026 = vpop.f32.mrb[0].mxu0
      %v3027 = vadd.f32 0.0, %v3026
      %v3028 = vpop.f32.mrb[0].mxu0
      %v3029 = vadd.f32 0.0, %v3028
      %v3030 = vpop.f32.mrb[0].mxu0
      %v3031 = vadd.f32 0.0, %v3030
      %3032 = vdwg.mxu0
      %v3033 = vmax.f32 %v2615, %v2875
      %v3034 = vmax.f32 %v2616, %v2877
      %v3035 = vmax.f32 %v2617, %v2879
      %v3036 = vmax.f32 %v2618, %v2881
      %v3037 = vmax.f32 %v2619, %v2885
      %v3038 = vmax.f32 %v2620, %v2887
      %v3039 = vmax.f32 %v2621, %v2889
      %v3040 = vmax.f32 %v2622, %v2891
      %v3041 = vmax.f32 %v2623, %v2895
      %v3042 = vmax.f32 %v2624, %v2897
      %v3043 = vmax.f32 %v2625, %v2899
      %v3044 = vmax.f32 %v2626, %v2901
      %v3045 = vmax.f32 %v2627, %v2905
      %v3046 = vmax.f32 %v2628, %v2907
      %v3047 = vmax.f32 %v2629, %v2909
      %v3048 = vmax.f32 %v2630, %v2911
      %v3049 = vmax.f32 %v2631, %v2915
      %v3050 = vmax.f32 %v2632, %v2917
      %v3051 = vmax.f32 %v2633, %v2919
      %v3052 = vmax.f32 %v2634, %v2921
      %v3053 = vmax.f32 %v2635, %v2925
      %v3054 = vmax.f32 %v2636, %v2927
      %v3055 = vmax.f32 %v2637, %v2929
      %v3056 = vmax.f32 %v2638, %v2931
      %v3057 = vmax.f32 %v2639, %v2935
      %v3058 = vmax.f32 %v2640, %v2937
      %v3059 = vmax.f32 %v2641, %v2939
      %v3060 = vmax.f32 %v2642, %v2941
      %v3061 = vmax.f32 %v2643, %v2945
      %v3062 = vmax.f32 %v2644, %v2947
      %v3063 = vmax.f32 %v2645, %v2949
      %v3064 = vmax.f32 %v2646, %v2951
      %v3065 = vmax.f32 %v2647, %v2955
      %v3066 = vmax.f32 %v2648, %v2957
      %v3067 = vmax.f32 %v2649, %v2959
      %v3068 = vmax.f32 %v2650, %v2961
      %v3069 = vmax.f32 %v2651, %v2965
      %v3070 = vmax.f32 %v2652, %v2967
      %v3071 = vmax.f32 %v2653, %v2969
      %v3072 = vmax.f32 %v2654, %v2971
      %v3073 = vmax.f32 %v2655, %v2975
      %v3074 = vmax.f32 %v2656, %v2977
      %v3075 = vmax.f32 %v2657, %v2979
      %v3076 = vmax.f32 %v2658, %v2981
      %v3077 = vmax.f32 %v2659, %v2985
      %v3078 = vmax.f32 %v2660, %v2987
      %v3079 = vmax.f32 %v2661, %v2989
      %v3080 = vmax.f32 %v2662, %v2991
      %v3081 = vmax.f32 %v2663, %v2995
      %v3082 = vmax.f32 %v2664, %v2997
      %v3083 = vmax.f32 %v2665, %v2999
      %v3084 = vmax.f32 %v2666, %v3001
      %v3085 = vmax.f32 %v2667, %v3005
      %v3086 = vmax.f32 %v2668, %v3007
      %v3087 = vmax.f32 %v2669, %v3009
      %v3088 = vmax.f32 %v2670, %v3011
      %v3089 = vmax.f32 %v2671, %v3015
      %v3090 = vmax.f32 %v2672, %v3017
      %v3091 = vmax.f32 %v2673, %v3019
      %v3092 = vmax.f32 %v2674, %v3021
      %v3093 = vmax.f32 %v2675, %v3025
      %v3094 = vmax.f32 %v2676, %v3027
      %v3095 = vmax.f32 %v2677, %v3029
      %v3096 = vmax.f32 %v2678, %v3031
      %3097 = vmatprep.subr.bf16.mxu0 %v873
      %3098 = vmatpush1.bf16.msra.mxu0 %v872
      %3099 = vmatprep.subr.bf16.mxu0 %v875
      %3100 = vmatpush1.bf16.msra.mxu0 %v874
      %3101 = vmatprep.subr.bf16.mxu0 %v877
      %3102 = vmatpush1.bf16.msra.mxu0 %v876
      %3103 = vmatprep.subr.bf16.mxu0 %v879
      %3104 = vmatpush1.bf16.msra.mxu0 %v878
      %3105 = vmatprep.subr.bf16.mxu0 %v881
      %3106 = vmatpush1.bf16.msra.mxu0 %v880
      %3107 = vmatprep.subr.bf16.mxu0 %v898
      %3108 = vmatpush1.bf16.msra.mxu0 %v895
      %3109 = vmatprep.subr.bf16.mxu0 0
      %3110 = vmatpush1.bf16.msra.mxu0 0
      %3111 = vmatprep.subr.bf16.mxu0 0
      %3112 = vmatpush1.bf16.msra.mxu0 0
      %3113 = vmatprep.subr.bf16.mxu0 0
      %3114 = vmatpush1.bf16.msra.mxu0 0
      %3115 = vmatprep.subr.bf16.mxu0 0
      %3116 = vmatpush1.bf16.msra.mxu0 0
      %3117 = vmatprep.subr.bf16.mxu0 0
      %3118 = vmatpush1.bf16.msra.mxu0 0
      %3119 = vmatprep.subr.bf16.mxu0 0
      %3120 = vmatpush1.bf16.msra.mxu0 0
      %3121 = vmatprep.subr.bf16.mxu0 0
      %3122 = vmatpush1.bf16.msra.mxu0 0
      %3123 = vmatprep.subr.bf16.mxu0 0
      %3124 = vmatpush1.bf16.msra.mxu0 0
      %3125 = vmatprep.subr.bf16.mxu0 0
      %3126 = vmatpush1.bf16.msra.mxu0 0
      %3127 = vmatprep.subr.bf16.mxu0 0
      %3128 = vmatpush1.bf16.msra.mxu0 0
      %3129 = vmatprep.mubr.bf16.mxu0 0
      %3130 = vmatmul.mubr.bf16.gmra.mrb[0].mxu0 %v2793
      %v3131 = vpop.f32.mrb[0].mxu0
      %v3132 = vadd.f32 0.0, %v3131
      %v3133 = vpop.f32.mrb[0].mxu0
      %v3134 = vadd.f32 0.0, %v3133
      %v3135 = vpop.f32.mrb[0].mxu0
      %v3136 = vadd.f32 0.0, %v3135
      %v3137 = vpop.f32.mrb[0].mxu0
      %v3138 = vadd.f32 0.0, %v3137
      %3139 = vmatprep.mubr.bf16.mxu0 0
      %3140 = vmatmul.mubr.bf16.gmra.mrb[0].mxu0 %v2796
      %v3141 = vpop.f32.mrb[0].mxu0
      %v3142 = vadd.f32 0.0, %v3141
      %v3143 = vpop.f32.mrb[0].mxu0
      %v3144 = vadd.f32 0.0, %v3143
      %v3145 = vpop.f32.mrb[0].mxu0
      %v3146 = vadd.f32 0.0, %v3145
      %v3147 = vpop.f32.mrb[0].mxu0
      %v3148 = vadd.f32 0.0, %v3147
      %3149 = vmatprep.mubr.bf16.mxu0 0
      %3150 = vmatmul.mubr.bf16.gmra.mrb[0].mxu0 %v2799
      %v3151 = vpop.f32.mrb[0].mxu0
      %v3152 = vadd.f32 0.0, %v3151
      %v3153 = vpop.f32.mrb[0].mxu0
      %v3154 = vadd.f32 0.0, %v3153
      %v3155 = vpop.f32.mrb[0].mxu0
      %v3156 = vadd.f32 0.0, %v3155
      %v3157 = vpop.f32.mrb[0].mxu0
      %v3158 = vadd.f32 0.0, %v3157
      %3159 = vmatprep.mubr.bf16.mxu0 0
      %3160 = vmatmul.mubr.bf16.gmra.mrb[0].mxu0 %v2802
      %v3161 = vpop.f32.mrb[0].mxu0
      %v3162 = vadd.f32 0.0, %v3161
      %v3163 = vpop.f32.mrb[0].mxu0
      %v3164 = vadd.f32 0.0, %v3163
      %v3165 = vpop.f32.mrb[0].mxu0
      %v3166 = vadd.f32 0.0, %v3165
      %v3167 = vpop.f32.mrb[0].mxu0
      %v3168 = vadd.f32 0.0, %v3167
      %3169 = vmatprep.mubr.bf16.mxu0 0
      %3170 = vmatmul.mubr.bf16.gmra.mrb[0].mxu0 %v2805
      %v3171 = vpop.f32.mrb[0].mxu0
      %v3172 = vadd.f32 0.0, %v3171
      %v3173 = vpop.f32.mrb[0].mxu0
      %v3174 = vadd.f32 0.0, %v3173
      %v3175 = vpop.f32.mrb[0].mxu0
      %v3176 = vadd.f32 0.0, %v3175
      %v3177 = vpop.f32.mrb[0].mxu0
      %v3178 = vadd.f32 0.0, %v3177
      %3179 = vmatprep.mubr.bf16.mxu0 0
      %3180 = vmatmul.mubr.bf16.gmra.mrb[0].mxu0 %v2808
      %v3181 = vpop.f32.mrb[0].mxu0
      %v3182 = vadd.f32 0.0, %v3181
      %v3183 = vpop.f32.mrb[0].mxu0
      %v3184 = vadd.f32 0.0, %v3183
      %v3185 = vpop.f32.mrb[0].mxu0
      %v3186 = vadd.f32 0.0, %v3185
      %v3187 = vpop.f32.mrb[0].mxu0
      %v3188 = vadd.f32 0.0, %v3187
      %3189 = vmatprep.mubr.bf16.mxu0 0
      %3190 = vmatmul.mubr.bf16.gmra.mrb[0].mxu0 %v2811
      %v3191 = vpop.f32.mrb[0].mxu0
      %v3192 = vadd.f32 0.0, %v3191
      %v3193 = vpop.f32.mrb[0].mxu0
      %v3194 = vadd.f32 0.0, %v3193
      %v3195 = vpop.f32.mrb[0].mxu0
      %v3196 = vadd.f32 0.0, %v3195
      %v3197 = vpop.f32.mrb[0].mxu0
      %v3198 = vadd.f32 0.0, %v3197
      %3199 = vmatprep.mubr.bf16.mxu0 0
      %3200 = vmatmul.mubr.bf16.gmra.mrb[0].mxu0 %v2814
      %v3201 = vpop.f32.mrb[0].mxu0
      %v3202 = vadd.f32 0.0, %v3201
      %v3203 = vpop.f32.mrb[0].mxu0
      %v3204 = vadd.f32 0.0, %v3203
      %v3205 = vpop.f32.mrb[0].mxu0
      %v3206 = vadd.f32 0.0, %v3205
      %v3207 = vpop.f32.mrb[0].mxu0
      %v3208 = vadd.f32 0.0, %v3207
      %3209 = vmatprep.mubr.bf16.mxu0 0
      %3210 = vmatmul.mubr.bf16.gmra.mrb[0].mxu0 %v2817
      %v3211 = vpop.f32.mrb[0].mxu0
      %v3212 = vadd.f32 0.0, %v3211
      %v3213 = vpop.f32.mrb[0].mxu0
      %v3214 = vadd.f32 0.0, %v3213
      %v3215 = vpop.f32.mrb[0].mxu0
      %v3216 = vadd.f32 0.0, %v3215
      %v3217 = vpop.f32.mrb[0].mxu0
      %v3218 = vadd.f32 0.0, %v3217
      %3219 = vmatprep.mubr.bf16.mxu0 0
      %3220 = vmatmul.mubr.bf16.gmra.mrb[0].mxu0 %v2820
      %v3221 = vpop.f32.mrb[0].mxu0
      %v3222 = vadd.f32 0.0, %v3221
      %v3223 = vpop.f32.mrb[0].mxu0
      %v3224 = vadd.f32 0.0, %v3223
      %v3225 = vpop.f32.mrb[0].mxu0
      %v3226 = vadd.f32 0.0, %v3225
      %v3227 = vpop.f32.mrb[0].mxu0
      %v3228 = vadd.f32 0.0, %v3227
      %3229 = vmatprep.mubr.bf16.mxu0 0
      %3230 = vmatmul.mubr.bf16.gmra.mrb[0].mxu0 %v2823
      %v3231 = vpop.f32.mrb[0].mxu0
      %v3232 = vadd.f32 0.0, %v3231
      %v3233 = vpop.f32.mrb[0].mxu0
      %v3234 = vadd.f32 0.0, %v3233
      %v3235 = vpop.f32.mrb[0].mxu0
      %v3236 = vadd.f32 0.0, %v3235
      %v3237 = vpop.f32.mrb[0].mxu0
      %v3238 = vadd.f32 0.0, %v3237
      %3239 = vmatprep.mubr.bf16.mxu0 0
      %3240 = vmatmul.mubr.bf16.gmra.mrb[0].mxu0 %v2826
      %v3241 = vpop.f32.mrb[0].mxu0
      %v3242 = vadd.f32 0.0, %v3241
      %v3243 = vpop.f32.mrb[0].mxu0
      %v3244 = vadd.f32 0.0, %v3243
      %v3245 = vpop.f32.mrb[0].mxu0
      %v3246 = vadd.f32 0.0, %v3245
      %v3247 = vpop.f32.mrb[0].mxu0
      %v3248 = vadd.f32 0.0, %v3247
      %3249 = vmatprep.mubr.bf16.mxu0 0
      %3250 = vmatmul.mubr.bf16.gmra.mrb[0].mxu0 %v2829
      %v3251 = vpop.f32.mrb[0].mxu0
      %v3252 = vadd.f32 0.0, %v3251
      %v3253 = vpop.f32.mrb[0].mxu0
      %v3254 = vadd.f32 0.0, %v3253
      %v3255 = vpop.f32.mrb[0].mxu0
      %v3256 = vadd.f32 0.0, %v3255
      %v3257 = vpop.f32.mrb[0].mxu0
      %v3258 = vadd.f32 0.0, %v3257
      %3259 = vmatprep.mubr.bf16.mxu0 0
      %3260 = vmatmul.mubr.bf16.gmra.mrb[0].mxu0 %v2832
      %v3261 = vpop.f32.mrb[0].mxu0
      %v3262 = vadd.f32 0.0, %v3261
      %v3263 = vpop.f32.mrb[0].mxu0
      %v3264 = vadd.f32 0.0, %v3263
      %v3265 = vpop.f32.mrb[0].mxu0
      %v3266 = vadd.f32 0.0, %v3265
      %v3267 = vpop.f32.mrb[0].mxu0
      %v3268 = vadd.f32 0.0, %v3267
      %3269 = vmatprep.mubr.bf16.mxu0 0
      %3270 = vmatmul.mubr.bf16.gmra.mrb[0].mxu0 %v2835
      %v3271 = vpop.f32.mrb[0].mxu0
      %v3272 = vadd.f32 0.0, %v3271
      %v3273 = vpop.f32.mrb[0].mxu0
      %v3274 = vadd.f32 0.0, %v3273
      %v3275 = vpop.f32.mrb[0].mxu0
      %v3276 = vadd.f32 0.0, %v3275
      %v3277 = vpop.f32.mrb[0].mxu0
      %v3278 = vadd.f32 0.0, %v3277
      %3279 = vmatprep.mubr.bf16.mxu0 0
      %3280 = vmatmul.mubr.bf16.gmra.mrb[0].mxu0 %v2838
      %v3281 = vpop.f32.mrb[0].mxu0
      %v3282 = vadd.f32 0.0, %v3281
      %v3283 = vpop.f32.mrb[0].mxu0
      %v3284 = vadd.f32 0.0, %v3283
      %v3285 = vpop.f32.mrb[0].mxu0
      %v3286 = vadd.f32 0.0, %v3285
      %v3287 = vpop.f32.mrb[0].mxu0
      %v3288 = vadd.f32 0.0, %v3287
      %3289 = vdwg.mxu0
      %v3290 = vmax.f32 %v3033, %v3132
      %v3291 = vmax.f32 %v3034, %v3134
      %v3292 = vmax.f32 %v3035, %v3136
      %v3293 = vmax.f32 %v3036, %v3138
      %v3294 = vmax.f32 %v3037, %v3142
      %v3295 = vmax.f32 %v3038, %v3144
      %v3296 = vmax.f32 %v3039, %v3146
      %v3297 = vmax.f32 %v3040, %v3148
      %v3298 = vmax.f32 %v3041, %v3152
      %v3299 = vmax.f32 %v3042, %v3154
      %v3300 = vmax.f32 %v3043, %v3156
      %v3301 = vmax.f32 %v3044, %v3158
      %v3302 = vmax.f32 %v3045, %v3162
      %v3303 = vmax.f32 %v3046, %v3164
      %v3304 = vmax.f32 %v3047, %v3166
      %v3305 = vmax.f32 %v3048, %v3168
      %v3306 = vmax.f32 %v3049, %v3172
      %v3307 = vmax.f32 %v3050, %v3174
      %v3308 = vmax.f32 %v3051, %v3176
      %v3309 = vmax.f32 %v3052, %v3178
      %v3310 = vmax.f32 %v3053, %v3182
      %v3311 = vmax.f32 %v3054, %v3184
      %v3312 = vmax.f32 %v3055, %v3186
      %v3313 = vmax.f32 %v3056, %v3188
      %v3314 = vmax.f32 %v3057, %v3192
      %v3315 = vmax.f32 %v3058, %v3194
      %v3316 = vmax.f32 %v3059, %v3196
      %v3317 = vmax.f32 %v3060, %v3198
      %v3318 = vmax.f32 %v3061, %v3202
      %v3319 = vmax.f32 %v3062, %v3204
      %v3320 = vmax.f32 %v3063, %v3206
      %v3321 = vmax.f32 %v3064, %v3208
      %v3322 = vmax.f32 %v3065, %v3212
      %v3323 = vmax.f32 %v3066, %v3214
      %v3324 = vmax.f32 %v3067, %v3216
      %v3325 = vmax.f32 %v3068, %v3218
      %v3326 = vmax.f32 %v3069, %v3222
      %v3327 = vmax.f32 %v3070, %v3224
      %v3328 = vmax.f32 %v3071, %v3226
      %v3329 = vmax.f32 %v3072, %v3228
      %v3330 = vmax.f32 %v3073, %v3232
      %v3331 = vmax.f32 %v3074, %v3234
      %v3332 = vmax.f32 %v3075, %v3236
      %v3333 = vmax.f32 %v3076, %v3238
      %v3334 = vmax.f32 %v3077, %v3242
      %v3335 = vmax.f32 %v3078, %v3244
      %v3336 = vmax.f32 %v3079, %v3246
      %v3337 = vmax.f32 %v3080, %v3248
      %v3338 = vmax.f32 %v3081, %v3252
      %v3339 = vmax.f32 %v3082, %v3254
      %v3340 = vmax.f32 %v3083, %v3256
      %v3341 = vmax.f32 %v3084, %v3258
      %v3342 = vmax.f32 %v3085, %v3262
      %v3343 = vmax.f32 %v3086, %v3264
      %v3344 = vmax.f32 %v3087, %v3266
      %v3345 = vmax.f32 %v3088, %v3268
      %v3346 = vmax.f32 %v3089, %v3272
      %v3347 = vmax.f32 %v3090, %v3274
      %v3348 = vmax.f32 %v3091, %v3276
      %v3349 = vmax.f32 %v3092, %v3278
      %v3350 = vmax.f32 %v3093, %v3282
      %v3351 = vmax.f32 %v3094, %v3284
      %v3352 = vmax.f32 %v3095, %v3286
      %v3353 = vmax.f32 %v3096, %v3288
      %v3354 = vadd.f32 %v3290, %v1837
      %v3355 = vadd.f32 %v3291, %v1841
      %v3356 = vadd.f32 %v3292, %v1837
      %v3357 = vadd.f32 %v3293, %v1841
      %v3358 = vadd.f32 %v3294, %v1837
      %v3359 = vadd.f32 %v3295, %v1841
      %v3360 = vadd.f32 %v3296, %v1837
      %v3361 = vadd.f32 %v3297, %v1841
      %v3362 = vadd.f32 %v3298, %v1837
      %v3363 = vadd.f32 %v3299, %v1841
      %v3364 = vadd.f32 %v3300, %v1837
      %v3365 = vadd.f32 %v3301, %v1841
      %v3366 = vadd.f32 %v3302, %v1837
      %v3367 = vadd.f32 %v3303, %v1841
      %v3368 = vadd.f32 %v3304, %v1837
      %v3369 = vadd.f32 %v3305, %v1841
      %v3370 = vadd.f32 %v3306, %v1837
      %v3371 = vadd.f32 %v3307, %v1841
      %v3372 = vadd.f32 %v3308, %v1837
      %v3373 = vadd.f32 %v3309, %v1841
      %v3374 = vadd.f32 %v3310, %v1837
      %v3375 = vadd.f32 %v3311, %v1841
      %v3376 = vadd.f32 %v3312, %v1837
      %v3377 = vadd.f32 %v3313, %v1841
      %v3378 = vadd.f32 %v3314, %v1837
      %v3379 = vadd.f32 %v3315, %v1841
      %v3380 = vadd.f32 %v3316, %v1837
      %v3381 = vadd.f32 %v3317, %v1841
      %v3382 = vadd.f32 %v3318, %v1837
      %v3383 = vadd.f32 %v3319, %v1841
      %v3384 = vadd.f32 %v3320, %v1837
      %v3385 = vadd.f32 %v3321, %v1841
      %v3386 = vadd.f32 %v3322, %v1837
      %v3387 = vadd.f32 %v3323, %v1841
      %v3388 = vadd.f32 %v3324, %v1837
      %v3389 = vadd.f32 %v3325, %v1841
      %v3390 = vadd.f32 %v3326, %v1837
      %v3391 = vadd.f32 %v3327, %v1841
      %v3392 = vadd.f32 %v3328, %v1837
      %v3393 = vadd.f32 %v3329, %v1841
      %v3394 = vadd.f32 %v3330, %v1837
      %v3395 = vadd.f32 %v3331, %v1841
      %v3396 = vadd.f32 %v3332, %v1837
      %v3397 = vadd.f32 %v3333, %v1841
      %v3398 = vadd.f32 %v3334, %v1837
      %v3399 = vadd.f32 %v3335, %v1841
      %v3400 = vadd.f32 %v3336, %v1837
      %v3401 = vadd.f32 %v3337, %v1841
      %v3402 = vadd.f32 %v3338, %v1837
      %v3403 = vadd.f32 %v3339, %v1841
      %v3404 = vadd.f32 %v3340, %v1837
      %v3405 = vadd.f32 %v3341, %v1841
      %v3406 = vadd.f32 %v3342, %v1837
      %v3407 = vadd.f32 %v3343, %v1841
      %v3408 = vadd.f32 %v3344, %v1837
      %v3409 = vadd.f32 %v3345, %v1841
      %v3410 = vadd.f32 %v3346, %v1837
      %v3411 = vadd.f32 %v3347, %v1841
      %v3412 = vadd.f32 %v3348, %v1837
      %v3413 = vadd.f32 %v3349, %v1841
      %v3414 = vadd.f32 %v3350, %v1837
      %v3415 = vadd.f32 %v3351, %v1841
      %v3416 = vadd.f32 %v3352, %v1837
      %v3417 = vadd.f32 %v3353, %v1841
      %v3418 = vmax.f32 %v3354, 0.0
      %v3419 = vmax.f32 %v3355, 0.0
      %v3420 = vmax.f32 %v3356, 0.0
      %v3421 = vmax.f32 %v3357, 0.0
      %v3422 = vmax.f32 %v3358, 0.0
      %v3423 = vmax.f32 %v3359, 0.0
      %v3424 = vmax.f32 %v3360, 0.0
      %v3425 = vmax.f32 %v3361, 0.0
      %v3426 = vmax.f32 %v3362, 0.0
      %v3427 = vmax.f32 %v3363, 0.0
      %v3428 = vmax.f32 %v3364, 0.0
      %v3429 = vmax.f32 %v3365, 0.0
      %v3430 = vmax.f32 %v3366, 0.0
      %v3431 = vmax.f32 %v3367, 0.0
      %v3432 = vmax.f32 %v3368, 0.0
      %v3433 = vmax.f32 %v3369, 0.0
      %v3434 = vmax.f32 %v3370, 0.0
      %v3435 = vmax.f32 %v3371, 0.0
      %v3436 = vmax.f32 %v3372, 0.0
      %v3437 = vmax.f32 %v3373, 0.0
      %v3438 = vmax.f32 %v3374, 0.0
      %v3439 = vmax.f32 %v3375, 0.0
      %v3440 = vmax.f32 %v3376, 0.0
      %v3441 = vmax.f32 %v3377, 0.0
      %v3442 = vmax.f32 %v3378, 0.0
      %v3443 = vmax.f32 %v3379, 0.0
      %v3444 = vmax.f32 %v3380, 0.0
      %v3445 = vmax.f32 %v3381, 0.0
      %v3446 = vmax.f32 %v3382, 0.0
      %v3447 = vmax.f32 %v3383, 0.0
      %v3448 = vmax.f32 %v3384, 0.0
      %v3449 = vmax.f32 %v3385, 0.0
      %v3450 = vmax.f32 %v3386, 0.0
      %v3451 = vmax.f32 %v3387, 0.0
      %v3452 = vmax.f32 %v3388, 0.0
      %v3453 = vmax.f32 %v3389, 0.0
      %v3454 = vmax.f32 %v3390, 0.0
      %v3455 = vmax.f32 %v3391, 0.0
      %v3456 = vmax.f32 %v3392, 0.0
      %v3457 = vmax.f32 %v3393, 0.0
      %v3458 = vmax.f32 %v3394, 0.0
      %v3459 = vmax.f32 %v3395, 0.0
      %v3460 = vmax.f32 %v3396, 0.0
      %v3461 = vmax.f32 %v3397, 0.0
      %v3462 = vmax.f32 %v3398, 0.0
      %v3463 = vmax.f32 %v3399, 0.0
      %v3464 = vmax.f32 %v3400, 0.0
      %v3465 = vmax.f32 %v3401, 0.0
      %v3466 = vmax.f32 %v3402, 0.0
      %v3467 = vmax.f32 %v3403, 0.0
      %v3468 = vmax.f32 %v3404, 0.0
      %v3469 = vmax.f32 %v3405, 0.0
      %v3470 = vmax.f32 %v3406, 0.0
      %v3471 = vmax.f32 %v3407, 0.0
      %v3472 = vmax.f32 %v3408, 0.0
      %v3473 = vmax.f32 %v3409, 0.0
      %v3474 = vmax.f32 %v3410, 0.0
      %v3475 = vmax.f32 %v3411, 0.0
      %v3476 = vmax.f32 %v3412, 0.0
      %v3477 = vmax.f32 %v3413, 0.0
      %v3478 = vmax.f32 %v3414, 0.0
      %v3479 = vmax.f32 %v3415, 0.0
      %v3480 = vmax.f32 %v3416, 0.0
      %v3481 = vmax.f32 %v3417, 0.0
      %v3482 = vsel %vm2036, 0.0, %v3418
      %v3483 = vsel %vm2036, 0.0, %v3419
      %v3484 = vsel %vm2037, 0.0, %v3420
      %v3485 = vsel %vm2037, 0.0, %v3421
      %v3486 = vsel %vm2038, 0.0, %v3422
      %v3487 = vsel %vm2038, 0.0, %v3423
      %v3488 = vsel %vm2039, 0.0, %v3424
      %v3489 = vsel %vm2039, 0.0, %v3425
      %v3490 = vsel %vm2040, 0.0, %v3426
      %v3491 = vsel %vm2040, 0.0, %v3427
      %v3492 = vsel %vm2041, 0.0, %v3428
      %v3493 = vsel %vm2041, 0.0, %v3429
      %v3494 = vsel %vm2042, 0.0, %v3430
      %v3495 = vsel %vm2042, 0.0, %v3431
      %v3496 = vsel %vm2043, 0.0, %v3432
      %v3497 = vsel %vm2043, 0.0, %v3433
      %v3498 = vsel %vm2044, 0.0, %v3434
      %v3499 = vsel %vm2044, 0.0, %v3435
      %v3500 = vsel %vm2045, 0.0, %v3436
      %v3501 = vsel %vm2045, 0.0, %v3437
      %v3502 = vsel %vm2046, 0.0, %v3438
      %v3503 = vsel %vm2046, 0.0, %v3439
      %v3504 = vsel %vm2047, 0.0, %v3440
      %v3505 = vsel %vm2047, 0.0, %v3441
      %v3506 = vsel %vm2048, 0.0, %v3442
      %v3507 = vsel %vm2048, 0.0, %v3443
      %v3508 = vsel %vm2049, 0.0, %v3444
      %v3509 = vsel %vm2049, 0.0, %v3445
      %v3510 = vsel %vm2050, 0.0, %v3446
      %v3511 = vsel %vm2050, 0.0, %v3447
      %v3512 = vsel %vm2051, 0.0, %v3448
      %v3513 = vsel %vm2051, 0.0, %v3449
      %v3514 = vsel %vm2052, 0.0, %v3450
      %v3515 = vsel %vm2052, 0.0, %v3451
      %v3516 = vsel %vm2053, 0.0, %v3452
      %v3517 = vsel %vm2053, 0.0, %v3453
      %v3518 = vsel %vm2054, 0.0, %v3454
      %v3519 = vsel %vm2054, 0.0, %v3455
      %v3520 = vsel %vm2055, 0.0, %v3456
      %v3521 = vsel %vm2055, 0.0, %v3457
      %v3522 = vsel %vm2056, 0.0, %v3458
      %v3523 = vsel %vm2056, 0.0, %v3459
      %v3524 = vsel %vm2057, 0.0, %v3460
      %v3525 = vsel %vm2057, 0.0, %v3461
      %v3526 = vsel %vm2058, 0.0, %v3462
      %v3527 = vsel %vm2058, 0.0, %v3463
      %v3528 = vsel %vm2059, 0.0, %v3464
      %v3529 = vsel %vm2059, 0.0, %v3465
      %v3530 = vsel %vm2060, 0.0, %v3466
      %v3531 = vsel %vm2060, 0.0, %v3467
      %v3532 = vsel %vm2061, 0.0, %v3468
      %v3533 = vsel %vm2061, 0.0, %v3469
      %v3534 = vsel %vm2062, 0.0, %v3470
      %v3535 = vsel %vm2062, 0.0, %v3471
      %v3536 = vsel %vm2063, 0.0, %v3472
      %v3537 = vsel %vm2063, 0.0, %v3473
      %v3538 = vsel %vm2064, 0.0, %v3474
      %v3539 = vsel %vm2064, 0.0, %v3475
      %v3540 = vsel %vm2065, 0.0, %v3476
      %v3541 = vsel %vm2065, 0.0, %v3477
      %v3542 = vsel %vm2066, 0.0, %v3478
      %v3543 = vsel %vm2066, 0.0, %v3479
      %v3544 = vsel %vm2067, 0.0, %v3480
      %v3545 = vsel %vm2067, 0.0, %v3481
      %v3546 = vpack.c.bf16 %v1974, %v1972
      %v3547 = vpack.c.bf16 %v1975, %v1973
      %v3548 = vpack.c.bf16 %v1978, %v1976
      %v3549 = vpack.c.bf16 %v1979, %v1977
      %v3550 = vpack.c.bf16 %v1982, %v1980
      %v3551 = vpack.c.bf16 %v1983, %v1981
      %v3552 = vpack.c.bf16 %v1986, %v1984
      %v3553 = vpack.c.bf16 %v1987, %v1985
      %v3554 = vpack.c.bf16 %v1990, %v1988
      %v3555 = vpack.c.bf16 %v1991, %v1989
      %v3556 = vpack.c.bf16 %v1994, %v1992
      %v3557 = vpack.c.bf16 %v1995, %v1993
      %v3558 = vpack.c.bf16 %v1998, %v1996
      %v3559 = vpack.c.bf16 %v1999, %v1997
      %v3560 = vpack.c.bf16 %v2002, %v2000
      %v3561 = vpack.c.bf16 %v2003, %v2001
      %v3562 = vpack.c.bf16 %v2006, %v2004
      %v3563 = vpack.c.bf16 %v2007, %v2005
      %v3564 = vpack.c.bf16 %v2010, %v2008
      %v3565 = vpack.c.bf16 %v2011, %v2009
      %v3566 = vpack.c.bf16 %v2014, %v2012
      %v3567 = vpack.c.bf16 %v2015, %v2013
      %v3568 = vpack.c.bf16 %v2018, %v2016
      %v3569 = vpack.c.bf16 %v2019, %v2017
      %v3570 = vpack.c.bf16 %v2022, %v2020
      %v3571 = vpack.c.bf16 %v2023, %v2021
      %v3572 = vpack.c.bf16 %v2026, %v2024
      %v3573 = vpack.c.bf16 %v2027, %v2025
      %v3574 = vpack.c.bf16 %v2030, %v2028
      %v3575 = vpack.c.bf16 %v2031, %v2029
      %v3576 = vpack.c.bf16 %v2034, %v2032
      %v3577 = vpack.c.bf16 %v2035, %v2033
      %v3578 = vpack.c.bf16 %v3484, %v3482
      %v3579 = vpack.c.bf16 %v3485, %v3483
      %v3580 = vpack.c.bf16 %v3488, %v3486
      %v3581 = vpack.c.bf16 %v3489, %v3487
      %v3582 = vpack.c.bf16 %v3492, %v3490
      %v3583 = vpack.c.bf16 %v3493, %v3491
      %v3584 = vpack.c.bf16 %v3496, %v3494
      %v3585 = vpack.c.bf16 %v3497, %v3495
      %v3586 = vpack.c.bf16 %v3500, %v3498
      %v3587 = vpack.c.bf16 %v3501, %v3499
      %v3588 = vpack.c.bf16 %v3504, %v3502
      %v3589 = vpack.c.bf16 %v3505, %v3503
      %v3590 = vpack.c.bf16 %v3508, %v3506
      %v3591 = vpack.c.bf16 %v3509, %v3507
      %v3592 = vpack.c.bf16 %v3512, %v3510
      %v3593 = vpack.c.bf16 %v3513, %v3511
      %v3594 = vpack.c.bf16 %v3516, %v3514
      %v3595 = vpack.c.bf16 %v3517, %v3515
      %v3596 = vpack.c.bf16 %v3520, %v3518
      %v3597 = vpack.c.bf16 %v3521, %v3519
      %v3598 = vpack.c.bf16 %v3524, %v3522
      %v3599 = vpack.c.bf16 %v3525, %v3523
      %v3600 = vpack.c.bf16 %v3528, %v3526
      %v3601 = vpack.c.bf16 %v3529, %v3527
      %v3602 = vpack.c.bf16 %v3532, %v3530
      %v3603 = vpack.c.bf16 %v3533, %v3531
      %v3604 = vpack.c.bf16 %v3536, %v3534
      %v3605 = vpack.c.bf16 %v3537, %v3535
      %v3606 = vpack.c.bf16 %v3540, %v3538
      %v3607 = vpack.c.bf16 %v3541, %v3539
      %v3608 = vpack.c.bf16 %v3544, %v3542
      %v3609 = vpack.c.bf16 %v3545, %v3543
      %v3610 = vld [vmem:[%s3] sm:$0xff]
      %v3611 = vld [vmem:[%s3 + $0x8] sm:$0xff]
      %v3612 = vld [vmem:[%s3 + $0x10] sm:$0xff]
      %v3613 = vld [vmem:[%s3 + $0x18] sm:$0xff]
      %v3614 = vld [vmem:[%s3 + $0x20] sm:$0xff]
      %v3615 = vld [vmem:[%s3 + $0x28] sm:$0xff]
      %v3616 = vld [vmem:[%s3 + $0x30] sm:$0xff]
      %v3617 = vld [vmem:[%s3 + $0x38] sm:$0xff]
      %v3618 = vld [vmem:[%s3 + $0x40] sm:$0xff]
      %v3619 = vld [vmem:[%s3 + $0x48] sm:$0xff]
      %v3620 = vld [vmem:[%s3 + $0x50] sm:$0xff]
      %v3621 = vld [vmem:[%s3 + $0x58] sm:$0xff]
      %v3622 = vld [vmem:[%s3 + $0x60] sm:$0xff]
      %v3623 = vld [vmem:[%s3 + $0x68] sm:$0xff]
      %v3624 = vld [vmem:[%s3 + $0x70] sm:$0xff]
      %v3625 = vld [vmem:[%s3 + $0x78] sm:$0xff]
      %v3626 = vld [vmem:[%s3 + $0x80] sm:$0xff]
      %v3627 = vld [vmem:[%s3 + $0x88] sm:$0xff]
      %v3628 = vld [vmem:[%s3 + $0x90] sm:$0xff]
      %v3629 = vld [vmem:[%s3 + $0x98] sm:$0xff]
      %v3630 = vld [vmem:[%s3 + $0xa0] sm:$0xff]
      %v3631 = vld [vmem:[%s3 + $0xa8] sm:$0xff]
      %v3632 = vld [vmem:[%s3 + $0xb0] sm:$0xff]
      %v3633 = vld [vmem:[%s3 + $0xb8] sm:$0xff]
      %v3634 = vld [vmem:[%s3 + $0xc0] sm:$0xff]
      %v3635 = vld [vmem:[%s3 + $0xc8] sm:$0xff]
      %v3636 = vld [vmem:[%s3 + $0xd0] sm:$0xff]
      %v3637 = vld [vmem:[%s3 + $0xd8] sm:$0xff]
      %v3638 = vld [vmem:[%s3 + $0xe0] sm:$0xff]
      %v3639 = vld [vmem:[%s3 + $0xe8] sm:$0xff]
      %v3640 = vld [vmem:[%s3 + $0xf0] sm:$0xff]
      %v3641 = vld [vmem:[%s3 + $0xf8] sm:$0xff]
      %s3642 = scalar_lea.vmem %s3, 256
      %v3643 = vld [vmem:[%s3642] sm:$0xff]
      %v3644 = vld [vmem:[%s3642 + $0x8] sm:$0xff]
      %v3645 = vld [vmem:[%s3642 + $0x10] sm:$0xff]
      %v3646 = vld [vmem:[%s3642 + $0x18] sm:$0xff]
      %v3647 = vld [vmem:[%s3642 + $0x20] sm:$0xff]
      %v3648 = vld [vmem:[%s3642 + $0x28] sm:$0xff]
      %v3649 = vld [vmem:[%s3642 + $0x30] sm:$0xff]
      %v3650 = vld [vmem:[%s3642 + $0x38] sm:$0xff]
      %v3651 = vld [vmem:[%s3642 + $0x40] sm:$0xff]
      %v3652 = vld [vmem:[%s3642 + $0x48] sm:$0xff]
      %v3653 = vld [vmem:[%s3642 + $0x50] sm:$0xff]
      %v3654 = vld [vmem:[%s3642 + $0x58] sm:$0xff]
      %v3655 = vld [vmem:[%s3642 + $0x60] sm:$0xff]
      %v3656 = vld [vmem:[%s3642 + $0x68] sm:$0xff]
      %v3657 = vld [vmem:[%s3642 + $0x70] sm:$0xff]
      %v3658 = vld [vmem:[%s3642 + $0x78] sm:$0xff]
      %v3659 = vld [vmem:[%s3642 + $0x80] sm:$0xff]
      %v3660 = vld [vmem:[%s3642 + $0x88] sm:$0xff]
      %v3661 = vld [vmem:[%s3642 + $0x90] sm:$0xff]
      %v3662 = vld [vmem:[%s3642 + $0x98] sm:$0xff]
      %v3663 = vld [vmem:[%s3642 + $0xa0] sm:$0xff]
      %v3664 = vld [vmem:[%s3642 + $0xa8] sm:$0xff]
      %v3665 = vld [vmem:[%s3642 + $0xb0] sm:$0xff]
      %v3666 = vld [vmem:[%s3642 + $0xb8] sm:$0xff]
      %v3667 = vld [vmem:[%s3642 + $0xc0] sm:$0xff]
      %v3668 = vld [vmem:[%s3642 + $0xc8] sm:$0xff]
      %v3669 = vld [vmem:[%s3642 + $0xd0] sm:$0xff]
      %v3670 = vld [vmem:[%s3642 + $0xd8] sm:$0xff]
      %v3671 = vld [vmem:[%s3642 + $0xe0] sm:$0xff]
      %v3672 = vld [vmem:[%s3642 + $0xe8] sm:$0xff]
      %v3673 = vld [vmem:[%s3642 + $0xf0] sm:$0xff]
      %v3674 = vld [vmem:[%s3642 + $0xf8] sm:$0xff]
      %v3707 = vunpack.c.l.b16 %v3643
      %v3708 = vunpack.c.h.b16 %v3643
      %v3709 = vunpack.c.l.b16 %v3644
      %v3710 = vunpack.c.h.b16 %v3644
      %v3711 = vunpack.c.l.b16 %v3645
      %v3712 = vunpack.c.h.b16 %v3645
      %v3713 = vunpack.c.l.b16 %v3646
      %v3714 = vunpack.c.h.b16 %v3646
      %v3715 = vunpack.c.l.b16 %v3647
      %v3716 = vunpack.c.h.b16 %v3647
      %v3717 = vunpack.c.l.b16 %v3648
      %v3718 = vunpack.c.h.b16 %v3648
      %v3719 = vunpack.c.l.b16 %v3649
      %v3720 = vunpack.c.h.b16 %v3649
      %v3721 = vunpack.c.l.b16 %v3650
      %v3722 = vunpack.c.h.b16 %v3650
      %v3723 = vunpack.c.l.b16 %v3651
      %v3724 = vunpack.c.h.b16 %v3651
      %v3725 = vunpack.c.l.b16 %v3652
      %v3726 = vunpack.c.h.b16 %v3652
      %v3727 = vunpack.c.l.b16 %v3653
      %v3728 = vunpack.c.h.b16 %v3653
      %v3729 = vunpack.c.l.b16 %v3654
      %v3730 = vunpack.c.h.b16 %v3654
      %v3731 = vunpack.c.l.b16 %v3655
      %v3732 = vunpack.c.h.b16 %v3655
      %v3733 = vunpack.c.l.b16 %v3656
      %v3734 = vunpack.c.h.b16 %v3656
      %v3735 = vunpack.c.l.b16 %v3657
      %v3736 = vunpack.c.h.b16 %v3657
      %v3737 = vunpack.c.l.b16 %v3658
      %v3738 = vunpack.c.h.b16 %v3658
      %v3739 = vunpack.c.l.b16 %v3659
      %v3740 = vunpack.c.h.b16 %v3659
      %v3741 = vunpack.c.l.b16 %v3660
      %v3742 = vunpack.c.h.b16 %v3660
      %v3743 = vunpack.c.l.b16 %v3661
      %v3744 = vunpack.c.h.b16 %v3661
      %v3745 = vunpack.c.l.b16 %v3662
      %v3746 = vunpack.c.h.b16 %v3662
      %v3747 = vunpack.c.l.b16 %v3663
      %v3748 = vunpack.c.h.b16 %v3663
      %v3749 = vunpack.c.l.b16 %v3664
      %v3750 = vunpack.c.h.b16 %v3664
      %v3751 = vunpack.c.l.b16 %v3665
      %v3752 = vunpack.c.h.b16 %v3665
      %v3753 = vunpack.c.l.b16 %v3666
      %v3754 = vunpack.c.h.b16 %v3666
      %v3755 = vunpack.c.l.b16 %v3667
      %v3756 = vunpack.c.h.b16 %v3667
      %v3757 = vunpack.c.l.b16 %v3668
      %v3758 = vunpack.c.h.b16 %v3668
      %v3759 = vunpack.c.l.b16 %v3669
      %v3760 = vunpack.c.h.b16 %v3669
      %v3761 = vunpack.c.l.b16 %v3670
      %v3762 = vunpack.c.h.b16 %v3670
      %v3763 = vunpack.c.l.b16 %v3671
      %v3764 = vunpack.c.h.b16 %v3671
      %v3765 = vunpack.c.l.b16 %v3672
      %v3766 = vunpack.c.h.b16 %v3672
      %v3767 = vunpack.c.l.b16 %v3673
      %v3768 = vunpack.c.h.b16 %v3673
      %v3769 = vunpack.c.l.b16 %v3674
      %v3770 = vunpack.c.h.b16 %v3674
      %v3771 = vpack.c.b16 %v3709, %v3707
      %v3772 = vpack.c.b16 %v3710, %v3708
      %v3773 = vpack.c.b16 %v3713, %v3711
      %v3774 = vpack.c.b16 %v3714, %v3712
      %v3775 = vpack.c.b16 %v3717, %v3715
      %v3776 = vpack.c.b16 %v3718, %v3716
      %v3777 = vpack.c.b16 %v3721, %v3719
      %v3778 = vpack.c.b16 %v3722, %v3720
      %v3779 = vpack.c.b16 %v3725, %v3723
      %v3780 = vpack.c.b16 %v3726, %v3724
      %v3781 = vpack.c.b16 %v3729, %v3727
      %v3782 = vpack.c.b16 %v3730, %v3728
      %v3783 = vpack.c.b16 %v3733, %v3731
      %v3784 = vpack.c.b16 %v3734, %v3732
      %v3785 = vpack.c.b16 %v3737, %v3735
      %v3786 = vpack.c.b16 %v3738, %v3736
      %v3787 = vpack.c.b16 %v3741, %v3739
      %v3788 = vpack.c.b16 %v3742, %v3740
      %v3789 = vpack.c.b16 %v3745, %v3743
      %v3790 = vpack.c.b16 %v3746, %v3744
      %v3791 = vpack.c.b16 %v3749, %v3747
      %v3792 = vpack.c.b16 %v3750, %v3748
      %v3793 = vpack.c.b16 %v3753, %v3751
      %v3794 = vpack.c.b16 %v3754, %v3752
      %v3795 = vpack.c.b16 %v3757, %v3755
      %v3796 = vpack.c.b16 %v3758, %v3756
      %v3797 = vpack.c.b16 %v3761, %v3759
      %v3798 = vpack.c.b16 %v3762, %v3760
      %v3799 = vpack.c.b16 %v3765, %v3763
      %v3800 = vpack.c.b16 %v3766, %v3764
      %v3801 = vpack.c.b16 %v3769, %v3767
      %v3802 = vpack.c.b16 %v3770, %v3768
      %3835 = vmatprep.subr.bf16.mxu0 %v3772
      %3836 = vmatpush1.bf16.msra.mxu0 %v3771
      %3837 = vmatprep.subr.bf16.mxu0 %v3774
      %3838 = vmatpush1.bf16.msra.mxu0 %v3773
      %3839 = vmatprep.subr.bf16.mxu0 %v3776
      %3840 = vmatpush1.bf16.msra.mxu0 %v3775
      %3841 = vmatprep.subr.bf16.mxu0 %v3778
      %3842 = vmatpush1.bf16.msra.mxu0 %v3777
      %3843 = vmatprep.subr.bf16.mxu0 %v3780
      %3844 = vmatpush1.bf16.msra.mxu0 %v3779
      %3845 = vmatprep.subr.bf16.mxu0 %v3782
      %3846 = vmatpush1.bf16.msra.mxu0 %v3781
      %3847 = vmatprep.subr.bf16.mxu0 %v3784
      %3848 = vmatpush1.bf16.msra.mxu0 %v3783
      %3849 = vmatprep.subr.bf16.mxu0 %v3786
      %3850 = vmatpush1.bf16.msra.mxu0 %v3785
      %3851 = vmatprep.subr.bf16.mxu0 %v3788
      %3852 = vmatpush1.bf16.msra.mxu0 %v3787
      %3853 = vmatprep.subr.bf16.mxu0 %v3790
      %3854 = vmatpush1.bf16.msra.mxu0 %v3789
      %3855 = vmatprep.subr.bf16.mxu0 %v3792
      %3856 = vmatpush1.bf16.msra.mxu0 %v3791
      %3857 = vmatprep.subr.bf16.mxu0 %v3794
      %3858 = vmatpush1.bf16.msra.mxu0 %v3793
      %3859 = vmatprep.subr.bf16.mxu0 %v3796
      %3860 = vmatpush1.bf16.msra.mxu0 %v3795
      %3861 = vmatprep.subr.bf16.mxu0 %v3798
      %3862 = vmatpush1.bf16.msra.mxu0 %v3797
      %3863 = vmatprep.subr.bf16.mxu0 %v3800
      %3864 = vmatpush1.bf16.msra.mxu0 %v3799
      %3865 = vmatprep.subr.bf16.mxu0 %v3802
      %3866 = vmatpush1.bf16.msra.mxu0 %v3801
      %3867 = vmatprep.mubr.bf16.mxu0 %v3547
      %3868 = vmatmul.mubr.bf16.gmra.mrb[0].mxu0 %v3546
      %v3869 = vpop.f32.mrb[0].mxu0
      %v3870 = vadd.f32 0.0, %v3869
      %v3871 = vpop.f32.mrb[0].mxu0
      %v3872 = vadd.f32 0.0, %v3871
      %v3873 = vpop.f32.mrb[0].mxu0
      %v3874 = vadd.f32 0.0, %v3873
      %v3875 = vpop.f32.mrb[0].mxu0
      %v3876 = vadd.f32 0.0, %v3875
      %3877 = vmatprep.mubr.bf16.mxu0 %v3549
      %3878 = vmatmul.mubr.bf16.gmra.mrb[0].mxu0 %v3548
      %v3879 = vpop.f32.mrb[0].mxu0
      %v3880 = vadd.f32 0.0, %v3879
      %v3881 = vpop.f32.mrb[0].mxu0
      %v3882 = vadd.f32 0.0, %v3881
      %v3883 = vpop.f32.mrb[0].mxu0
      %v3884 = vadd.f32 0.0, %v3883
      %v3885 = vpop.f32.mrb[0].mxu0
      %v3886 = vadd.f32 0.0, %v3885
      %3887 = vmatprep.mubr.bf16.mxu0 %v3551
      %3888 = vmatmul.mubr.bf16.gmra.mrb[0].mxu0 %v3550
      %v3889 = vpop.f32.mrb[0].mxu0
      %v3890 = vadd.f32 0.0, %v3889
      %v3891 = vpop.f32.mrb[0].mxu0
      %v3892 = vadd.f32 0.0, %v3891
      %v3893 = vpop.f32.mrb[0].mxu0
      %v3894 = vadd.f32 0.0, %v3893
      %v3895 = vpop.f32.mrb[0].mxu0
      %v3896 = vadd.f32 0.0, %v3895
      %3897 = vmatprep.mubr.bf16.mxu0 %v3553
      %3898 = vmatmul.mubr.bf16.gmra.mrb[0].mxu0 %v3552
      %v3899 = vpop.f32.mrb[0].mxu0
      %v3900 = vadd.f32 0.0, %v3899
      %v3901 = vpop.f32.mrb[0].mxu0
      %v3902 = vadd.f32 0.0, %v3901
      %v3903 = vpop.f32.mrb[0].mxu0
      %v3904 = vadd.f32 0.0, %v3903
      %v3905 = vpop.f32.mrb[0].mxu0
      %v3906 = vadd.f32 0.0, %v3905
      %3907 = vmatprep.mubr.bf16.mxu0 %v3555
      %3908 = vmatmul.mubr.bf16.gmra.mrb[0].mxu0 %v3554
      %v3909 = vpop.f32.mrb[0].mxu0
      %v3910 = vadd.f32 0.0, %v3909
      %v3911 = vpop.f32.mrb[0].mxu0
      %v3912 = vadd.f32 0.0, %v3911
      %v3913 = vpop.f32.mrb[0].mxu0
      %v3914 = vadd.f32 0.0, %v3913
      %v3915 = vpop.f32.mrb[0].mxu0
      %v3916 = vadd.f32 0.0, %v3915
      %3917 = vmatprep.mubr.bf16.mxu0 %v3557
      %3918 = vmatmul.mubr.bf16.gmra.mrb[0].mxu0 %v3556
      %v3919 = vpop.f32.mrb[0].mxu0
      %v3920 = vadd.f32 0.0, %v3919
      %v3921 = vpop.f32.mrb[0].mxu0
      %v3922 = vadd.f32 0.0, %v3921
      %v3923 = vpop.f32.mrb[0].mxu0
      %v3924 = vadd.f32 0.0, %v3923
      %v3925 = vpop.f32.mrb[0].mxu0
      %v3926 = vadd.f32 0.0, %v3925
      %3927 = vmatprep.mubr.bf16.mxu0 %v3559
      %3928 = vmatmul.mubr.bf16.gmra.mrb[0].mxu0 %v3558
      %v3929 = vpop.f32.mrb[0].mxu0
      %v3930 = vadd.f32 0.0, %v3929
      %v3931 = vpop.f32.mrb[0].mxu0
      %v3932 = vadd.f32 0.0, %v3931
      %v3933 = vpop.f32.mrb[0].mxu0
      %v3934 = vadd.f32 0.0, %v3933
      %v3935 = vpop.f32.mrb[0].mxu0
      %v3936 = vadd.f32 0.0, %v3935
      %3937 = vmatprep.mubr.bf16.mxu0 %v3561
      %3938 = vmatmul.mubr.bf16.gmra.mrb[0].mxu0 %v3560
      %v3939 = vpop.f32.mrb[0].mxu0
      %v3940 = vadd.f32 0.0, %v3939
      %v3941 = vpop.f32.mrb[0].mxu0
      %v3942 = vadd.f32 0.0, %v3941
      %v3943 = vpop.f32.mrb[0].mxu0
      %v3944 = vadd.f32 0.0, %v3943
      %v3945 = vpop.f32.mrb[0].mxu0
      %v3946 = vadd.f32 0.0, %v3945
      %3947 = vmatprep.mubr.bf16.mxu0 %v3563
      %3948 = vmatmul.mubr.bf16.gmra.mrb[0].mxu0 %v3562
      %v3949 = vpop.f32.mrb[0].mxu0
      %v3950 = vadd.f32 0.0, %v3949
      %v3951 = vpop.f32.mrb[0].mxu0
      %v3952 = vadd.f32 0.0, %v3951
      %v3953 = vpop.f32.mrb[0].mxu0
      %v3954 = vadd.f32 0.0, %v3953
      %v3955 = vpop.f32.mrb[0].mxu0
      %v3956 = vadd.f32 0.0, %v3955
      %3957 = vmatprep.mubr.bf16.mxu0 %v3565
      %3958 = vmatmul.mubr.bf16.gmra.mrb[0].mxu0 %v3564
      %v3959 = vpop.f32.mrb[0].mxu0
      %v3960 = vadd.f32 0.0, %v3959
      %v3961 = vpop.f32.mrb[0].mxu0
      %v3962 = vadd.f32 0.0, %v3961
      %v3963 = vpop.f32.mrb[0].mxu0
      %v3964 = vadd.f32 0.0, %v3963
      %v3965 = vpop.f32.mrb[0].mxu0
      %v3966 = vadd.f32 0.0, %v3965
      %3967 = vmatprep.mubr.bf16.mxu0 %v3567
      %3968 = vmatmul.mubr.bf16.gmra.mrb[0].mxu0 %v3566
      %v3969 = vpop.f32.mrb[0].mxu0
      %v3970 = vadd.f32 0.0, %v3969
      %v3971 = vpop.f32.mrb[0].mxu0
      %v3972 = vadd.f32 0.0, %v3971
      %v3973 = vpop.f32.mrb[0].mxu0
      %v3974 = vadd.f32 0.0, %v3973
      %v3975 = vpop.f32.mrb[0].mxu0
      %v3976 = vadd.f32 0.0, %v3975
      %3977 = vmatprep.mubr.bf16.mxu0 %v3569
      %3978 = vmatmul.mubr.bf16.gmra.mrb[0].mxu0 %v3568
      %v3979 = vpop.f32.mrb[0].mxu0
      %v3980 = vadd.f32 0.0, %v3979
      %v3981 = vpop.f32.mrb[0].mxu0
      %v3982 = vadd.f32 0.0, %v3981
      %v3983 = vpop.f32.mrb[0].mxu0
      %v3984 = vadd.f32 0.0, %v3983
      %v3985 = vpop.f32.mrb[0].mxu0
      %v3986 = vadd.f32 0.0, %v3985
      %3987 = vmatprep.mubr.bf16.mxu0 %v3571
      %3988 = vmatmul.mubr.bf16.gmra.mrb[0].mxu0 %v3570
      %v3989 = vpop.f32.mrb[0].mxu0
      %v3990 = vadd.f32 0.0, %v3989
      %v3991 = vpop.f32.mrb[0].mxu0
      %v3992 = vadd.f32 0.0, %v3991
      %v3993 = vpop.f32.mrb[0].mxu0
      %v3994 = vadd.f32 0.0, %v3993
      %v3995 = vpop.f32.mrb[0].mxu0
      %v3996 = vadd.f32 0.0, %v3995
      %3997 = vmatprep.mubr.bf16.mxu0 %v3573
      %3998 = vmatmul.mubr.bf16.gmra.mrb[0].mxu0 %v3572
      %v3999 = vpop.f32.mrb[0].mxu0
      %v4000 = vadd.f32 0.0, %v3999
      %v4001 = vpop.f32.mrb[0].mxu0
      %v4002 = vadd.f32 0.0, %v4001
      %v4003 = vpop.f32.mrb[0].mxu0
      %v4004 = vadd.f32 0.0, %v4003
      %v4005 = vpop.f32.mrb[0].mxu0
      %v4006 = vadd.f32 0.0, %v4005
      %4007 = vdwg.mxu0
      %v4040 = vunpack.c.l.b16 %v3610
      %v4041 = vunpack.c.h.b16 %v3610
      %v4042 = vunpack.c.l.b16 %v3611
      %v4043 = vunpack.c.h.b16 %v3611
      %v4044 = vunpack.c.l.b16 %v3612
      %v4045 = vunpack.c.h.b16 %v3612
      %v4046 = vunpack.c.l.b16 %v3613
      %v4047 = vunpack.c.h.b16 %v3613
      %v4048 = vunpack.c.l.b16 %v3614
      %v4049 = vunpack.c.h.b16 %v3614
      %v4050 = vunpack.c.l.b16 %v3615
      %v4051 = vunpack.c.h.b16 %v3615
      %v4052 = vunpack.c.l.b16 %v3616
      %v4053 = vunpack.c.h.b16 %v3616
      %v4054 = vunpack.c.l.b16 %v3617
      %v4055 = vunpack.c.h.b16 %v3617
      %v4056 = vunpack.c.l.b16 %v3618
      %v4057 = vunpack.c.h.b16 %v3618
      %v4058 = vunpack.c.l.b16 %v3619
      %v4059 = vunpack.c.h.b16 %v3619
      %v4060 = vunpack.c.l.b16 %v3620
      %v4061 = vunpack.c.h.b16 %v3620
      %v4062 = vunpack.c.l.b16 %v3621
      %v4063 = vunpack.c.h.b16 %v3621
      %v4064 = vunpack.c.l.b16 %v3622
      %v4065 = vunpack.c.h.b16 %v3622
      %v4066 = vunpack.c.l.b16 %v3623
      %v4067 = vunpack.c.h.b16 %v3623
      %v4068 = vunpack.c.l.b16 %v3624
      %v4069 = vunpack.c.h.b16 %v3624
      %v4070 = vunpack.c.l.b16 %v3625
      %v4071 = vunpack.c.h.b16 %v3625
      %v4072 = vunpack.c.l.b16 %v3626
      %v4073 = vunpack.c.h.b16 %v3626
      %v4074 = vunpack.c.l.b16 %v3627
      %v4075 = vunpack.c.h.b16 %v3627
      %v4076 = vunpack.c.l.b16 %v3628
      %v4077 = vunpack.c.h.b16 %v3628
      %v4078 = vunpack.c.l.b16 %v3629
      %v4079 = vunpack.c.h.b16 %v3629
      %v4080 = vunpack.c.l.b16 %v3630
      %v4081 = vunpack.c.h.b16 %v3630
      %v4082 = vunpack.c.l.b16 %v3631
      %v4083 = vunpack.c.h.b16 %v3631
      %v4084 = vunpack.c.l.b16 %v3632
      %v4085 = vunpack.c.h.b16 %v3632
      %v4086 = vunpack.c.l.b16 %v3633
      %v4087 = vunpack.c.h.b16 %v3633
      %v4088 = vunpack.c.l.b16 %v3634
      %v4089 = vunpack.c.h.b16 %v3634
      %v4090 = vunpack.c.l.b16 %v3635
      %v4091 = vunpack.c.h.b16 %v3635
      %v4092 = vunpack.c.l.b16 %v3636
      %v4093 = vunpack.c.h.b16 %v3636
      %v4094 = vunpack.c.l.b16 %v3637
      %v4095 = vunpack.c.h.b16 %v3637
      %v4096 = vunpack.c.l.b16 %v3638
      %v4097 = vunpack.c.h.b16 %v3638
      %v4098 = vunpack.c.l.b16 %v3639
      %v4099 = vunpack.c.h.b16 %v3639
      %v4100 = vunpack.c.l.b16 %v3640
      %v4101 = vunpack.c.h.b16 %v3640
      %v4102 = vunpack.c.l.b16 %v3641
      %v4103 = vunpack.c.h.b16 %v3641
      %v4104 = vpack.c.b16 %v4042, %v4040
      %v4105 = vpack.c.b16 %v4043, %v4041
      %v4106 = vpack.c.b16 %v4046, %v4044
      %v4107 = vpack.c.b16 %v4047, %v4045
      %v4108 = vpack.c.b16 %v4050, %v4048
      %v4109 = vpack.c.b16 %v4051, %v4049
      %v4110 = vpack.c.b16 %v4054, %v4052
      %v4111 = vpack.c.b16 %v4055, %v4053
      %v4112 = vpack.c.b16 %v4058, %v4056
      %v4113 = vpack.c.b16 %v4059, %v4057
      %v4114 = vpack.c.b16 %v4062, %v4060
      %v4115 = vpack.c.b16 %v4063, %v4061
      %v4116 = vpack.c.b16 %v4066, %v4064
      %v4117 = vpack.c.b16 %v4067, %v4065
      %v4118 = vpack.c.b16 %v4070, %v4068
      %v4119 = vpack.c.b16 %v4071, %v4069
      %v4120 = vpack.c.b16 %v4074, %v4072
      %v4121 = vpack.c.b16 %v4075, %v4073
      %v4122 = vpack.c.b16 %v4078, %v4076
      %v4123 = vpack.c.b16 %v4079, %v4077
      %v4124 = vpack.c.b16 %v4082, %v4080
      %v4125 = vpack.c.b16 %v4083, %v4081
      %v4126 = vpack.c.b16 %v4086, %v4084
      %v4127 = vpack.c.b16 %v4087, %v4085
      %v4128 = vpack.c.b16 %v4090, %v4088
      %v4129 = vpack.c.b16 %v4091, %v4089
      %v4130 = vpack.c.b16 %v4094, %v4092
      %v4131 = vpack.c.b16 %v4095, %v4093
      %v4132 = vpack.c.b16 %v4098, %v4096
      %v4133 = vpack.c.b16 %v4099, %v4097
      %v4134 = vpack.c.b16 %v4102, %v4100
      %v4135 = vpack.c.b16 %v4103, %v4101
      %4168 = vmatprep.subr.bf16.mxu0 %v4105
      %4169 = vmatpush1.bf16.msra.mxu0 %v4104
      %4170 = vmatprep.subr.bf16.mxu0 %v4107
      %4171 = vmatpush1.bf16.msra.mxu0 %v4106
      %4172 = vmatprep.subr.bf16.mxu0 %v4109
      %4173 = vmatpush1.bf16.msra.mxu0 %v4108
      %4174 = vmatprep.subr.bf16.mxu0 %v4111
      %4175 = vmatpush1.bf16.msra.mxu0 %v4110
      %4176 = vmatprep.subr.bf16.mxu0 %v4113
      %4177 = vmatpush1.bf16.msra.mxu0 %v4112
      %4178 = vmatprep.subr.bf16.mxu0 %v4115
      %4179 = vmatpush1.bf16.msra.mxu0 %v4114
      %4180 = vmatprep.subr.bf16.mxu0 %v4117
      %4181 = vmatpush1.bf16.msra.mxu0 %v4116
      %4182 = vmatprep.subr.bf16.mxu0 %v4119
      %4183 = vmatpush1.bf16.msra.mxu0 %v4118
      %4184 = vmatprep.subr.bf16.mxu0 %v4121
      %4185 = vmatpush1.bf16.msra.mxu0 %v4120
      %4186 = vmatprep.subr.bf16.mxu0 %v4123
      %4187 = vmatpush1.bf16.msra.mxu0 %v4122
      %4188 = vmatprep.subr.bf16.mxu0 %v4125
      %4189 = vmatpush1.bf16.msra.mxu0 %v4124
      %4190 = vmatprep.subr.bf16.mxu0 %v4127
      %4191 = vmatpush1.bf16.msra.mxu0 %v4126
      %4192 = vmatprep.subr.bf16.mxu0 %v4129
      %4193 = vmatpush1.bf16.msra.mxu0 %v4128
      %4194 = vmatprep.subr.bf16.mxu0 %v4131
      %4195 = vmatpush1.bf16.msra.mxu0 %v4130
      %4196 = vmatprep.subr.bf16.mxu0 %v4133
      %4197 = vmatpush1.bf16.msra.mxu0 %v4132
      %4198 = vmatprep.subr.bf16.mxu0 %v4135
      %4199 = vmatpush1.bf16.msra.mxu0 %v4134
      %4200 = vmatprep.mubr.bf16.mxu0 %v3579
      %4201 = vmatmul.mubr.bf16.gmra.mrb[0].mxu0 %v3578
      %v4202 = vpop.f32.mrb[0].mxu0
      %v4203 = vadd.f32 %v3870, %v4202
      %v4204 = vpop.f32.mrb[0].mxu0
      %v4205 = vadd.f32 %v3872, %v4204
      %v4206 = vpop.f32.mrb[0].mxu0
      %v4207 = vadd.f32 %v3874, %v4206
      %v4208 = vpop.f32.mrb[0].mxu0
      %v4209 = vadd.f32 %v3876, %v4208
      %4210 = vmatprep.mubr.bf16.mxu0 %v3581
      %4211 = vmatmul.mubr.bf16.gmra.mrb[0].mxu0 %v3580
      %v4212 = vpop.f32.mrb[0].mxu0
      %v4213 = vadd.f32 %v3880, %v4212
      %v4214 = vpop.f32.mrb[0].mxu0
      %v4215 = vadd.f32 %v3882, %v4214
      %v4216 = vpop.f32.mrb[0].mxu0
      %v4217 = vadd.f32 %v3884, %v4216
      %v4218 = vpop.f32.mrb[0].mxu0
      %v4219 = vadd.f32 %v3886, %v4218
      %4220 = vmatprep.mubr.bf16.mxu0 %v3583
      %4221 = vmatmul.mubr.bf16.gmra.mrb[0].mxu0 %v3582
      %v4222 = vpop.f32.mrb[0].mxu0
      %v4223 = vadd.f32 %v3890, %v4222
      %v4224 = vpop.f32.mrb[0].mxu0
      %v4225 = vadd.f32 %v3892, %v4224
      %v4226 = vpop.f32.mrb[0].mxu0
      %v4227 = vadd.f32 %v3894, %v4226
      %v4228 = vpop.f32.mrb[0].mxu0
      %v4229 = vadd.f32 %v3896, %v4228
      %4230 = vmatprep.mubr.bf16.mxu0 %v3585
      %4231 = vmatmul.mubr.bf16.gmra.mrb[0].mxu0 %v3584
      %v4232 = vpop.f32.mrb[0].mxu0
      %v4233 = vadd.f32 %v3900, %v4232
      %v4234 = vpop.f32.mrb[0].mxu0
      %v4235 = vadd.f32 %v3902, %v4234
      %v4236 = vpop.f32.mrb[0].mxu0
      %v4237 = vadd.f32 %v3904, %v4236
      %v4238 = vpop.f32.mrb[0].mxu0
      %v4239 = vadd.f32 %v3906, %v4238
      %4240 = vmatprep.mubr.bf16.mxu0 %v3587
      %4241 = vmatmul.mubr.bf16.gmra.mrb[0].mxu0 %v3586
      %v4242 = vpop.f32.mrb[0].mxu0
      %v4243 = vadd.f32 %v3910, %v4242
      %v4244 = vpop.f32.mrb[0].mxu0
      %v4245 = vadd.f32 %v3912, %v4244
      %v4246 = vpop.f32.mrb[0].mxu0
      %v4247 = vadd.f32 %v3914, %v4246
      %v4248 = vpop.f32.mrb[0].mxu0
      %v4249 = vadd.f32 %v3916, %v4248
      %4250 = vmatprep.mubr.bf16.mxu0 %v3589
      %4251 = vmatmul.mubr.bf16.gmra.mrb[0].mxu0 %v3588
      %v4252 = vpop.f32.mrb[0].mxu0
      %v4253 = vadd.f32 %v3920, %v4252
      %v4254 = vpop.f32.mrb[0].mxu0
      %v4255 = vadd.f32 %v3922, %v4254
      %v4256 = vpop.f32.mrb[0].mxu0
      %v4257 = vadd.f32 %v3924, %v4256
      %v4258 = vpop.f32.mrb[0].mxu0
      %v4259 = vadd.f32 %v3926, %v4258
      %4260 = vmatprep.mubr.bf16.mxu0 %v3591
      %4261 = vmatmul.mubr.bf16.gmra.mrb[0].mxu0 %v3590
      %v4262 = vpop.f32.mrb[0].mxu0
      %v4263 = vadd.f32 %v3930, %v4262
      %v4264 = vpop.f32.mrb[0].mxu0
      %v4265 = vadd.f32 %v3932, %v4264
      %v4266 = vpop.f32.mrb[0].mxu0
      %v4267 = vadd.f32 %v3934, %v4266
      %v4268 = vpop.f32.mrb[0].mxu0
      %v4269 = vadd.f32 %v3936, %v4268
      %4270 = vmatprep.mubr.bf16.mxu0 %v3593
      %4271 = vmatmul.mubr.bf16.gmra.mrb[0].mxu0 %v3592
      %v4272 = vpop.f32.mrb[0].mxu0
      %v4273 = vadd.f32 %v3940, %v4272
      %v4274 = vpop.f32.mrb[0].mxu0
      %v4275 = vadd.f32 %v3942, %v4274
      %v4276 = vpop.f32.mrb[0].mxu0
      %v4277 = vadd.f32 %v3944, %v4276
      %v4278 = vpop.f32.mrb[0].mxu0
      %v4279 = vadd.f32 %v3946, %v4278
      %4280 = vmatprep.mubr.bf16.mxu0 %v3595
      %4281 = vmatmul.mubr.bf16.gmra.mrb[0].mxu0 %v3594
      %v4282 = vpop.f32.mrb[0].mxu0
      %v4283 = vadd.f32 %v3950, %v4282
      %v4284 = vpop.f32.mrb[0].mxu0
      %v4285 = vadd.f32 %v3952, %v4284
      %v4286 = vpop.f32.mrb[0].mxu0
      %v4287 = vadd.f32 %v3954, %v4286
      %v4288 = vpop.f32.mrb[0].mxu0
      %v4289 = vadd.f32 %v3956, %v4288
      %4290 = vmatprep.mubr.bf16.mxu0 %v3597
      %4291 = vmatmul.mubr.bf16.gmra.mrb[0].mxu0 %v3596
      %v4292 = vpop.f32.mrb[0].mxu0
      %v4293 = vadd.f32 %v3960, %v4292
      %v4294 = vpop.f32.mrb[0].mxu0
      %v4295 = vadd.f32 %v3962, %v4294
      %v4296 = vpop.f32.mrb[0].mxu0
      %v4297 = vadd.f32 %v3964, %v4296
      %v4298 = vpop.f32.mrb[0].mxu0
      %v4299 = vadd.f32 %v3966, %v4298
      %4300 = vmatprep.mubr.bf16.mxu0 %v3599
      %4301 = vmatmul.mubr.bf16.gmra.mrb[0].mxu0 %v3598
      %v4302 = vpop.f32.mrb[0].mxu0
      %v4303 = vadd.f32 %v3970, %v4302
      %v4304 = vpop.f32.mrb[0].mxu0
      %v4305 = vadd.f32 %v3972, %v4304
      %v4306 = vpop.f32.mrb[0].mxu0
      %v4307 = vadd.f32 %v3974, %v4306
      %v4308 = vpop.f32.mrb[0].mxu0
      %v4309 = vadd.f32 %v3976, %v4308
      %4310 = vmatprep.mubr.bf16.mxu0 %v3601
      %4311 = vmatmul.mubr.bf16.gmra.mrb[0].mxu0 %v3600
      %v4312 = vpop.f32.mrb[0].mxu0
      %v4313 = vadd.f32 %v3980, %v4312
      %v4314 = vpop.f32.mrb[0].mxu0
      %v4315 = vadd.f32 %v3982, %v4314
      %v4316 = vpop.f32.mrb[0].mxu0
      %v4317 = vadd.f32 %v3984, %v4316
      %v4318 = vpop.f32.mrb[0].mxu0
      %v4319 = vadd.f32 %v3986, %v4318
      %4320 = vmatprep.mubr.bf16.mxu0 %v3603
      %4321 = vmatmul.mubr.bf16.gmra.mrb[0].mxu0 %v3602
      %v4322 = vpop.f32.mrb[0].mxu0
      %v4323 = vadd.f32 %v3990, %v4322
      %v4324 = vpop.f32.mrb[0].mxu0
      %v4325 = vadd.f32 %v3992, %v4324
      %v4326 = vpop.f32.mrb[0].mxu0
      %v4327 = vadd.f32 %v3994, %v4326
      %v4328 = vpop.f32.mrb[0].mxu0
      %v4329 = vadd.f32 %v3996, %v4328
      %4330 = vmatprep.mubr.bf16.mxu0 %v3605
      %4331 = vmatmul.mubr.bf16.gmra.mrb[0].mxu0 %v3604
      %v4332 = vpop.f32.mrb[0].mxu0
      %v4333 = vadd.f32 %v4000, %v4332
      %v4334 = vpop.f32.mrb[0].mxu0
      %v4335 = vadd.f32 %v4002, %v4334
      %v4336 = vpop.f32.mrb[0].mxu0
      %v4337 = vadd.f32 %v4004, %v4336
      %v4338 = vpop.f32.mrb[0].mxu0
      %v4339 = vadd.f32 %v4006, %v4338
      %4340 = vdwg.mxu0
      %s4341 = scalar_lea.vmem %s3, 512
      %v4342 = vld [vmem:[%s4341] sm:$0xff]
      %v4343 = vld [vmem:[%s4341 + $0x8] sm:$0xff]
      %v4344 = vld [vmem:[%s4341 + $0x10] sm:$0xff]
      %v4345 = vld [vmem:[%s4341 + $0x18] sm:$0xff]
      %v4346 = vld [vmem:[%s4341 + $0x20] sm:$0xff]
      %v4347 = vld [vmem:[%s4341 + $0x28] sm:$0xff]
      %v4348 = vld [vmem:[%s4341 + $0x30] sm:$0xff]
      %v4349 = vld [vmem:[%s4341 + $0x38] sm:$0xff]
      %v4350 = vld [vmem:[%s4341 + $0x40] sm:$0xff]
      %v4351 = vld [vmem:[%s4341 + $0x48] sm:$0xff]
      %v4352 = vld [vmem:[%s4341 + $0x50] sm:$0xff]
      %v4353 = vld [vmem:[%s4341 + $0x58] sm:$0xff]
      %v4354 = vld [vmem:[%s4341 + $0x60] sm:$0xff]
      %v4355 = vld [vmem:[%s4341 + $0x68] sm:$0xff]
      %v4356 = vld [vmem:[%s4341 + $0x70] sm:$0xff]
      %v4357 = vld [vmem:[%s4341 + $0x78] sm:$0xff]
      %v4358 = vld [vmem:[%s4341 + $0x80] sm:$0xff]
      %v4359 = vld [vmem:[%s4341 + $0x88] sm:$0xff]
      %v4360 = vld [vmem:[%s4341 + $0x90] sm:$0xff]
      %v4361 = vld [vmem:[%s4341 + $0x98] sm:$0xff]
      %v4362 = vld [vmem:[%s4341 + $0xa0] sm:$0xff]
      %v4363 = vld [vmem:[%s4341 + $0xa8] sm:$0xff]
      %v4364 = vld [vmem:[%s4341 + $0xb0] sm:$0xff]
      %v4365 = vld [vmem:[%s4341 + $0xb8] sm:$0xff]
      %v4366 = vld [vmem:[%s4341 + $0xc0] sm:$0xff]
      %v4367 = vld [vmem:[%s4341 + $0xc8] sm:$0xff]
      %v4368 = vld [vmem:[%s4341 + $0xd0] sm:$0xff]
      %v4369 = vld [vmem:[%s4341 + $0xd8] sm:$0xff]
      %v4370 = vld [vmem:[%s4341 + $0xe0] sm:$0xff]
      %v4371 = vld [vmem:[%s4341 + $0xe8] sm:$0xff]
      %v4372 = vld [vmem:[%s4341 + $0xf0] sm:$0xff]
      %v4373 = vld [vmem:[%s4341 + $0xf8] sm:$0xff]
      %v4406 = vunpack.c.l.b16 %v4342
      %v4407 = vunpack.c.h.b16 %v4342
      %v4408 = vunpack.c.l.b16 %v4343
      %v4409 = vunpack.c.h.b16 %v4343
      %v4410 = vunpack.c.l.b16 %v4344
      %v4411 = vunpack.c.h.b16 %v4344
      %v4412 = vunpack.c.l.b16 %v4345
      %v4413 = vunpack.c.h.b16 %v4345
      %v4414 = vunpack.c.l.b16 %v4346
      %v4415 = vunpack.c.h.b16 %v4346
      %v4416 = vunpack.c.l.b16 %v4347
      %v4417 = vunpack.c.h.b16 %v4347
      %v4418 = vunpack.c.l.b16 %v4348
      %v4419 = vunpack.c.h.b16 %v4348
      %v4420 = vunpack.c.l.b16 %v4349
      %v4421 = vunpack.c.h.b16 %v4349
      %v4422 = vunpack.c.l.b16 %v4350
      %v4423 = vunpack.c.h.b16 %v4350
      %v4424 = vunpack.c.l.b16 %v4351
      %v4425 = vunpack.c.h.b16 %v4351
      %v4426 = vunpack.c.l.b16 %v4352
      %v4427 = vunpack.c.h.b16 %v4352
      %v4428 = vunpack.c.l.b16 %v4353
      %v4429 = vunpack.c.h.b16 %v4353
      %v4430 = vunpack.c.l.b16 %v4354
      %v4431 = vunpack.c.h.b16 %v4354
      %v4432 = vunpack.c.l.b16 %v4355
      %v4433 = vunpack.c.h.b16 %v4355
      %v4434 = vunpack.c.l.b16 %v4356
      %v4435 = vunpack.c.h.b16 %v4356
      %v4436 = vunpack.c.l.b16 %v4357
      %v4437 = vunpack.c.h.b16 %v4357
      %v4438 = vunpack.c.l.b16 %v4358
      %v4439 = vunpack.c.h.b16 %v4358
      %v4440 = vunpack.c.l.b16 %v4359
      %v4441 = vunpack.c.h.b16 %v4359
      %v4442 = vunpack.c.l.b16 %v4360
      %v4443 = vunpack.c.h.b16 %v4360
      %v4444 = vunpack.c.l.b16 %v4361
      %v4445 = vunpack.c.h.b16 %v4361
      %v4446 = vunpack.c.l.b16 %v4362
      %v4447 = vunpack.c.h.b16 %v4362
      %v4448 = vunpack.c.l.b16 %v4363
      %v4449 = vunpack.c.h.b16 %v4363
      %v4450 = vunpack.c.l.b16 %v4364
      %v4451 = vunpack.c.h.b16 %v4364
      %v4452 = vunpack.c.l.b16 %v4365
      %v4453 = vunpack.c.h.b16 %v4365
      %v4454 = vunpack.c.l.b16 %v4366
      %v4455 = vunpack.c.h.b16 %v4366
      %v4456 = vunpack.c.l.b16 %v4367
      %v4457 = vunpack.c.h.b16 %v4367
      %v4458 = vunpack.c.l.b16 %v4368
      %v4459 = vunpack.c.h.b16 %v4368
      %v4460 = vunpack.c.l.b16 %v4369
      %v4461 = vunpack.c.h.b16 %v4369
      %v4462 = vunpack.c.l.b16 %v4370
      %v4463 = vunpack.c.h.b16 %v4370
      %v4464 = vunpack.c.l.b16 %v4371
      %v4465 = vunpack.c.h.b16 %v4371
      %v4466 = vunpack.c.l.b16 %v4372
      %v4467 = vunpack.c.h.b16 %v4372
      %v4468 = vunpack.c.l.b16 %v4373
      %v4469 = vunpack.c.h.b16 %v4373
      %v4470 = vpack.c.b16 %v4408, %v4406
      %v4471 = vpack.c.b16 %v4409, %v4407
      %v4472 = vpack.c.b16 %v4412, %v4410
      %v4473 = vpack.c.b16 %v4413, %v4411
      %v4474 = vpack.c.b16 %v4416, %v4414
      %v4475 = vpack.c.b16 %v4417, %v4415
      %v4476 = vpack.c.b16 %v4420, %v4418
      %v4477 = vpack.c.b16 %v4421, %v4419
      %v4478 = vpack.c.b16 %v4424, %v4422
      %v4479 = vpack.c.b16 %v4425, %v4423
      %v4480 = vpack.c.b16 %v4428, %v4426
      %v4481 = vpack.c.b16 %v4429, %v4427
      %v4482 = vpack.c.b16 %v4432, %v4430
      %v4483 = vpack.c.b16 %v4433, %v4431
      %v4484 = vpack.c.b16 %v4436, %v4434
      %v4485 = vpack.c.b16 %v4437, %v4435
      %v4486 = vpack.c.b16 %v4440, %v4438
      %v4487 = vpack.c.b16 %v4441, %v4439
      %v4488 = vpack.c.b16 %v4444, %v4442
      %v4489 = vpack.c.b16 %v4445, %v4443
      %v4490 = vpack.c.b16 %v4448, %v4446
      %v4491 = vpack.c.b16 %v4449, %v4447
      %v4492 = vpack.c.b16 %v4452, %v4450
      %v4493 = vpack.c.b16 %v4453, %v4451
      %v4494 = vpack.c.b16 %v4456, %v4454
      %v4495 = vpack.c.b16 %v4457, %v4455
      %v4496 = vpack.c.b16 %v4460, %v4458
      %v4497 = vpack.c.b16 %v4461, %v4459
      %v4498 = vpack.c.b16 %v4464, %v4462
      %v4499 = vpack.c.b16 %v4465, %v4463
      %v4500 = vpack.c.b16 %v4468, %v4466
      %v4501 = vpack.c.b16 %v4469, %v4467
      %4534 = vmatprep.subr.bf16.mxu0 %v4471
      %4535 = vmatpush1.bf16.msra.mxu0 %v4470
      %4536 = vmatprep.subr.bf16.mxu0 %v4473
      %4537 = vmatpush1.bf16.msra.mxu0 %v4472
      %4538 = vmatprep.subr.bf16.mxu0 %v4475
      %4539 = vmatpush1.bf16.msra.mxu0 %v4474
      %4540 = vmatprep.subr.bf16.mxu0 %v4477
      %4541 = vmatpush1.bf16.msra.mxu0 %v4476
      %4542 = vmatprep.subr.bf16.mxu0 %v4479
      %4543 = vmatpush1.bf16.msra.mxu0 %v4478
      %4544 = vmatprep.subr.bf16.mxu0 %v4481
      %4545 = vmatpush1.bf16.msra.mxu0 %v4480
      %4546 = vmatprep.subr.bf16.mxu0 %v4483
      %4547 = vmatpush1.bf16.msra.mxu0 %v4482
      %4548 = vmatprep.subr.bf16.mxu0 %v4485
      %4549 = vmatpush1.bf16.msra.mxu0 %v4484
      %4550 = vmatprep.subr.bf16.mxu0 %v4487
      %4551 = vmatpush1.bf16.msra.mxu0 %v4486
      %4552 = vmatprep.subr.bf16.mxu0 %v4489
      %4553 = vmatpush1.bf16.msra.mxu0 %v4488
      %4554 = vmatprep.subr.bf16.mxu0 %v4491
      %4555 = vmatpush1.bf16.msra.mxu0 %v4490
      %4556 = vmatprep.subr.bf16.mxu0 %v4493
      %4557 = vmatpush1.bf16.msra.mxu0 %v4492
      %4558 = vmatprep.subr.bf16.mxu0 %v4495
      %4559 = vmatpush1.bf16.msra.mxu0 %v4494
      %4560 = vmatprep.subr.bf16.mxu0 %v4497
      %4561 = vmatpush1.bf16.msra.mxu0 %v4496
      %4562 = vmatprep.subr.bf16.mxu0 %v4499
      %4563 = vmatpush1.bf16.msra.mxu0 %v4498
      %4564 = vmatprep.subr.bf16.mxu0 %v4501
      %4565 = vmatpush1.bf16.msra.mxu0 %v4500
      %4566 = vmatprep.mubr.bf16.mxu0 %v3583
      %4567 = vmatmul.mubr.bf16.gmra.mrb[0].mxu0 %v3582
      %v4568 = vpop.f32.mrb[0].mxu0
      %v4569 = vadd.f32 0.0, %v4568
      %v4570 = vpop.f32.mrb[0].mxu0
      %v4571 = vadd.f32 0.0, %v4570
      %v4572 = vpop.f32.mrb[0].mxu0
      %v4573 = vadd.f32 0.0, %v4572
      %v4574 = vpop.f32.mrb[0].mxu0
      %v4575 = vadd.f32 0.0, %v4574
      %4576 = vmatprep.mubr.bf16.mxu0 %v3585
      %4577 = vmatmul.mubr.bf16.gmra.mrb[0].mxu0 %v3584
      %v4578 = vpop.f32.mrb[0].mxu0
      %v4579 = vadd.f32 0.0, %v4578
      %v4580 = vpop.f32.mrb[0].mxu0
      %v4581 = vadd.f32 0.0, %v4580
      %v4582 = vpop.f32.mrb[0].mxu0
      %v4583 = vadd.f32 0.0, %v4582
      %v4584 = vpop.f32.mrb[0].mxu0
      %v4585 = vadd.f32 0.0, %v4584
      %4586 = vmatprep.mubr.bf16.mxu0 %v3587
      %4587 = vmatmul.mubr.bf16.gmra.mrb[0].mxu0 %v3586
      %v4588 = vpop.f32.mrb[0].mxu0
      %v4589 = vadd.f32 0.0, %v4588
      %v4590 = vpop.f32.mrb[0].mxu0
      %v4591 = vadd.f32 0.0, %v4590
      %v4592 = vpop.f32.mrb[0].mxu0
      %v4593 = vadd.f32 0.0, %v4592
      %v4594 = vpop.f32.mrb[0].mxu0
      %v4595 = vadd.f32 0.0, %v4594
      %4596 = vmatprep.mubr.bf16.mxu0 %v3589
      %4597 = vmatmul.mubr.bf16.gmra.mrb[0].mxu0 %v3588
      %v4598 = vpop.f32.mrb[0].mxu0
      %v4599 = vadd.f32 0.0, %v4598
      %v4600 = vpop.f32.mrb[0].mxu0
      %v4601 = vadd.f32 0.0, %v4600
      %v4602 = vpop.f32.mrb[0].mxu0
      %v4603 = vadd.f32 0.0, %v4602
      %v4604 = vpop.f32.mrb[0].mxu0
      %v4605 = vadd.f32 0.0, %v4604
      %4606 = vmatprep.mubr.bf16.mxu0 %v3591
      %4607 = vmatmul.mubr.bf16.gmra.mrb[0].mxu0 %v3590
      %v4608 = vpop.f32.mrb[0].mxu0
      %v4609 = vadd.f32 0.0, %v4608
      %v4610 = vpop.f32.mrb[0].mxu0
      %v4611 = vadd.f32 0.0, %v4610
      %v4612 = vpop.f32.mrb[0].mxu0
      %v4613 = vadd.f32 0.0, %v4612
      %v4614 = vpop.f32.mrb[0].mxu0
      %v4615 = vadd.f32 0.0, %v4614
      %4616 = vmatprep.mubr.bf16.mxu0 %v3593
      %4617 = vmatmul.mubr.bf16.gmra.mrb[0].mxu0 %v3592
      %v4618 = vpop.f32.mrb[0].mxu0
      %v4619 = vadd.f32 0.0, %v4618
      %v4620 = vpop.f32.mrb[0].mxu0
      %v4621 = vadd.f32 0.0, %v4620
      %v4622 = vpop.f32.mrb[0].mxu0
      %v4623 = vadd.f32 0.0, %v4622
      %v4624 = vpop.f32.mrb[0].mxu0
      %v4625 = vadd.f32 0.0, %v4624
      %4626 = vmatprep.mubr.bf16.mxu0 %v3595
      %4627 = vmatmul.mubr.bf16.gmra.mrb[0].mxu0 %v3594
      %v4628 = vpop.f32.mrb[0].mxu0
      %v4629 = vadd.f32 0.0, %v4628
      %v4630 = vpop.f32.mrb[0].mxu0
      %v4631 = vadd.f32 0.0, %v4630
      %v4632 = vpop.f32.mrb[0].mxu0
      %v4633 = vadd.f32 0.0, %v4632
      %v4634 = vpop.f32.mrb[0].mxu0
      %v4635 = vadd.f32 0.0, %v4634
      %4636 = vmatprep.mubr.bf16.mxu0 %v3597
      %4637 = vmatmul.mubr.bf16.gmra.mrb[0].mxu0 %v3596
      %v4638 = vpop.f32.mrb[0].mxu0
      %v4639 = vadd.f32 0.0, %v4638
      %v4640 = vpop.f32.mrb[0].mxu0
      %v4641 = vadd.f32 0.0, %v4640
      %v4642 = vpop.f32.mrb[0].mxu0
      %v4643 = vadd.f32 0.0, %v4642
      %v4644 = vpop.f32.mrb[0].mxu0
      %v4645 = vadd.f32 0.0, %v4644
      %4646 = vmatprep.mubr.bf16.mxu0 %v3599
      %4647 = vmatmul.mubr.bf16.gmra.mrb[0].mxu0 %v3598
      %v4648 = vpop.f32.mrb[0].mxu0
      %v4649 = vadd.f32 0.0, %v4648
      %v4650 = vpop.f32.mrb[0].mxu0
      %v4651 = vadd.f32 0.0, %v4650
      %v4652 = vpop.f32.mrb[0].mxu0
      %v4653 = vadd.f32 0.0, %v4652
      %v4654 = vpop.f32.mrb[0].mxu0
      %v4655 = vadd.f32 0.0, %v4654
      %4656 = vmatprep.mubr.bf16.mxu0 %v3601
      %4657 = vmatmul.mubr.bf16.gmra.mrb[0].mxu0 %v3600
      %v4658 = vpop.f32.mrb[0].mxu0
      %v4659 = vadd.f32 0.0, %v4658
      %v4660 = vpop.f32.mrb[0].mxu0
      %v4661 = vadd.f32 0.0, %v4660
      %v4662 = vpop.f32.mrb[0].mxu0
      %v4663 = vadd.f32 0.0, %v4662
      %v4664 = vpop.f32.mrb[0].mxu0
      %v4665 = vadd.f32 0.0, %v4664
      %4666 = vmatprep.mubr.bf16.mxu0 %v3603
      %4667 = vmatmul.mubr.bf16.gmra.mrb[0].mxu0 %v3602
      %v4668 = vpop.f32.mrb[0].mxu0
      %v4669 = vadd.f32 0.0, %v4668
      %v4670 = vpop.f32.mrb[0].mxu0
      %v4671 = vadd.f32 0.0, %v4670
      %v4672 = vpop.f32.mrb[0].mxu0
      %v4673 = vadd.f32 0.0, %v4672
      %v4674 = vpop.f32.mrb[0].mxu0
      %v4675 = vadd.f32 0.0, %v4674
      %4676 = vmatprep.mubr.bf16.mxu0 %v3605
      %4677 = vmatmul.mubr.bf16.gmra.mrb[0].mxu0 %v3604
      %v4678 = vpop.f32.mrb[0].mxu0
      %v4679 = vadd.f32 0.0, %v4678
      %v4680 = vpop.f32.mrb[0].mxu0
      %v4681 = vadd.f32 0.0, %v4680
      %v4682 = vpop.f32.mrb[0].mxu0
      %v4683 = vadd.f32 0.0, %v4682
      %v4684 = vpop.f32.mrb[0].mxu0
      %v4685 = vadd.f32 0.0, %v4684
      %4686 = vmatprep.mubr.bf16.mxu0 %v3607
      %4687 = vmatmul.mubr.bf16.gmra.mrb[0].mxu0 %v3606
      %v4688 = vpop.f32.mrb[0].mxu0
      %v4689 = vadd.f32 0.0, %v4688
      %v4690 = vpop.f32.mrb[0].mxu0
      %v4691 = vadd.f32 0.0, %v4690
      %v4692 = vpop.f32.mrb[0].mxu0
      %v4693 = vadd.f32 0.0, %v4692
      %v4694 = vpop.f32.mrb[0].mxu0
      %v4695 = vadd.f32 0.0, %v4694
      %4696 = vmatprep.mubr.bf16.mxu0 %v3609
      %4697 = vmatmul.mubr.bf16.gmra.mrb[0].mxu0 %v3608
      %v4698 = vpop.f32.mrb[0].mxu0
      %v4699 = vadd.f32 0.0, %v4698
      %v4700 = vpop.f32.mrb[0].mxu0
      %v4701 = vadd.f32 0.0, %v4700
      %v4702 = vpop.f32.mrb[0].mxu0
      %v4703 = vadd.f32 0.0, %v4702
      %v4704 = vpop.f32.mrb[0].mxu0
      %v4705 = vadd.f32 0.0, %v4704
      %4706 = vdwg.mxu0
      %v4707 = vadd.f32 %v4203, %v4569
      %v4708 = vadd.f32 %v4205, %v4571
      %v4709 = vadd.f32 %v4207, %v4573
      %v4710 = vadd.f32 %v4209, %v4575
      %v4711 = vadd.f32 %v4213, %v4579
      %v4712 = vadd.f32 %v4215, %v4581
      %v4713 = vadd.f32 %v4217, %v4583
      %v4714 = vadd.f32 %v4219, %v4585
      %v4715 = vadd.f32 %v4223, %v4589
      %v4716 = vadd.f32 %v4225, %v4591
      %v4717 = vadd.f32 %v4227, %v4593
      %v4718 = vadd.f32 %v4229, %v4595
      %v4719 = vadd.f32 %v4233, %v4599
      %v4720 = vadd.f32 %v4235, %v4601
      %v4721 = vadd.f32 %v4237, %v4603
      %v4722 = vadd.f32 %v4239, %v4605
      %v4723 = vadd.f32 %v4243, %v4609
      %v4724 = vadd.f32 %v4245, %v4611
      %v4725 = vadd.f32 %v4247, %v4613
      %v4726 = vadd.f32 %v4249, %v4615
      %v4727 = vadd.f32 %v4253, %v4619
      %v4728 = vadd.f32 %v4255, %v4621
      %v4729 = vadd.f32 %v4257, %v4623
      %v4730 = vadd.f32 %v4259, %v4625
      %v4731 = vadd.f32 %v4263, %v4629
      %v4732 = vadd.f32 %v4265, %v4631
      %v4733 = vadd.f32 %v4267, %v4633
      %v4734 = vadd.f32 %v4269, %v4635
      %v4735 = vadd.f32 %v4273, %v4639
      %v4736 = vadd.f32 %v4275, %v4641
      %v4737 = vadd.f32 %v4277, %v4643
      %v4738 = vadd.f32 %v4279, %v4645
      %v4739 = vadd.f32 %v4283, %v4649
      %v4740 = vadd.f32 %v4285, %v4651
      %v4741 = vadd.f32 %v4287, %v4653
      %v4742 = vadd.f32 %v4289, %v4655
      %v4743 = vadd.f32 %v4293, %v4659
      %v4744 = vadd.f32 %v4295, %v4661
      %v4745 = vadd.f32 %v4297, %v4663
      %v4746 = vadd.f32 %v4299, %v4665
      %v4747 = vadd.f32 %v4303, %v4669
      %v4748 = vadd.f32 %v4305, %v4671
      %v4749 = vadd.f32 %v4307, %v4673
      %v4750 = vadd.f32 %v4309, %v4675
      %v4751 = vadd.f32 %v4313, %v4679
      %v4752 = vadd.f32 %v4315, %v4681
      %v4753 = vadd.f32 %v4317, %v4683
      %v4754 = vadd.f32 %v4319, %v4685
      %v4755 = vadd.f32 %v4323, %v4689
      %v4756 = vadd.f32 %v4325, %v4691
      %v4757 = vadd.f32 %v4327, %v4693
      %v4758 = vadd.f32 %v4329, %v4695
      %v4759 = vadd.f32 %v4333, %v4699
      %v4760 = vadd.f32 %v4335, %v4701
      %v4761 = vadd.f32 %v4337, %v4703
      %v4762 = vadd.f32 %v4339, %v4705
      %s4763 = scalar_lea.vmem %s3, 768
      %v4764 = vld [vmem:[%s4763] sm:$0xff]
      %v4765 = vld [vmem:[%s4763 + $0x8] sm:$0xff]
      %v4766 = vld [vmem:[%s4763 + $0x10] sm:$0xff]
      %v4767 = vld [vmem:[%s4763 + $0x18] sm:$0xff]
      %v4768 = vld [vmem:[%s4763 + $0x20] sm:$0xff]
      %v4769 = vld [vmem:[%s4763 + $0x28] sm:$0xff]
      %v4770 = vld [vmem:[%s4763 + $0x30] sm:$0xff]
      %v4771 = vld [vmem:[%s4763 + $0x38] sm:$0xff]
      %v4772 = vld [vmem:[%s4763 + $0x40] sm:$0xff]
      %v4773 = vld [vmem:[%s4763 + $0x48] sm:$0xff]
      %v4774 = vld [vmem:[%s4763 + $0x50] sm:$0xff]
      %v4775 = vld [vmem:[%s4763 + $0x58] sm:$0xff]
      %v4776 = vld [vmem:[%s4763 + $0x60] sm:$0xff]
      %v4777 = vld [vmem:[%s4763 + $0x68] sm:$0xff]
      %v4778 = vld [vmem:[%s4763 + $0x70] sm:$0xff]
      %v4779 = vld [vmem:[%s4763 + $0x78] sm:$0xff]
      %v4780 = vld [vmem:[%s4763 + $0x80] sm:$0xff]
      %v4781 = vld [vmem:[%s4763 + $0x88] sm:$0xff]
      %v4782 = vld [vmem:[%s4763 + $0x90] sm:$0xff]
      %v4783 = vld [vmem:[%s4763 + $0x98] sm:$0xff]
      %v4784 = vld [vmem:[%s4763 + $0xa0] sm:$0xff]
      %v4785 = vld [vmem:[%s4763 + $0xa8] sm:$0xff]
      %v4786 = vld [vmem:[%s4763 + $0xb0] sm:$0xff]
      %v4787 = vld [vmem:[%s4763 + $0xb8] sm:$0xff]
      %v4788 = vld [vmem:[%s4763 + $0xc0] sm:$0xff]
      %v4789 = vld [vmem:[%s4763 + $0xc8] sm:$0xff]
      %v4790 = vld [vmem:[%s4763 + $0xd0] sm:$0xff]
      %v4791 = vld [vmem:[%s4763 + $0xd8] sm:$0xff]
      %v4792 = vld [vmem:[%s4763 + $0xe0] sm:$0xff]
      %v4793 = vld [vmem:[%s4763 + $0xe8] sm:$0xff]
      %v4794 = vld [vmem:[%s4763 + $0xf0] sm:$0xff]
      %v4795 = vld [vmem:[%s4763 + $0xf8] sm:$0xff]
      %s4796 = scalar_lea.vmem %s3, 1024
      %v4797 = vld [vmem:[%s4796] sm:$0xff]
      %v4798 = vld [vmem:[%s4796 + $0x8] sm:$0xff]
      %v4799 = vld [vmem:[%s4796 + $0x10] sm:$0xff]
      %v4800 = vld [vmem:[%s4796 + $0x18] sm:$0xff]
      %v4801 = vld [vmem:[%s4796 + $0x20] sm:$0xff]
      %v4802 = vld [vmem:[%s4796 + $0x28] sm:$0xff]
      %v4803 = vld [vmem:[%s4796 + $0x30] sm:$0xff]
      %v4804 = vld [vmem:[%s4796 + $0x38] sm:$0xff]
      %v4805 = vld [vmem:[%s4796 + $0x40] sm:$0xff]
      %v4806 = vld [vmem:[%s4796 + $0x48] sm:$0xff]
      %v4807 = vld [vmem:[%s4796 + $0x50] sm:$0xff]
      %v4808 = vld [vmem:[%s4796 + $0x58] sm:$0xff]
      %v4809 = vld [vmem:[%s4796 + $0x60] sm:$0xff]
      %v4810 = vld [vmem:[%s4796 + $0x68] sm:$0xff]
      %v4811 = vld [vmem:[%s4796 + $0x70] sm:$0xff]
      %v4812 = vld [vmem:[%s4796 + $0x78] sm:$0xff]
      %v4813 = vld [vmem:[%s4796 + $0x80] sm:$0xff]
      %v4814 = vld [vmem:[%s4796 + $0x88] sm:$0xff]
      %v4815 = vld [vmem:[%s4796 + $0x90] sm:$0xff]
      %v4816 = vld [vmem:[%s4796 + $0x98] sm:$0xff]
      %v4817 = vld [vmem:[%s4796 + $0xa0] sm:$0xff]
      %v4818 = vld [vmem:[%s4796 + $0xa8] sm:$0xff]
      %v4819 = vld [vmem:[%s4796 + $0xb0] sm:$0xff]
      %v4820 = vld [vmem:[%s4796 + $0xb8] sm:$0xff]
      %v4821 = vld [vmem:[%s4796 + $0xc0] sm:$0xff]
      %v4822 = vld [vmem:[%s4796 + $0xc8] sm:$0xff]
      %v4823 = vld [vmem:[%s4796 + $0xd0] sm:$0xff]
      %v4824 = vld [vmem:[%s4796 + $0xd8] sm:$0xff]
      %v4825 = vld [vmem:[%s4796 + $0xe0] sm:$0xff]
      %v4826 = vld [vmem:[%s4796 + $0xe8] sm:$0xff]
      %v4827 = vld [vmem:[%s4796 + $0xf0] sm:$0xff]
      %v4828 = vld [vmem:[%s4796 + $0xf8] sm:$0xff]
      %v4861 = vunpack.c.l.b16 %v4797
      %v4862 = vunpack.c.h.b16 %v4797
      %v4863 = vunpack.c.l.b16 %v4798
      %v4864 = vunpack.c.h.b16 %v4798
      %v4865 = vunpack.c.l.b16 %v4799
      %v4866 = vunpack.c.h.b16 %v4799
      %v4867 = vunpack.c.l.b16 %v4800
      %v4868 = vunpack.c.h.b16 %v4800
      %v4869 = vunpack.c.l.b16 %v4801
      %v4870 = vunpack.c.h.b16 %v4801
      %v4871 = vunpack.c.l.b16 %v4802
      %v4872 = vunpack.c.h.b16 %v4802
      %v4873 = vunpack.c.l.b16 %v4803
      %v4874 = vunpack.c.h.b16 %v4803
      %v4875 = vunpack.c.l.b16 %v4804
      %v4876 = vunpack.c.h.b16 %v4804
      %v4877 = vunpack.c.l.b16 %v4805
      %v4878 = vunpack.c.h.b16 %v4805
      %v4879 = vunpack.c.l.b16 %v4806
      %v4880 = vunpack.c.h.b16 %v4806
      %v4881 = vunpack.c.l.b16 %v4807
      %v4882 = vunpack.c.h.b16 %v4807
      %v4883 = vunpack.c.l.b16 %v4808
      %v4884 = vunpack.c.h.b16 %v4808
      %v4885 = vunpack.c.l.b16 %v4809
      %v4886 = vunpack.c.h.b16 %v4809
      %v4887 = vunpack.c.l.b16 %v4810
      %v4888 = vunpack.c.h.b16 %v4810
      %v4889 = vunpack.c.l.b16 %v4811
      %v4890 = vunpack.c.h.b16 %v4811
      %v4891 = vunpack.c.l.b16 %v4812
      %v4892 = vunpack.c.h.b16 %v4812
      %v4893 = vunpack.c.l.b16 %v4813
      %v4894 = vunpack.c.h.b16 %v4813
      %v4895 = vunpack.c.l.b16 %v4814
      %v4896 = vunpack.c.h.b16 %v4814
      %v4897 = vunpack.c.l.b16 %v4815
      %v4898 = vunpack.c.h.b16 %v4815
      %v4899 = vunpack.c.l.b16 %v4816
      %v4900 = vunpack.c.h.b16 %v4816
      %v4901 = vunpack.c.l.b16 %v4817
      %v4902 = vunpack.c.h.b16 %v4817
      %v4903 = vunpack.c.l.b16 %v4818
      %v4904 = vunpack.c.h.b16 %v4818
      %v4905 = vunpack.c.l.b16 %v4819
      %v4906 = vunpack.c.h.b16 %v4819
      %v4907 = vunpack.c.l.b16 %v4820
      %v4908 = vunpack.c.h.b16 %v4820
      %v4909 = vunpack.c.l.b16 %v4821
      %v4910 = vunpack.c.h.b16 %v4821
      %v4911 = vunpack.c.l.b16 %v4822
      %v4912 = vunpack.c.h.b16 %v4822
      %v4913 = vunpack.c.l.b16 %v4823
      %v4914 = vunpack.c.h.b16 %v4823
      %v4915 = vunpack.c.l.b16 %v4824
      %v4916 = vunpack.c.h.b16 %v4824
      %v4917 = vunpack.c.l.b16 %v4825
      %v4918 = vunpack.c.h.b16 %v4825
      %v4919 = vunpack.c.l.b16 %v4826
      %v4920 = vunpack.c.h.b16 %v4826
      %v4921 = vunpack.c.l.b16 %v4827
      %v4922 = vunpack.c.h.b16 %v4827
      %v4923 = vunpack.c.l.b16 %v4828
      %v4924 = vunpack.c.h.b16 %v4828
      %v4925 = vpack.c.b16 %v4863, %v4861
      %v4926 = vpack.c.b16 %v4864, %v4862
      %v4927 = vpack.c.b16 %v4867, %v4865
      %v4928 = vpack.c.b16 %v4868, %v4866
      %v4929 = vpack.c.b16 %v4871, %v4869
      %v4930 = vpack.c.b16 %v4872, %v4870
      %v4931 = vpack.c.b16 %v4875, %v4873
      %v4932 = vpack.c.b16 %v4876, %v4874
      %v4933 = vpack.c.b16 %v4879, %v4877
      %v4934 = vpack.c.b16 %v4880, %v4878
      %v4935 = vpack.c.b16 %v4883, %v4881
      %v4936 = vpack.c.b16 %v4884, %v4882
      %v4937 = vpack.c.b16 %v4887, %v4885
      %v4938 = vpack.c.b16 %v4888, %v4886
      %v4939 = vpack.c.b16 %v4891, %v4889
      %v4940 = vpack.c.b16 %v4892, %v4890
      %v4941 = vpack.c.b16 %v4895, %v4893
      %v4942 = vpack.c.b16 %v4896, %v4894
      %v4943 = vpack.c.b16 %v4899, %v4897
      %v4944 = vpack.c.b16 %v4900, %v4898
      %v4945 = vpack.c.b16 %v4903, %v4901
      %v4946 = vpack.c.b16 %v4904, %v4902
      %v4947 = vpack.c.b16 %v4907, %v4905
      %v4948 = vpack.c.b16 %v4908, %v4906
      %v4949 = vpack.c.b16 %v4911, %v4909
      %v4950 = vpack.c.b16 %v4912, %v4910
      %v4951 = vpack.c.b16 %v4915, %v4913
      %v4952 = vpack.c.b16 %v4916, %v4914
      %v4953 = vpack.c.b16 %v4919, %v4917
      %v4954 = vpack.c.b16 %v4920, %v4918
      %v4955 = vpack.c.b16 %v4923, %v4921
      %v4956 = vpack.c.b16 %v4924, %v4922
      %4989 = vmatprep.subr.bf16.mxu0 %v4926
      %4990 = vmatpush1.bf16.msra.mxu0 %v4925
      %4991 = vmatprep.subr.bf16.mxu0 %v4928
      %4992 = vmatpush1.bf16.msra.mxu0 %v4927
      %4993 = vmatprep.subr.bf16.mxu0 %v4930
      %4994 = vmatpush1.bf16.msra.mxu0 %v4929
      %4995 = vmatprep.subr.bf16.mxu0 %v4932
      %4996 = vmatpush1.bf16.msra.mxu0 %v4931
      %4997 = vmatprep.subr.bf16.mxu0 %v4934
      %4998 = vmatpush1.bf16.msra.mxu0 %v4933
      %4999 = vmatprep.subr.bf16.mxu0 %v4936
      %5000 = vmatpush1.bf16.msra.mxu0 %v4935
      %5001 = vmatprep.subr.bf16.mxu0 %v4938
      %5002 = vmatpush1.bf16.msra.mxu0 %v4937
      %5003 = vmatprep.subr.bf16.mxu0 %v4940
      %5004 = vmatpush1.bf16.msra.mxu0 %v4939
      %5005 = vmatprep.subr.bf16.mxu0 %v4942
      %5006 = vmatpush1.bf16.msra.mxu0 %v4941
      %5007 = vmatprep.subr.bf16.mxu0 %v4944
      %5008 = vmatpush1.bf16.msra.mxu0 %v4943
      %5009 = vmatprep.subr.bf16.mxu0 %v4946
      %5010 = vmatpush1.bf16.msra.mxu0 %v4945
      %5011 = vmatprep.subr.bf16.mxu0 %v4948
      %5012 = vmatpush1.bf16.msra.mxu0 %v4947
      %5013 = vmatprep.subr.bf16.mxu0 %v4950
      %5014 = vmatpush1.bf16.msra.mxu0 %v4949
      %5015 = vmatprep.subr.bf16.mxu0 %v4952
      %5016 = vmatpush1.bf16.msra.mxu0 %v4951
      %5017 = vmatprep.subr.bf16.mxu0 %v4954
      %5018 = vmatpush1.bf16.msra.mxu0 %v4953
      %5019 = vmatprep.subr.bf16.mxu0 %v4956
      %5020 = vmatpush1.bf16.msra.mxu0 %v4955
      %5021 = vmatprep.mubr.bf16.mxu0 %v3547
      %5022 = vmatmul.mubr.bf16.gmra.mrb[0].mxu0 %v3546
      %v5023 = vpop.f32.mrb[0].mxu0
      %v5024 = vadd.f32 0.0, %v5023
      %v5025 = vpop.f32.mrb[0].mxu0
      %v5026 = vadd.f32 0.0, %v5025
      %v5027 = vpop.f32.mrb[0].mxu0
      %v5028 = vadd.f32 0.0, %v5027
      %v5029 = vpop.f32.mrb[0].mxu0
      %v5030 = vadd.f32 0.0, %v5029
      %5031 = vmatprep.mubr.bf16.mxu0 %v3549
      %5032 = vmatmul.mubr.bf16.gmra.mrb[0].mxu0 %v3548
      %v5033 = vpop.f32.mrb[0].mxu0
      %v5034 = vadd.f32 0.0, %v5033
      %v5035 = vpop.f32.mrb[0].mxu0
      %v5036 = vadd.f32 0.0, %v5035
      %v5037 = vpop.f32.mrb[0].mxu0
      %v5038 = vadd.f32 0.0, %v5037
      %v5039 = vpop.f32.mrb[0].mxu0
      %v5040 = vadd.f32 0.0, %v5039
      %5041 = vmatprep.mubr.bf16.mxu0 %v3551
      %5042 = vmatmul.mubr.bf16.gmra.mrb[0].mxu0 %v3550
      %v5043 = vpop.f32.mrb[0].mxu0
      %v5044 = vadd.f32 0.0, %v5043
      %v5045 = vpop.f32.mrb[0].mxu0
      %v5046 = vadd.f32 0.0, %v5045
      %v5047 = vpop.f32.mrb[0].mxu0
      %v5048 = vadd.f32 0.0, %v5047
      %v5049 = vpop.f32.mrb[0].mxu0
      %v5050 = vadd.f32 0.0, %v5049
      %5051 = vmatprep.mubr.bf16.mxu0 %v3553
      %5052 = vmatmul.mubr.bf16.gmra.mrb[0].mxu0 %v3552
      %v5053 = vpop.f32.mrb[0].mxu0
      %v5054 = vadd.f32 0.0, %v5053
      %v5055 = vpop.f32.mrb[0].mxu0
      %v5056 = vadd.f32 0.0, %v5055
      %v5057 = vpop.f32.mrb[0].mxu0
      %v5058 = vadd.f32 0.0, %v5057
      %v5059 = vpop.f32.mrb[0].mxu0
      %v5060 = vadd.f32 0.0, %v5059
      %5061 = vmatprep.mubr.bf16.mxu0 %v3555
      %5062 = vmatmul.mubr.bf16.gmra.mrb[0].mxu0 %v3554
      %v5063 = vpop.f32.mrb[0].mxu0
      %v5064 = vadd.f32 0.0, %v5063
      %v5065 = vpop.f32.mrb[0].mxu0
      %v5066 = vadd.f32 0.0, %v5065
      %v5067 = vpop.f32.mrb[0].mxu0
      %v5068 = vadd.f32 0.0, %v5067
      %v5069 = vpop.f32.mrb[0].mxu0
      %v5070 = vadd.f32 0.0, %v5069
      %5071 = vmatprep.mubr.bf16.mxu0 %v3557
      %5072 = vmatmul.mubr.bf16.gmra.mrb[0].mxu0 %v3556
      %v5073 = vpop.f32.mrb[0].mxu0
      %v5074 = vadd.f32 0.0, %v5073
      %v5075 = vpop.f32.mrb[0].mxu0
      %v5076 = vadd.f32 0.0, %v5075
      %v5077 = vpop.f32.mrb[0].mxu0
      %v5078 = vadd.f32 0.0, %v5077
      %v5079 = vpop.f32.mrb[0].mxu0
      %v5080 = vadd.f32 0.0, %v5079
      %5081 = vmatprep.mubr.bf16.mxu0 %v3559
      %5082 = vmatmul.mubr.bf16.gmra.mrb[0].mxu0 %v3558
      %v5083 = vpop.f32.mrb[0].mxu0
      %v5084 = vadd.f32 0.0, %v5083
      %v5085 = vpop.f32.mrb[0].mxu0
      %v5086 = vadd.f32 0.0, %v5085
      %v5087 = vpop.f32.mrb[0].mxu0
      %v5088 = vadd.f32 0.0, %v5087
      %v5089 = vpop.f32.mrb[0].mxu0
      %v5090 = vadd.f32 0.0, %v5089
      %5091 = vmatprep.mubr.bf16.mxu0 %v3561
      %5092 = vmatmul.mubr.bf16.gmra.mrb[0].mxu0 %v3560
      %v5093 = vpop.f32.mrb[0].mxu0
      %v5094 = vadd.f32 0.0, %v5093
      %v5095 = vpop.f32.mrb[0].mxu0
      %v5096 = vadd.f32 0.0, %v5095
      %v5097 = vpop.f32.mrb[0].mxu0
      %v5098 = vadd.f32 0.0, %v5097
      %v5099 = vpop.f32.mrb[0].mxu0
      %v5100 = vadd.f32 0.0, %v5099
      %5101 = vmatprep.mubr.bf16.mxu0 %v3563
      %5102 = vmatmul.mubr.bf16.gmra.mrb[0].mxu0 %v3562
      %v5103 = vpop.f32.mrb[0].mxu0
      %v5104 = vadd.f32 0.0, %v5103
      %v5105 = vpop.f32.mrb[0].mxu0
      %v5106 = vadd.f32 0.0, %v5105
      %v5107 = vpop.f32.mrb[0].mxu0
      %v5108 = vadd.f32 0.0, %v5107
      %v5109 = vpop.f32.mrb[0].mxu0
      %v5110 = vadd.f32 0.0, %v5109
      %5111 = vmatprep.mubr.bf16.mxu0 %v3565
      %5112 = vmatmul.mubr.bf16.gmra.mrb[0].mxu0 %v3564
      %v5113 = vpop.f32.mrb[0].mxu0
      %v5114 = vadd.f32 0.0, %v5113
      %v5115 = vpop.f32.mrb[0].mxu0
      %v5116 = vadd.f32 0.0, %v5115
      %v5117 = vpop.f32.mrb[0].mxu0
      %v5118 = vadd.f32 0.0, %v5117
      %v5119 = vpop.f32.mrb[0].mxu0
      %v5120 = vadd.f32 0.0, %v5119
      %5121 = vmatprep.mubr.bf16.mxu0 %v3567
      %5122 = vmatmul.mubr.bf16.gmra.mrb[0].mxu0 %v3566
      %v5123 = vpop.f32.mrb[0].mxu0
      %v5124 = vadd.f32 0.0, %v5123
      %v5125 = vpop.f32.mrb[0].mxu0
      %v5126 = vadd.f32 0.0, %v5125
      %v5127 = vpop.f32.mrb[0].mxu0
      %v5128 = vadd.f32 0.0, %v5127
      %v5129 = vpop.f32.mrb[0].mxu0
      %v5130 = vadd.f32 0.0, %v5129
      %5131 = vmatprep.mubr.bf16.mxu0 %v3569
      %5132 = vmatmul.mubr.bf16.gmra.mrb[0].mxu0 %v3568
      %v5133 = vpop.f32.mrb[0].mxu0
      %v5134 = vadd.f32 0.0, %v5133
      %v5135 = vpop.f32.mrb[0].mxu0
      %v5136 = vadd.f32 0.0, %v5135
      %v5137 = vpop.f32.mrb[0].mxu0
      %v5138 = vadd.f32 0.0, %v5137
      %v5139 = vpop.f32.mrb[0].mxu0
      %v5140 = vadd.f32 0.0, %v5139
      %5141 = vmatprep.mubr.bf16.mxu0 %v3571
      %5142 = vmatmul.mubr.bf16.gmra.mrb[0].mxu0 %v3570
      %v5143 = vpop.f32.mrb[0].mxu0
      %v5144 = vadd.f32 0.0, %v5143
      %v5145 = vpop.f32.mrb[0].mxu0
      %v5146 = vadd.f32 0.0, %v5145
      %v5147 = vpop.f32.mrb[0].mxu0
      %v5148 = vadd.f32 0.0, %v5147
      %v5149 = vpop.f32.mrb[0].mxu0
      %v5150 = vadd.f32 0.0, %v5149
      %5151 = vmatprep.mubr.bf16.mxu0 %v3573
      %5152 = vmatmul.mubr.bf16.gmra.mrb[0].mxu0 %v3572
      %v5153 = vpop.f32.mrb[0].mxu0
      %v5154 = vadd.f32 0.0, %v5153
      %v5155 = vpop.f32.mrb[0].mxu0
      %v5156 = vadd.f32 0.0, %v5155
      %v5157 = vpop.f32.mrb[0].mxu0
      %v5158 = vadd.f32 0.0, %v5157
      %v5159 = vpop.f32.mrb[0].mxu0
      %v5160 = vadd.f32 0.0, %v5159
      %5161 = vdwg.mxu0
      %v5194 = vunpack.c.l.b16 %v4764
      %v5195 = vunpack.c.h.b16 %v4764
      %v5196 = vunpack.c.l.b16 %v4765
      %v5197 = vunpack.c.h.b16 %v4765
      %v5198 = vunpack.c.l.b16 %v4766
      %v5199 = vunpack.c.h.b16 %v4766
      %v5200 = vunpack.c.l.b16 %v4767
      %v5201 = vunpack.c.h.b16 %v4767
      %v5202 = vunpack.c.l.b16 %v4768
      %v5203 = vunpack.c.h.b16 %v4768
      %v5204 = vunpack.c.l.b16 %v4769
      %v5205 = vunpack.c.h.b16 %v4769
      %v5206 = vunpack.c.l.b16 %v4770
      %v5207 = vunpack.c.h.b16 %v4770
      %v5208 = vunpack.c.l.b16 %v4771
      %v5209 = vunpack.c.h.b16 %v4771
      %v5210 = vunpack.c.l.b16 %v4772
      %v5211 = vunpack.c.h.b16 %v4772
      %v5212 = vunpack.c.l.b16 %v4773
      %v5213 = vunpack.c.h.b16 %v4773
      %v5214 = vunpack.c.l.b16 %v4774
      %v5215 = vunpack.c.h.b16 %v4774
      %v5216 = vunpack.c.l.b16 %v4775
      %v5217 = vunpack.c.h.b16 %v4775
      %v5218 = vunpack.c.l.b16 %v4776
      %v5219 = vunpack.c.h.b16 %v4776
      %v5220 = vunpack.c.l.b16 %v4777
      %v5221 = vunpack.c.h.b16 %v4777
      %v5222 = vunpack.c.l.b16 %v4778
      %v5223 = vunpack.c.h.b16 %v4778
      %v5224 = vunpack.c.l.b16 %v4779
      %v5225 = vunpack.c.h.b16 %v4779
      %v5226 = vunpack.c.l.b16 %v4780
      %v5227 = vunpack.c.h.b16 %v4780
      %v5228 = vunpack.c.l.b16 %v4781
      %v5229 = vunpack.c.h.b16 %v4781
      %v5230 = vunpack.c.l.b16 %v4782
      %v5231 = vunpack.c.h.b16 %v4782
      %v5232 = vunpack.c.l.b16 %v4783
      %v5233 = vunpack.c.h.b16 %v4783
      %v5234 = vunpack.c.l.b16 %v4784
      %v5235 = vunpack.c.h.b16 %v4784
      %v5236 = vunpack.c.l.b16 %v4785
      %v5237 = vunpack.c.h.b16 %v4785
      %v5238 = vunpack.c.l.b16 %v4786
      %v5239 = vunpack.c.h.b16 %v4786
      %v5240 = vunpack.c.l.b16 %v4787
      %v5241 = vunpack.c.h.b16 %v4787
      %v5242 = vunpack.c.l.b16 %v4788
      %v5243 = vunpack.c.h.b16 %v4788
      %v5244 = vunpack.c.l.b16 %v4789
      %v5245 = vunpack.c.h.b16 %v4789
      %v5246 = vunpack.c.l.b16 %v4790
      %v5247 = vunpack.c.h.b16 %v4790
      %v5248 = vunpack.c.l.b16 %v4791
      %v5249 = vunpack.c.h.b16 %v4791
      %v5250 = vunpack.c.l.b16 %v4792
      %v5251 = vunpack.c.h.b16 %v4792
      %v5252 = vunpack.c.l.b16 %v4793
      %v5253 = vunpack.c.h.b16 %v4793
      %v5254 = vunpack.c.l.b16 %v4794
      %v5255 = vunpack.c.h.b16 %v4794
      %v5256 = vunpack.c.l.b16 %v4795
      %v5257 = vunpack.c.h.b16 %v4795
      %v5258 = vpack.c.b16 %v5196, %v5194
      %v5259 = vpack.c.b16 %v5197, %v5195
      %v5260 = vpack.c.b16 %v5200, %v5198
      %v5261 = vpack.c.b16 %v5201, %v5199
      %v5262 = vpack.c.b16 %v5204, %v5202
      %v5263 = vpack.c.b16 %v5205, %v5203
      %v5264 = vpack.c.b16 %v5208, %v5206
      %v5265 = vpack.c.b16 %v5209, %v5207
      %v5266 = vpack.c.b16 %v5212, %v5210
      %v5267 = vpack.c.b16 %v5213, %v5211
      %v5268 = vpack.c.b16 %v5216, %v5214
      %v5269 = vpack.c.b16 %v5217, %v5215
      %v5270 = vpack.c.b16 %v5220, %v5218
      %v5271 = vpack.c.b16 %v5221, %v5219
      %v5272 = vpack.c.b16 %v5224, %v5222
      %v5273 = vpack.c.b16 %v5225, %v5223
      %v5274 = vpack.c.b16 %v5228, %v5226
      %v5275 = vpack.c.b16 %v5229, %v5227
      %v5276 = vpack.c.b16 %v5232, %v5230
      %v5277 = vpack.c.b16 %v5233, %v5231
      %v5278 = vpack.c.b16 %v5236, %v5234
      %v5279 = vpack.c.b16 %v5237, %v5235
      %v5280 = vpack.c.b16 %v5240, %v5238
      %v5281 = vpack.c.b16 %v5241, %v5239
      %v5282 = vpack.c.b16 %v5244, %v5242
      %v5283 = vpack.c.b16 %v5245, %v5243
      %v5284 = vpack.c.b16 %v5248, %v5246
      %v5285 = vpack.c.b16 %v5249, %v5247
      %v5286 = vpack.c.b16 %v5252, %v5250
      %v5287 = vpack.c.b16 %v5253, %v5251
      %v5288 = vpack.c.b16 %v5256, %v5254
      %v5289 = vpack.c.b16 %v5257, %v5255
      %5322 = vmatprep.subr.bf16.mxu0 %v5259
      %5323 = vmatpush1.bf16.msra.mxu0 %v5258
      %5324 = vmatprep.subr.bf16.mxu0 %v5261
      %5325 = vmatpush1.bf16.msra.mxu0 %v5260
      %5326 = vmatprep.subr.bf16.mxu0 %v5263
      %5327 = vmatpush1.bf16.msra.mxu0 %v5262
      %5328 = vmatprep.subr.bf16.mxu0 %v5265
      %5329 = vmatpush1.bf16.msra.mxu0 %v5264
      %5330 = vmatprep.subr.bf16.mxu0 %v5267
      %5331 = vmatpush1.bf16.msra.mxu0 %v5266
      %5332 = vmatprep.subr.bf16.mxu0 %v5269
      %5333 = vmatpush1.bf16.msra.mxu0 %v5268
      %5334 = vmatprep.subr.bf16.mxu0 %v5271
      %5335 = vmatpush1.bf16.msra.mxu0 %v5270
      %5336 = vmatprep.subr.bf16.mxu0 %v5273
      %5337 = vmatpush1.bf16.msra.mxu0 %v5272
      %5338 = vmatprep.subr.bf16.mxu0 %v5275
      %5339 = vmatpush1.bf16.msra.mxu0 %v5274
      %5340 = vmatprep.subr.bf16.mxu0 %v5277
      %5341 = vmatpush1.bf16.msra.mxu0 %v5276
      %5342 = vmatprep.subr.bf16.mxu0 %v5279
      %5343 = vmatpush1.bf16.msra.mxu0 %v5278
      %5344 = vmatprep.subr.bf16.mxu0 %v5281
      %5345 = vmatpush1.bf16.msra.mxu0 %v5280
      %5346 = vmatprep.subr.bf16.mxu0 %v5283
      %5347 = vmatpush1.bf16.msra.mxu0 %v5282
      %5348 = vmatprep.subr.bf16.mxu0 %v5285
      %5349 = vmatpush1.bf16.msra.mxu0 %v5284
      %5350 = vmatprep.subr.bf16.mxu0 %v5287
      %5351 = vmatpush1.bf16.msra.mxu0 %v5286
      %5352 = vmatprep.subr.bf16.mxu0 %v5289
      %5353 = vmatpush1.bf16.msra.mxu0 %v5288
      %5354 = vmatprep.mubr.bf16.mxu0 %v3579
      %5355 = vmatmul.mubr.bf16.gmra.mrb[0].mxu0 %v3578
      %v5356 = vpop.f32.mrb[0].mxu0
      %v5357 = vadd.f32 %v5024, %v5356
      %v5358 = vpop.f32.mrb[0].mxu0
      %v5359 = vadd.f32 %v5026, %v5358
      %v5360 = vpop.f32.mrb[0].mxu0
      %v5361 = vadd.f32 %v5028, %v5360
      %v5362 = vpop.f32.mrb[0].mxu0
      %v5363 = vadd.f32 %v5030, %v5362
      %5364 = vmatprep.mubr.bf16.mxu0 %v3581
      %5365 = vmatmul.mubr.bf16.gmra.mrb[0].mxu0 %v3580
      %v5366 = vpop.f32.mrb[0].mxu0
      %v5367 = vadd.f32 %v5034, %v5366
      %v5368 = vpop.f32.mrb[0].mxu0
      %v5369 = vadd.f32 %v5036, %v5368
      %v5370 = vpop.f32.mrb[0].mxu0
      %v5371 = vadd.f32 %v5038, %v5370
      %v5372 = vpop.f32.mrb[0].mxu0
      %v5373 = vadd.f32 %v5040, %v5372
      %5374 = vmatprep.mubr.bf16.mxu0 %v3583
      %5375 = vmatmul.mubr.bf16.gmra.mrb[0].mxu0 %v3582
      %v5376 = vpop.f32.mrb[0].mxu0
      %v5377 = vadd.f32 %v5044, %v5376
      %v5378 = vpop.f32.mrb[0].mxu0
      %v5379 = vadd.f32 %v5046, %v5378
      %v5380 = vpop.f32.mrb[0].mxu0
      %v5381 = vadd.f32 %v5048, %v5380
      %v5382 = vpop.f32.mrb[0].mxu0
      %v5383 = vadd.f32 %v5050, %v5382
      %5384 = vmatprep.mubr.bf16.mxu0 %v3585
      %5385 = vmatmul.mubr.bf16.gmra.mrb[0].mxu0 %v3584
      %v5386 = vpop.f32.mrb[0].mxu0
      %v5387 = vadd.f32 %v5054, %v5386
      %v5388 = vpop.f32.mrb[0].mxu0
      %v5389 = vadd.f32 %v5056, %v5388
      %v5390 = vpop.f32.mrb[0].mxu0
      %v5391 = vadd.f32 %v5058, %v5390
      %v5392 = vpop.f32.mrb[0].mxu0
      %v5393 = vadd.f32 %v5060, %v5392
      %5394 = vmatprep.mubr.bf16.mxu0 %v3587
      %5395 = vmatmul.mubr.bf16.gmra.mrb[0].mxu0 %v3586
      %v5396 = vpop.f32.mrb[0].mxu0
      %v5397 = vadd.f32 %v5064, %v5396
      %v5398 = vpop.f32.mrb[0].mxu0
      %v5399 = vadd.f32 %v5066, %v5398
      %v5400 = vpop.f32.mrb[0].mxu0
      %v5401 = vadd.f32 %v5068, %v5400
      %v5402 = vpop.f32.mrb[0].mxu0
      %v5403 = vadd.f32 %v5070, %v5402
      %5404 = vmatprep.mubr.bf16.mxu0 %v3589
      %5405 = vmatmul.mubr.bf16.gmra.mrb[0].mxu0 %v3588
      %v5406 = vpop.f32.mrb[0].mxu0
      %v5407 = vadd.f32 %v5074, %v5406
      %v5408 = vpop.f32.mrb[0].mxu0
      %v5409 = vadd.f32 %v5076, %v5408
      %v5410 = vpop.f32.mrb[0].mxu0
      %v5411 = vadd.f32 %v5078, %v5410
      %v5412 = vpop.f32.mrb[0].mxu0
      %v5413 = vadd.f32 %v5080, %v5412
      %5414 = vmatprep.mubr.bf16.mxu0 %v3591
      %5415 = vmatmul.mubr.bf16.gmra.mrb[0].mxu0 %v3590
      %v5416 = vpop.f32.mrb[0].mxu0
      %v5417 = vadd.f32 %v5084, %v5416
      %v5418 = vpop.f32.mrb[0].mxu0
      %v5419 = vadd.f32 %v5086, %v5418
      %v5420 = vpop.f32.mrb[0].mxu0
      %v5421 = vadd.f32 %v5088, %v5420
      %v5422 = vpop.f32.mrb[0].mxu0
      %v5423 = vadd.f32 %v5090, %v5422
      %5424 = vmatprep.mubr.bf16.mxu0 %v3593
      %5425 = vmatmul.mubr.bf16.gmra.mrb[0].mxu0 %v3592
      %v5426 = vpop.f32.mrb[0].mxu0
      %v5427 = vadd.f32 %v5094, %v5426
      %v5428 = vpop.f32.mrb[0].mxu0
      %v5429 = vadd.f32 %v5096, %v5428
      %v5430 = vpop.f32.mrb[0].mxu0
      %v5431 = vadd.f32 %v5098, %v5430
      %v5432 = vpop.f32.mrb[0].mxu0
      %v5433 = vadd.f32 %v5100, %v5432
      %5434 = vmatprep.mubr.bf16.mxu0 %v3595
      %5435 = vmatmul.mubr.bf16.gmra.mrb[0].mxu0 %v3594
      %v5436 = vpop.f32.mrb[0].mxu0
      %v5437 = vadd.f32 %v5104, %v5436
      %v5438 = vpop.f32.mrb[0].mxu0
      %v5439 = vadd.f32 %v5106, %v5438
      %v5440 = vpop.f32.mrb[0].mxu0
      %v5441 = vadd.f32 %v5108, %v5440
      %v5442 = vpop.f32.mrb[0].mxu0
      %v5443 = vadd.f32 %v5110, %v5442
      %5444 = vmatprep.mubr.bf16.mxu0 %v3597
      %5445 = vmatmul.mubr.bf16.gmra.mrb[0].mxu0 %v3596
      %v5446 = vpop.f32.mrb[0].mxu0
      %v5447 = vadd.f32 %v5114, %v5446
      %v5448 = vpop.f32.mrb[0].mxu0
      %v5449 = vadd.f32 %v5116, %v5448
      %v5450 = vpop.f32.mrb[0].mxu0
      %v5451 = vadd.f32 %v5118, %v5450
      %v5452 = vpop.f32.mrb[0].mxu0
      %v5453 = vadd.f32 %v5120, %v5452
      %5454 = vmatprep.mubr.bf16.mxu0 %v3599
      %5455 = vmatmul.mubr.bf16.gmra.mrb[0].mxu0 %v3598
      %v5456 = vpop.f32.mrb[0].mxu0
      %v5457 = vadd.f32 %v5124, %v5456
      %v5458 = vpop.f32.mrb[0].mxu0
      %v5459 = vadd.f32 %v5126, %v5458
      %v5460 = vpop.f32.mrb[0].mxu0
      %v5461 = vadd.f32 %v5128, %v5460
      %v5462 = vpop.f32.mrb[0].mxu0
      %v5463 = vadd.f32 %v5130, %v5462
      %5464 = vmatprep.mubr.bf16.mxu0 %v3601
      %5465 = vmatmul.mubr.bf16.gmra.mrb[0].mxu0 %v3600
      %v5466 = vpop.f32.mrb[0].mxu0
      %v5467 = vadd.f32 %v5134, %v5466
      %v5468 = vpop.f32.mrb[0].mxu0
      %v5469 = vadd.f32 %v5136, %v5468
      %v5470 = vpop.f32.mrb[0].mxu0
      %v5471 = vadd.f32 %v5138, %v5470
      %v5472 = vpop.f32.mrb[0].mxu0
      %v5473 = vadd.f32 %v5140, %v5472
      %5474 = vmatprep.mubr.bf16.mxu0 %v3603
      %5475 = vmatmul.mubr.bf16.gmra.mrb[0].mxu0 %v3602
      %v5476 = vpop.f32.mrb[0].mxu0
      %v5477 = vadd.f32 %v5144, %v5476
      %v5478 = vpop.f32.mrb[0].mxu0
      %v5479 = vadd.f32 %v5146, %v5478
      %v5480 = vpop.f32.mrb[0].mxu0
      %v5481 = vadd.f32 %v5148, %v5480
      %v5482 = vpop.f32.mrb[0].mxu0
      %v5483 = vadd.f32 %v5150, %v5482
      %5484 = vmatprep.mubr.bf16.mxu0 %v3605
      %5485 = vmatmul.mubr.bf16.gmra.mrb[0].mxu0 %v3604
      %v5486 = vpop.f32.mrb[0].mxu0
      %v5487 = vadd.f32 %v5154, %v5486
      %v5488 = vpop.f32.mrb[0].mxu0
      %v5489 = vadd.f32 %v5156, %v5488
      %v5490 = vpop.f32.mrb[0].mxu0
      %v5491 = vadd.f32 %v5158, %v5490
      %v5492 = vpop.f32.mrb[0].mxu0
      %v5493 = vadd.f32 %v5160, %v5492
      %5494 = vdwg.mxu0
      %s5495 = scalar_lea.vmem %s3, 1280
      %v5496 = vld [vmem:[%s5495] sm:$0xff]
      %v5497 = vld [vmem:[%s5495 + $0x8] sm:$0xff]
      %v5498 = vld [vmem:[%s5495 + $0x10] sm:$0xff]
      %v5499 = vld [vmem:[%s5495 + $0x18] sm:$0xff]
      %v5500 = vld [vmem:[%s5495 + $0x20] sm:$0xff]
      %v5501 = vld [vmem:[%s5495 + $0x28] sm:$0xff]
      %v5502 = vld [vmem:[%s5495 + $0x30] sm:$0xff]
      %v5503 = vld [vmem:[%s5495 + $0x38] sm:$0xff]
      %v5504 = vld [vmem:[%s5495 + $0x40] sm:$0xff]
      %v5505 = vld [vmem:[%s5495 + $0x48] sm:$0xff]
      %v5506 = vld [vmem:[%s5495 + $0x50] sm:$0xff]
      %v5507 = vld [vmem:[%s5495 + $0x58] sm:$0xff]
      %v5508 = vld [vmem:[%s5495 + $0x60] sm:$0xff]
      %v5509 = vld [vmem:[%s5495 + $0x68] sm:$0xff]
      %v5510 = vld [vmem:[%s5495 + $0x70] sm:$0xff]
      %v5511 = vld [vmem:[%s5495 + $0x78] sm:$0xff]
      %v5512 = vld [vmem:[%s5495 + $0x80] sm:$0xff]
      %v5513 = vld [vmem:[%s5495 + $0x88] sm:$0xff]
      %v5514 = vld [vmem:[%s5495 + $0x90] sm:$0xff]
      %v5515 = vld [vmem:[%s5495 + $0x98] sm:$0xff]
      %v5516 = vld [vmem:[%s5495 + $0xa0] sm:$0xff]
      %v5517 = vld [vmem:[%s5495 + $0xa8] sm:$0xff]
      %v5518 = vld [vmem:[%s5495 + $0xb0] sm:$0xff]
      %v5519 = vld [vmem:[%s5495 + $0xb8] sm:$0xff]
      %v5520 = vld [vmem:[%s5495 + $0xc0] sm:$0xff]
      %v5521 = vld [vmem:[%s5495 + $0xc8] sm:$0xff]
      %v5522 = vld [vmem:[%s5495 + $0xd0] sm:$0xff]
      %v5523 = vld [vmem:[%s5495 + $0xd8] sm:$0xff]
      %v5524 = vld [vmem:[%s5495 + $0xe0] sm:$0xff]
      %v5525 = vld [vmem:[%s5495 + $0xe8] sm:$0xff]
      %v5526 = vld [vmem:[%s5495 + $0xf0] sm:$0xff]
      %v5527 = vld [vmem:[%s5495 + $0xf8] sm:$0xff]
      %v5560 = vunpack.c.l.b16 %v5496
      %v5561 = vunpack.c.h.b16 %v5496
      %v5562 = vunpack.c.l.b16 %v5497
      %v5563 = vunpack.c.h.b16 %v5497
      %v5564 = vunpack.c.l.b16 %v5498
      %v5565 = vunpack.c.h.b16 %v5498
      %v5566 = vunpack.c.l.b16 %v5499
      %v5567 = vunpack.c.h.b16 %v5499
      %v5568 = vunpack.c.l.b16 %v5500
      %v5569 = vunpack.c.h.b16 %v5500
      %v5570 = vunpack.c.l.b16 %v5501
      %v5571 = vunpack.c.h.b16 %v5501
      %v5572 = vunpack.c.l.b16 %v5502
      %v5573 = vunpack.c.h.b16 %v5502
      %v5574 = vunpack.c.l.b16 %v5503
      %v5575 = vunpack.c.h.b16 %v5503
      %v5576 = vunpack.c.l.b16 %v5504
      %v5577 = vunpack.c.h.b16 %v5504
      %v5578 = vunpack.c.l.b16 %v5505
      %v5579 = vunpack.c.h.b16 %v5505
      %v5580 = vunpack.c.l.b16 %v5506
      %v5581 = vunpack.c.h.b16 %v5506
      %v5582 = vunpack.c.l.b16 %v5507
      %v5583 = vunpack.c.h.b16 %v5507
      %v5584 = vunpack.c.l.b16 %v5508
      %v5585 = vunpack.c.h.b16 %v5508
      %v5586 = vunpack.c.l.b16 %v5509
      %v5587 = vunpack.c.h.b16 %v5509
      %v5588 = vunpack.c.l.b16 %v5510
      %v5589 = vunpack.c.h.b16 %v5510
      %v5590 = vunpack.c.l.b16 %v5511
      %v5591 = vunpack.c.h.b16 %v5511
      %v5592 = vunpack.c.l.b16 %v5512
      %v5593 = vunpack.c.h.b16 %v5512
      %v5594 = vunpack.c.l.b16 %v5513
      %v5595 = vunpack.c.h.b16 %v5513
      %v5596 = vunpack.c.l.b16 %v5514
      %v5597 = vunpack.c.h.b16 %v5514
      %v5598 = vunpack.c.l.b16 %v5515
      %v5599 = vunpack.c.h.b16 %v5515
      %v5600 = vunpack.c.l.b16 %v5516
      %v5601 = vunpack.c.h.b16 %v5516
      %v5602 = vunpack.c.l.b16 %v5517
      %v5603 = vunpack.c.h.b16 %v5517
      %v5604 = vunpack.c.l.b16 %v5518
      %v5605 = vunpack.c.h.b16 %v5518
      %v5606 = vunpack.c.l.b16 %v5519
      %v5607 = vunpack.c.h.b16 %v5519
      %v5608 = vunpack.c.l.b16 %v5520
      %v5609 = vunpack.c.h.b16 %v5520
      %v5610 = vunpack.c.l.b16 %v5521
      %v5611 = vunpack.c.h.b16 %v5521
      %v5612 = vunpack.c.l.b16 %v5522
      %v5613 = vunpack.c.h.b16 %v5522
      %v5614 = vunpack.c.l.b16 %v5523
      %v5615 = vunpack.c.h.b16 %v5523
      %v5616 = vunpack.c.l.b16 %v5524
      %v5617 = vunpack.c.h.b16 %v5524
      %v5618 = vunpack.c.l.b16 %v5525
      %v5619 = vunpack.c.h.b16 %v5525
      %v5620 = vunpack.c.l.b16 %v5526
      %v5621 = vunpack.c.h.b16 %v5526
      %v5622 = vunpack.c.l.b16 %v5527
      %v5623 = vunpack.c.h.b16 %v5527
      %v5624 = vpack.c.b16 %v5562, %v5560
      %v5625 = vpack.c.b16 %v5563, %v5561
      %v5626 = vpack.c.b16 %v5566, %v5564
      %v5627 = vpack.c.b16 %v5567, %v5565
      %v5628 = vpack.c.b16 %v5570, %v5568
      %v5629 = vpack.c.b16 %v5571, %v5569
      %v5630 = vpack.c.b16 %v5574, %v5572
      %v5631 = vpack.c.b16 %v5575, %v5573
      %v5632 = vpack.c.b16 %v5578, %v5576
      %v5633 = vpack.c.b16 %v5579, %v5577
      %v5634 = vpack.c.b16 %v5582, %v5580
      %v5635 = vpack.c.b16 %v5583, %v5581
      %v5636 = vpack.c.b16 %v5586, %v5584
      %v5637 = vpack.c.b16 %v5587, %v5585
      %v5638 = vpack.c.b16 %v5590, %v5588
      %v5639 = vpack.c.b16 %v5591, %v5589
      %v5640 = vpack.c.b16 %v5594, %v5592
      %v5641 = vpack.c.b16 %v5595, %v5593
      %v5642 = vpack.c.b16 %v5598, %v5596
      %v5643 = vpack.c.b16 %v5599, %v5597
      %v5644 = vpack.c.b16 %v5602, %v5600
      %v5645 = vpack.c.b16 %v5603, %v5601
      %v5646 = vpack.c.b16 %v5606, %v5604
      %v5647 = vpack.c.b16 %v5607, %v5605
      %v5648 = vpack.c.b16 %v5610, %v5608
      %v5649 = vpack.c.b16 %v5611, %v5609
      %v5650 = vpack.c.b16 %v5614, %v5612
      %v5651 = vpack.c.b16 %v5615, %v5613
      %v5652 = vpack.c.b16 %v5618, %v5616
      %v5653 = vpack.c.b16 %v5619, %v5617
      %v5654 = vpack.c.b16 %v5622, %v5620
      %v5655 = vpack.c.b16 %v5623, %v5621
      %5688 = vmatprep.subr.bf16.mxu0 %v5625
      %5689 = vmatpush1.bf16.msra.mxu0 %v5624
      %5690 = vmatprep.subr.bf16.mxu0 %v5627
      %5691 = vmatpush1.bf16.msra.mxu0 %v5626
      %5692 = vmatprep.subr.bf16.mxu0 %v5629
      %5693 = vmatpush1.bf16.msra.mxu0 %v5628
      %5694 = vmatprep.subr.bf16.mxu0 %v5631
      %5695 = vmatpush1.bf16.msra.mxu0 %v5630
      %5696 = vmatprep.subr.bf16.mxu0 %v5633
      %5697 = vmatpush1.bf16.msra.mxu0 %v5632
      %5698 = vmatprep.subr.bf16.mxu0 %v5635
      %5699 = vmatpush1.bf16.msra.mxu0 %v5634
      %5700 = vmatprep.subr.bf16.mxu0 %v5637
      %5701 = vmatpush1.bf16.msra.mxu0 %v5636
      %5702 = vmatprep.subr.bf16.mxu0 %v5639
      %5703 = vmatpush1.bf16.msra.mxu0 %v5638
      %5704 = vmatprep.subr.bf16.mxu0 %v5641
      %5705 = vmatpush1.bf16.msra.mxu0 %v5640
      %5706 = vmatprep.subr.bf16.mxu0 %v5643
      %5707 = vmatpush1.bf16.msra.mxu0 %v5642
      %5708 = vmatprep.subr.bf16.mxu0 %v5645
      %5709 = vmatpush1.bf16.msra.mxu0 %v5644
      %5710 = vmatprep.subr.bf16.mxu0 %v5647
      %5711 = vmatpush1.bf16.msra.mxu0 %v5646
      %5712 = vmatprep.subr.bf16.mxu0 %v5649
      %5713 = vmatpush1.bf16.msra.mxu0 %v5648
      %5714 = vmatprep.subr.bf16.mxu0 %v5651
      %5715 = vmatpush1.bf16.msra.mxu0 %v5650
      %5716 = vmatprep.subr.bf16.mxu0 %v5653
      %5717 = vmatpush1.bf16.msra.mxu0 %v5652
      %5718 = vmatprep.subr.bf16.mxu0 %v5655
      %5719 = vmatpush1.bf16.msra.mxu0 %v5654
      %5720 = vmatprep.mubr.bf16.mxu0 %v3583
      %5721 = vmatmul.mubr.bf16.gmra.mrb[0].mxu0 %v3582
      %v5722 = vpop.f32.mrb[0].mxu0
      %v5723 = vadd.f32 0.0, %v5722
      %v5724 = vpop.f32.mrb[0].mxu0
      %v5725 = vadd.f32 0.0, %v5724
      %v5726 = vpop.f32.mrb[0].mxu0
      %v5727 = vadd.f32 0.0, %v5726
      %v5728 = vpop.f32.mrb[0].mxu0
      %v5729 = vadd.f32 0.0, %v5728
      %5730 = vmatprep.mubr.bf16.mxu0 %v3585
      %5731 = vmatmul.mubr.bf16.gmra.mrb[0].mxu0 %v3584
      %v5732 = vpop.f32.mrb[0].mxu0
      %v5733 = vadd.f32 0.0, %v5732
      %v5734 = vpop.f32.mrb[0].mxu0
      %v5735 = vadd.f32 0.0, %v5734
      %v5736 = vpop.f32.mrb[0].mxu0
      %v5737 = vadd.f32 0.0, %v5736
      %v5738 = vpop.f32.mrb[0].mxu0
      %v5739 = vadd.f32 0.0, %v5738
      %5740 = vmatprep.mubr.bf16.mxu0 %v3587
      %5741 = vmatmul.mubr.bf16.gmra.mrb[0].mxu0 %v3586
      %v5742 = vpop.f32.mrb[0].mxu0
      %v5743 = vadd.f32 0.0, %v5742
      %v5744 = vpop.f32.mrb[0].mxu0
      %v5745 = vadd.f32 0.0, %v5744
      %v5746 = vpop.f32.mrb[0].mxu0
      %v5747 = vadd.f32 0.0, %v5746
      %v5748 = vpop.f32.mrb[0].mxu0
      %v5749 = vadd.f32 0.0, %v5748
      %5750 = vmatprep.mubr.bf16.mxu0 %v3589
      %5751 = vmatmul.mubr.bf16.gmra.mrb[0].mxu0 %v3588
      %v5752 = vpop.f32.mrb[0].mxu0
      %v5753 = vadd.f32 0.0, %v5752
      %v5754 = vpop.f32.mrb[0].mxu0
      %v5755 = vadd.f32 0.0, %v5754
      %v5756 = vpop.f32.mrb[0].mxu0
      %v5757 = vadd.f32 0.0, %v5756
      %v5758 = vpop.f32.mrb[0].mxu0
      %v5759 = vadd.f32 0.0, %v5758
      %5760 = vmatprep.mubr.bf16.mxu0 %v3591
      %5761 = vmatmul.mubr.bf16.gmra.mrb[0].mxu0 %v3590
      %v5762 = vpop.f32.mrb[0].mxu0
      %v5763 = vadd.f32 0.0, %v5762
      %v5764 = vpop.f32.mrb[0].mxu0
      %v5765 = vadd.f32 0.0, %v5764
      %v5766 = vpop.f32.mrb[0].mxu0
      %v5767 = vadd.f32 0.0, %v5766
      %v5768 = vpop.f32.mrb[0].mxu0
      %v5769 = vadd.f32 0.0, %v5768
      %5770 = vmatprep.mubr.bf16.mxu0 %v3593
      %5771 = vmatmul.mubr.bf16.gmra.mrb[0].mxu0 %v3592
      %v5772 = vpop.f32.mrb[0].mxu0
      %v5773 = vadd.f32 0.0, %v5772
      %v5774 = vpop.f32.mrb[0].mxu0
      %v5775 = vadd.f32 0.0, %v5774
      %v5776 = vpop.f32.mrb[0].mxu0
      %v5777 = vadd.f32 0.0, %v5776
      %v5778 = vpop.f32.mrb[0].mxu0
      %v5779 = vadd.f32 0.0, %v5778
      %5780 = vmatprep.mubr.bf16.mxu0 %v3595
      %5781 = vmatmul.mubr.bf16.gmra.mrb[0].mxu0 %v3594
      %v5782 = vpop.f32.mrb[0].mxu0
      %v5783 = vadd.f32 0.0, %v5782
      %v5784 = vpop.f32.mrb[0].mxu0
      %v5785 = vadd.f32 0.0, %v5784
      %v5786 = vpop.f32.mrb[0].mxu0
      %v5787 = vadd.f32 0.0, %v5786
      %v5788 = vpop.f32.mrb[0].mxu0
      %v5789 = vadd.f32 0.0, %v5788
      %5790 = vmatprep.mubr.bf16.mxu0 %v3597
      %5791 = vmatmul.mubr.bf16.gmra.mrb[0].mxu0 %v3596
      %v5792 = vpop.f32.mrb[0].mxu0
      %v5793 = vadd.f32 0.0, %v5792
      %v5794 = vpop.f32.mrb[0].mxu0
      %v5795 = vadd.f32 0.0, %v5794
      %v5796 = vpop.f32.mrb[0].mxu0
      %v5797 = vadd.f32 0.0, %v5796
      %v5798 = vpop.f32.mrb[0].mxu0
      %v5799 = vadd.f32 0.0, %v5798
      %5800 = vmatprep.mubr.bf16.mxu0 %v3599
      %5801 = vmatmul.mubr.bf16.gmra.mrb[0].mxu0 %v3598
      %v5802 = vpop.f32.mrb[0].mxu0
      %v5803 = vadd.f32 0.0, %v5802
      %v5804 = vpop.f32.mrb[0].mxu0
      %v5805 = vadd.f32 0.0, %v5804
      %v5806 = vpop.f32.mrb[0].mxu0
      %v5807 = vadd.f32 0.0, %v5806
      %v5808 = vpop.f32.mrb[0].mxu0
      %v5809 = vadd.f32 0.0, %v5808
      %5810 = vmatprep.mubr.bf16.mxu0 %v3601
      %5811 = vmatmul.mubr.bf16.gmra.mrb[0].mxu0 %v3600
      %v5812 = vpop.f32.mrb[0].mxu0
      %v5813 = vadd.f32 0.0, %v5812
      %v5814 = vpop.f32.mrb[0].mxu0
      %v5815 = vadd.f32 0.0, %v5814
      %v5816 = vpop.f32.mrb[0].mxu0
      %v5817 = vadd.f32 0.0, %v5816
      %v5818 = vpop.f32.mrb[0].mxu0
      %v5819 = vadd.f32 0.0, %v5818
      %5820 = vmatprep.mubr.bf16.mxu0 %v3603
      %5821 = vmatmul.mubr.bf16.gmra.mrb[0].mxu0 %v3602
      %v5822 = vpop.f32.mrb[0].mxu0
      %v5823 = vadd.f32 0.0, %v5822
      %v5824 = vpop.f32.mrb[0].mxu0
      %v5825 = vadd.f32 0.0, %v5824
      %v5826 = vpop.f32.mrb[0].mxu0
      %v5827 = vadd.f32 0.0, %v5826
      %v5828 = vpop.f32.mrb[0].mxu0
      %v5829 = vadd.f32 0.0, %v5828
      %5830 = vmatprep.mubr.bf16.mxu0 %v3605
      %5831 = vmatmul.mubr.bf16.gmra.mrb[0].mxu0 %v3604
      %v5832 = vpop.f32.mrb[0].mxu0
      %v5833 = vadd.f32 0.0, %v5832
      %v5834 = vpop.f32.mrb[0].mxu0
      %v5835 = vadd.f32 0.0, %v5834
      %v5836 = vpop.f32.mrb[0].mxu0
      %v5837 = vadd.f32 0.0, %v5836
      %v5838 = vpop.f32.mrb[0].mxu0
      %v5839 = vadd.f32 0.0, %v5838
      %5840 = vmatprep.mubr.bf16.mxu0 %v3607
      %5841 = vmatmul.mubr.bf16.gmra.mrb[0].mxu0 %v3606
      %v5842 = vpop.f32.mrb[0].mxu0
      %v5843 = vadd.f32 0.0, %v5842
      %v5844 = vpop.f32.mrb[0].mxu0
      %v5845 = vadd.f32 0.0, %v5844
      %v5846 = vpop.f32.mrb[0].mxu0
      %v5847 = vadd.f32 0.0, %v5846
      %v5848 = vpop.f32.mrb[0].mxu0
      %v5849 = vadd.f32 0.0, %v5848
      %5850 = vmatprep.mubr.bf16.mxu0 %v3609
      %5851 = vmatmul.mubr.bf16.gmra.mrb[0].mxu0 %v3608
      %v5852 = vpop.f32.mrb[0].mxu0
      %v5853 = vadd.f32 0.0, %v5852
      %v5854 = vpop.f32.mrb[0].mxu0
      %v5855 = vadd.f32 0.0, %v5854
      %v5856 = vpop.f32.mrb[0].mxu0
      %v5857 = vadd.f32 0.0, %v5856
      %v5858 = vpop.f32.mrb[0].mxu0
      %v5859 = vadd.f32 0.0, %v5858
      %5860 = vdwg.mxu0
      %v5861 = vadd.f32 %v5357, %v5723
      %v5862 = vadd.f32 %v5359, %v5725
      %v5863 = vadd.f32 %v5361, %v5727
      %v5864 = vadd.f32 %v5363, %v5729
      %v5865 = vadd.f32 %v5367, %v5733
      %v5866 = vadd.f32 %v5369, %v5735
      %v5867 = vadd.f32 %v5371, %v5737
      %v5868 = vadd.f32 %v5373, %v5739
      %v5869 = vadd.f32 %v5377, %v5743
      %v5870 = vadd.f32 %v5379, %v5745
      %v5871 = vadd.f32 %v5381, %v5747
      %v5872 = vadd.f32 %v5383, %v5749
      %v5873 = vadd.f32 %v5387, %v5753
      %v5874 = vadd.f32 %v5389, %v5755
      %v5875 = vadd.f32 %v5391, %v5757
      %v5876 = vadd.f32 %v5393, %v5759
      %v5877 = vadd.f32 %v5397, %v5763
      %v5878 = vadd.f32 %v5399, %v5765
      %v5879 = vadd.f32 %v5401, %v5767
      %v5880 = vadd.f32 %v5403, %v5769
      %v5881 = vadd.f32 %v5407, %v5773
      %v5882 = vadd.f32 %v5409, %v5775
      %v5883 = vadd.f32 %v5411, %v5777
      %v5884 = vadd.f32 %v5413, %v5779
      %v5885 = vadd.f32 %v5417, %v5783
      %v5886 = vadd.f32 %v5419, %v5785
      %v5887 = vadd.f32 %v5421, %v5787
      %v5888 = vadd.f32 %v5423, %v5789
      %v5889 = vadd.f32 %v5427, %v5793
      %v5890 = vadd.f32 %v5429, %v5795
      %v5891 = vadd.f32 %v5431, %v5797
      %v5892 = vadd.f32 %v5433, %v5799
      %v5893 = vadd.f32 %v5437, %v5803
      %v5894 = vadd.f32 %v5439, %v5805
      %v5895 = vadd.f32 %v5441, %v5807
      %v5896 = vadd.f32 %v5443, %v5809
      %v5897 = vadd.f32 %v5447, %v5813
      %v5898 = vadd.f32 %v5449, %v5815
      %v5899 = vadd.f32 %v5451, %v5817
      %v5900 = vadd.f32 %v5453, %v5819
      %v5901 = vadd.f32 %v5457, %v5823
      %v5902 = vadd.f32 %v5459, %v5825
      %v5903 = vadd.f32 %v5461, %v5827
      %v5904 = vadd.f32 %v5463, %v5829
      %v5905 = vadd.f32 %v5467, %v5833
      %v5906 = vadd.f32 %v5469, %v5835
      %v5907 = vadd.f32 %v5471, %v5837
      %v5908 = vadd.f32 %v5473, %v5839
      %v5909 = vadd.f32 %v5477, %v5843
      %v5910 = vadd.f32 %v5479, %v5845
      %v5911 = vadd.f32 %v5481, %v5847
      %v5912 = vadd.f32 %v5483, %v5849
      %v5913 = vadd.f32 %v5487, %v5853
      %v5914 = vadd.f32 %v5489, %v5855
      %v5915 = vadd.f32 %v5491, %v5857
      %v5916 = vadd.f32 %v5493, %v5859
      %v5917 = vmax.f32 %v4707, %v5861
      %v5918 = vmax.f32 %v4708, %v5862
      %v5919 = vmax.f32 %v4709, %v5863
      %v5920 = vmax.f32 %v4710, %v5864
      %v5921 = vmax.f32 %v4711, %v5865
      %v5922 = vmax.f32 %v4712, %v5866
      %v5923 = vmax.f32 %v4713, %v5867
      %v5924 = vmax.f32 %v4714, %v5868
      %v5925 = vmax.f32 %v4715, %v5869
      %v5926 = vmax.f32 %v4716, %v5870
      %v5927 = vmax.f32 %v4717, %v5871
      %v5928 = vmax.f32 %v4718, %v5872
      %v5929 = vmax.f32 %v4719, %v5873
      %v5930 = vmax.f32 %v4720, %v5874
      %v5931 = vmax.f32 %v4721, %v5875
      %v5932 = vmax.f32 %v4722, %v5876
      %v5933 = vmax.f32 %v4723, %v5877
      %v5934 = vmax.f32 %v4724, %v5878
      %v5935 = vmax.f32 %v4725, %v5879
      %v5936 = vmax.f32 %v4726, %v5880
      %v5937 = vmax.f32 %v4727, %v5881
      %v5938 = vmax.f32 %v4728, %v5882
      %v5939 = vmax.f32 %v4729, %v5883
      %v5940 = vmax.f32 %v4730, %v5884
      %v5941 = vmax.f32 %v4731, %v5885
      %v5942 = vmax.f32 %v4732, %v5886
      %v5943 = vmax.f32 %v4733, %v5887
      %v5944 = vmax.f32 %v4734, %v5888
      %v5945 = vmax.f32 %v4735, %v5889
      %v5946 = vmax.f32 %v4736, %v5890
      %v5947 = vmax.f32 %v4737, %v5891
      %v5948 = vmax.f32 %v4738, %v5892
      %v5949 = vmax.f32 %v4739, %v5893
      %v5950 = vmax.f32 %v4740, %v5894
      %v5951 = vmax.f32 %v4741, %v5895
      %v5952 = vmax.f32 %v4742, %v5896
      %v5953 = vmax.f32 %v4743, %v5897
      %v5954 = vmax.f32 %v4744, %v5898
      %v5955 = vmax.f32 %v4745, %v5899
      %v5956 = vmax.f32 %v4746, %v5900
      %v5957 = vmax.f32 %v4747, %v5901
      %v5958 = vmax.f32 %v4748, %v5902
      %v5959 = vmax.f32 %v4749, %v5903
      %v5960 = vmax.f32 %v4750, %v5904
      %v5961 = vmax.f32 %v4751, %v5905
      %v5962 = vmax.f32 %v4752, %v5906
      %v5963 = vmax.f32 %v4753, %v5907
      %v5964 = vmax.f32 %v4754, %v5908
      %v5965 = vmax.f32 %v4755, %v5909
      %v5966 = vmax.f32 %v4756, %v5910
      %v5967 = vmax.f32 %v4757, %v5911
      %v5968 = vmax.f32 %v4758, %v5912
      %v5969 = vmax.f32 %v4759, %v5913
      %v5970 = vmax.f32 %v4760, %v5914
      %v5971 = vmax.f32 %v4761, %v5915
      %v5972 = vmax.f32 %v4762, %v5916
      %5973 = vmatprep.subr.bf16.mxu0 %v3772
      %5974 = vmatpush1.bf16.msra.mxu0 %v3771
      %5975 = vmatprep.subr.bf16.mxu0 %v3774
      %5976 = vmatpush1.bf16.msra.mxu0 %v3773
      %5977 = vmatprep.subr.bf16.mxu0 %v3776
      %5978 = vmatpush1.bf16.msra.mxu0 %v3775
      %5979 = vmatprep.subr.bf16.mxu0 %v3778
      %5980 = vmatpush1.bf16.msra.mxu0 %v3777
      %5981 = vmatprep.subr.bf16.mxu0 %v3780
      %5982 = vmatpush1.bf16.msra.mxu0 %v3779
      %5983 = vmatprep.subr.bf16.mxu0 %v3782
      %5984 = vmatpush1.bf16.msra.mxu0 %v3781
      %5985 = vmatprep.subr.bf16.mxu0 %v3784
      %5986 = vmatpush1.bf16.msra.mxu0 %v3783
      %5987 = vmatprep.subr.bf16.mxu0 %v3786
      %5988 = vmatpush1.bf16.msra.mxu0 %v3785
      %5989 = vmatprep.subr.bf16.mxu0 %v3788
      %5990 = vmatpush1.bf16.msra.mxu0 %v3787
      %5991 = vmatprep.subr.bf16.mxu0 %v3790
      %5992 = vmatpush1.bf16.msra.mxu0 %v3789
      %5993 = vmatprep.subr.bf16.mxu0 %v3792
      %5994 = vmatpush1.bf16.msra.mxu0 %v3791
      %5995 = vmatprep.subr.bf16.mxu0 %v3794
      %5996 = vmatpush1.bf16.msra.mxu0 %v3793
      %5997 = vmatprep.subr.bf16.mxu0 %v3796
      %5998 = vmatpush1.bf16.msra.mxu0 %v3795
      %5999 = vmatprep.subr.bf16.mxu0 %v3798
      %6000 = vmatpush1.bf16.msra.mxu0 %v3797
      %6001 = vmatprep.subr.bf16.mxu0 %v3800
      %6002 = vmatpush1.bf16.msra.mxu0 %v3799
      %6003 = vmatprep.subr.bf16.mxu0 %v3802
      %6004 = vmatpush1.bf16.msra.mxu0 %v3801
      %6005 = vmatprep.mubr.bf16.mxu0 %v3583
      %6006 = vmatmul.mubr.bf16.gmra.mrb[0].mxu0 %v3582
      %v6007 = vpop.f32.mrb[0].mxu0
      %v6008 = vadd.f32 0.0, %v6007
      %v6009 = vpop.f32.mrb[0].mxu0
      %v6010 = vadd.f32 0.0, %v6009
      %v6011 = vpop.f32.mrb[0].mxu0
      %v6012 = vadd.f32 0.0, %v6011
      %v6013 = vpop.f32.mrb[0].mxu0
      %v6014 = vadd.f32 0.0, %v6013
      %6015 = vmatprep.mubr.bf16.mxu0 %v3585
      %6016 = vmatmul.mubr.bf16.gmra.mrb[0].mxu0 %v3584
      %v6017 = vpop.f32.mrb[0].mxu0
      %v6018 = vadd.f32 0.0, %v6017
      %v6019 = vpop.f32.mrb[0].mxu0
      %v6020 = vadd.f32 0.0, %v6019
      %v6021 = vpop.f32.mrb[0].mxu0
      %v6022 = vadd.f32 0.0, %v6021
      %v6023 = vpop.f32.mrb[0].mxu0
      %v6024 = vadd.f32 0.0, %v6023
      %6025 = vmatprep.mubr.bf16.mxu0 %v3587
      %6026 = vmatmul.mubr.bf16.gmra.mrb[0].mxu0 %v3586
      %v6027 = vpop.f32.mrb[0].mxu0
      %v6028 = vadd.f32 0.0, %v6027
      %v6029 = vpop.f32.mrb[0].mxu0
      %v6030 = vadd.f32 0.0, %v6029
      %v6031 = vpop.f32.mrb[0].mxu0
      %v6032 = vadd.f32 0.0, %v6031
      %v6033 = vpop.f32.mrb[0].mxu0
      %v6034 = vadd.f32 0.0, %v6033
      %6035 = vmatprep.mubr.bf16.mxu0 %v3589
      %6036 = vmatmul.mubr.bf16.gmra.mrb[0].mxu0 %v3588
      %v6037 = vpop.f32.mrb[0].mxu0
      %v6038 = vadd.f32 0.0, %v6037
      %v6039 = vpop.f32.mrb[0].mxu0
      %v6040 = vadd.f32 0.0, %v6039
      %v6041 = vpop.f32.mrb[0].mxu0
      %v6042 = vadd.f32 0.0, %v6041
      %v6043 = vpop.f32.mrb[0].mxu0
      %v6044 = vadd.f32 0.0, %v6043
      %6045 = vmatprep.mubr.bf16.mxu0 %v3591
      %6046 = vmatmul.mubr.bf16.gmra.mrb[0].mxu0 %v3590
      %v6047 = vpop.f32.mrb[0].mxu0
      %v6048 = vadd.f32 0.0, %v6047
      %v6049 = vpop.f32.mrb[0].mxu0
      %v6050 = vadd.f32 0.0, %v6049
      %v6051 = vpop.f32.mrb[0].mxu0
      %v6052 = vadd.f32 0.0, %v6051
      %v6053 = vpop.f32.mrb[0].mxu0
      %v6054 = vadd.f32 0.0, %v6053
      %6055 = vmatprep.mubr.bf16.mxu0 %v3593
      %6056 = vmatmul.mubr.bf16.gmra.mrb[0].mxu0 %v3592
      %v6057 = vpop.f32.mrb[0].mxu0
      %v6058 = vadd.f32 0.0, %v6057
      %v6059 = vpop.f32.mrb[0].mxu0
      %v6060 = vadd.f32 0.0, %v6059
      %v6061 = vpop.f32.mrb[0].mxu0
      %v6062 = vadd.f32 0.0, %v6061
      %v6063 = vpop.f32.mrb[0].mxu0
      %v6064 = vadd.f32 0.0, %v6063
      %6065 = vmatprep.mubr.bf16.mxu0 %v3595
      %6066 = vmatmul.mubr.bf16.gmra.mrb[0].mxu0 %v3594
      %v6067 = vpop.f32.mrb[0].mxu0
      %v6068 = vadd.f32 0.0, %v6067
      %v6069 = vpop.f32.mrb[0].mxu0
      %v6070 = vadd.f32 0.0, %v6069
      %v6071 = vpop.f32.mrb[0].mxu0
      %v6072 = vadd.f32 0.0, %v6071
      %v6073 = vpop.f32.mrb[0].mxu0
      %v6074 = vadd.f32 0.0, %v6073
      %6075 = vmatprep.mubr.bf16.mxu0 %v3597
      %6076 = vmatmul.mubr.bf16.gmra.mrb[0].mxu0 %v3596
      %v6077 = vpop.f32.mrb[0].mxu0
      %v6078 = vadd.f32 0.0, %v6077
      %v6079 = vpop.f32.mrb[0].mxu0
      %v6080 = vadd.f32 0.0, %v6079
      %v6081 = vpop.f32.mrb[0].mxu0
      %v6082 = vadd.f32 0.0, %v6081
      %v6083 = vpop.f32.mrb[0].mxu0
      %v6084 = vadd.f32 0.0, %v6083
      %6085 = vmatprep.mubr.bf16.mxu0 %v3599
      %6086 = vmatmul.mubr.bf16.gmra.mrb[0].mxu0 %v3598
      %v6087 = vpop.f32.mrb[0].mxu0
      %v6088 = vadd.f32 0.0, %v6087
      %v6089 = vpop.f32.mrb[0].mxu0
      %v6090 = vadd.f32 0.0, %v6089
      %v6091 = vpop.f32.mrb[0].mxu0
      %v6092 = vadd.f32 0.0, %v6091
      %v6093 = vpop.f32.mrb[0].mxu0
      %v6094 = vadd.f32 0.0, %v6093
      %6095 = vmatprep.mubr.bf16.mxu0 %v3601
      %6096 = vmatmul.mubr.bf16.gmra.mrb[0].mxu0 %v3600
      %v6097 = vpop.f32.mrb[0].mxu0
      %v6098 = vadd.f32 0.0, %v6097
      %v6099 = vpop.f32.mrb[0].mxu0
      %v6100 = vadd.f32 0.0, %v6099
      %v6101 = vpop.f32.mrb[0].mxu0
      %v6102 = vadd.f32 0.0, %v6101
      %v6103 = vpop.f32.mrb[0].mxu0
      %v6104 = vadd.f32 0.0, %v6103
      %6105 = vmatprep.mubr.bf16.mxu0 %v3603
      %6106 = vmatmul.mubr.bf16.gmra.mrb[0].mxu0 %v3602
      %v6107 = vpop.f32.mrb[0].mxu0
      %v6108 = vadd.f32 0.0, %v6107
      %v6109 = vpop.f32.mrb[0].mxu0
      %v6110 = vadd.f32 0.0, %v6109
      %v6111 = vpop.f32.mrb[0].mxu0
      %v6112 = vadd.f32 0.0, %v6111
      %v6113 = vpop.f32.mrb[0].mxu0
      %v6114 = vadd.f32 0.0, %v6113
      %6115 = vmatprep.mubr.bf16.mxu0 %v3605
      %6116 = vmatmul.mubr.bf16.gmra.mrb[0].mxu0 %v3604
      %v6117 = vpop.f32.mrb[0].mxu0
      %v6118 = vadd.f32 0.0, %v6117
      %v6119 = vpop.f32.mrb[0].mxu0
      %v6120 = vadd.f32 0.0, %v6119
      %v6121 = vpop.f32.mrb[0].mxu0
      %v6122 = vadd.f32 0.0, %v6121
      %v6123 = vpop.f32.mrb[0].mxu0
      %v6124 = vadd.f32 0.0, %v6123
      %6125 = vmatprep.mubr.bf16.mxu0 %v3607
      %6126 = vmatmul.mubr.bf16.gmra.mrb[0].mxu0 %v3606
      %v6127 = vpop.f32.mrb[0].mxu0
      %v6128 = vadd.f32 0.0, %v6127
      %v6129 = vpop.f32.mrb[0].mxu0
      %v6130 = vadd.f32 0.0, %v6129
      %v6131 = vpop.f32.mrb[0].mxu0
      %v6132 = vadd.f32 0.0, %v6131
      %v6133 = vpop.f32.mrb[0].mxu0
      %v6134 = vadd.f32 0.0, %v6133
      %6135 = vmatprep.mubr.bf16.mxu0 %v3609
      %6136 = vmatmul.mubr.bf16.gmra.mrb[0].mxu0 %v3608
      %v6137 = vpop.f32.mrb[0].mxu0
      %v6138 = vadd.f32 0.0, %v6137
      %v6139 = vpop.f32.mrb[0].mxu0
      %v6140 = vadd.f32 0.0, %v6139
      %v6141 = vpop.f32.mrb[0].mxu0
      %v6142 = vadd.f32 0.0, %v6141
      %v6143 = vpop.f32.mrb[0].mxu0
      %v6144 = vadd.f32 0.0, %v6143
      %6145 = vdwg.mxu0
      %6146 = vmatprep.subr.bf16.mxu0 %v4105
      %6147 = vmatpush1.bf16.msra.mxu0 %v4104
      %6148 = vmatprep.subr.bf16.mxu0 %v4107
      %6149 = vmatpush1.bf16.msra.mxu0 %v4106
      %6150 = vmatprep.subr.bf16.mxu0 %v4109
      %6151 = vmatpush1.bf16.msra.mxu0 %v4108
      %6152 = vmatprep.subr.bf16.mxu0 %v4111
      %6153 = vmatpush1.bf16.msra.mxu0 %v4110
      %6154 = vmatprep.subr.bf16.mxu0 %v4113
      %6155 = vmatpush1.bf16.msra.mxu0 %v4112
      %6156 = vmatprep.subr.bf16.mxu0 %v4115
      %6157 = vmatpush1.bf16.msra.mxu0 %v4114
      %6158 = vmatprep.subr.bf16.mxu0 %v4117
      %6159 = vmatpush1.bf16.msra.mxu0 %v4116
      %6160 = vmatprep.subr.bf16.mxu0 %v4119
      %6161 = vmatpush1.bf16.msra.mxu0 %v4118
      %6162 = vmatprep.subr.bf16.mxu0 %v4121
      %6163 = vmatpush1.bf16.msra.mxu0 %v4120
      %6164 = vmatprep.subr.bf16.mxu0 %v4123
      %6165 = vmatpush1.bf16.msra.mxu0 %v4122
      %6166 = vmatprep.subr.bf16.mxu0 %v4125
      %6167 = vmatpush1.bf16.msra.mxu0 %v4124
      %6168 = vmatprep.subr.bf16.mxu0 %v4127
      %6169 = vmatpush1.bf16.msra.mxu0 %v4126
      %6170 = vmatprep.subr.bf16.mxu0 %v4129
      %6171 = vmatpush1.bf16.msra.mxu0 %v4128
      %6172 = vmatprep.subr.bf16.mxu0 %v4131
      %6173 = vmatpush1.bf16.msra.mxu0 %v4130
      %6174 = vmatprep.subr.bf16.mxu0 %v4133
      %6175 = vmatpush1.bf16.msra.mxu0 %v4132
      %6176 = vmatprep.subr.bf16.mxu0 %v4135
      %6177 = vmatpush1.bf16.msra.mxu0 %v4134
      %6178 = vmatprep.mubr.bf16.mxu0 %v3547
      %6179 = vmatmul.mubr.bf16.gmra.mrb[0].mxu0 %v3546
      %v6180 = vpop.f32.mrb[0].mxu0
      %v6181 = vadd.f32 %v6008, %v6180
      %v6182 = vpop.f32.mrb[0].mxu0
      %v6183 = vadd.f32 %v6010, %v6182
      %v6184 = vpop.f32.mrb[0].mxu0
      %v6185 = vadd.f32 %v6012, %v6184
      %v6186 = vpop.f32.mrb[0].mxu0
      %v6187 = vadd.f32 %v6014, %v6186
      %6188 = vmatprep.mubr.bf16.mxu0 %v3549
      %6189 = vmatmul.mubr.bf16.gmra.mrb[0].mxu0 %v3548
      %v6190 = vpop.f32.mrb[0].mxu0
      %v6191 = vadd.f32 %v6018, %v6190
      %v6192 = vpop.f32.mrb[0].mxu0
      %v6193 = vadd.f32 %v6020, %v6192
      %v6194 = vpop.f32.mrb[0].mxu0
      %v6195 = vadd.f32 %v6022, %v6194
      %v6196 = vpop.f32.mrb[0].mxu0
      %v6197 = vadd.f32 %v6024, %v6196
      %6198 = vmatprep.mubr.bf16.mxu0 %v3551
      %6199 = vmatmul.mubr.bf16.gmra.mrb[0].mxu0 %v3550
      %v6200 = vpop.f32.mrb[0].mxu0
      %v6201 = vadd.f32 %v6028, %v6200
      %v6202 = vpop.f32.mrb[0].mxu0
      %v6203 = vadd.f32 %v6030, %v6202
      %v6204 = vpop.f32.mrb[0].mxu0
      %v6205 = vadd.f32 %v6032, %v6204
      %v6206 = vpop.f32.mrb[0].mxu0
      %v6207 = vadd.f32 %v6034, %v6206
      %6208 = vmatprep.mubr.bf16.mxu0 %v3553
      %6209 = vmatmul.mubr.bf16.gmra.mrb[0].mxu0 %v3552
      %v6210 = vpop.f32.mrb[0].mxu0
      %v6211 = vadd.f32 %v6038, %v6210
      %v6212 = vpop.f32.mrb[0].mxu0
      %v6213 = vadd.f32 %v6040, %v6212
      %v6214 = vpop.f32.mrb[0].mxu0
      %v6215 = vadd.f32 %v6042, %v6214
      %v6216 = vpop.f32.mrb[0].mxu0
      %v6217 = vadd.f32 %v6044, %v6216
      %6218 = vmatprep.mubr.bf16.mxu0 %v3555
      %6219 = vmatmul.mubr.bf16.gmra.mrb[0].mxu0 %v3554
      %v6220 = vpop.f32.mrb[0].mxu0
      %v6221 = vadd.f32 %v6048, %v6220
      %v6222 = vpop.f32.mrb[0].mxu0
      %v6223 = vadd.f32 %v6050, %v6222
      %v6224 = vpop.f32.mrb[0].mxu0
      %v6225 = vadd.f32 %v6052, %v6224
      %v6226 = vpop.f32.mrb[0].mxu0
      %v6227 = vadd.f32 %v6054, %v6226
      %6228 = vmatprep.mubr.bf16.mxu0 %v3557
      %6229 = vmatmul.mubr.bf16.gmra.mrb[0].mxu0 %v3556
      %v6230 = vpop.f32.mrb[0].mxu0
      %v6231 = vadd.f32 %v6058, %v6230
      %v6232 = vpop.f32.mrb[0].mxu0
      %v6233 = vadd.f32 %v6060, %v6232
      %v6234 = vpop.f32.mrb[0].mxu0
      %v6235 = vadd.f32 %v6062, %v6234
      %v6236 = vpop.f32.mrb[0].mxu0
      %v6237 = vadd.f32 %v6064, %v6236
      %6238 = vmatprep.mubr.bf16.mxu0 %v3559
      %6239 = vmatmul.mubr.bf16.gmra.mrb[0].mxu0 %v3558
      %v6240 = vpop.f32.mrb[0].mxu0
      %v6241 = vadd.f32 %v6068, %v6240
      %v6242 = vpop.f32.mrb[0].mxu0
      %v6243 = vadd.f32 %v6070, %v6242
      %v6244 = vpop.f32.mrb[0].mxu0
      %v6245 = vadd.f32 %v6072, %v6244
      %v6246 = vpop.f32.mrb[0].mxu0
      %v6247 = vadd.f32 %v6074, %v6246
      %6248 = vmatprep.mubr.bf16.mxu0 %v3561
      %6249 = vmatmul.mubr.bf16.gmra.mrb[0].mxu0 %v3560
      %v6250 = vpop.f32.mrb[0].mxu0
      %v6251 = vadd.f32 %v6078, %v6250
      %v6252 = vpop.f32.mrb[0].mxu0
      %v6253 = vadd.f32 %v6080, %v6252
      %v6254 = vpop.f32.mrb[0].mxu0
      %v6255 = vadd.f32 %v6082, %v6254
      %v6256 = vpop.f32.mrb[0].mxu0
      %v6257 = vadd.f32 %v6084, %v6256
      %6258 = vmatprep.mubr.bf16.mxu0 %v3563
      %6259 = vmatmul.mubr.bf16.gmra.mrb[0].mxu0 %v3562
      %v6260 = vpop.f32.mrb[0].mxu0
      %v6261 = vadd.f32 %v6088, %v6260
      %v6262 = vpop.f32.mrb[0].mxu0
      %v6263 = vadd.f32 %v6090, %v6262
      %v6264 = vpop.f32.mrb[0].mxu0
      %v6265 = vadd.f32 %v6092, %v6264
      %v6266 = vpop.f32.mrb[0].mxu0
      %v6267 = vadd.f32 %v6094, %v6266
      %6268 = vmatprep.mubr.bf16.mxu0 %v3565
      %6269 = vmatmul.mubr.bf16.gmra.mrb[0].mxu0 %v3564
      %v6270 = vpop.f32.mrb[0].mxu0
      %v6271 = vadd.f32 %v6098, %v6270
      %v6272 = vpop.f32.mrb[0].mxu0
      %v6273 = vadd.f32 %v6100, %v6272
      %v6274 = vpop.f32.mrb[0].mxu0
      %v6275 = vadd.f32 %v6102, %v6274
      %v6276 = vpop.f32.mrb[0].mxu0
      %v6277 = vadd.f32 %v6104, %v6276
      %6278 = vmatprep.mubr.bf16.mxu0 %v3567
      %6279 = vmatmul.mubr.bf16.gmra.mrb[0].mxu0 %v3566
      %v6280 = vpop.f32.mrb[0].mxu0
      %v6281 = vadd.f32 %v6108, %v6280
      %v6282 = vpop.f32.mrb[0].mxu0
      %v6283 = vadd.f32 %v6110, %v6282
      %v6284 = vpop.f32.mrb[0].mxu0
      %v6285 = vadd.f32 %v6112, %v6284
      %v6286 = vpop.f32.mrb[0].mxu0
      %v6287 = vadd.f32 %v6114, %v6286
      %6288 = vmatprep.mubr.bf16.mxu0 %v3569
      %6289 = vmatmul.mubr.bf16.gmra.mrb[0].mxu0 %v3568
      %v6290 = vpop.f32.mrb[0].mxu0
      %v6291 = vadd.f32 %v6118, %v6290
      %v6292 = vpop.f32.mrb[0].mxu0
      %v6293 = vadd.f32 %v6120, %v6292
      %v6294 = vpop.f32.mrb[0].mxu0
      %v6295 = vadd.f32 %v6122, %v6294
      %v6296 = vpop.f32.mrb[0].mxu0
      %v6297 = vadd.f32 %v6124, %v6296
      %6298 = vmatprep.mubr.bf16.mxu0 %v3571
      %6299 = vmatmul.mubr.bf16.gmra.mrb[0].mxu0 %v3570
      %v6300 = vpop.f32.mrb[0].mxu0
      %v6301 = vadd.f32 %v6128, %v6300
      %v6302 = vpop.f32.mrb[0].mxu0
      %v6303 = vadd.f32 %v6130, %v6302
      %v6304 = vpop.f32.mrb[0].mxu0
      %v6305 = vadd.f32 %v6132, %v6304
      %v6306 = vpop.f32.mrb[0].mxu0
      %v6307 = vadd.f32 %v6134, %v6306
      %6308 = vmatprep.mubr.bf16.mxu0 %v3573
      %6309 = vmatmul.mubr.bf16.gmra.mrb[0].mxu0 %v3572
      %v6310 = vpop.f32.mrb[0].mxu0
      %v6311 = vadd.f32 %v6138, %v6310
      %v6312 = vpop.f32.mrb[0].mxu0
      %v6313 = vadd.f32 %v6140, %v6312
      %v6314 = vpop.f32.mrb[0].mxu0
      %v6315 = vadd.f32 %v6142, %v6314
      %v6316 = vpop.f32.mrb[0].mxu0
      %v6317 = vadd.f32 %v6144, %v6316
      %6318 = vdwg.mxu0
      %6319 = vmatprep.subr.bf16.mxu0 %v4471
      %6320 = vmatpush1.bf16.msra.mxu0 %v4470
      %6321 = vmatprep.subr.bf16.mxu0 %v4473
      %6322 = vmatpush1.bf16.msra.mxu0 %v4472
      %6323 = vmatprep.subr.bf16.mxu0 %v4475
      %6324 = vmatpush1.bf16.msra.mxu0 %v4474
      %6325 = vmatprep.subr.bf16.mxu0 %v4477
      %6326 = vmatpush1.bf16.msra.mxu0 %v4476
      %6327 = vmatprep.subr.bf16.mxu0 %v4479
      %6328 = vmatpush1.bf16.msra.mxu0 %v4478
      %6329 = vmatprep.subr.bf16.mxu0 %v4481
      %6330 = vmatpush1.bf16.msra.mxu0 %v4480
      %6331 = vmatprep.subr.bf16.mxu0 %v4483
      %6332 = vmatpush1.bf16.msra.mxu0 %v4482
      %6333 = vmatprep.subr.bf16.mxu0 %v4485
      %6334 = vmatpush1.bf16.msra.mxu0 %v4484
      %6335 = vmatprep.subr.bf16.mxu0 %v4487
      %6336 = vmatpush1.bf16.msra.mxu0 %v4486
      %6337 = vmatprep.subr.bf16.mxu0 %v4489
      %6338 = vmatpush1.bf16.msra.mxu0 %v4488
      %6339 = vmatprep.subr.bf16.mxu0 %v4491
      %6340 = vmatpush1.bf16.msra.mxu0 %v4490
      %6341 = vmatprep.subr.bf16.mxu0 %v4493
      %6342 = vmatpush1.bf16.msra.mxu0 %v4492
      %6343 = vmatprep.subr.bf16.mxu0 %v4495
      %6344 = vmatpush1.bf16.msra.mxu0 %v4494
      %6345 = vmatprep.subr.bf16.mxu0 %v4497
      %6346 = vmatpush1.bf16.msra.mxu0 %v4496
      %6347 = vmatprep.subr.bf16.mxu0 %v4499
      %6348 = vmatpush1.bf16.msra.mxu0 %v4498
      %6349 = vmatprep.subr.bf16.mxu0 %v4501
      %6350 = vmatpush1.bf16.msra.mxu0 %v4500
      %6351 = vmatprep.mubr.bf16.mxu0 %v3551
      %6352 = vmatmul.mubr.bf16.gmra.mrb[0].mxu0 %v3550
      %v6353 = vpop.f32.mrb[0].mxu0
      %v6354 = vadd.f32 0.0, %v6353
      %v6355 = vpop.f32.mrb[0].mxu0
      %v6356 = vadd.f32 0.0, %v6355
      %v6357 = vpop.f32.mrb[0].mxu0
      %v6358 = vadd.f32 0.0, %v6357
      %v6359 = vpop.f32.mrb[0].mxu0
      %v6360 = vadd.f32 0.0, %v6359
      %6361 = vmatprep.mubr.bf16.mxu0 %v3553
      %6362 = vmatmul.mubr.bf16.gmra.mrb[0].mxu0 %v3552
      %v6363 = vpop.f32.mrb[0].mxu0
      %v6364 = vadd.f32 0.0, %v6363
      %v6365 = vpop.f32.mrb[0].mxu0
      %v6366 = vadd.f32 0.0, %v6365
      %v6367 = vpop.f32.mrb[0].mxu0
      %v6368 = vadd.f32 0.0, %v6367
      %v6369 = vpop.f32.mrb[0].mxu0
      %v6370 = vadd.f32 0.0, %v6369
      %6371 = vmatprep.mubr.bf16.mxu0 %v3555
      %6372 = vmatmul.mubr.bf16.gmra.mrb[0].mxu0 %v3554
      %v6373 = vpop.f32.mrb[0].mxu0
      %v6374 = vadd.f32 0.0, %v6373
      %v6375 = vpop.f32.mrb[0].mxu0
      %v6376 = vadd.f32 0.0, %v6375
      %v6377 = vpop.f32.mrb[0].mxu0
      %v6378 = vadd.f32 0.0, %v6377
      %v6379 = vpop.f32.mrb[0].mxu0
      %v6380 = vadd.f32 0.0, %v6379
      %6381 = vmatprep.mubr.bf16.mxu0 %v3557
      %6382 = vmatmul.mubr.bf16.gmra.mrb[0].mxu0 %v3556
      %v6383 = vpop.f32.mrb[0].mxu0
      %v6384 = vadd.f32 0.0, %v6383
      %v6385 = vpop.f32.mrb[0].mxu0
      %v6386 = vadd.f32 0.0, %v6385
      %v6387 = vpop.f32.mrb[0].mxu0
      %v6388 = vadd.f32 0.0, %v6387
      %v6389 = vpop.f32.mrb[0].mxu0
      %v6390 = vadd.f32 0.0, %v6389
      %6391 = vmatprep.mubr.bf16.mxu0 %v3559
      %6392 = vmatmul.mubr.bf16.gmra.mrb[0].mxu0 %v3558
      %v6393 = vpop.f32.mrb[0].mxu0
      %v6394 = vadd.f32 0.0, %v6393
      %v6395 = vpop.f32.mrb[0].mxu0
      %v6396 = vadd.f32 0.0, %v6395
      %v6397 = vpop.f32.mrb[0].mxu0
      %v6398 = vadd.f32 0.0, %v6397
      %v6399 = vpop.f32.mrb[0].mxu0
      %v6400 = vadd.f32 0.0, %v6399
      %6401 = vmatprep.mubr.bf16.mxu0 %v3561
      %6402 = vmatmul.mubr.bf16.gmra.mrb[0].mxu0 %v3560
      %v6403 = vpop.f32.mrb[0].mxu0
      %v6404 = vadd.f32 0.0, %v6403
      %v6405 = vpop.f32.mrb[0].mxu0
      %v6406 = vadd.f32 0.0, %v6405
      %v6407 = vpop.f32.mrb[0].mxu0
      %v6408 = vadd.f32 0.0, %v6407
      %v6409 = vpop.f32.mrb[0].mxu0
      %v6410 = vadd.f32 0.0, %v6409
      %6411 = vmatprep.mubr.bf16.mxu0 %v3563
      %6412 = vmatmul.mubr.bf16.gmra.mrb[0].mxu0 %v3562
      %v6413 = vpop.f32.mrb[0].mxu0
      %v6414 = vadd.f32 0.0, %v6413
      %v6415 = vpop.f32.mrb[0].mxu0
      %v6416 = vadd.f32 0.0, %v6415
      %v6417 = vpop.f32.mrb[0].mxu0
      %v6418 = vadd.f32 0.0, %v6417
      %v6419 = vpop.f32.mrb[0].mxu0
      %v6420 = vadd.f32 0.0, %v6419
      %6421 = vmatprep.mubr.bf16.mxu0 %v3565
      %6422 = vmatmul.mubr.bf16.gmra.mrb[0].mxu0 %v3564
      %v6423 = vpop.f32.mrb[0].mxu0
      %v6424 = vadd.f32 0.0, %v6423
      %v6425 = vpop.f32.mrb[0].mxu0
      %v6426 = vadd.f32 0.0, %v6425
      %v6427 = vpop.f32.mrb[0].mxu0
      %v6428 = vadd.f32 0.0, %v6427
      %v6429 = vpop.f32.mrb[0].mxu0
      %v6430 = vadd.f32 0.0, %v6429
      %6431 = vmatprep.mubr.bf16.mxu0 %v3567
      %6432 = vmatmul.mubr.bf16.gmra.mrb[0].mxu0 %v3566
      %v6433 = vpop.f32.mrb[0].mxu0
      %v6434 = vadd.f32 0.0, %v6433
      %v6435 = vpop.f32.mrb[0].mxu0
      %v6436 = vadd.f32 0.0, %v6435
      %v6437 = vpop.f32.mrb[0].mxu0
      %v6438 = vadd.f32 0.0, %v6437
      %v6439 = vpop.f32.mrb[0].mxu0
      %v6440 = vadd.f32 0.0, %v6439
      %6441 = vmatprep.mubr.bf16.mxu0 %v3569
      %6442 = vmatmul.mubr.bf16.gmra.mrb[0].mxu0 %v3568
      %v6443 = vpop.f32.mrb[0].mxu0
      %v6444 = vadd.f32 0.0, %v6443
      %v6445 = vpop.f32.mrb[0].mxu0
      %v6446 = vadd.f32 0.0, %v6445
      %v6447 = vpop.f32.mrb[0].mxu0
      %v6448 = vadd.f32 0.0, %v6447
      %v6449 = vpop.f32.mrb[0].mxu0
      %v6450 = vadd.f32 0.0, %v6449
      %6451 = vmatprep.mubr.bf16.mxu0 %v3571
      %6452 = vmatmul.mubr.bf16.gmra.mrb[0].mxu0 %v3570
      %v6453 = vpop.f32.mrb[0].mxu0
      %v6454 = vadd.f32 0.0, %v6453
      %v6455 = vpop.f32.mrb[0].mxu0
      %v6456 = vadd.f32 0.0, %v6455
      %v6457 = vpop.f32.mrb[0].mxu0
      %v6458 = vadd.f32 0.0, %v6457
      %v6459 = vpop.f32.mrb[0].mxu0
      %v6460 = vadd.f32 0.0, %v6459
      %6461 = vmatprep.mubr.bf16.mxu0 %v3573
      %6462 = vmatmul.mubr.bf16.gmra.mrb[0].mxu0 %v3572
      %v6463 = vpop.f32.mrb[0].mxu0
      %v6464 = vadd.f32 0.0, %v6463
      %v6465 = vpop.f32.mrb[0].mxu0
      %v6466 = vadd.f32 0.0, %v6465
      %v6467 = vpop.f32.mrb[0].mxu0
      %v6468 = vadd.f32 0.0, %v6467
      %v6469 = vpop.f32.mrb[0].mxu0
      %v6470 = vadd.f32 0.0, %v6469
      %6471 = vmatprep.mubr.bf16.mxu0 %v3575
      %6472 = vmatmul.mubr.bf16.gmra.mrb[0].mxu0 %v3574
      %v6473 = vpop.f32.mrb[0].mxu0
      %v6474 = vadd.f32 0.0, %v6473
      %v6475 = vpop.f32.mrb[0].mxu0
      %v6476 = vadd.f32 0.0, %v6475
      %v6477 = vpop.f32.mrb[0].mxu0
      %v6478 = vadd.f32 0.0, %v6477
      %v6479 = vpop.f32.mrb[0].mxu0
      %v6480 = vadd.f32 0.0, %v6479
      %6481 = vmatprep.mubr.bf16.mxu0 %v3577
      %6482 = vmatmul.mubr.bf16.gmra.mrb[0].mxu0 %v3576
      %v6483 = vpop.f32.mrb[0].mxu0
      %v6484 = vadd.f32 0.0, %v6483
      %v6485 = vpop.f32.mrb[0].mxu0
      %v6486 = vadd.f32 0.0, %v6485
      %v6487 = vpop.f32.mrb[0].mxu0
      %v6488 = vadd.f32 0.0, %v6487
      %v6489 = vpop.f32.mrb[0].mxu0
      %v6490 = vadd.f32 0.0, %v6489
      %6491 = vdwg.mxu0
      %v6492 = vadd.f32 %v6181, %v6354
      %v6493 = vadd.f32 %v6183, %v6356
      %v6494 = vadd.f32 %v6185, %v6358
      %v6495 = vadd.f32 %v6187, %v6360
      %v6496 = vadd.f32 %v6191, %v6364
      %v6497 = vadd.f32 %v6193, %v6366
      %v6498 = vadd.f32 %v6195, %v6368
      %v6499 = vadd.f32 %v6197, %v6370
      %v6500 = vadd.f32 %v6201, %v6374
      %v6501 = vadd.f32 %v6203, %v6376
      %v6502 = vadd.f32 %v6205, %v6378
      %v6503 = vadd.f32 %v6207, %v6380
      %v6504 = vadd.f32 %v6211, %v6384
      %v6505 = vadd.f32 %v6213, %v6386
      %v6506 = vadd.f32 %v6215, %v6388
      %v6507 = vadd.f32 %v6217, %v6390
      %v6508 = vadd.f32 %v6221, %v6394
      %v6509 = vadd.f32 %v6223, %v6396
      %v6510 = vadd.f32 %v6225, %v6398
      %v6511 = vadd.f32 %v6227, %v6400
      %v6512 = vadd.f32 %v6231, %v6404
      %v6513 = vadd.f32 %v6233, %v6406
      %v6514 = vadd.f32 %v6235, %v6408
      %v6515 = vadd.f32 %v6237, %v6410
      %v6516 = vadd.f32 %v6241, %v6414
      %v6517 = vadd.f32 %v6243, %v6416
      %v6518 = vadd.f32 %v6245, %v6418
      %v6519 = vadd.f32 %v6247, %v6420
      %v6520 = vadd.f32 %v6251, %v6424
      %v6521 = vadd.f32 %v6253, %v6426
      %v6522 = vadd.f32 %v6255, %v6428
      %v6523 = vadd.f32 %v6257, %v6430
      %v6524 = vadd.f32 %v6261, %v6434
      %v6525 = vadd.f32 %v6263, %v6436
      %v6526 = vadd.f32 %v6265, %v6438
      %v6527 = vadd.f32 %v6267, %v6440
      %v6528 = vadd.f32 %v6271, %v6444
      %v6529 = vadd.f32 %v6273, %v6446
      %v6530 = vadd.f32 %v6275, %v6448
      %v6531 = vadd.f32 %v6277, %v6450
      %v6532 = vadd.f32 %v6281, %v6454
      %v6533 = vadd.f32 %v6283, %v6456
      %v6534 = vadd.f32 %v6285, %v6458
      %v6535 = vadd.f32 %v6287, %v6460
      %v6536 = vadd.f32 %v6291, %v6464
      %v6537 = vadd.f32 %v6293, %v6466
      %v6538 = vadd.f32 %v6295, %v6468
      %v6539 = vadd.f32 %v6297, %v6470
      %v6540 = vadd.f32 %v6301, %v6474
      %v6541 = vadd.f32 %v6303, %v6476
      %v6542 = vadd.f32 %v6305, %v6478
      %v6543 = vadd.f32 %v6307, %v6480
      %v6544 = vadd.f32 %v6311, %v6484
      %v6545 = vadd.f32 %v6313, %v6486
      %v6546 = vadd.f32 %v6315, %v6488
      %v6547 = vadd.f32 %v6317, %v6490
      %v6548 = vmax.f32 %v5917, %v6492
      %v6549 = vmax.f32 %v5918, %v6493
      %v6550 = vmax.f32 %v5919, %v6494
      %v6551 = vmax.f32 %v5920, %v6495
      %v6552 = vmax.f32 %v5921, %v6496
      %v6553 = vmax.f32 %v5922, %v6497
      %v6554 = vmax.f32 %v5923, %v6498
      %v6555 = vmax.f32 %v5924, %v6499
      %v6556 = vmax.f32 %v5925, %v6500
      %v6557 = vmax.f32 %v5926, %v6501
      %v6558 = vmax.f32 %v5927, %v6502
      %v6559 = vmax.f32 %v5928, %v6503
      %v6560 = vmax.f32 %v5929, %v6504
      %v6561 = vmax.f32 %v5930, %v6505
      %v6562 = vmax.f32 %v5931, %v6506
      %v6563 = vmax.f32 %v5932, %v6507
      %v6564 = vmax.f32 %v5933, %v6508
      %v6565 = vmax.f32 %v5934, %v6509
      %v6566 = vmax.f32 %v5935, %v6510
      %v6567 = vmax.f32 %v5936, %v6511
      %v6568 = vmax.f32 %v5937, %v6512
      %v6569 = vmax.f32 %v5938, %v6513
      %v6570 = vmax.f32 %v5939, %v6514
      %v6571 = vmax.f32 %v5940, %v6515
      %v6572 = vmax.f32 %v5941, %v6516
      %v6573 = vmax.f32 %v5942, %v6517
      %v6574 = vmax.f32 %v5943, %v6518
      %v6575 = vmax.f32 %v5944, %v6519
      %v6576 = vmax.f32 %v5945, %v6520
      %v6577 = vmax.f32 %v5946, %v6521
      %v6578 = vmax.f32 %v5947, %v6522
      %v6579 = vmax.f32 %v5948, %v6523
      %v6580 = vmax.f32 %v5949, %v6524
      %v6581 = vmax.f32 %v5950, %v6525
      %v6582 = vmax.f32 %v5951, %v6526
      %v6583 = vmax.f32 %v5952, %v6527
      %v6584 = vmax.f32 %v5953, %v6528
      %v6585 = vmax.f32 %v5954, %v6529
      %v6586 = vmax.f32 %v5955, %v6530
      %v6587 = vmax.f32 %v5956, %v6531
      %v6588 = vmax.f32 %v5957, %v6532
      %v6589 = vmax.f32 %v5958, %v6533
      %v6590 = vmax.f32 %v5959, %v6534
      %v6591 = vmax.f32 %v5960, %v6535
      %v6592 = vmax.f32 %v5961, %v6536
      %v6593 = vmax.f32 %v5962, %v6537
      %v6594 = vmax.f32 %v5963, %v6538
      %v6595 = vmax.f32 %v5964, %v6539
      %v6596 = vmax.f32 %v5965, %v6540
      %v6597 = vmax.f32 %v5966, %v6541
      %v6598 = vmax.f32 %v5967, %v6542
      %v6599 = vmax.f32 %v5968, %v6543
      %v6600 = vmax.f32 %v5969, %v6544
      %v6601 = vmax.f32 %v5970, %v6545
      %v6602 = vmax.f32 %v5971, %v6546
      %v6603 = vmax.f32 %v5972, %v6547
      %6604 = vmatprep.subr.bf16.mxu0 %v4926
      %6605 = vmatpush1.bf16.msra.mxu0 %v4925
      %6606 = vmatprep.subr.bf16.mxu0 %v4928
      %6607 = vmatpush1.bf16.msra.mxu0 %v4927
      %6608 = vmatprep.subr.bf16.mxu0 %v4930
      %6609 = vmatpush1.bf16.msra.mxu0 %v4929
      %6610 = vmatprep.subr.bf16.mxu0 %v4932
      %6611 = vmatpush1.bf16.msra.mxu0 %v4931
      %6612 = vmatprep.subr.bf16.mxu0 %v4934
      %6613 = vmatpush1.bf16.msra.mxu0 %v4933
      %6614 = vmatprep.subr.bf16.mxu0 %v4936
      %6615 = vmatpush1.bf16.msra.mxu0 %v4935
      %6616 = vmatprep.subr.bf16.mxu0 %v4938
      %6617 = vmatpush1.bf16.msra.mxu0 %v4937
      %6618 = vmatprep.subr.bf16.mxu0 %v4940
      %6619 = vmatpush1.bf16.msra.mxu0 %v4939
      %6620 = vmatprep.subr.bf16.mxu0 %v4942
      %6621 = vmatpush1.bf16.msra.mxu0 %v4941
      %6622 = vmatprep.subr.bf16.mxu0 %v4944
      %6623 = vmatpush1.bf16.msra.mxu0 %v4943
      %6624 = vmatprep.subr.bf16.mxu0 %v4946
      %6625 = vmatpush1.bf16.msra.mxu0 %v4945
      %6626 = vmatprep.subr.bf16.mxu0 %v4948
      %6627 = vmatpush1.bf16.msra.mxu0 %v4947
      %6628 = vmatprep.subr.bf16.mxu0 %v4950
      %6629 = vmatpush1.bf16.msra.mxu0 %v4949
      %6630 = vmatprep.subr.bf16.mxu0 %v4952
      %6631 = vmatpush1.bf16.msra.mxu0 %v4951
      %6632 = vmatprep.subr.bf16.mxu0 %v4954
      %6633 = vmatpush1.bf16.msra.mxu0 %v4953
      %6634 = vmatprep.subr.bf16.mxu0 %v4956
      %6635 = vmatpush1.bf16.msra.mxu0 %v4955
      %6636 = vmatprep.mubr.bf16.mxu0 %v3583
      %6637 = vmatmul.mubr.bf16.gmra.mrb[0].mxu0 %v3582
      %v6638 = vpop.f32.mrb[0].mxu0
      %v6639 = vadd.f32 0.0, %v6638
      %v6640 = vpop.f32.mrb[0].mxu0
      %v6641 = vadd.f32 0.0, %v6640
      %v6642 = vpop.f32.mrb[0].mxu0
      %v6643 = vadd.f32 0.0, %v6642
      %v6644 = vpop.f32.mrb[0].mxu0
      %v6645 = vadd.f32 0.0, %v6644
      %6646 = vmatprep.mubr.bf16.mxu0 %v3585
      %6647 = vmatmul.mubr.bf16.gmra.mrb[0].mxu0 %v3584
      %v6648 = vpop.f32.mrb[0].mxu0
      %v6649 = vadd.f32 0.0, %v6648
      %v6650 = vpop.f32.mrb[0].mxu0
      %v6651 = vadd.f32 0.0, %v6650
      %v6652 = vpop.f32.mrb[0].mxu0
      %v6653 = vadd.f32 0.0, %v6652
      %v6654 = vpop.f32.mrb[0].mxu0
      %v6655 = vadd.f32 0.0, %v6654
      %6656 = vmatprep.mubr.bf16.mxu0 %v3587
      %6657 = vmatmul.mubr.bf16.gmra.mrb[0].mxu0 %v3586
      %v6658 = vpop.f32.mrb[0].mxu0
      %v6659 = vadd.f32 0.0, %v6658
      %v6660 = vpop.f32.mrb[0].mxu0
      %v6661 = vadd.f32 0.0, %v6660
      %v6662 = vpop.f32.mrb[0].mxu0
      %v6663 = vadd.f32 0.0, %v6662
      %v6664 = vpop.f32.mrb[0].mxu0
      %v6665 = vadd.f32 0.0, %v6664
      %6666 = vmatprep.mubr.bf16.mxu0 %v3589
      %6667 = vmatmul.mubr.bf16.gmra.mrb[0].mxu0 %v3588
      %v6668 = vpop.f32.mrb[0].mxu0
      %v6669 = vadd.f32 0.0, %v6668
      %v6670 = vpop.f32.mrb[0].mxu0
      %v6671 = vadd.f32 0.0, %v6670
      %v6672 = vpop.f32.mrb[0].mxu0
      %v6673 = vadd.f32 0.0, %v6672
      %v6674 = vpop.f32.mrb[0].mxu0
      %v6675 = vadd.f32 0.0, %v6674
      %6676 = vmatprep.mubr.bf16.mxu0 %v3591
      %6677 = vmatmul.mubr.bf16.gmra.mrb[0].mxu0 %v3590
      %v6678 = vpop.f32.mrb[0].mxu0
      %v6679 = vadd.f32 0.0, %v6678
      %v6680 = vpop.f32.mrb[0].mxu0
      %v6681 = vadd.f32 0.0, %v6680
      %v6682 = vpop.f32.mrb[0].mxu0
      %v6683 = vadd.f32 0.0, %v6682
      %v6684 = vpop.f32.mrb[0].mxu0
      %v6685 = vadd.f32 0.0, %v6684
      %6686 = vmatprep.mubr.bf16.mxu0 %v3593
      %6687 = vmatmul.mubr.bf16.gmra.mrb[0].mxu0 %v3592
      %v6688 = vpop.f32.mrb[0].mxu0
      %v6689 = vadd.f32 0.0, %v6688
      %v6690 = vpop.f32.mrb[0].mxu0
      %v6691 = vadd.f32 0.0, %v6690
      %v6692 = vpop.f32.mrb[0].mxu0
      %v6693 = vadd.f32 0.0, %v6692
      %v6694 = vpop.f32.mrb[0].mxu0
      %v6695 = vadd.f32 0.0, %v6694
      %6696 = vmatprep.mubr.bf16.mxu0 %v3595
      %6697 = vmatmul.mubr.bf16.gmra.mrb[0].mxu0 %v3594
      %v6698 = vpop.f32.mrb[0].mxu0
      %v6699 = vadd.f32 0.0, %v6698
      %v6700 = vpop.f32.mrb[0].mxu0
      %v6701 = vadd.f32 0.0, %v6700
      %v6702 = vpop.f32.mrb[0].mxu0
      %v6703 = vadd.f32 0.0, %v6702
      %v6704 = vpop.f32.mrb[0].mxu0
      %v6705 = vadd.f32 0.0, %v6704
      %6706 = vmatprep.mubr.bf16.mxu0 %v3597
      %6707 = vmatmul.mubr.bf16.gmra.mrb[0].mxu0 %v3596
      %v6708 = vpop.f32.mrb[0].mxu0
      %v6709 = vadd.f32 0.0, %v6708
      %v6710 = vpop.f32.mrb[0].mxu0
      %v6711 = vadd.f32 0.0, %v6710
      %v6712 = vpop.f32.mrb[0].mxu0
      %v6713 = vadd.f32 0.0, %v6712
      %v6714 = vpop.f32.mrb[0].mxu0
      %v6715 = vadd.f32 0.0, %v6714
      %6716 = vmatprep.mubr.bf16.mxu0 %v3599
      %6717 = vmatmul.mubr.bf16.gmra.mrb[0].mxu0 %v3598
      %v6718 = vpop.f32.mrb[0].mxu0
      %v6719 = vadd.f32 0.0, %v6718
      %v6720 = vpop.f32.mrb[0].mxu0
      %v6721 = vadd.f32 0.0, %v6720
      %v6722 = vpop.f32.mrb[0].mxu0
      %v6723 = vadd.f32 0.0, %v6722
      %v6724 = vpop.f32.mrb[0].mxu0
      %v6725 = vadd.f32 0.0, %v6724
      %6726 = vmatprep.mubr.bf16.mxu0 %v3601
      %6727 = vmatmul.mubr.bf16.gmra.mrb[0].mxu0 %v3600
      %v6728 = vpop.f32.mrb[0].mxu0
      %v6729 = vadd.f32 0.0, %v6728
      %v6730 = vpop.f32.mrb[0].mxu0
      %v6731 = vadd.f32 0.0, %v6730
      %v6732 = vpop.f32.mrb[0].mxu0
      %v6733 = vadd.f32 0.0, %v6732
      %v6734 = vpop.f32.mrb[0].mxu0
      %v6735 = vadd.f32 0.0, %v6734
      %6736 = vmatprep.mubr.bf16.mxu0 %v3603
      %6737 = vmatmul.mubr.bf16.gmra.mrb[0].mxu0 %v3602
      %v6738 = vpop.f32.mrb[0].mxu0
      %v6739 = vadd.f32 0.0, %v6738
      %v6740 = vpop.f32.mrb[0].mxu0
      %v6741 = vadd.f32 0.0, %v6740
      %v6742 = vpop.f32.mrb[0].mxu0
      %v6743 = vadd.f32 0.0, %v6742
      %v6744 = vpop.f32.mrb[0].mxu0
      %v6745 = vadd.f32 0.0, %v6744
      %6746 = vmatprep.mubr.bf16.mxu0 %v3605
      %6747 = vmatmul.mubr.bf16.gmra.mrb[0].mxu0 %v3604
      %v6748 = vpop.f32.mrb[0].mxu0
      %v6749 = vadd.f32 0.0, %v6748
      %v6750 = vpop.f32.mrb[0].mxu0
      %v6751 = vadd.f32 0.0, %v6750
      %v6752 = vpop.f32.mrb[0].mxu0
      %v6753 = vadd.f32 0.0, %v6752
      %v6754 = vpop.f32.mrb[0].mxu0
      %v6755 = vadd.f32 0.0, %v6754
      %6756 = vmatprep.mubr.bf16.mxu0 %v3607
      %6757 = vmatmul.mubr.bf16.gmra.mrb[0].mxu0 %v3606
      %v6758 = vpop.f32.mrb[0].mxu0
      %v6759 = vadd.f32 0.0, %v6758
      %v6760 = vpop.f32.mrb[0].mxu0
      %v6761 = vadd.f32 0.0, %v6760
      %v6762 = vpop.f32.mrb[0].mxu0
      %v6763 = vadd.f32 0.0, %v6762
      %v6764 = vpop.f32.mrb[0].mxu0
      %v6765 = vadd.f32 0.0, %v6764
      %6766 = vmatprep.mubr.bf16.mxu0 %v3609
      %6767 = vmatmul.mubr.bf16.gmra.mrb[0].mxu0 %v3608
      %v6768 = vpop.f32.mrb[0].mxu0
      %v6769 = vadd.f32 0.0, %v6768
      %v6770 = vpop.f32.mrb[0].mxu0
      %v6771 = vadd.f32 0.0, %v6770
      %v6772 = vpop.f32.mrb[0].mxu0
      %v6773 = vadd.f32 0.0, %v6772
      %v6774 = vpop.f32.mrb[0].mxu0
      %v6775 = vadd.f32 0.0, %v6774
      %6776 = vdwg.mxu0
      %6777 = vmatprep.subr.bf16.mxu0 %v5259
      %6778 = vmatpush1.bf16.msra.mxu0 %v5258
      %6779 = vmatprep.subr.bf16.mxu0 %v5261
      %6780 = vmatpush1.bf16.msra.mxu0 %v5260
      %6781 = vmatprep.subr.bf16.mxu0 %v5263
      %6782 = vmatpush1.bf16.msra.mxu0 %v5262
      %6783 = vmatprep.subr.bf16.mxu0 %v5265
      %6784 = vmatpush1.bf16.msra.mxu0 %v5264
      %6785 = vmatprep.subr.bf16.mxu0 %v5267
      %6786 = vmatpush1.bf16.msra.mxu0 %v5266
      %6787 = vmatprep.subr.bf16.mxu0 %v5269
      %6788 = vmatpush1.bf16.msra.mxu0 %v5268
      %6789 = vmatprep.subr.bf16.mxu0 %v5271
      %6790 = vmatpush1.bf16.msra.mxu0 %v5270
      %6791 = vmatprep.subr.bf16.mxu0 %v5273
      %6792 = vmatpush1.bf16.msra.mxu0 %v5272
      %6793 = vmatprep.subr.bf16.mxu0 %v5275
      %6794 = vmatpush1.bf16.msra.mxu0 %v5274
      %6795 = vmatprep.subr.bf16.mxu0 %v5277
      %6796 = vmatpush1.bf16.msra.mxu0 %v5276
      %6797 = vmatprep.subr.bf16.mxu0 %v5279
      %6798 = vmatpush1.bf16.msra.mxu0 %v5278
      %6799 = vmatprep.subr.bf16.mxu0 %v5281
      %6800 = vmatpush1.bf16.msra.mxu0 %v5280
      %6801 = vmatprep.subr.bf16.mxu0 %v5283
      %6802 = vmatpush1.bf16.msra.mxu0 %v5282
      %6803 = vmatprep.subr.bf16.mxu0 %v5285
      %6804 = vmatpush1.bf16.msra.mxu0 %v5284
      %6805 = vmatprep.subr.bf16.mxu0 %v5287
      %6806 = vmatpush1.bf16.msra.mxu0 %v5286
      %6807 = vmatprep.subr.bf16.mxu0 %v5289
      %6808 = vmatpush1.bf16.msra.mxu0 %v5288
      %6809 = vmatprep.mubr.bf16.mxu0 %v3547
      %6810 = vmatmul.mubr.bf16.gmra.mrb[0].mxu0 %v3546
      %v6811 = vpop.f32.mrb[0].mxu0
      %v6812 = vadd.f32 %v6639, %v6811
      %v6813 = vpop.f32.mrb[0].mxu0
      %v6814 = vadd.f32 %v6641, %v6813
      %v6815 = vpop.f32.mrb[0].mxu0
      %v6816 = vadd.f32 %v6643, %v6815
      %v6817 = vpop.f32.mrb[0].mxu0
      %v6818 = vadd.f32 %v6645, %v6817
      %6819 = vmatprep.mubr.bf16.mxu0 %v3549
      %6820 = vmatmul.mubr.bf16.gmra.mrb[0].mxu0 %v3548
      %v6821 = vpop.f32.mrb[0].mxu0
      %v6822 = vadd.f32 %v6649, %v6821
      %v6823 = vpop.f32.mrb[0].mxu0
      %v6824 = vadd.f32 %v6651, %v6823
      %v6825 = vpop.f32.mrb[0].mxu0
      %v6826 = vadd.f32 %v6653, %v6825
      %v6827 = vpop.f32.mrb[0].mxu0
      %v6828 = vadd.f32 %v6655, %v6827
      %6829 = vmatprep.mubr.bf16.mxu0 %v3551
      %6830 = vmatmul.mubr.bf16.gmra.mrb[0].mxu0 %v3550
      %v6831 = vpop.f32.mrb[0].mxu0
      %v6832 = vadd.f32 %v6659, %v6831
      %v6833 = vpop.f32.mrb[0].mxu0
      %v6834 = vadd.f32 %v6661, %v6833
      %v6835 = vpop.f32.mrb[0].mxu0
      %v6836 = vadd.f32 %v6663, %v6835
      %v6837 = vpop.f32.mrb[0].mxu0
      %v6838 = vadd.f32 %v6665, %v6837
      %6839 = vmatprep.mubr.bf16.mxu0 %v3553
      %6840 = vmatmul.mubr.bf16.gmra.mrb[0].mxu0 %v3552
      %v6841 = vpop.f32.mrb[0].mxu0
      %v6842 = vadd.f32 %v6669, %v6841
      %v6843 = vpop.f32.mrb[0].mxu0
      %v6844 = vadd.f32 %v6671, %v6843
      %v6845 = vpop.f32.mrb[0].mxu0
      %v6846 = vadd.f32 %v6673, %v6845
      %v6847 = vpop.f32.mrb[0].mxu0
      %v6848 = vadd.f32 %v6675, %v6847
      %6849 = vmatprep.mubr.bf16.mxu0 %v3555
      %6850 = vmatmul.mubr.bf16.gmra.mrb[0].mxu0 %v3554
      %v6851 = vpop.f32.mrb[0].mxu0
      %v6852 = vadd.f32 %v6679, %v6851
      %v6853 = vpop.f32.mrb[0].mxu0
      %v6854 = vadd.f32 %v6681, %v6853
      %v6855 = vpop.f32.mrb[0].mxu0
      %v6856 = vadd.f32 %v6683, %v6855
      %v6857 = vpop.f32.mrb[0].mxu0
      %v6858 = vadd.f32 %v6685, %v6857
      %6859 = vmatprep.mubr.bf16.mxu0 %v3557
      %6860 = vmatmul.mubr.bf16.gmra.mrb[0].mxu0 %v3556
      %v6861 = vpop.f32.mrb[0].mxu0
      %v6862 = vadd.f32 %v6689, %v6861
      %v6863 = vpop.f32.mrb[0].mxu0
      %v6864 = vadd.f32 %v6691, %v6863
      %v6865 = vpop.f32.mrb[0].mxu0
      %v6866 = vadd.f32 %v6693, %v6865
      %v6867 = vpop.f32.mrb[0].mxu0
      %v6868 = vadd.f32 %v6695, %v6867
      %6869 = vmatprep.mubr.bf16.mxu0 %v3559
      %6870 = vmatmul.mubr.bf16.gmra.mrb[0].mxu0 %v3558
      %v6871 = vpop.f32.mrb[0].mxu0
      %v6872 = vadd.f32 %v6699, %v6871
      %v6873 = vpop.f32.mrb[0].mxu0
      %v6874 = vadd.f32 %v6701, %v6873
      %v6875 = vpop.f32.mrb[0].mxu0
      %v6876 = vadd.f32 %v6703, %v6875
      %v6877 = vpop.f32.mrb[0].mxu0
      %v6878 = vadd.f32 %v6705, %v6877
      %6879 = vmatprep.mubr.bf16.mxu0 %v3561
      %6880 = vmatmul.mubr.bf16.gmra.mrb[0].mxu0 %v3560
      %v6881 = vpop.f32.mrb[0].mxu0
      %v6882 = vadd.f32 %v6709, %v6881
      %v6883 = vpop.f32.mrb[0].mxu0
      %v6884 = vadd.f32 %v6711, %v6883
      %v6885 = vpop.f32.mrb[0].mxu0
      %v6886 = vadd.f32 %v6713, %v6885
      %v6887 = vpop.f32.mrb[0].mxu0
      %v6888 = vadd.f32 %v6715, %v6887
      %6889 = vmatprep.mubr.bf16.mxu0 %v3563
      %6890 = vmatmul.mubr.bf16.gmra.mrb[0].mxu0 %v3562
      %v6891 = vpop.f32.mrb[0].mxu0
      %v6892 = vadd.f32 %v6719, %v6891
      %v6893 = vpop.f32.mrb[0].mxu0
      %v6894 = vadd.f32 %v6721, %v6893
      %v6895 = vpop.f32.mrb[0].mxu0
      %v6896 = vadd.f32 %v6723, %v6895
      %v6897 = vpop.f32.mrb[0].mxu0
      %v6898 = vadd.f32 %v6725, %v6897
      %6899 = vmatprep.mubr.bf16.mxu0 %v3565
      %6900 = vmatmul.mubr.bf16.gmra.mrb[0].mxu0 %v3564
      %v6901 = vpop.f32.mrb[0].mxu0
      %v6902 = vadd.f32 %v6729, %v6901
      %v6903 = vpop.f32.mrb[0].mxu0
      %v6904 = vadd.f32 %v6731, %v6903
      %v6905 = vpop.f32.mrb[0].mxu0
      %v6906 = vadd.f32 %v6733, %v6905
      %v6907 = vpop.f32.mrb[0].mxu0
      %v6908 = vadd.f32 %v6735, %v6907
      %6909 = vmatprep.mubr.bf16.mxu0 %v3567
      %6910 = vmatmul.mubr.bf16.gmra.mrb[0].mxu0 %v3566
      %v6911 = vpop.f32.mrb[0].mxu0
      %v6912 = vadd.f32 %v6739, %v6911
      %v6913 = vpop.f32.mrb[0].mxu0
      %v6914 = vadd.f32 %v6741, %v6913
      %v6915 = vpop.f32.mrb[0].mxu0
      %v6916 = vadd.f32 %v6743, %v6915
      %v6917 = vpop.f32.mrb[0].mxu0
      %v6918 = vadd.f32 %v6745, %v6917
      %6919 = vmatprep.mubr.bf16.mxu0 %v3569
      %6920 = vmatmul.mubr.bf16.gmra.mrb[0].mxu0 %v3568
      %v6921 = vpop.f32.mrb[0].mxu0
      %v6922 = vadd.f32 %v6749, %v6921
      %v6923 = vpop.f32.mrb[0].mxu0
      %v6924 = vadd.f32 %v6751, %v6923
      %v6925 = vpop.f32.mrb[0].mxu0
      %v6926 = vadd.f32 %v6753, %v6925
      %v6927 = vpop.f32.mrb[0].mxu0
      %v6928 = vadd.f32 %v6755, %v6927
      %6929 = vmatprep.mubr.bf16.mxu0 %v3571
      %6930 = vmatmul.mubr.bf16.gmra.mrb[0].mxu0 %v3570
      %v6931 = vpop.f32.mrb[0].mxu0
      %v6932 = vadd.f32 %v6759, %v6931
      %v6933 = vpop.f32.mrb[0].mxu0
      %v6934 = vadd.f32 %v6761, %v6933
      %v6935 = vpop.f32.mrb[0].mxu0
      %v6936 = vadd.f32 %v6763, %v6935
      %v6937 = vpop.f32.mrb[0].mxu0
      %v6938 = vadd.f32 %v6765, %v6937
      %6939 = vmatprep.mubr.bf16.mxu0 %v3573
      %6940 = vmatmul.mubr.bf16.gmra.mrb[0].mxu0 %v3572
      %v6941 = vpop.f32.mrb[0].mxu0
      %v6942 = vadd.f32 %v6769, %v6941
      %v6943 = vpop.f32.mrb[0].mxu0
      %v6944 = vadd.f32 %v6771, %v6943
      %v6945 = vpop.f32.mrb[0].mxu0
      %v6946 = vadd.f32 %v6773, %v6945
      %v6947 = vpop.f32.mrb[0].mxu0
      %v6948 = vadd.f32 %v6775, %v6947
      %6949 = vdwg.mxu0
      %6950 = vmatprep.subr.bf16.mxu0 %v5625
      %6951 = vmatpush1.bf16.msra.mxu0 %v5624
      %6952 = vmatprep.subr.bf16.mxu0 %v5627
      %6953 = vmatpush1.bf16.msra.mxu0 %v5626
      %6954 = vmatprep.subr.bf16.mxu0 %v5629
      %6955 = vmatpush1.bf16.msra.mxu0 %v5628
      %6956 = vmatprep.subr.bf16.mxu0 %v5631
      %6957 = vmatpush1.bf16.msra.mxu0 %v5630
      %6958 = vmatprep.subr.bf16.mxu0 %v5633
      %6959 = vmatpush1.bf16.msra.mxu0 %v5632
      %6960 = vmatprep.subr.bf16.mxu0 %v5635
      %6961 = vmatpush1.bf16.msra.mxu0 %v5634
      %6962 = vmatprep.subr.bf16.mxu0 %v5637
      %6963 = vmatpush1.bf16.msra.mxu0 %v5636
      %6964 = vmatprep.subr.bf16.mxu0 %v5639
      %6965 = vmatpush1.bf16.msra.mxu0 %v5638
      %6966 = vmatprep.subr.bf16.mxu0 %v5641
      %6967 = vmatpush1.bf16.msra.mxu0 %v5640
      %6968 = vmatprep.subr.bf16.mxu0 %v5643
      %6969 = vmatpush1.bf16.msra.mxu0 %v5642
      %6970 = vmatprep.subr.bf16.mxu0 %v5645
      %6971 = vmatpush1.bf16.msra.mxu0 %v5644
      %6972 = vmatprep.subr.bf16.mxu0 %v5647
      %6973 = vmatpush1.bf16.msra.mxu0 %v5646
      %6974 = vmatprep.subr.bf16.mxu0 %v5649
      %6975 = vmatpush1.bf16.msra.mxu0 %v5648
      %6976 = vmatprep.subr.bf16.mxu0 %v5651
      %6977 = vmatpush1.bf16.msra.mxu0 %v5650
      %6978 = vmatprep.subr.bf16.mxu0 %v5653
      %6979 = vmatpush1.bf16.msra.mxu0 %v5652
      %6980 = vmatprep.subr.bf16.mxu0 %v5655
      %6981 = vmatpush1.bf16.msra.mxu0 %v5654
      %6982 = vmatprep.mubr.bf16.mxu0 %v3551
      %6983 = vmatmul.mubr.bf16.gmra.mrb[0].mxu0 %v3550
      %v6984 = vpop.f32.mrb[0].mxu0
      %v6985 = vadd.f32 0.0, %v6984
      %v6986 = vpop.f32.mrb[0].mxu0
      %v6987 = vadd.f32 0.0, %v6986
      %v6988 = vpop.f32.mrb[0].mxu0
      %v6989 = vadd.f32 0.0, %v6988
      %v6990 = vpop.f32.mrb[0].mxu0
      %v6991 = vadd.f32 0.0, %v6990
      %6992 = vmatprep.mubr.bf16.mxu0 %v3553
      %6993 = vmatmul.mubr.bf16.gmra.mrb[0].mxu0 %v3552
      %v6994 = vpop.f32.mrb[0].mxu0
      %v6995 = vadd.f32 0.0, %v6994
      %v6996 = vpop.f32.mrb[0].mxu0
      %v6997 = vadd.f32 0.0, %v6996
      %v6998 = vpop.f32.mrb[0].mxu0
      %v6999 = vadd.f32 0.0, %v6998
      %v7000 = vpop.f32.mrb[0].mxu0
      %v7001 = vadd.f32 0.0, %v7000
      %7002 = vmatprep.mubr.bf16.mxu0 %v3555
      %7003 = vmatmul.mubr.bf16.gmra.mrb[0].mxu0 %v3554
      %v7004 = vpop.f32.mrb[0].mxu0
      %v7005 = vadd.f32 0.0, %v7004
      %v7006 = vpop.f32.mrb[0].mxu0
      %v7007 = vadd.f32 0.0, %v7006
      %v7008 = vpop.f32.mrb[0].mxu0
      %v7009 = vadd.f32 0.0, %v7008
      %v7010 = vpop.f32.mrb[0].mxu0
      %v7011 = vadd.f32 0.0, %v7010
      %7012 = vmatprep.mubr.bf16.mxu0 %v3557
      %7013 = vmatmul.mubr.bf16.gmra.mrb[0].mxu0 %v3556
      %v7014 = vpop.f32.mrb[0].mxu0
      %v7015 = vadd.f32 0.0, %v7014
      %v7016 = vpop.f32.mrb[0].mxu0
      %v7017 = vadd.f32 0.0, %v7016
      %v7018 = vpop.f32.mrb[0].mxu0
      %v7019 = vadd.f32 0.0, %v7018
      %v7020 = vpop.f32.mrb[0].mxu0
      %v7021 = vadd.f32 0.0, %v7020
      %7022 = vmatprep.mubr.bf16.mxu0 %v3559
      %7023 = vmatmul.mubr.bf16.gmra.mrb[0].mxu0 %v3558
      %v7024 = vpop.f32.mrb[0].mxu0
      %v7025 = vadd.f32 0.0, %v7024
      %v7026 = vpop.f32.mrb[0].mxu0
      %v7027 = vadd.f32 0.0, %v7026
      %v7028 = vpop.f32.mrb[0].mxu0
      %v7029 = vadd.f32 0.0, %v7028
      %v7030 = vpop.f32.mrb[0].mxu0
      %v7031 = vadd.f32 0.0, %v7030
      %7032 = vmatprep.mubr.bf16.mxu0 %v3561
      %7033 = vmatmul.mubr.bf16.gmra.mrb[0].mxu0 %v3560
      %v7034 = vpop.f32.mrb[0].mxu0
      %v7035 = vadd.f32 0.0, %v7034
      %v7036 = vpop.f32.mrb[0].mxu0
      %v7037 = vadd.f32 0.0, %v7036
      %v7038 = vpop.f32.mrb[0].mxu0
      %v7039 = vadd.f32 0.0, %v7038
      %v7040 = vpop.f32.mrb[0].mxu0
      %v7041 = vadd.f32 0.0, %v7040
      %7042 = vmatprep.mubr.bf16.mxu0 %v3563
      %7043 = vmatmul.mubr.bf16.gmra.mrb[0].mxu0 %v3562
      %v7044 = vpop.f32.mrb[0].mxu0
      %v7045 = vadd.f32 0.0, %v7044
      %v7046 = vpop.f32.mrb[0].mxu0
      %v7047 = vadd.f32 0.0, %v7046
      %v7048 = vpop.f32.mrb[0].mxu0
      %v7049 = vadd.f32 0.0, %v7048
      %v7050 = vpop.f32.mrb[0].mxu0
      %v7051 = vadd.f32 0.0, %v7050
      %7052 = vmatprep.mubr.bf16.mxu0 %v3565
      %7053 = vmatmul.mubr.bf16.gmra.mrb[0].mxu0 %v3564
      %v7054 = vpop.f32.mrb[0].mxu0
      %v7055 = vadd.f32 0.0, %v7054
      %v7056 = vpop.f32.mrb[0].mxu0
      %v7057 = vadd.f32 0.0, %v7056
      %v7058 = vpop.f32.mrb[0].mxu0
      %v7059 = vadd.f32 0.0, %v7058
      %v7060 = vpop.f32.mrb[0].mxu0
      %v7061 = vadd.f32 0.0, %v7060
      %7062 = vmatprep.mubr.bf16.mxu0 %v3567
      %7063 = vmatmul.mubr.bf16.gmra.mrb[0].mxu0 %v3566
      %v7064 = vpop.f32.mrb[0].mxu0
      %v7065 = vadd.f32 0.0, %v7064
      %v7066 = vpop.f32.mrb[0].mxu0
      %v7067 = vadd.f32 0.0, %v7066
      %v7068 = vpop.f32.mrb[0].mxu0
      %v7069 = vadd.f32 0.0, %v7068
      %v7070 = vpop.f32.mrb[0].mxu0
      %v7071 = vadd.f32 0.0, %v7070
      %7072 = vmatprep.mubr.bf16.mxu0 %v3569
      %7073 = vmatmul.mubr.bf16.gmra.mrb[0].mxu0 %v3568
      %v7074 = vpop.f32.mrb[0].mxu0
      %v7075 = vadd.f32 0.0, %v7074
      %v7076 = vpop.f32.mrb[0].mxu0
      %v7077 = vadd.f32 0.0, %v7076
      %v7078 = vpop.f32.mrb[0].mxu0
      %v7079 = vadd.f32 0.0, %v7078
      %v7080 = vpop.f32.mrb[0].mxu0
      %v7081 = vadd.f32 0.0, %v7080
      %7082 = vmatprep.mubr.bf16.mxu0 %v3571
      %7083 = vmatmul.mubr.bf16.gmra.mrb[0].mxu0 %v3570
      %v7084 = vpop.f32.mrb[0].mxu0
      %v7085 = vadd.f32 0.0, %v7084
      %v7086 = vpop.f32.mrb[0].mxu0
      %v7087 = vadd.f32 0.0, %v7086
      %v7088 = vpop.f32.mrb[0].mxu0
      %v7089 = vadd.f32 0.0, %v7088
      %v7090 = vpop.f32.mrb[0].mxu0
      %v7091 = vadd.f32 0.0, %v7090
      %7092 = vmatprep.mubr.bf16.mxu0 %v3573
      %7093 = vmatmul.mubr.bf16.gmra.mrb[0].mxu0 %v3572
      %v7094 = vpop.f32.mrb[0].mxu0
      %v7095 = vadd.f32 0.0, %v7094
      %v7096 = vpop.f32.mrb[0].mxu0
      %v7097 = vadd.f32 0.0, %v7096
      %v7098 = vpop.f32.mrb[0].mxu0
      %v7099 = vadd.f32 0.0, %v7098
      %v7100 = vpop.f32.mrb[0].mxu0
      %v7101 = vadd.f32 0.0, %v7100
      %7102 = vmatprep.mubr.bf16.mxu0 %v3575
      %7103 = vmatmul.mubr.bf16.gmra.mrb[0].mxu0 %v3574
      %v7104 = vpop.f32.mrb[0].mxu0
      %v7105 = vadd.f32 0.0, %v7104
      %v7106 = vpop.f32.mrb[0].mxu0
      %v7107 = vadd.f32 0.0, %v7106
      %v7108 = vpop.f32.mrb[0].mxu0
      %v7109 = vadd.f32 0.0, %v7108
      %v7110 = vpop.f32.mrb[0].mxu0
      %v7111 = vadd.f32 0.0, %v7110
      %7112 = vmatprep.mubr.bf16.mxu0 %v3577
      %7113 = vmatmul.mubr.bf16.gmra.mrb[0].mxu0 %v3576
      %v7114 = vpop.f32.mrb[0].mxu0
      %v7115 = vadd.f32 0.0, %v7114
      %v7116 = vpop.f32.mrb[0].mxu0
      %v7117 = vadd.f32 0.0, %v7116
      %v7118 = vpop.f32.mrb[0].mxu0
      %v7119 = vadd.f32 0.0, %v7118
      %v7120 = vpop.f32.mrb[0].mxu0
      %v7121 = vadd.f32 0.0, %v7120
      %7122 = vdwg.mxu0
      %v7123 = vadd.f32 %v6812, %v6985
      %v7124 = vadd.f32 %v6814, %v6987
      %v7125 = vadd.f32 %v6816, %v6989
      %v7126 = vadd.f32 %v6818, %v6991
      %v7127 = vadd.f32 %v6822, %v6995
      %v7128 = vadd.f32 %v6824, %v6997
      %v7129 = vadd.f32 %v6826, %v6999
      %v7130 = vadd.f32 %v6828, %v7001
      %v7131 = vadd.f32 %v6832, %v7005
      %v7132 = vadd.f32 %v6834, %v7007
      %v7133 = vadd.f32 %v6836, %v7009
      %v7134 = vadd.f32 %v6838, %v7011
      %v7135 = vadd.f32 %v6842, %v7015
      %v7136 = vadd.f32 %v6844, %v7017
      %v7137 = vadd.f32 %v6846, %v7019
      %v7138 = vadd.f32 %v6848, %v7021
      %v7139 = vadd.f32 %v6852, %v7025
      %v7140 = vadd.f32 %v6854, %v7027
      %v7141 = vadd.f32 %v6856, %v7029
      %v7142 = vadd.f32 %v6858, %v7031
      %v7143 = vadd.f32 %v6862, %v7035
      %v7144 = vadd.f32 %v6864, %v7037
      %v7145 = vadd.f32 %v6866, %v7039
      %v7146 = vadd.f32 %v6868, %v7041
      %v7147 = vadd.f32 %v6872, %v7045
      %v7148 = vadd.f32 %v6874, %v7047
      %v7149 = vadd.f32 %v6876, %v7049
      %v7150 = vadd.f32 %v6878, %v7051
      %v7151 = vadd.f32 %v6882, %v7055
      %v7152 = vadd.f32 %v6884, %v7057
      %v7153 = vadd.f32 %v6886, %v7059
      %v7154 = vadd.f32 %v6888, %v7061
      %v7155 = vadd.f32 %v6892, %v7065
      %v7156 = vadd.f32 %v6894, %v7067
      %v7157 = vadd.f32 %v6896, %v7069
      %v7158 = vadd.f32 %v6898, %v7071
      %v7159 = vadd.f32 %v6902, %v7075
      %v7160 = vadd.f32 %v6904, %v7077
      %v7161 = vadd.f32 %v6906, %v7079
      %v7162 = vadd.f32 %v6908, %v7081
      %v7163 = vadd.f32 %v6912, %v7085
      %v7164 = vadd.f32 %v6914, %v7087
      %v7165 = vadd.f32 %v6916, %v7089
      %v7166 = vadd.f32 %v6918, %v7091
      %v7167 = vadd.f32 %v6922, %v7095
      %v7168 = vadd.f32 %v6924, %v7097
      %v7169 = vadd.f32 %v6926, %v7099
      %v7170 = vadd.f32 %v6928, %v7101
      %v7171 = vadd.f32 %v6932, %v7105
      %v7172 = vadd.f32 %v6934, %v7107
      %v7173 = vadd.f32 %v6936, %v7109
      %v7174 = vadd.f32 %v6938, %v7111
      %v7175 = vadd.f32 %v6942, %v7115
      %v7176 = vadd.f32 %v6944, %v7117
      %v7177 = vadd.f32 %v6946, %v7119
      %v7178 = vadd.f32 %v6948, %v7121
      %v7179 = vmax.f32 %v6548, %v7123
      %v7180 = vmax.f32 %v6549, %v7124
      %v7181 = vmax.f32 %v6550, %v7125
      %v7182 = vmax.f32 %v6551, %v7126
      %v7183 = vmax.f32 %v6552, %v7127
      %v7184 = vmax.f32 %v6553, %v7128
      %v7185 = vmax.f32 %v6554, %v7129
      %v7186 = vmax.f32 %v6555, %v7130
      %v7187 = vmax.f32 %v6556, %v7131
      %v7188 = vmax.f32 %v6557, %v7132
      %v7189 = vmax.f32 %v6558, %v7133
      %v7190 = vmax.f32 %v6559, %v7134
      %v7191 = vmax.f32 %v6560, %v7135
      %v7192 = vmax.f32 %v6561, %v7136
      %v7193 = vmax.f32 %v6562, %v7137
      %v7194 = vmax.f32 %v6563, %v7138
      %v7195 = vmax.f32 %v6564, %v7139
      %v7196 = vmax.f32 %v6565, %v7140
      %v7197 = vmax.f32 %v6566, %v7141
      %v7198 = vmax.f32 %v6567, %v7142
      %v7199 = vmax.f32 %v6568, %v7143
      %v7200 = vmax.f32 %v6569, %v7144
      %v7201 = vmax.f32 %v6570, %v7145
      %v7202 = vmax.f32 %v6571, %v7146
      %v7203 = vmax.f32 %v6572, %v7147
      %v7204 = vmax.f32 %v6573, %v7148
      %v7205 = vmax.f32 %v6574, %v7149
      %v7206 = vmax.f32 %v6575, %v7150
      %v7207 = vmax.f32 %v6576, %v7151
      %v7208 = vmax.f32 %v6577, %v7152
      %v7209 = vmax.f32 %v6578, %v7153
      %v7210 = vmax.f32 %v6579, %v7154
      %v7211 = vmax.f32 %v6580, %v7155
      %v7212 = vmax.f32 %v6581, %v7156
      %v7213 = vmax.f32 %v6582, %v7157
      %v7214 = vmax.f32 %v6583, %v7158
      %v7215 = vmax.f32 %v6584, %v7159
      %v7216 = vmax.f32 %v6585, %v7160
      %v7217 = vmax.f32 %v6586, %v7161
      %v7218 = vmax.f32 %v6587, %v7162
      %v7219 = vmax.f32 %v6588, %v7163
      %v7220 = vmax.f32 %v6589, %v7164
      %v7221 = vmax.f32 %v6590, %v7165
      %v7222 = vmax.f32 %v6591, %v7166
      %v7223 = vmax.f32 %v6592, %v7167
      %v7224 = vmax.f32 %v6593, %v7168
      %v7225 = vmax.f32 %v6594, %v7169
      %v7226 = vmax.f32 %v6595, %v7170
      %v7227 = vmax.f32 %v6596, %v7171
      %v7228 = vmax.f32 %v6597, %v7172
      %v7229 = vmax.f32 %v6598, %v7173
      %v7230 = vmax.f32 %v6599, %v7174
      %v7231 = vmax.f32 %v6600, %v7175
      %v7232 = vmax.f32 %v6601, %v7176
      %v7233 = vmax.f32 %v6602, %v7177
      %v7234 = vmax.f32 %v6603, %v7178
      %v7235 = vld [vmem:[%s4] sm:$0x3]
      %v7237 = vlaneseq
      %v7238 = vshrl.u32 %v7237, 7
      %v7239 = vsub.s32 0, %v7238
      %v7240 = vrot.slane %v7235, %v7239
      %v7241 = vlaneseq
      %v7242 = vshrl.u32 %v7241, 7
      %v7243 = vsub.s32 1, %v7242
      %v7244 = vrot.slane %v7235, %v7243
      %v7247 = vadd.f32 %v7179, %v7240
      %v7248 = vadd.f32 %v7180, %v7244
      %v7249 = vadd.f32 %v7181, %v7240
      %v7250 = vadd.f32 %v7182, %v7244
      %v7251 = vadd.f32 %v7183, %v7240
      %v7252 = vadd.f32 %v7184, %v7244
      %v7253 = vadd.f32 %v7185, %v7240
      %v7254 = vadd.f32 %v7186, %v7244
      %v7255 = vadd.f32 %v7187, %v7240
      %v7256 = vadd.f32 %v7188, %v7244
      %v7257 = vadd.f32 %v7189, %v7240
      %v7258 = vadd.f32 %v7190, %v7244
      %v7259 = vadd.f32 %v7191, %v7240
      %v7260 = vadd.f32 %v7192, %v7244
      %v7261 = vadd.f32 %v7193, %v7240
      %v7262 = vadd.f32 %v7194, %v7244
      %v7263 = vadd.f32 %v7195, %v7240
      %v7264 = vadd.f32 %v7196, %v7244
      %v7265 = vadd.f32 %v7197, %v7240
      %v7266 = vadd.f32 %v7198, %v7244
      %v7267 = vadd.f32 %v7199, %v7240
      %v7268 = vadd.f32 %v7200, %v7244
      %v7269 = vadd.f32 %v7201, %v7240
      %v7270 = vadd.f32 %v7202, %v7244
      %v7271 = vadd.f32 %v7203, %v7240
      %v7272 = vadd.f32 %v7204, %v7244
      %v7273 = vadd.f32 %v7205, %v7240
      %v7274 = vadd.f32 %v7206, %v7244
      %v7275 = vadd.f32 %v7207, %v7240
      %v7276 = vadd.f32 %v7208, %v7244
      %v7277 = vadd.f32 %v7209, %v7240
      %v7278 = vadd.f32 %v7210, %v7244
      %v7279 = vadd.f32 %v7211, %v7240
      %v7280 = vadd.f32 %v7212, %v7244
      %v7281 = vadd.f32 %v7213, %v7240
      %v7282 = vadd.f32 %v7214, %v7244
      %v7283 = vadd.f32 %v7215, %v7240
      %v7284 = vadd.f32 %v7216, %v7244
      %v7285 = vadd.f32 %v7217, %v7240
      %v7286 = vadd.f32 %v7218, %v7244
      %v7287 = vadd.f32 %v7219, %v7240
      %v7288 = vadd.f32 %v7220, %v7244
      %v7289 = vadd.f32 %v7221, %v7240
      %v7290 = vadd.f32 %v7222, %v7244
      %v7291 = vadd.f32 %v7223, %v7240
      %v7292 = vadd.f32 %v7224, %v7244
      %v7293 = vadd.f32 %v7225, %v7240
      %v7294 = vadd.f32 %v7226, %v7244
      %v7295 = vadd.f32 %v7227, %v7240
      %v7296 = vadd.f32 %v7228, %v7244
      %v7297 = vadd.f32 %v7229, %v7240
      %v7298 = vadd.f32 %v7230, %v7244
      %v7299 = vadd.f32 %v7231, %v7240
      %v7300 = vadd.f32 %v7232, %v7244
      %v7301 = vadd.f32 %v7233, %v7240
      %v7302 = vadd.f32 %v7234, %v7244
      %v7303 = vmax.f32 %v7247, 0.0
      %v7304 = vmax.f32 %v7248, 0.0
      %v7305 = vmax.f32 %v7249, 0.0
      %v7306 = vmax.f32 %v7250, 0.0
      %v7307 = vmax.f32 %v7251, 0.0
      %v7308 = vmax.f32 %v7252, 0.0
      %v7309 = vmax.f32 %v7253, 0.0
      %v7310 = vmax.f32 %v7254, 0.0
      %v7311 = vmax.f32 %v7255, 0.0
      %v7312 = vmax.f32 %v7256, 0.0
      %v7313 = vmax.f32 %v7257, 0.0
      %v7314 = vmax.f32 %v7258, 0.0
      %v7315 = vmax.f32 %v7259, 0.0
      %v7316 = vmax.f32 %v7260, 0.0
      %v7317 = vmax.f32 %v7261, 0.0
      %v7318 = vmax.f32 %v7262, 0.0
      %v7319 = vmax.f32 %v7263, 0.0
      %v7320 = vmax.f32 %v7264, 0.0
      %v7321 = vmax.f32 %v7265, 0.0
      %v7322 = vmax.f32 %v7266, 0.0
      %v7323 = vmax.f32 %v7267, 0.0
      %v7324 = vmax.f32 %v7268, 0.0
      %v7325 = vmax.f32 %v7269, 0.0
      %v7326 = vmax.f32 %v7270, 0.0
      %v7327 = vmax.f32 %v7271, 0.0
      %v7328 = vmax.f32 %v7272, 0.0
      %v7329 = vmax.f32 %v7273, 0.0
      %v7330 = vmax.f32 %v7274, 0.0
      %v7331 = vmax.f32 %v7275, 0.0
      %v7332 = vmax.f32 %v7276, 0.0
      %v7333 = vmax.f32 %v7277, 0.0
      %v7334 = vmax.f32 %v7278, 0.0
      %v7335 = vmax.f32 %v7279, 0.0
      %v7336 = vmax.f32 %v7280, 0.0
      %v7337 = vmax.f32 %v7281, 0.0
      %v7338 = vmax.f32 %v7282, 0.0
      %v7339 = vmax.f32 %v7283, 0.0
      %v7340 = vmax.f32 %v7284, 0.0
      %v7341 = vmax.f32 %v7285, 0.0
      %v7342 = vmax.f32 %v7286, 0.0
      %v7343 = vmax.f32 %v7287, 0.0
      %v7344 = vmax.f32 %v7288, 0.0
      %v7345 = vmax.f32 %v7289, 0.0
      %v7346 = vmax.f32 %v7290, 0.0
      %v7347 = vmax.f32 %v7291, 0.0
      %v7348 = vmax.f32 %v7292, 0.0
      %v7349 = vmax.f32 %v7293, 0.0
      %v7350 = vmax.f32 %v7294, 0.0
      %v7351 = vmax.f32 %v7295, 0.0
      %v7352 = vmax.f32 %v7296, 0.0
      %v7353 = vmax.f32 %v7297, 0.0
      %v7354 = vmax.f32 %v7298, 0.0
      %v7355 = vmax.f32 %v7299, 0.0
      %v7356 = vmax.f32 %v7300, 0.0
      %v7357 = vmax.f32 %v7301, 0.0
      %v7358 = vmax.f32 %v7302, 0.0
      %v7359 = vpack.c.bf16 %v7305, %v7303
      %v7360 = vpack.c.bf16 %v7306, %v7304
      %v7361 = vpack.c.bf16 %v7309, %v7307
      %v7362 = vpack.c.bf16 %v7310, %v7308
      %v7363 = vpack.c.bf16 %v7313, %v7311
      %v7364 = vpack.c.bf16 %v7314, %v7312
      %v7365 = vpack.c.bf16 %v7317, %v7315
      %v7366 = vpack.c.bf16 %v7318, %v7316
      %v7367 = vpack.c.bf16 %v7321, %v7319
      %v7368 = vpack.c.bf16 %v7322, %v7320
      %v7369 = vpack.c.bf16 %v7325, %v7323
      %v7370 = vpack.c.bf16 %v7326, %v7324
      %v7371 = vpack.c.bf16 %v7329, %v7327
      %v7372 = vpack.c.bf16 %v7330, %v7328
      %v7373 = vpack.c.bf16 %v7333, %v7331
      %v7374 = vpack.c.bf16 %v7334, %v7332
      %v7375 = vpack.c.bf16 %v7337, %v7335
      %v7376 = vpack.c.bf16 %v7338, %v7336
      %v7377 = vpack.c.bf16 %v7341, %v7339
      %v7378 = vpack.c.bf16 %v7342, %v7340
      %v7379 = vpack.c.bf16 %v7345, %v7343
      %v7380 = vpack.c.bf16 %v7346, %v7344
      %v7381 = vpack.c.bf16 %v7349, %v7347
      %v7382 = vpack.c.bf16 %v7350, %v7348
      %v7383 = vpack.c.bf16 %v7353, %v7351
      %v7384 = vpack.c.bf16 %v7354, %v7352
      %v7385 = vpack.c.bf16 %v7357, %v7355
      %v7386 = vpack.c.bf16 %v7358, %v7356
      %v7387 = vld [vmem:[%s5] sm:$0xf]
      %v7388 = vld [vmem:[%s5 + $0x4] sm:$0xf]
      %v7389 = vld [vmem:[%s5 + $0x8] sm:$0xf]
      %v7390 = vld [vmem:[%s5 + $0xc] sm:$0xf]
      %v7391 = vld [vmem:[%s5 + $0x10] sm:$0xf]
      %v7392 = vld [vmem:[%s5 + $0x14] sm:$0xf]
      %v7393 = vld [vmem:[%s5 + $0x18] sm:$0xf]
      %v7394 = vld [vmem:[%s5 + $0x1c] sm:$0xf]
      %v7395 = vld [vmem:[%s5 + $0x20] sm:$0xf]
      %v7396 = vld [vmem:[%s5 + $0x24] sm:$0xf]
      %v7397 = vld [vmem:[%s5 + $0x28] sm:$0xf]
      %v7398 = vld [vmem:[%s5 + $0x2c] sm:$0xf]
      %v7399 = vld [vmem:[%s5 + $0x30] sm:$0xf]
      %v7400 = vld [vmem:[%s5 + $0x34] sm:$0xf]
      %v7401 = vld [vmem:[%s5 + $0x38] sm:$0xf]
      %v7402 = vld [vmem:[%s5 + $0x3c] sm:$0xf]
      %v7403 = vld [vmem:[%s5 + $0x40] sm:$0xf]
      %v7404 = vld [vmem:[%s5 + $0x44] sm:$0xf]
      %v7405 = vld [vmem:[%s5 + $0x48] sm:$0xf]
      %v7406 = vld [vmem:[%s5 + $0x4c] sm:$0xf]
      %v7407 = vld [vmem:[%s5 + $0x50] sm:$0xf]
      %v7408 = vld [vmem:[%s5 + $0x54] sm:$0xf]
      %v7409 = vld [vmem:[%s5 + $0x58] sm:$0xf]
      %v7410 = vld [vmem:[%s5 + $0x5c] sm:$0xf]
      %v7411 = vld [vmem:[%s5 + $0x60] sm:$0xf]
      %v7412 = vld [vmem:[%s5 + $0x64] sm:$0xf]
      %v7413 = vld [vmem:[%s5 + $0x68] sm:$0xf]
      %v7414 = vld [vmem:[%s5 + $0x6c] sm:$0xf]
      %v7415 = vld [vmem:[%s5 + $0x70] sm:$0xf]
      %v7416 = vld [vmem:[%s5 + $0x74] sm:$0xf]
      %v7417 = vld [vmem:[%s5 + $0x78] sm:$0xf]
      %v7418 = vld [vmem:[%s5 + $0x7c] sm:$0xf]
      %s7419 = scalar_lea.vmem %s5, 128
      %v7420 = vld [vmem:[%s7419] sm:$0xf]
      %v7421 = vld [vmem:[%s7419 + $0x4] sm:$0xf]
      %v7422 = vld [vmem:[%s7419 + $0x8] sm:$0xf]
      %v7423 = vld [vmem:[%s7419 + $0xc] sm:$0xf]
      %v7424 = vld [vmem:[%s7419 + $0x10] sm:$0xf]
      %v7425 = vld [vmem:[%s7419 + $0x14] sm:$0xf]
      %v7426 = vld [vmem:[%s7419 + $0x18] sm:$0xf]
      %v7427 = vld [vmem:[%s7419 + $0x1c] sm:$0xf]
      %v7428 = vld [vmem:[%s7419 + $0x20] sm:$0xf]
      %v7429 = vld [vmem:[%s7419 + $0x24] sm:$0xf]
      %v7430 = vld [vmem:[%s7419 + $0x28] sm:$0xf]
      %v7431 = vld [vmem:[%s7419 + $0x2c] sm:$0xf]
      %v7432 = vld [vmem:[%s7419 + $0x30] sm:$0xf]
      %v7433 = vld [vmem:[%s7419 + $0x34] sm:$0xf]
      %v7434 = vld [vmem:[%s7419 + $0x38] sm:$0xf]
      %v7435 = vld [vmem:[%s7419 + $0x3c] sm:$0xf]
      %v7436 = vld [vmem:[%s7419 + $0x40] sm:$0xf]
      %v7437 = vld [vmem:[%s7419 + $0x44] sm:$0xf]
      %v7438 = vld [vmem:[%s7419 + $0x48] sm:$0xf]
      %v7439 = vld [vmem:[%s7419 + $0x4c] sm:$0xf]
      %v7440 = vld [vmem:[%s7419 + $0x50] sm:$0xf]
      %v7441 = vld [vmem:[%s7419 + $0x54] sm:$0xf]
      %v7442 = vld [vmem:[%s7419 + $0x58] sm:$0xf]
      %v7443 = vld [vmem:[%s7419 + $0x5c] sm:$0xf]
      %v7444 = vld [vmem:[%s7419 + $0x60] sm:$0xf]
      %v7445 = vld [vmem:[%s7419 + $0x64] sm:$0xf]
      %v7446 = vld [vmem:[%s7419 + $0x68] sm:$0xf]
      %v7447 = vld [vmem:[%s7419 + $0x6c] sm:$0xf]
      %v7448 = vld [vmem:[%s7419 + $0x70] sm:$0xf]
      %v7449 = vld [vmem:[%s7419 + $0x74] sm:$0xf]
      %v7450 = vld [vmem:[%s7419 + $0x78] sm:$0xf]
      %v7451 = vld [vmem:[%s7419 + $0x7c] sm:$0xf]
      %v7484 = vunpack.c.l.b16 %v7420
      %v7485 = vunpack.c.l.b16 %v7421
      %v7486 = vunpack.c.l.b16 %v7422
      %v7487 = vunpack.c.l.b16 %v7423
      %v7488 = vunpack.c.l.b16 %v7424
      %v7489 = vunpack.c.l.b16 %v7425
      %v7490 = vunpack.c.l.b16 %v7426
      %v7491 = vunpack.c.l.b16 %v7427
      %v7492 = vunpack.c.l.b16 %v7428
      %v7493 = vunpack.c.l.b16 %v7429
      %v7494 = vunpack.c.l.b16 %v7430
      %v7495 = vunpack.c.l.b16 %v7431
      %v7496 = vunpack.c.l.b16 %v7432
      %v7497 = vunpack.c.l.b16 %v7433
      %v7498 = vunpack.c.l.b16 %v7434
      %v7499 = vunpack.c.l.b16 %v7435
      %v7500 = vunpack.c.l.b16 %v7436
      %v7501 = vunpack.c.l.b16 %v7437
      %v7502 = vunpack.c.l.b16 %v7438
      %v7503 = vunpack.c.l.b16 %v7439
      %v7504 = vunpack.c.l.b16 %v7440
      %v7505 = vunpack.c.l.b16 %v7441
      %v7506 = vunpack.c.l.b16 %v7442
      %v7507 = vunpack.c.l.b16 %v7443
      %v7508 = vunpack.c.l.b16 %v7444
      %v7509 = vunpack.c.l.b16 %v7445
      %v7510 = vunpack.c.l.b16 %v7446
      %v7511 = vunpack.c.l.b16 %v7447
      %v7512 = vunpack.c.l.b16 %v7448
      %v7513 = vunpack.c.l.b16 %v7449
      %v7514 = vunpack.c.l.b16 %v7450
      %v7515 = vunpack.c.l.b16 %v7451
      %v7516 = vpack.c.b16 %v7485, %v7484
      %v7517 = vpack.c.b16 %v7487, %v7486
      %v7518 = vpack.c.b16 %v7489, %v7488
      %v7519 = vpack.c.b16 %v7491, %v7490
      %v7520 = vpack.c.b16 %v7493, %v7492
      %v7521 = vpack.c.b16 %v7495, %v7494
      %v7522 = vpack.c.b16 %v7497, %v7496
      %v7523 = vpack.c.b16 %v7499, %v7498
      %v7524 = vpack.c.b16 %v7501, %v7500
      %v7525 = vpack.c.b16 %v7503, %v7502
      %v7526 = vpack.c.b16 %v7505, %v7504
      %v7527 = vpack.c.b16 %v7507, %v7506
      %v7528 = vpack.c.b16 %v7509, %v7508
      %v7529 = vpack.c.b16 %v7511, %v7510
      %v7530 = vpack.c.b16 %v7513, %v7512
      %v7531 = vpack.c.b16 %v7515, %v7514
      %7548 = vmatprep.subr.bf16.mxu0 0
      %7549 = vmatpush1.bf16.msra.mxu0 %v7516
      %7550 = vmatprep.subr.bf16.mxu0 0
      %7551 = vmatpush1.bf16.msra.mxu0 %v7517
      %7552 = vmatprep.subr.bf16.mxu0 0
      %7553 = vmatpush1.bf16.msra.mxu0 %v7518
      %7554 = vmatprep.subr.bf16.mxu0 0
      %7555 = vmatpush1.bf16.msra.mxu0 %v7519
      %7556 = vmatprep.subr.bf16.mxu0 0
      %7557 = vmatpush1.bf16.msra.mxu0 %v7520
      %7558 = vmatprep.subr.bf16.mxu0 0
      %7559 = vmatpush1.bf16.msra.mxu0 %v7521
      %7560 = vmatprep.subr.bf16.mxu0 0
      %7561 = vmatpush1.bf16.msra.mxu0 %v7522
      %7562 = vmatprep.subr.bf16.mxu0 0
      %7563 = vmatpush1.bf16.msra.mxu0 %v7523
      %7564 = vmatprep.subr.bf16.mxu0 0
      %7565 = vmatpush1.bf16.msra.mxu0 %v7524
      %7566 = vmatprep.subr.bf16.mxu0 0
      %7567 = vmatpush1.bf16.msra.mxu0 %v7525
      %7568 = vmatprep.subr.bf16.mxu0 0
      %7569 = vmatpush1.bf16.msra.mxu0 %v7526
      %7570 = vmatprep.subr.bf16.mxu0 0
      %7571 = vmatpush1.bf16.msra.mxu0 %v7527
      %7572 = vmatprep.subr.bf16.mxu0 0
      %7573 = vmatpush1.bf16.msra.mxu0 %v7528
      %7574 = vmatprep.subr.bf16.mxu0 0
      %7575 = vmatpush1.bf16.msra.mxu0 %v7529
      %7576 = vmatprep.subr.bf16.mxu0 0
      %7577 = vmatpush1.bf16.msra.mxu0 %v7530
      %7578 = vmatprep.subr.bf16.mxu0 0
      %7579 = vmatpush1.bf16.msra.mxu0 %v7531
      %7580 = vmatprep.mubr.bf16.mxu0 %v7364
      %7581 = vmatmul.mubr.bf16.gmra.mrb[0].mxu0 %v7363
      %v7582 = vpop.f32.mrb[0].mxu0
      %v7583 = vadd.f32 0.0, %v7582
      %v7584 = vpop.f32.mrb[0].mxu0
      %v7585 = vpop.f32.mrb[0].mxu0
      %v7586 = vadd.f32 0.0, %v7585
      %v7587 = vpop.f32.mrb[0].mxu0
      %7588 = vmatprep.mubr.bf16.mxu0 %v7366
      %7589 = vmatmul.mubr.bf16.gmra.mrb[0].mxu0 %v7365
      %v7590 = vpop.f32.mrb[0].mxu0
      %v7591 = vadd.f32 0.0, %v7590
      %v7592 = vpop.f32.mrb[0].mxu0
      %v7593 = vpop.f32.mrb[0].mxu0
      %v7594 = vadd.f32 0.0, %v7593
      %v7595 = vpop.f32.mrb[0].mxu0
      %7596 = vdwg.mxu0
      %v7629 = vunpack.c.l.b16 %v7387
      %v7630 = vunpack.c.l.b16 %v7388
      %v7631 = vunpack.c.l.b16 %v7389
      %v7632 = vunpack.c.l.b16 %v7390
      %v7633 = vunpack.c.l.b16 %v7391
      %v7634 = vunpack.c.l.b16 %v7392
      %v7635 = vunpack.c.l.b16 %v7393
      %v7636 = vunpack.c.l.b16 %v7394
      %v7637 = vunpack.c.l.b16 %v7395
      %v7638 = vunpack.c.l.b16 %v7396
      %v7639 = vunpack.c.l.b16 %v7397
      %v7640 = vunpack.c.l.b16 %v7398
      %v7641 = vunpack.c.l.b16 %v7399
      %v7642 = vunpack.c.l.b16 %v7400
      %v7643 = vunpack.c.l.b16 %v7401
      %v7644 = vunpack.c.l.b16 %v7402
      %v7645 = vunpack.c.l.b16 %v7403
      %v7646 = vunpack.c.l.b16 %v7404
      %v7647 = vunpack.c.l.b16 %v7405
      %v7648 = vunpack.c.l.b16 %v7406
      %v7649 = vunpack.c.l.b16 %v7407
      %v7650 = vunpack.c.l.b16 %v7408
      %v7651 = vunpack.c.l.b16 %v7409
      %v7652 = vunpack.c.l.b16 %v7410
      %v7653 = vunpack.c.l.b16 %v7411
      %v7654 = vunpack.c.l.b16 %v7412
      %v7655 = vunpack.c.l.b16 %v7413
      %v7656 = vunpack.c.l.b16 %v7414
      %v7657 = vunpack.c.l.b16 %v7415
      %v7658 = vunpack.c.l.b16 %v7416
      %v7659 = vunpack.c.l.b16 %v7417
      %v7660 = vunpack.c.l.b16 %v7418
      %v7661 = vpack.c.b16 %v7630, %v7629
      %v7662 = vpack.c.b16 %v7632, %v7631
      %v7663 = vpack.c.b16 %v7634, %v7633
      %v7664 = vpack.c.b16 %v7636, %v7635
      %v7665 = vpack.c.b16 %v7638, %v7637
      %v7666 = vpack.c.b16 %v7640, %v7639
      %v7667 = vpack.c.b16 %v7642, %v7641
      %v7668 = vpack.c.b16 %v7644, %v7643
      %v7669 = vpack.c.b16 %v7646, %v7645
      %v7670 = vpack.c.b16 %v7648, %v7647
      %v7671 = vpack.c.b16 %v7650, %v7649
      %v7672 = vpack.c.b16 %v7652, %v7651
      %v7673 = vpack.c.b16 %v7654, %v7653
      %v7674 = vpack.c.b16 %v7656, %v7655
      %v7675 = vpack.c.b16 %v7658, %v7657
      %v7676 = vpack.c.b16 %v7660, %v7659
      %7693 = vmatprep.subr.bf16.mxu0 0
      %7694 = vmatpush1.bf16.msra.mxu0 %v7661
      %7695 = vmatprep.subr.bf16.mxu0 0
      %7696 = vmatpush1.bf16.msra.mxu0 %v7662
      %7697 = vmatprep.subr.bf16.mxu0 0
      %7698 = vmatpush1.bf16.msra.mxu0 %v7663
      %7699 = vmatprep.subr.bf16.mxu0 0
      %7700 = vmatpush1.bf16.msra.mxu0 %v7664
      %7701 = vmatprep.subr.bf16.mxu0 0
      %7702 = vmatpush1.bf16.msra.mxu0 %v7665
      %7703 = vmatprep.subr.bf16.mxu0 0
      %7704 = vmatpush1.bf16.msra.mxu0 %v7666
      %7705 = vmatprep.subr.bf16.mxu0 0
      %7706 = vmatpush1.bf16.msra.mxu0 %v7667
      %7707 = vmatprep.subr.bf16.mxu0 0
      %7708 = vmatpush1.bf16.msra.mxu0 %v7668
      %7709 = vmatprep.subr.bf16.mxu0 0
      %7710 = vmatpush1.bf16.msra.mxu0 %v7669
      %7711 = vmatprep.subr.bf16.mxu0 0
      %7712 = vmatpush1.bf16.msra.mxu0 %v7670
      %7713 = vmatprep.subr.bf16.mxu0 0
      %7714 = vmatpush1.bf16.msra.mxu0 %v7671
      %7715 = vmatprep.subr.bf16.mxu0 0
      %7716 = vmatpush1.bf16.msra.mxu0 %v7672
      %7717 = vmatprep.subr.bf16.mxu0 0
      %7718 = vmatpush1.bf16.msra.mxu0 %v7673
      %7719 = vmatprep.subr.bf16.mxu0 0
      %7720 = vmatpush1.bf16.msra.mxu0 %v7674
      %7721 = vmatprep.subr.bf16.mxu0 0
      %7722 = vmatpush1.bf16.msra.mxu0 %v7675
      %7723 = vmatprep.subr.bf16.mxu0 0
      %7724 = vmatpush1.bf16.msra.mxu0 %v7676
      %7725 = vmatprep.mubr.bf16.mxu0 %v7360
      %7726 = vmatmul.mubr.bf16.gmra.mrb[0].mxu0 %v7359
      %v7727 = vpop.f32.mrb[0].mxu0
      %v7728 = vadd.f32 %v7583, %v7727
      %v7729 = vpop.f32.mrb[0].mxu0
      %v7730 = vpop.f32.mrb[0].mxu0
      %v7731 = vadd.f32 %v7586, %v7730
      %v7732 = vpop.f32.mrb[0].mxu0
      %7733 = vmatprep.mubr.bf16.mxu0 %v7362
      %7734 = vmatmul.mubr.bf16.gmra.mrb[0].mxu0 %v7361
      %v7735 = vpop.f32.mrb[0].mxu0
      %v7736 = vadd.f32 %v7591, %v7735
      %v7737 = vpop.f32.mrb[0].mxu0
      %v7738 = vpop.f32.mrb[0].mxu0
      %v7739 = vadd.f32 %v7594, %v7738
      %v7740 = vpop.f32.mrb[0].mxu0
      %7741 = vdwg.mxu0
      %s7742 = scalar_lea.vmem %s5, 256
      %v7743 = vld [vmem:[%s7742] sm:$0xf]
      %v7744 = vld [vmem:[%s7742 + $0x4] sm:$0xf]
      %v7745 = vld [vmem:[%s7742 + $0x8] sm:$0xf]
      %v7746 = vld [vmem:[%s7742 + $0xc] sm:$0xf]
      %v7747 = vld [vmem:[%s7742 + $0x10] sm:$0xf]
      %v7748 = vld [vmem:[%s7742 + $0x14] sm:$0xf]
      %v7749 = vld [vmem:[%s7742 + $0x18] sm:$0xf]
      %v7750 = vld [vmem:[%s7742 + $0x1c] sm:$0xf]
      %v7751 = vld [vmem:[%s7742 + $0x20] sm:$0xf]
      %v7752 = vld [vmem:[%s7742 + $0x24] sm:$0xf]
      %v7753 = vld [vmem:[%s7742 + $0x28] sm:$0xf]
      %v7754 = vld [vmem:[%s7742 + $0x2c] sm:$0xf]
      %v7755 = vld [vmem:[%s7742 + $0x30] sm:$0xf]
      %v7756 = vld [vmem:[%s7742 + $0x34] sm:$0xf]
      %v7757 = vld [vmem:[%s7742 + $0x38] sm:$0xf]
      %v7758 = vld [vmem:[%s7742 + $0x3c] sm:$0xf]
      %v7759 = vld [vmem:[%s7742 + $0x40] sm:$0xf]
      %v7760 = vld [vmem:[%s7742 + $0x44] sm:$0xf]
      %v7761 = vld [vmem:[%s7742 + $0x48] sm:$0xf]
      %v7762 = vld [vmem:[%s7742 + $0x4c] sm:$0xf]
      %v7763 = vld [vmem:[%s7742 + $0x50] sm:$0xf]
      %v7764 = vld [vmem:[%s7742 + $0x54] sm:$0xf]
      %v7765 = vld [vmem:[%s7742 + $0x58] sm:$0xf]
      %v7766 = vld [vmem:[%s7742 + $0x5c] sm:$0xf]
      %v7767 = vld [vmem:[%s7742 + $0x60] sm:$0xf]
      %v7768 = vld [vmem:[%s7742 + $0x64] sm:$0xf]
      %v7769 = vld [vmem:[%s7742 + $0x68] sm:$0xf]
      %v7770 = vld [vmem:[%s7742 + $0x6c] sm:$0xf]
      %v7771 = vld [vmem:[%s7742 + $0x70] sm:$0xf]
      %v7772 = vld [vmem:[%s7742 + $0x74] sm:$0xf]
      %v7773 = vld [vmem:[%s7742 + $0x78] sm:$0xf]
      %v7774 = vld [vmem:[%s7742 + $0x7c] sm:$0xf]
      %v7807 = vunpack.c.l.b16 %v7743
      %v7808 = vunpack.c.l.b16 %v7744
      %v7809 = vunpack.c.l.b16 %v7745
      %v7810 = vunpack.c.l.b16 %v7746
      %v7811 = vunpack.c.l.b16 %v7747
      %v7812 = vunpack.c.l.b16 %v7748
      %v7813 = vunpack.c.l.b16 %v7749
      %v7814 = vunpack.c.l.b16 %v7750
      %v7815 = vunpack.c.l.b16 %v7751
      %v7816 = vunpack.c.l.b16 %v7752
      %v7817 = vunpack.c.l.b16 %v7753
      %v7818 = vunpack.c.l.b16 %v7754
      %v7819 = vunpack.c.l.b16 %v7755
      %v7820 = vunpack.c.l.b16 %v7756
      %v7821 = vunpack.c.l.b16 %v7757
      %v7822 = vunpack.c.l.b16 %v7758
      %v7823 = vunpack.c.l.b16 %v7759
      %v7824 = vunpack.c.l.b16 %v7760
      %v7825 = vunpack.c.l.b16 %v7761
      %v7826 = vunpack.c.l.b16 %v7762
      %v7827 = vunpack.c.l.b16 %v7763
      %v7828 = vunpack.c.l.b16 %v7764
      %v7829 = vunpack.c.l.b16 %v7765
      %v7830 = vunpack.c.l.b16 %v7766
      %v7831 = vunpack.c.l.b16 %v7767
      %v7832 = vunpack.c.l.b16 %v7768
      %v7833 = vunpack.c.l.b16 %v7769
      %v7834 = vunpack.c.l.b16 %v7770
      %v7835 = vunpack.c.l.b16 %v7771
      %v7836 = vunpack.c.l.b16 %v7772
      %v7837 = vunpack.c.l.b16 %v7773
      %v7838 = vunpack.c.l.b16 %v7774
      %v7839 = vpack.c.b16 %v7808, %v7807
      %v7840 = vpack.c.b16 %v7810, %v7809
      %v7841 = vpack.c.b16 %v7812, %v7811
      %v7842 = vpack.c.b16 %v7814, %v7813
      %v7843 = vpack.c.b16 %v7816, %v7815
      %v7844 = vpack.c.b16 %v7818, %v7817
      %v7845 = vpack.c.b16 %v7820, %v7819
      %v7846 = vpack.c.b16 %v7822, %v7821
      %v7847 = vpack.c.b16 %v7824, %v7823
      %v7848 = vpack.c.b16 %v7826, %v7825
      %v7849 = vpack.c.b16 %v7828, %v7827
      %v7850 = vpack.c.b16 %v7830, %v7829
      %v7851 = vpack.c.b16 %v7832, %v7831
      %v7852 = vpack.c.b16 %v7834, %v7833
      %v7853 = vpack.c.b16 %v7836, %v7835
      %v7854 = vpack.c.b16 %v7838, %v7837
      %7871 = vmatprep.subr.bf16.mxu0 0
      %7872 = vmatpush1.bf16.msra.mxu0 %v7839
      %7873 = vmatprep.subr.bf16.mxu0 0
      %7874 = vmatpush1.bf16.msra.mxu0 %v7840
      %7875 = vmatprep.subr.bf16.mxu0 0
      %7876 = vmatpush1.bf16.msra.mxu0 %v7841
      %7877 = vmatprep.subr.bf16.mxu0 0
      %7878 = vmatpush1.bf16.msra.mxu0 %v7842
      %7879 = vmatprep.subr.bf16.mxu0 0
      %7880 = vmatpush1.bf16.msra.mxu0 %v7843
      %7881 = vmatprep.subr.bf16.mxu0 0
      %7882 = vmatpush1.bf16.msra.mxu0 %v7844
      %7883 = vmatprep.subr.bf16.mxu0 0
      %7884 = vmatpush1.bf16.msra.mxu0 %v7845
      %7885 = vmatprep.subr.bf16.mxu0 0
      %7886 = vmatpush1.bf16.msra.mxu0 %v7846
      %7887 = vmatprep.subr.bf16.mxu0 0
      %7888 = vmatpush1.bf16.msra.mxu0 %v7847
      %7889 = vmatprep.subr.bf16.mxu0 0
      %7890 = vmatpush1.bf16.msra.mxu0 %v7848
      %7891 = vmatprep.subr.bf16.mxu0 0
      %7892 = vmatpush1.bf16.msra.mxu0 %v7849
      %7893 = vmatprep.subr.bf16.mxu0 0
      %7894 = vmatpush1.bf16.msra.mxu0 %v7850
      %7895 = vmatprep.subr.bf16.mxu0 0
      %7896 = vmatpush1.bf16.msra.mxu0 %v7851
      %7897 = vmatprep.subr.bf16.mxu0 0
      %7898 = vmatpush1.bf16.msra.mxu0 %v7852
      %7899 = vmatprep.subr.bf16.mxu0 0
      %7900 = vmatpush1.bf16.msra.mxu0 %v7853
      %7901 = vmatprep.subr.bf16.mxu0 0
      %7902 = vmatpush1.bf16.msra.mxu0 %v7854
      %7903 = vmatprep.mubr.bf16.mxu0 %v7368
      %7904 = vmatmul.mubr.bf16.gmra.mrb[0].mxu0 %v7367
      %v7905 = vpop.f32.mrb[0].mxu0
      %v7906 = vadd.f32 0.0, %v7905
      %v7907 = vpop.f32.mrb[0].mxu0
      %v7908 = vpop.f32.mrb[0].mxu0
      %v7909 = vadd.f32 0.0, %v7908
      %v7910 = vpop.f32.mrb[0].mxu0
      %7911 = vmatprep.mubr.bf16.mxu0 %v7370
      %7912 = vmatmul.mubr.bf16.gmra.mrb[0].mxu0 %v7369
      %v7913 = vpop.f32.mrb[0].mxu0
      %v7914 = vadd.f32 0.0, %v7913
      %v7915 = vpop.f32.mrb[0].mxu0
      %v7916 = vpop.f32.mrb[0].mxu0
      %v7917 = vadd.f32 0.0, %v7916
      %v7918 = vpop.f32.mrb[0].mxu0
      %7919 = vdwg.mxu0
      %v7920 = vadd.f32 %v7728, %v7906
      %v7921 = vadd.f32 %v7731, %v7909
      %v7922 = vadd.f32 %v7736, %v7914
      %v7923 = vadd.f32 %v7739, %v7917
      %s7924 = scalar_lea.vmem %s5, 384
      %v7925 = vld [vmem:[%s7924] sm:$0xf]
      %v7926 = vld [vmem:[%s7924 + $0x4] sm:$0xf]
      %v7927 = vld [vmem:[%s7924 + $0x8] sm:$0xf]
      %v7928 = vld [vmem:[%s7924 + $0xc] sm:$0xf]
      %v7929 = vld [vmem:[%s7924 + $0x10] sm:$0xf]
      %v7930 = vld [vmem:[%s7924 + $0x14] sm:$0xf]
      %v7931 = vld [vmem:[%s7924 + $0x18] sm:$0xf]
      %v7932 = vld [vmem:[%s7924 + $0x1c] sm:$0xf]
      %v7933 = vld [vmem:[%s7924 + $0x20] sm:$0xf]
      %v7934 = vld [vmem:[%s7924 + $0x24] sm:$0xf]
      %v7935 = vld [vmem:[%s7924 + $0x28] sm:$0xf]
      %v7936 = vld [vmem:[%s7924 + $0x2c] sm:$0xf]
      %v7937 = vld [vmem:[%s7924 + $0x30] sm:$0xf]
      %v7938 = vld [vmem:[%s7924 + $0x34] sm:$0xf]
      %v7939 = vld [vmem:[%s7924 + $0x38] sm:$0xf]
      %v7940 = vld [vmem:[%s7924 + $0x3c] sm:$0xf]
      %v7941 = vld [vmem:[%s7924 + $0x40] sm:$0xf]
      %v7942 = vld [vmem:[%s7924 + $0x44] sm:$0xf]
      %v7943 = vld [vmem:[%s7924 + $0x48] sm:$0xf]
      %v7944 = vld [vmem:[%s7924 + $0x4c] sm:$0xf]
      %v7945 = vld [vmem:[%s7924 + $0x50] sm:$0xf]
      %v7946 = vld [vmem:[%s7924 + $0x54] sm:$0xf]
      %v7947 = vld [vmem:[%s7924 + $0x58] sm:$0xf]
      %v7948 = vld [vmem:[%s7924 + $0x5c] sm:$0xf]
      %v7949 = vld [vmem:[%s7924 + $0x60] sm:$0xf]
      %v7950 = vld [vmem:[%s7924 + $0x64] sm:$0xf]
      %v7951 = vld [vmem:[%s7924 + $0x68] sm:$0xf]
      %v7952 = vld [vmem:[%s7924 + $0x6c] sm:$0xf]
      %v7953 = vld [vmem:[%s7924 + $0x70] sm:$0xf]
      %v7954 = vld [vmem:[%s7924 + $0x74] sm:$0xf]
      %v7955 = vld [vmem:[%s7924 + $0x78] sm:$0xf]
      %v7956 = vld [vmem:[%s7924 + $0x7c] sm:$0xf]
      %v7989 = vunpack.c.l.b16 %v7925
      %v7990 = vunpack.c.l.b16 %v7926
      %v7991 = vunpack.c.l.b16 %v7927
      %v7992 = vunpack.c.l.b16 %v7928
      %v7993 = vunpack.c.l.b16 %v7929
      %v7994 = vunpack.c.l.b16 %v7930
      %v7995 = vunpack.c.l.b16 %v7931
      %v7996 = vunpack.c.l.b16 %v7932
      %v7997 = vunpack.c.l.b16 %v7933
      %v7998 = vunpack.c.l.b16 %v7934
      %v7999 = vunpack.c.l.b16 %v7935
      %v8000 = vunpack.c.l.b16 %v7936
      %v8001 = vunpack.c.l.b16 %v7937
      %v8002 = vunpack.c.l.b16 %v7938
      %v8003 = vunpack.c.l.b16 %v7939
      %v8004 = vunpack.c.l.b16 %v7940
      %v8005 = vunpack.c.l.b16 %v7941
      %v8006 = vunpack.c.l.b16 %v7942
      %v8007 = vunpack.c.l.b16 %v7943
      %v8008 = vunpack.c.l.b16 %v7944
      %v8009 = vunpack.c.l.b16 %v7945
      %v8010 = vunpack.c.l.b16 %v7946
      %v8011 = vunpack.c.l.b16 %v7947
      %v8012 = vunpack.c.l.b16 %v7948
      %v8013 = vunpack.c.l.b16 %v7949
      %v8014 = vunpack.c.l.b16 %v7950
      %v8015 = vunpack.c.l.b16 %v7951
      %v8016 = vunpack.c.l.b16 %v7952
      %v8017 = vunpack.c.l.b16 %v7953
      %v8018 = vunpack.c.l.b16 %v7954
      %v8019 = vunpack.c.l.b16 %v7955
      %v8020 = vunpack.c.l.b16 %v7956
      %v8021 = vpack.c.b16 %v7990, %v7989
      %v8022 = vpack.c.b16 %v7992, %v7991
      %v8023 = vpack.c.b16 %v7994, %v7993
      %v8024 = vpack.c.b16 %v7996, %v7995
      %v8025 = vpack.c.b16 %v7998, %v7997
      %v8026 = vpack.c.b16 %v8000, %v7999
      %v8027 = vpack.c.b16 %v8002, %v8001
      %v8028 = vpack.c.b16 %v8004, %v8003
      %v8029 = vpack.c.b16 %v8006, %v8005
      %v8030 = vpack.c.b16 %v8008, %v8007
      %v8031 = vpack.c.b16 %v8010, %v8009
      %v8032 = vpack.c.b16 %v8012, %v8011
      %v8033 = vpack.c.b16 %v8014, %v8013
      %v8034 = vpack.c.b16 %v8016, %v8015
      %v8035 = vpack.c.b16 %v8018, %v8017
      %v8036 = vpack.c.b16 %v8020, %v8019
      %8053 = vmatprep.subr.bf16.mxu0 0
      %8054 = vmatpush1.bf16.msra.mxu0 %v8021
      %8055 = vmatprep.subr.bf16.mxu0 0
      %8056 = vmatpush1.bf16.msra.mxu0 %v8022
      %8057 = vmatprep.subr.bf16.mxu0 0
      %8058 = vmatpush1.bf16.msra.mxu0 %v8023
      %8059 = vmatprep.subr.bf16.mxu0 0
      %8060 = vmatpush1.bf16.msra.mxu0 %v8024
      %8061 = vmatprep.subr.bf16.mxu0 0
      %8062 = vmatpush1.bf16.msra.mxu0 %v8025
      %8063 = vmatprep.subr.bf16.mxu0 0
      %8064 = vmatpush1.bf16.msra.mxu0 %v8026
      %8065 = vmatprep.subr.bf16.mxu0 0
      %8066 = vmatpush1.bf16.msra.mxu0 %v8027
      %8067 = vmatprep.subr.bf16.mxu0 0
      %8068 = vmatpush1.bf16.msra.mxu0 %v8028
      %8069 = vmatprep.subr.bf16.mxu0 0
      %8070 = vmatpush1.bf16.msra.mxu0 %v8029
      %8071 = vmatprep.subr.bf16.mxu0 0
      %8072 = vmatpush1.bf16.msra.mxu0 %v8030
      %8073 = vmatprep.subr.bf16.mxu0 0
      %8074 = vmatpush1.bf16.msra.mxu0 %v8031
      %8075 = vmatprep.subr.bf16.mxu0 0
      %8076 = vmatpush1.bf16.msra.mxu0 %v8032
      %8077 = vmatprep.subr.bf16.mxu0 0
      %8078 = vmatpush1.bf16.msra.mxu0 %v8033
      %8079 = vmatprep.subr.bf16.mxu0 0
      %8080 = vmatpush1.bf16.msra.mxu0 %v8034
      %8081 = vmatprep.subr.bf16.mxu0 0
      %8082 = vmatpush1.bf16.msra.mxu0 %v8035
      %8083 = vmatprep.subr.bf16.mxu0 0
      %8084 = vmatpush1.bf16.msra.mxu0 %v8036
      %8085 = vmatprep.mubr.bf16.mxu0 %v7372
      %8086 = vmatmul.mubr.bf16.gmra.mrb[0].mxu0 %v7371
      %v8087 = vpop.f32.mrb[0].mxu0
      %v8088 = vadd.f32 0.0, %v8087
      %v8089 = vpop.f32.mrb[0].mxu0
      %v8090 = vpop.f32.mrb[0].mxu0
      %v8091 = vadd.f32 0.0, %v8090
      %v8092 = vpop.f32.mrb[0].mxu0
      %8093 = vmatprep.mubr.bf16.mxu0 %v7374
      %8094 = vmatmul.mubr.bf16.gmra.mrb[0].mxu0 %v7373
      %v8095 = vpop.f32.mrb[0].mxu0
      %v8096 = vadd.f32 0.0, %v8095
      %v8097 = vpop.f32.mrb[0].mxu0
      %v8098 = vpop.f32.mrb[0].mxu0
      %v8099 = vadd.f32 0.0, %v8098
      %v8100 = vpop.f32.mrb[0].mxu0
      %8101 = vdwg.mxu0
      %v8102 = vadd.f32 %v7920, %v8088
      %v8103 = vadd.f32 %v7921, %v8091
      %v8104 = vadd.f32 %v7922, %v8096
      %v8105 = vadd.f32 %v7923, %v8099
      %s8106 = scalar_lea.vmem %s5, 512
      %v8107 = vld [vmem:[%s8106] sm:$0xf]
      %v8108 = vld [vmem:[%s8106 + $0x4] sm:$0xf]
      %v8109 = vld [vmem:[%s8106 + $0x8] sm:$0xf]
      %v8110 = vld [vmem:[%s8106 + $0xc] sm:$0xf]
      %v8111 = vld [vmem:[%s8106 + $0x10] sm:$0xf]
      %v8112 = vld [vmem:[%s8106 + $0x14] sm:$0xf]
      %v8113 = vld [vmem:[%s8106 + $0x18] sm:$0xf]
      %v8114 = vld [vmem:[%s8106 + $0x1c] sm:$0xf]
      %v8115 = vld [vmem:[%s8106 + $0x20] sm:$0xf]
      %v8116 = vld [vmem:[%s8106 + $0x24] sm:$0xf]
      %v8117 = vld [vmem:[%s8106 + $0x28] sm:$0xf]
      %v8118 = vld [vmem:[%s8106 + $0x2c] sm:$0xf]
      %v8119 = vld [vmem:[%s8106 + $0x30] sm:$0xf]
      %v8120 = vld [vmem:[%s8106 + $0x34] sm:$0xf]
      %v8121 = vld [vmem:[%s8106 + $0x38] sm:$0xf]
      %v8122 = vld [vmem:[%s8106 + $0x3c] sm:$0xf]
      %v8123 = vld [vmem:[%s8106 + $0x40] sm:$0xf]
      %v8124 = vld [vmem:[%s8106 + $0x44] sm:$0xf]
      %v8125 = vld [vmem:[%s8106 + $0x48] sm:$0xf]
      %v8126 = vld [vmem:[%s8106 + $0x4c] sm:$0xf]
      %v8127 = vld [vmem:[%s8106 + $0x50] sm:$0xf]
      %v8128 = vld [vmem:[%s8106 + $0x54] sm:$0xf]
      %v8129 = vld [vmem:[%s8106 + $0x58] sm:$0xf]
      %v8130 = vld [vmem:[%s8106 + $0x5c] sm:$0xf]
      %v8131 = vld [vmem:[%s8106 + $0x60] sm:$0xf]
      %v8132 = vld [vmem:[%s8106 + $0x64] sm:$0xf]
      %v8133 = vld [vmem:[%s8106 + $0x68] sm:$0xf]
      %v8134 = vld [vmem:[%s8106 + $0x6c] sm:$0xf]
      %v8135 = vld [vmem:[%s8106 + $0x70] sm:$0xf]
      %v8136 = vld [vmem:[%s8106 + $0x74] sm:$0xf]
      %v8137 = vld [vmem:[%s8106 + $0x78] sm:$0xf]
      %v8138 = vld [vmem:[%s8106 + $0x7c] sm:$0xf]
      %v8171 = vunpack.c.l.b16 %v8107
      %v8172 = vunpack.c.l.b16 %v8108
      %v8173 = vunpack.c.l.b16 %v8109
      %v8174 = vunpack.c.l.b16 %v8110
      %v8175 = vunpack.c.l.b16 %v8111
      %v8176 = vunpack.c.l.b16 %v8112
      %v8177 = vunpack.c.l.b16 %v8113
      %v8178 = vunpack.c.l.b16 %v8114
      %v8179 = vunpack.c.l.b16 %v8115
      %v8180 = vunpack.c.l.b16 %v8116
      %v8181 = vunpack.c.l.b16 %v8117
      %v8182 = vunpack.c.l.b16 %v8118
      %v8183 = vunpack.c.l.b16 %v8119
      %v8184 = vunpack.c.l.b16 %v8120
      %v8185 = vunpack.c.l.b16 %v8121
      %v8186 = vunpack.c.l.b16 %v8122
      %v8187 = vunpack.c.l.b16 %v8123
      %v8188 = vunpack.c.l.b16 %v8124
      %v8189 = vunpack.c.l.b16 %v8125
      %v8190 = vunpack.c.l.b16 %v8126
      %v8191 = vunpack.c.l.b16 %v8127
      %v8192 = vunpack.c.l.b16 %v8128
      %v8193 = vunpack.c.l.b16 %v8129
      %v8194 = vunpack.c.l.b16 %v8130
      %v8195 = vunpack.c.l.b16 %v8131
      %v8196 = vunpack.c.l.b16 %v8132
      %v8197 = vunpack.c.l.b16 %v8133
      %v8198 = vunpack.c.l.b16 %v8134
      %v8199 = vunpack.c.l.b16 %v8135
      %v8200 = vunpack.c.l.b16 %v8136
      %v8201 = vunpack.c.l.b16 %v8137
      %v8202 = vunpack.c.l.b16 %v8138
      %v8203 = vpack.c.b16 %v8172, %v8171
      %v8204 = vpack.c.b16 %v8174, %v8173
      %v8205 = vpack.c.b16 %v8176, %v8175
      %v8206 = vpack.c.b16 %v8178, %v8177
      %v8207 = vpack.c.b16 %v8180, %v8179
      %v8208 = vpack.c.b16 %v8182, %v8181
      %v8209 = vpack.c.b16 %v8184, %v8183
      %v8210 = vpack.c.b16 %v8186, %v8185
      %v8211 = vpack.c.b16 %v8188, %v8187
      %v8212 = vpack.c.b16 %v8190, %v8189
      %v8213 = vpack.c.b16 %v8192, %v8191
      %v8214 = vpack.c.b16 %v8194, %v8193
      %v8215 = vpack.c.b16 %v8196, %v8195
      %v8216 = vpack.c.b16 %v8198, %v8197
      %v8217 = vpack.c.b16 %v8200, %v8199
      %v8218 = vpack.c.b16 %v8202, %v8201
      %8235 = vmatprep.subr.bf16.mxu0 0
      %8236 = vmatpush1.bf16.msra.mxu0 %v8203
      %8237 = vmatprep.subr.bf16.mxu0 0
      %8238 = vmatpush1.bf16.msra.mxu0 %v8204
      %8239 = vmatprep.subr.bf16.mxu0 0
      %8240 = vmatpush1.bf16.msra.mxu0 %v8205
      %8241 = vmatprep.subr.bf16.mxu0 0
      %8242 = vmatpush1.bf16.msra.mxu0 %v8206
      %8243 = vmatprep.subr.bf16.mxu0 0
      %8244 = vmatpush1.bf16.msra.mxu0 %v8207
      %8245 = vmatprep.subr.bf16.mxu0 0
      %8246 = vmatpush1.bf16.msra.mxu0 %v8208
      %8247 = vmatprep.subr.bf16.mxu0 0
      %8248 = vmatpush1.bf16.msra.mxu0 %v8209
      %8249 = vmatprep.subr.bf16.mxu0 0
      %8250 = vmatpush1.bf16.msra.mxu0 %v8210
      %8251 = vmatprep.subr.bf16.mxu0 0
      %8252 = vmatpush1.bf16.msra.mxu0 %v8211
      %8253 = vmatprep.subr.bf16.mxu0 0
      %8254 = vmatpush1.bf16.msra.mxu0 %v8212
      %8255 = vmatprep.subr.bf16.mxu0 0
      %8256 = vmatpush1.bf16.msra.mxu0 %v8213
      %8257 = vmatprep.subr.bf16.mxu0 0
      %8258 = vmatpush1.bf16.msra.mxu0 %v8214
      %8259 = vmatprep.subr.bf16.mxu0 0
      %8260 = vmatpush1.bf16.msra.mxu0 %v8215
      %8261 = vmatprep.subr.bf16.mxu0 0
      %8262 = vmatpush1.bf16.msra.mxu0 %v8216
      %8263 = vmatprep.subr.bf16.mxu0 0
      %8264 = vmatpush1.bf16.msra.mxu0 %v8217
      %8265 = vmatprep.subr.bf16.mxu0 0
      %8266 = vmatpush1.bf16.msra.mxu0 %v8218
      %8267 = vmatprep.mubr.bf16.mxu0 %v7376
      %8268 = vmatmul.mubr.bf16.gmra.mrb[0].mxu0 %v7375
      %v8269 = vpop.f32.mrb[0].mxu0
      %v8270 = vadd.f32 0.0, %v8269
      %v8271 = vpop.f32.mrb[0].mxu0
      %v8272 = vpop.f32.mrb[0].mxu0
      %v8273 = vadd.f32 0.0, %v8272
      %v8274 = vpop.f32.mrb[0].mxu0
      %8275 = vmatprep.mubr.bf16.mxu0 %v7378
      %8276 = vmatmul.mubr.bf16.gmra.mrb[0].mxu0 %v7377
      %v8277 = vpop.f32.mrb[0].mxu0
      %v8278 = vadd.f32 0.0, %v8277
      %v8279 = vpop.f32.mrb[0].mxu0
      %v8280 = vpop.f32.mrb[0].mxu0
      %v8281 = vadd.f32 0.0, %v8280
      %v8282 = vpop.f32.mrb[0].mxu0
      %8283 = vdwg.mxu0
      %v8284 = vadd.f32 %v8102, %v8270
      %v8285 = vadd.f32 %v8103, %v8273
      %v8286 = vadd.f32 %v8104, %v8278
      %v8287 = vadd.f32 %v8105, %v8281
      %s8288 = scalar_lea.vmem %s5, 640
      %v8289 = vld [vmem:[%s8288] sm:$0xf]
      %v8290 = vld [vmem:[%s8288 + $0x4] sm:$0xf]
      %v8291 = vld [vmem:[%s8288 + $0x8] sm:$0xf]
      %v8292 = vld [vmem:[%s8288 + $0xc] sm:$0xf]
      %v8293 = vld [vmem:[%s8288 + $0x10] sm:$0xf]
      %v8294 = vld [vmem:[%s8288 + $0x14] sm:$0xf]
      %v8295 = vld [vmem:[%s8288 + $0x18] sm:$0xf]
      %v8296 = vld [vmem:[%s8288 + $0x1c] sm:$0xf]
      %v8297 = vld [vmem:[%s8288 + $0x20] sm:$0xf]
      %v8298 = vld [vmem:[%s8288 + $0x24] sm:$0xf]
      %v8299 = vld [vmem:[%s8288 + $0x28] sm:$0xf]
      %v8300 = vld [vmem:[%s8288 + $0x2c] sm:$0xf]
      %v8301 = vld [vmem:[%s8288 + $0x30] sm:$0xf]
      %v8302 = vld [vmem:[%s8288 + $0x34] sm:$0xf]
      %v8303 = vld [vmem:[%s8288 + $0x38] sm:$0xf]
      %v8304 = vld [vmem:[%s8288 + $0x3c] sm:$0xf]
      %v8305 = vld [vmem:[%s8288 + $0x40] sm:$0xf]
      %v8306 = vld [vmem:[%s8288 + $0x44] sm:$0xf]
      %v8307 = vld [vmem:[%s8288 + $0x48] sm:$0xf]
      %v8308 = vld [vmem:[%s8288 + $0x4c] sm:$0xf]
      %v8309 = vld [vmem:[%s8288 + $0x50] sm:$0xf]
      %v8310 = vld [vmem:[%s8288 + $0x54] sm:$0xf]
      %v8311 = vld [vmem:[%s8288 + $0x58] sm:$0xf]
      %v8312 = vld [vmem:[%s8288 + $0x5c] sm:$0xf]
      %v8313 = vld [vmem:[%s8288 + $0x60] sm:$0xf]
      %v8314 = vld [vmem:[%s8288 + $0x64] sm:$0xf]
      %v8315 = vld [vmem:[%s8288 + $0x68] sm:$0xf]
      %v8316 = vld [vmem:[%s8288 + $0x6c] sm:$0xf]
      %v8317 = vld [vmem:[%s8288 + $0x70] sm:$0xf]
      %v8318 = vld [vmem:[%s8288 + $0x74] sm:$0xf]
      %v8319 = vld [vmem:[%s8288 + $0x78] sm:$0xf]
      %v8320 = vld [vmem:[%s8288 + $0x7c] sm:$0xf]
      %v8353 = vunpack.c.l.b16 %v8289
      %v8354 = vunpack.c.l.b16 %v8290
      %v8355 = vunpack.c.l.b16 %v8291
      %v8356 = vunpack.c.l.b16 %v8292
      %v8357 = vunpack.c.l.b16 %v8293
      %v8358 = vunpack.c.l.b16 %v8294
      %v8359 = vunpack.c.l.b16 %v8295
      %v8360 = vunpack.c.l.b16 %v8296
      %v8361 = vunpack.c.l.b16 %v8297
      %v8362 = vunpack.c.l.b16 %v8298
      %v8363 = vunpack.c.l.b16 %v8299
      %v8364 = vunpack.c.l.b16 %v8300
      %v8365 = vunpack.c.l.b16 %v8301
      %v8366 = vunpack.c.l.b16 %v8302
      %v8367 = vunpack.c.l.b16 %v8303
      %v8368 = vunpack.c.l.b16 %v8304
      %v8369 = vunpack.c.l.b16 %v8305
      %v8370 = vunpack.c.l.b16 %v8306
      %v8371 = vunpack.c.l.b16 %v8307
      %v8372 = vunpack.c.l.b16 %v8308
      %v8373 = vunpack.c.l.b16 %v8309
      %v8374 = vunpack.c.l.b16 %v8310
      %v8375 = vunpack.c.l.b16 %v8311
      %v8376 = vunpack.c.l.b16 %v8312
      %v8377 = vunpack.c.l.b16 %v8313
      %v8378 = vunpack.c.l.b16 %v8314
      %v8379 = vunpack.c.l.b16 %v8315
      %v8380 = vunpack.c.l.b16 %v8316
      %v8381 = vunpack.c.l.b16 %v8317
      %v8382 = vunpack.c.l.b16 %v8318
      %v8383 = vunpack.c.l.b16 %v8319
      %v8384 = vunpack.c.l.b16 %v8320
      %v8385 = vpack.c.b16 %v8354, %v8353
      %v8386 = vpack.c.b16 %v8356, %v8355
      %v8387 = vpack.c.b16 %v8358, %v8357
      %v8388 = vpack.c.b16 %v8360, %v8359
      %v8389 = vpack.c.b16 %v8362, %v8361
      %v8390 = vpack.c.b16 %v8364, %v8363
      %v8391 = vpack.c.b16 %v8366, %v8365
      %v8392 = vpack.c.b16 %v8368, %v8367
      %v8393 = vpack.c.b16 %v8370, %v8369
      %v8394 = vpack.c.b16 %v8372, %v8371
      %v8395 = vpack.c.b16 %v8374, %v8373
      %v8396 = vpack.c.b16 %v8376, %v8375
      %v8397 = vpack.c.b16 %v8378, %v8377
      %v8398 = vpack.c.b16 %v8380, %v8379
      %v8399 = vpack.c.b16 %v8382, %v8381
      %v8400 = vpack.c.b16 %v8384, %v8383
      %8417 = vmatprep.subr.bf16.mxu0 0
      %8418 = vmatpush1.bf16.msra.mxu0 %v8385
      %8419 = vmatprep.subr.bf16.mxu0 0
      %8420 = vmatpush1.bf16.msra.mxu0 %v8386
      %8421 = vmatprep.subr.bf16.mxu0 0
      %8422 = vmatpush1.bf16.msra.mxu0 %v8387
      %8423 = vmatprep.subr.bf16.mxu0 0
      %8424 = vmatpush1.bf16.msra.mxu0 %v8388
      %8425 = vmatprep.subr.bf16.mxu0 0
      %8426 = vmatpush1.bf16.msra.mxu0 %v8389
      %8427 = vmatprep.subr.bf16.mxu0 0
      %8428 = vmatpush1.bf16.msra.mxu0 %v8390
      %8429 = vmatprep.subr.bf16.mxu0 0
      %8430 = vmatpush1.bf16.msra.mxu0 %v8391
      %8431 = vmatprep.subr.bf16.mxu0 0
      %8432 = vmatpush1.bf16.msra.mxu0 %v8392
      %8433 = vmatprep.subr.bf16.mxu0 0
      %8434 = vmatpush1.bf16.msra.mxu0 %v8393
      %8435 = vmatprep.subr.bf16.mxu0 0
      %8436 = vmatpush1.bf16.msra.mxu0 %v8394
      %8437 = vmatprep.subr.bf16.mxu0 0
      %8438 = vmatpush1.bf16.msra.mxu0 %v8395
      %8439 = vmatprep.subr.bf16.mxu0 0
      %8440 = vmatpush1.bf16.msra.mxu0 %v8396
      %8441 = vmatprep.subr.bf16.mxu0 0
      %8442 = vmatpush1.bf16.msra.mxu0 %v8397
      %8443 = vmatprep.subr.bf16.mxu0 0
      %8444 = vmatpush1.bf16.msra.mxu0 %v8398
      %8445 = vmatprep.subr.bf16.mxu0 0
      %8446 = vmatpush1.bf16.msra.mxu0 %v8399
      %8447 = vmatprep.subr.bf16.mxu0 0
      %8448 = vmatpush1.bf16.msra.mxu0 %v8400
      %8449 = vmatprep.mubr.bf16.mxu0 %v7380
      %8450 = vmatmul.mubr.bf16.gmra.mrb[0].mxu0 %v7379
      %v8451 = vpop.f32.mrb[0].mxu0
      %v8452 = vadd.f32 0.0, %v8451
      %v8453 = vpop.f32.mrb[0].mxu0
      %v8454 = vpop.f32.mrb[0].mxu0
      %v8455 = vadd.f32 0.0, %v8454
      %v8456 = vpop.f32.mrb[0].mxu0
      %8457 = vmatprep.mubr.bf16.mxu0 %v7382
      %8458 = vmatmul.mubr.bf16.gmra.mrb[0].mxu0 %v7381
      %v8459 = vpop.f32.mrb[0].mxu0
      %v8460 = vadd.f32 0.0, %v8459
      %v8461 = vpop.f32.mrb[0].mxu0
      %v8462 = vpop.f32.mrb[0].mxu0
      %v8463 = vadd.f32 0.0, %v8462
      %v8464 = vpop.f32.mrb[0].mxu0
      %8465 = vdwg.mxu0
      %v8466 = vadd.f32 %v8284, %v8452
      %v8467 = vadd.f32 %v8285, %v8455
      %v8468 = vadd.f32 %v8286, %v8460
      %v8469 = vadd.f32 %v8287, %v8463
      %s8470 = scalar_lea.vmem %s5, 768
      %v8471 = vld [vmem:[%s8470] sm:$0xf]
      %v8472 = vld [vmem:[%s8470 + $0x4] sm:$0xf]
      %v8473 = vld [vmem:[%s8470 + $0x8] sm:$0xf]
      %v8474 = vld [vmem:[%s8470 + $0xc] sm:$0xf]
      %v8475 = vld [vmem:[%s8470 + $0x10] sm:$0xf]
      %v8476 = vld [vmem:[%s8470 + $0x14] sm:$0xf]
      %v8477 = vld [vmem:[%s8470 + $0x18] sm:$0xf]
      %v8478 = vld [vmem:[%s8470 + $0x1c] sm:$0xf]
      %v8479 = vld [vmem:[%s8470 + $0x20] sm:$0xf]
      %v8480 = vld [vmem:[%s8470 + $0x24] sm:$0xf]
      %v8481 = vld [vmem:[%s8470 + $0x28] sm:$0xf]
      %v8482 = vld [vmem:[%s8470 + $0x2c] sm:$0xf]
      %v8483 = vld [vmem:[%s8470 + $0x30] sm:$0xf]
      %v8484 = vld [vmem:[%s8470 + $0x34] sm:$0xf]
      %v8485 = vld [vmem:[%s8470 + $0x38] sm:$0xf]
      %v8486 = vld [vmem:[%s8470 + $0x3c] sm:$0xf]
      %v8487 = vld [vmem:[%s8470 + $0x40] sm:$0xf]
      %v8488 = vld [vmem:[%s8470 + $0x44] sm:$0xf]
      %v8489 = vld [vmem:[%s8470 + $0x48] sm:$0xf]
      %v8490 = vld [vmem:[%s8470 + $0x4c] sm:$0xf]
      %v8491 = vld [vmem:[%s8470 + $0x50] sm:$0xf]
      %v8492 = vld [vmem:[%s8470 + $0x54] sm:$0xf]
      %v8493 = vld [vmem:[%s8470 + $0x58] sm:$0xf]
      %v8494 = vld [vmem:[%s8470 + $0x5c] sm:$0xf]
      %v8495 = vld [vmem:[%s8470 + $0x60] sm:$0xf]
      %v8496 = vld [vmem:[%s8470 + $0x64] sm:$0xf]
      %v8497 = vld [vmem:[%s8470 + $0x68] sm:$0xf]
      %v8498 = vld [vmem:[%s8470 + $0x6c] sm:$0xf]
      %v8499 = vld [vmem:[%s8470 + $0x70] sm:$0xf]
      %v8500 = vld [vmem:[%s8470 + $0x74] sm:$0xf]
      %v8501 = vld [vmem:[%s8470 + $0x78] sm:$0xf]
      %v8502 = vld [vmem:[%s8470 + $0x7c] sm:$0xf]
      %v8535 = vunpack.c.l.b16 %v8471
      %v8536 = vunpack.c.l.b16 %v8472
      %v8537 = vunpack.c.l.b16 %v8473
      %v8538 = vunpack.c.l.b16 %v8474
      %v8539 = vunpack.c.l.b16 %v8475
      %v8540 = vunpack.c.l.b16 %v8476
      %v8541 = vunpack.c.l.b16 %v8477
      %v8542 = vunpack.c.l.b16 %v8478
      %v8543 = vunpack.c.l.b16 %v8479
      %v8544 = vunpack.c.l.b16 %v8480
      %v8545 = vunpack.c.l.b16 %v8481
      %v8546 = vunpack.c.l.b16 %v8482
      %v8547 = vunpack.c.l.b16 %v8483
      %v8548 = vunpack.c.l.b16 %v8484
      %v8549 = vunpack.c.l.b16 %v8485
      %v8550 = vunpack.c.l.b16 %v8486
      %v8551 = vunpack.c.l.b16 %v8487
      %v8552 = vunpack.c.l.b16 %v8488
      %v8553 = vunpack.c.l.b16 %v8489
      %v8554 = vunpack.c.l.b16 %v8490
      %v8555 = vunpack.c.l.b16 %v8491
      %v8556 = vunpack.c.l.b16 %v8492
      %v8557 = vunpack.c.l.b16 %v8493
      %v8558 = vunpack.c.l.b16 %v8494
      %v8559 = vunpack.c.l.b16 %v8495
      %v8560 = vunpack.c.l.b16 %v8496
      %v8561 = vunpack.c.l.b16 %v8497
      %v8562 = vunpack.c.l.b16 %v8498
      %v8563 = vunpack.c.l.b16 %v8499
      %v8564 = vunpack.c.l.b16 %v8500
      %v8565 = vunpack.c.l.b16 %v8501
      %v8566 = vunpack.c.l.b16 %v8502
      %v8567 = vpack.c.b16 %v8536, %v8535
      %v8568 = vpack.c.b16 %v8538, %v8537
      %v8569 = vpack.c.b16 %v8540, %v8539
      %v8570 = vpack.c.b16 %v8542, %v8541
      %v8571 = vpack.c.b16 %v8544, %v8543
      %v8572 = vpack.c.b16 %v8546, %v8545
      %v8573 = vpack.c.b16 %v8548, %v8547
      %v8574 = vpack.c.b16 %v8550, %v8549
      %v8575 = vpack.c.b16 %v8552, %v8551
      %v8576 = vpack.c.b16 %v8554, %v8553
      %v8577 = vpack.c.b16 %v8556, %v8555
      %v8578 = vpack.c.b16 %v8558, %v8557
      %v8579 = vpack.c.b16 %v8560, %v8559
      %v8580 = vpack.c.b16 %v8562, %v8561
      %v8581 = vpack.c.b16 %v8564, %v8563
      %v8582 = vpack.c.b16 %v8566, %v8565
      %8599 = vmatprep.subr.bf16.mxu0 0
      %8600 = vmatpush1.bf16.msra.mxu0 %v8567
      %8601 = vmatprep.subr.bf16.mxu0 0
      %8602 = vmatpush1.bf16.msra.mxu0 %v8568
      %8603 = vmatprep.subr.bf16.mxu0 0
      %8604 = vmatpush1.bf16.msra.mxu0 %v8569
      %8605 = vmatprep.subr.bf16.mxu0 0
      %8606 = vmatpush1.bf16.msra.mxu0 %v8570
      %8607 = vmatprep.subr.bf16.mxu0 0
      %8608 = vmatpush1.bf16.msra.mxu0 %v8571
      %8609 = vmatprep.subr.bf16.mxu0 0
      %8610 = vmatpush1.bf16.msra.mxu0 %v8572
      %8611 = vmatprep.subr.bf16.mxu0 0
      %8612 = vmatpush1.bf16.msra.mxu0 %v8573
      %8613 = vmatprep.subr.bf16.mxu0 0
      %8614 = vmatpush1.bf16.msra.mxu0 %v8574
      %8615 = vmatprep.subr.bf16.mxu0 0
      %8616 = vmatpush1.bf16.msra.mxu0 %v8575
      %8617 = vmatprep.subr.bf16.mxu0 0
      %8618 = vmatpush1.bf16.msra.mxu0 %v8576
      %8619 = vmatprep.subr.bf16.mxu0 0
      %8620 = vmatpush1.bf16.msra.mxu0 %v8577
      %8621 = vmatprep.subr.bf16.mxu0 0
      %8622 = vmatpush1.bf16.msra.mxu0 %v8578
      %8623 = vmatprep.subr.bf16.mxu0 0
      %8624 = vmatpush1.bf16.msra.mxu0 %v8579
      %8625 = vmatprep.subr.bf16.mxu0 0
      %8626 = vmatpush1.bf16.msra.mxu0 %v8580
      %8627 = vmatprep.subr.bf16.mxu0 0
      %8628 = vmatpush1.bf16.msra.mxu0 %v8581
      %8629 = vmatprep.subr.bf16.mxu0 0
      %8630 = vmatpush1.bf16.msra.mxu0 %v8582
      %8631 = vmatprep.mubr.bf16.mxu0 %v7384
      %8632 = vmatmul.mubr.bf16.gmra.mrb[0].mxu0 %v7383
      %v8633 = vpop.f32.mrb[0].mxu0
      %v8634 = vadd.f32 0.0, %v8633
      %v8635 = vpop.f32.mrb[0].mxu0
      %v8636 = vpop.f32.mrb[0].mxu0
      %v8637 = vadd.f32 0.0, %v8636
      %v8638 = vpop.f32.mrb[0].mxu0
      %8639 = vmatprep.mubr.bf16.mxu0 %v7386
      %8640 = vmatmul.mubr.bf16.gmra.mrb[0].mxu0 %v7385
      %v8641 = vpop.f32.mrb[0].mxu0
      %v8642 = vadd.f32 0.0, %v8641
      %v8643 = vpop.f32.mrb[0].mxu0
      %v8644 = vpop.f32.mrb[0].mxu0
      %v8645 = vadd.f32 0.0, %v8644
      %v8646 = vpop.f32.mrb[0].mxu0
      %8647 = vdwg.mxu0
      %v8648 = vadd.f32 %v8466, %v8634
      %v8649 = vadd.f32 %v8467, %v8637
      %v8650 = vadd.f32 %v8468, %v8642
      %v8651 = vadd.f32 %v8469, %v8645
      %v8652 = vld [vmem:[%s6] sm:$0x1]
      %v8654 = vlaneseq
      %v8655 = vshrl.u32 %v8654, 7
      %v8656 = vsub.s32 0, %v8655
      %v8657 = vrot.slane %v8652, %v8656
      %v8659 = vadd.f32 %v8648, %v8657
      %v8660 = vadd.f32 %v8649, %v8657
      %v8661 = vadd.f32 %v8650, %v8657
      %v8662 = vadd.f32 %v8651, %v8657
      %v8663 = vmax.f32 %v8659, 0.0
      %v8664 = vmax.f32 %v8660, 0.0
      %v8665 = vmax.f32 %v8661, 0.0
      %v8666 = vmax.f32 %v8662, 0.0
      %v8667 = vpack.c.bf16 %v8664, %v8663
      %v8668 = vpack.c.bf16 %v8666, %v8665
      %v8669 = vld [vmem:[%s7] sm:$0xf]
      %v8670 = vld [vmem:[%s7 + $0x4] sm:$0xf]
      %v8671 = vld [vmem:[%s7 + $0x8] sm:$0xf]
      %v8672 = vld [vmem:[%s7 + $0xc] sm:$0xf]
      %v8673 = vld [vmem:[%s7 + $0x10] sm:$0xf]
      %v8674 = vld [vmem:[%s7 + $0x14] sm:$0xf]
      %v8675 = vld [vmem:[%s7 + $0x18] sm:$0xf]
      %v8676 = vld [vmem:[%s7 + $0x1c] sm:$0xf]
      %v8677 = vld [vmem:[%s7 + $0x20] sm:$0xf]
      %v8678 = vld [vmem:[%s7 + $0x24] sm:$0xf]
      %v8679 = vld [vmem:[%s7 + $0x28] sm:$0xf]
      %v8680 = vld [vmem:[%s7 + $0x2c] sm:$0xf]
      %v8681 = vld [vmem:[%s7 + $0x30] sm:$0xf]
      %v8682 = vld [vmem:[%s7 + $0x34] sm:$0xf]
      %v8683 = vld [vmem:[%s7 + $0x38] sm:$0xf]
      %v8684 = vld [vmem:[%s7 + $0x3c] sm:$0xf]
      %v8685 = vld [vmem:[%s8] sm:$0x1]
      %v8687 = vlaneseq
      %v8688 = vshrl.u32 %v8687, 7
      %v8689 = vsub.s32 0, %v8688
      %v8690 = vrot.slane %v8685, %v8689
      %v8708 = vunpack.c.l.b16 %v8669
      %v8709 = vunpack.c.l.b16 %v8670
      %v8710 = vunpack.c.l.b16 %v8671
      %v8711 = vunpack.c.l.b16 %v8672
      %v8712 = vunpack.c.l.b16 %v8673
      %v8713 = vunpack.c.l.b16 %v8674
      %v8714 = vunpack.c.l.b16 %v8675
      %v8715 = vunpack.c.l.b16 %v8676
      %v8716 = vunpack.c.l.b16 %v8677
      %v8717 = vunpack.c.l.b16 %v8678
      %v8718 = vunpack.c.l.b16 %v8679
      %v8719 = vunpack.c.l.b16 %v8680
      %v8720 = vunpack.c.l.b16 %v8681
      %v8721 = vunpack.c.l.b16 %v8682
      %v8722 = vunpack.c.l.b16 %v8683
      %v8723 = vunpack.c.l.b16 %v8684
      %v8724 = vpack.c.b16 %v8709, %v8708
      %v8725 = vpack.c.b16 %v8711, %v8710
      %v8726 = vpack.c.b16 %v8713, %v8712
      %v8727 = vpack.c.b16 %v8715, %v8714
      %v8728 = vpack.c.b16 %v8717, %v8716
      %v8729 = vpack.c.b16 %v8719, %v8718
      %v8730 = vpack.c.b16 %v8721, %v8720
      %v8731 = vpack.c.b16 %v8723, %v8722
      %8740 = vmatprep.subr.bf16.mxu0 0
      %8741 = vmatpush1.bf16.msra.mxu0 %v8724
      %8742 = vmatprep.subr.bf16.mxu0 0
      %8743 = vmatpush1.bf16.msra.mxu0 %v8725
      %8744 = vmatprep.subr.bf16.mxu0 0
      %8745 = vmatpush1.bf16.msra.mxu0 %v8726
      %8746 = vmatprep.subr.bf16.mxu0 0
      %8747 = vmatpush1.bf16.msra.mxu0 %v8727
      %8748 = vmatprep.subr.bf16.mxu0 0
      %8749 = vmatpush1.bf16.msra.mxu0 %v8728
      %8750 = vmatprep.subr.bf16.mxu0 0
      %8751 = vmatpush1.bf16.msra.mxu0 %v8729
      %8752 = vmatprep.subr.bf16.mxu0 0
      %8753 = vmatpush1.bf16.msra.mxu0 %v8730
      %8754 = vmatprep.subr.bf16.mxu0 0
      %8755 = vmatpush1.bf16.msra.mxu0 %v8731
      %8756 = vmatprep.subr.bf16.mxu0 0
      %8757 = vmatpush1.bf16.msra.mxu0 0
      %8758 = vmatprep.subr.bf16.mxu0 0
      %8759 = vmatpush1.bf16.msra.mxu0 0
      %8760 = vmatprep.subr.bf16.mxu0 0
      %8761 = vmatpush1.bf16.msra.mxu0 0
      %8762 = vmatprep.subr.bf16.mxu0 0
      %8763 = vmatpush1.bf16.msra.mxu0 0
      %8764 = vmatprep.subr.bf16.mxu0 0
      %8765 = vmatpush1.bf16.msra.mxu0 0
      %8766 = vmatprep.subr.bf16.mxu0 0
      %8767 = vmatpush1.bf16.msra.mxu0 0
      %8768 = vmatprep.subr.bf16.mxu0 0
      %8769 = vmatpush1.bf16.msra.mxu0 0
      %8770 = vmatprep.subr.bf16.mxu0 0
      %8771 = vmatpush1.bf16.msra.mxu0 0
      %8772 = vmatprep.mubr.bf16.mxu0 0
      %8773 = vmatmul.mubr.bf16.gmra.mrb[0].mxu0 %v8667
      %v8774 = vpop.f32.mrb[0].mxu0
      %v8775 = vadd.f32 %v8690, %v8774
      %v8776 = vpop.f32.mrb[0].mxu0
      %v8777 = vpop.f32.mrb[0].mxu0
      %v8778 = vadd.f32 %v8690, %v8777
      %v8779 = vpop.f32.mrb[0].mxu0
      %8780 = vmatprep.mubr.bf16.mxu0 0
      %8781 = vmatmul.mubr.bf16.gmra.mrb[0].mxu0 %v8668
      %v8782 = vpop.f32.mrb[0].mxu0
      %v8783 = vadd.f32 %v8690, %v8782
      %v8784 = vpop.f32.mrb[0].mxu0
      %v8785 = vpop.f32.mrb[0].mxu0
      %v8786 = vadd.f32 %v8690, %v8785
      %v8787 = vpop.f32.mrb[0].mxu0
      %8788 = vdwg.mxu0
      %8789 = vst [vmem:[%s332] sm:$0xff] %v8775
      %8790 = vst [vmem:[%s332 + $0x8] sm:$0xff] %v8778
      %8791 = vst [vmem:[%s332 + $0x10] sm:$0xff] %v8783
      %8792 = vst [vmem:[%s332 + $0x18] sm:$0xff] %v8786
      %s8793 = smul.u32 4, %s20
      %p8794 = scmp.lt.s32.totalorder %s8793, 7
      %s8795 = scalar_select %p8794, %s8793, 7
      %s8796 = smul.addr %s8795, 8
      %s8797 = scalar_lea.vmem %s9, %s8796
      // Predicated region
      $region57: #{simple_cnn_forward.1} parent=55 // pred_check
        %p8798 = pneg %p232
      $region58: #{simple_cnn_forward.1} parent=55 // pred_check_branch
        %8800 = sbr.rel (%p8798) target = $region60
      $region59: #{simple_cnn_forward.1} parent=55 // pred_region
        %s8801 = smul.u32 4, %s20
      $region60: #{simple_cnn_forward.1} parent=55 // pred_fallthru
        _
    $region56: #{simple_cnn_forward.1} parent=5 // pred_fallthru
      _
    %p8802 = scmp.le.s32.totalorder 2, %s15
    // Predicated region
    $region61: #{simple_cnn_forward.1} parent=5 // pred_check
      %p8803 = pneg %p8802
    $region62: #{simple_cnn_forward.1} parent=5 // pred_check_branch
      %8805 = sbr.rel (%p8803) target = $region64
    $region63: #{simple_cnn_forward.1} parent=5 // pred_region
      %s8806 = ssub.s32 %s15, 2
      // Predicated region
      $region65: #{simple_cnn_forward.1} parent=63 // pred_check
        %p8807 = pneg %p238
      $region66: #{simple_cnn_forward.1} parent=63 // pred_check_branch
        %8809 = sbr.rel (%p8807) target = $region68
      $region67: #{simple_cnn_forward.1} parent=63 // pred_region
        %s8810 = smul.u32 4, %s21
        %p8811 = scmp.lt.s32.totalorder %s8810, 7
        %s8812 = scalar_select %p8811, %s8810, 7
        %s8813 = smul.addr %s8812, 8
        %s8814 = scalar_lea.vmem %s9, %s8813
      $region68: #{simple_cnn_forward.1} parent=63 // pred_fallthru
        _
    $region64: #{simple_cnn_forward.1} parent=5 // pred_fallthru
      _
  $region6: #{simple_cnn_forward.1} parent=0 // loop_footer
    %s19 = sadd.s32 1, %s15
  $region7: #{simple_cnn_forward.1} parent=0 // loop_footer_branch
    %14 = sbr.rel target = $region3
  $region8: #{simple_cnn_forward.1} parent=0 // loop_exit
    _

</llo_original>
